<compile_context>
chip_gen: v7x
topology: tpu7x:2x2x1
jax: 0.10.0
libtpu: 0.0.40
codegen_flags: <defaults>
</compile_context>

<pallas_src>
import functools

import jax
import jax.numpy as jnp
from jax.experimental import pallas as pl
from jax.experimental.pallas import tpu as pltpu

EPS = 1e-5
C_REAL = 96      # model channels
C_PAD = 128      # lane-dense padded channels


# ----------------------------------------------------------------------------
# In-kernel 1-D conv along W on a row-flattened activation.
#   a   : (M, w_in*c)  bf16   (rows = B*H, cols = W*C, C minor)
#   wts : (k*c, c)     bf16   (tap-major rows, i.e. HWIO reshape)
#   sc/sh : (1, c)     f32    folded BN scale / shift
# Each output position is ONE matmul over the contiguous valid-tap window
# (lane-aligned 128-multiple slices), epilogue in f32, ReLU.
# ----------------------------------------------------------------------------
def _conv1xk_flat(a, wts, sc, sh, *, k, c, w_in, stride=2):
    pad = k // 2
    w_out = (w_in + 2 * pad - k) // stride + 1
    outs = []
    for wo in range(w_out):
        base = wo * stride - pad
        t_lo = max(0, -base)                 # first valid tap
        t_hi = min(k, w_in - base)           # one past last valid tap
        xs = a[:, (base + t_lo) * c:(base + t_hi) * c]
        ws = wts[t_lo * c:t_hi * c, :]
        y = jnp.dot(xs, ws, preferred_element_type=jnp.float32)
        outs.append(jnp.maximum(y * sc + sh, 0.0))
    return outs[0] if w_out == 1 else jnp.concatenate(outs, axis=1)


# ----------------------------------------------------------------------------
# K1: plain matmul + folded-BN + ReLU (backbone stand-in after JAX-side im2col)
# ----------------------------------------------------------------------------
def _mm_bn_relu_kernel(x_ref, w_ref, s_ref, b_ref, o_ref):
    y = jnp.dot(x_ref[...], w_ref[...], preferred_element_type=jnp.float32)
    o_ref[...] = jnp.maximum(y * s_ref[...] + b_ref[...], 0.0).astype(o_ref.dtype)


def _front_conv(x2, w, s, b):
    M, K = x2.shape
    N = w.shape[1]
    # full-extent K/N blocks; split M in two only to give >=2 parallel grid
    # steps (keeps both v7x TensorCores busy); M//2 = 256 also fills MXU rows.
    TM = M // 2 if (M % 2 == 0 and (M // 2) % 8 == 0 and M >= 16) else M
    return pl.pallas_call(
        _mm_bn_relu_kernel,
        out_shape=jax.ShapeDtypeStruct((M, N), jnp.bfloat16),
        grid_spec=pltpu.PrefetchScalarGridSpec(
            num_scalar_prefetch=0,
            grid=(M // TM,),
            in_specs=[
                pl.BlockSpec((TM, K), lambda m: (m, 0)),
                pl.BlockSpec((K, N), lambda m: (0, 0)),
                pl.BlockSpec((1, N), lambda m: (0, 0)),
                pl.BlockSpec((1, N), lambda m: (0, 0)),
            ],
            out_specs=pl.BlockSpec((TM, N), lambda m: (m, 0))),
        compiler_params=pltpu.CompilerParams(dimension_semantics=("parallel",)),
    )(x2.astype(jnp.bfloat16), w, s, b)


# ----------------------------------------------------------------------------
# K2: the 3 shared HRM blocks fused (in-kernel conv, intermediates on-chip)
# ----------------------------------------------------------------------------
def _shared_stack_kernel(x_ref, w_ref, s_ref, b_ref, o_ref, *, c, w_in, n_layers):
    a = x_ref[...]                                   # (TM, w_in*c) bf16
    w_cur = w_in
    for l in range(n_layers):
        a = _conv1xk_flat(a, w_ref[l], s_ref[l], b_ref[l],
                          k=3, c=c, w_in=w_cur).astype(jnp.bfloat16)
        w_cur = (w_cur - 1) // 2 + 1                 # stride-2 width halving
    o_ref[...] = a                                   # (TM, w_cur*c) bf16, lane-dense


def _shared_stack(xf, w, s, b, *, w_in):
    M, KC = xf.shape
    n_layers = w.shape[0]
    w_out = w_in >> n_layers
    TM = M // 2 if (M % 2 == 0 and (M // 2) % 8 == 0) else M   # 2 parallel steps
    kernel = functools.partial(_shared_stack_kernel, c=C_PAD, w_in=w_in,
                               n_layers=n_layers)
    return pl.pallas_call(
        kernel,
        out_shape=jax.ShapeDtypeStruct((M, w_out * C_PAD), jnp.bfloat16),
        grid_spec=pltpu.PrefetchScalarGridSpec(
            num_scalar_prefetch=0,
            grid=(M // TM,),
            in_specs=[
                pl.BlockSpec((TM, KC), lambda m: (m, 0)),
                pl.BlockSpec(w.shape, lambda m: (0, 0, 0)),
                pl.BlockSpec(s.shape, lambda m: (0, 0, 0)),
                pl.BlockSpec(b.shape, lambda m: (0, 0, 0)),
            ],
            out_specs=pl.BlockSpec((TM, w_out * C_PAD), lambda m: (m, 0))),
        compiler_params=pltpu.CompilerParams(dimension_semantics=("parallel",)),
    )(xf, w, s, b)


# ----------------------------------------------------------------------------
# K3: one branch end-to-end (5 HRM convs + vertex head + row head), grid=(G,)
# ----------------------------------------------------------------------------
def _branch_kernel(x_ref, wc3_ref, wc1_ref, cs_ref, cb_ref,
                   v1_ref, v1s_ref, v1b_ref, v2_ref, v2b_ref,
                   r1_ref, r1s_ref, r1b_ref, r2_ref, r2b_ref,
                   v_o_ref, r_o_ref, *, c, w_in):
    a = x_ref[...]                                   # (M, w_in*c) bf16, same for all g
    w_cur = w_in
    for l in range(4):                               # four (1,3)/s2 HRM stand-ins
        a = _conv1xk_flat(a, wc3_ref[0, l], cs_ref[0, l], cb_ref[0, l],
                          k=3, c=c, w_in=w_cur).astype(jnp.bfloat16)
        w_cur = (w_cur - 1) // 2 + 1
    # fifth HRM stand-in, kernel size 1
    a = _conv1xk_flat(a, wc1_ref[0], cs_ref[0, 4], cb_ref[0, 4],
                      k=1, c=c, w_in=w_cur).astype(jnp.bfloat16)
    # width has collapsed to 1 -> the 1x1-conv heads are plain row matmuls.
    # (bf16 intermediates into the MXU, f32 accumulate/epilogue, f32 outputs.)
    hv = jnp.maximum(jnp.dot(a, v1_ref[0], preferred_element_type=jnp.float32)
                     * v1s_ref[0] + v1b_ref[0], 0.0).astype(jnp.bfloat16)
    v_o_ref[0] = (jnp.dot(hv, v2_ref[0], preferred_element_type=jnp.float32)
                  + v2b_ref[0])                      # (M, 128): real v in lane 0
    hr = jnp.maximum(jnp.dot(a, r1_ref[0], preferred_element_type=jnp.float32)
                     * r1s_ref[0] + r1b_ref[0], 0.0).astype(jnp.bfloat16)
    r_o_ref[0] = (jnp.dot(hr, r2_ref[0], preferred_element_type=jnp.float32)
                  + r2b_ref[0])                      # (M, 256)


def _branch_pipeline(xf, p, *, w_in):
    M = xf.shape[0]
    G = p['br_wc3'].shape[0]
    n_row = p['r2_w'].shape[-1]
    w = w_in
    for _ in range(4):
        w = (w - 1) // 2 + 1
    assert w == 1, "branch heads assume the width collapses to 1"

    def gspec(arr):      # full-extent per-group block, indexed by g
        nz = (0,) * (arr.ndim - 1)
        return pl.BlockSpec((1,) + arr.shape[1:], lambda g, nz=nz: (g,) + nz)

    kernel = functools.partial(_branch_kernel, c=C_PAD, w_in=w_in)
    v, r = pl.pallas_call(
        kernel,
        out_shape=(jax.ShapeDtypeStruct((G, M, 128), jnp.float32),
                   jax.ShapeDtypeStruct((G, M, n_row), jnp.float32)),
        grid_spec=pltpu.PrefetchScalarGridSpec(
            num_scalar_prefetch=0,
            grid=(G,),
            in_specs=[
                # shared activation: index_map ignores g -> no HBM broadcast copy
                pl.BlockSpec((M, w_in * C_PAD), lambda g: (0, 0)),
                gspec(p['br_wc3']), gspec(p['br_wc1']),
                gspec(p['br_cs']), gspec(p['br_cb']),
                gspec(p['v1_w']), gspec(p['v1_s']), gspec(p['v1_b']),
                gspec(p['v2_w']), gspec(p['v2_b']),
                gspec(p['r1_w']), gspec(p['r1_s']), gspec(p['r1_b']),
                gspec(p['r2_w']), gspec(p['r2_b']),
            ],
            out_specs=[pl.BlockSpec((1, M, 128), lambda g: (g, 0, 0)),
                       pl.BlockSpec((1, M, n_row), lambda g: (g, 0, 0))]),
        compiler_params=pltpu.CompilerParams(dimension_semantics=("parallel",)),
    )(xf, p['br_wc3'], p['br_wc1'], p['br_cs'], p['br_cb'],
      p['v1_w'], p['v1_s'], p['v1_b'], p['v2_w'], p['v2_b'],
      p['r1_w'], p['r1_s'], p['r1_b'], p['r2_w'], p['r2_b'])
    return v, r


# ----------------------------------------------------------------------------
# JAX-side im2col, used only for the 3x3 backbone stand-in (tiny patch tensor).
# TODO(synk): 2-D spatial in-kernel im2col for the backbone (strided sublane
# reads) deferred; all 1-D width convs are already done in-kernel.
# ----------------------------------------------------------------------------
def _im2col(x, kh, kw, stride, padding):
    sh, sw = stride
    ph, pw = padding
    N, H, W, C = x.shape
    if ph or pw:
        x = jnp.pad(x, ((0, 0), (ph, ph), (pw, pw), (0, 0)))
    Ho = (H + 2 * ph - kh) // sh + 1
    Wo = (W + 2 * pw - kw) // sw + 1
    cols = []
    for ih in range(kh):
        for iw in range(kw):
            cols.append(x[:, ih:ih + sh * (Ho - 1) + 1:sh,
                            iw:iw + sw * (Wo - 1) + 1:sw, :])
    p = cols[0] if len(cols) == 1 else jnp.concatenate(cols, axis=-1)
    return p, Ho, Wo


# ----------------------------------------------------------------------------
# Deterministic synthetic parameters (bf16 weights, f32 folded-BN scale/shift,
# channels zero-padded 96 -> 128 once here so everything is lane-dense).
# ----------------------------------------------------------------------------
def init_params(key, *, channels=96, nums_lane=4, column_channels=256,
                row_channels=128, in_ch=3, num_branches=4):
    C, Cp, G = channels, C_PAD, num_branches
    Ch = channels // 2
    keys = iter(jax.random.split(key, 64))
    nxt = lambda: next(keys)

    def kaiming(shape, fan_in):
        return jax.random.normal(nxt(), shape, jnp.float32) * jnp.sqrt(2.0 / fan_in)

    def bn_fold(n, n_pad=None):
        # eval-mode BN with init gamma=1, beta=0, mean=0, var=1 and zero conv bias
        s = jnp.ones((n,), jnp.float32) / jnp.sqrt(1.0 + EPS)
        b = jnp.zeros((n,), jnp.float32)
        if n_pad is not None and n_pad > n:
            s = jnp.concatenate([s, jnp.ones((n_pad - n,), jnp.float32)])
            b = jnp.concatenate([b, jnp.zeros((n_pad - n,), jnp.float32)])
        return s, b

    def conv1xk(k):      # (1,k,C,C) HWIO, zero-padded to Cp, tap-major reshape
        w = kaiming((1, k, C, C), k * C)
        w = jnp.pad(w, ((0, 0), (0, 0), (0, Cp - C), (0, Cp - C)))
        return w.reshape(k * Cp, Cp)

    p = {}
    # TODO(synk): ERFNet encoder source not provided; stand-in = 3x3/s2 conv+BN+ReLU.
    wbb = jnp.pad(kaiming((3, 3, in_ch, C), in_ch * 9),
                  ((0, 0), (0, 0), (0, 0), (0, Cp - C)))
    p['bb_w'] = wbb.reshape(9 * in_ch, Cp).astype(jnp.bfloat16)
    s, b = bn_fold(C, Cp)
    p['bb_s'], p['bb_b'] = s[None, :], b[None, :]

    # TODO(synk): HRM_Block source not provided; stand-in = (1,k)/s(1,2) conv+BN+ReLU.
    p['sh_w'] = jnp.stack([conv1xk(3) for _ in range(3)]).astype(jnp.bfloat16)
    ssb = [bn_fold(C, Cp) for _ in range(3)]
    p['sh_s'] = jnp.stack([x for x, _ in ssb])[:, None, :]          # (3,1,128)
    p['sh_b'] = jnp.stack([x for _, x in ssb])[:, None, :]

    # lane_maker_confidence head (computed in plain XLA)
    p['fc1_w'] = jax.random.normal(nxt(), (C, Ch), jnp.float32) * 0.01
    p['fc1_s'], p['fc1_b'] = bn_fold(Ch)
    p['fc2_w'] = jax.random.normal(nxt(), (Ch, nums_lane), jnp.float32) * 0.01
    p['fc2_b'] = jnp.zeros((nums_lane,), jnp.float32)

    # four lane-marker branches, stacked on a leading group axis
    p['br_wc3'] = jnp.stack([jnp.stack([conv1xk(3) for _ in range(4)])
                             for _ in range(G)]).astype(jnp.bfloat16)  # (G,4,384,128)
    p['br_wc1'] = jnp.stack([conv1xk(1) for _ in range(G)]).astype(jnp.bfloat16)
    cs, cb = [], []
    for _ in range(G):
        pairs = [bn_fold(C, Cp) for _ in range(5)]
        cs.append(jnp.stack([x for x, _ in pairs]))
        cb.append(jnp.stack([x for _, x in pairs]))
    p['br_cs'] = jnp.stack(cs)[:, :, None, :]                        # (G,5,1,128)
    p['br_cb'] = jnp.stack(cb)[:, :, None, :]

    def stack_g(make):
        return jnp.stack([make() for _ in range(G)])

    # vertex-wise confidence head: 1x1(C->C/2)+BN+ReLU, 1x1(C/2->1, lane-packed)
    p['v1_w'] = stack_g(lambda: jnp.pad(kaiming((C, Ch), C),
                                        ((0, Cp - C), (0, 0)))).astype(jnp.bfloat16)
    vs = [bn_fold(Ch) for _ in range(G)]
    p['v1_s'] = jnp.stack([x for x, _ in vs])[:, None, :]
    p['v1_b'] = jnp.stack([x for _, x in vs])[:, None, :]
    p['v2_w'] = stack_g(lambda: jnp.pad(kaiming((Ch, 1), Ch),
                                        ((0, 0), (0, 127)))).astype(jnp.bfloat16)
    p['v2_b'] = jnp.zeros((G, 1, 128), jnp.float32)
    # row-wise vertex-location head: 1x1(C->128)+BN+ReLU, 1x1(128->256)
    p['r1_w'] = stack_g(lambda: jnp.pad(kaiming((C, row_channels), C),
                                        ((0, Cp - C), (0, 0)))).astype(jnp.bfloat16)
    rs = [bn_fold(row_channels) for _ in range(G)]
    p['r1_s'] = jnp.stack([x for x, _ in rs])[:, None, :]
    p['r1_b'] = jnp.stack([x for _, x in rs])[:, None, :]
    p['r2_w'] = stack_g(lambda: kaiming((row_channels, column_channels),
                                        row_channels)).astype(jnp.bfloat16)
    p['r2_b'] = jnp.zeros((G, 1, column_channels), jnp.float32)
    return p


# ----------------------------------------------------------------------------
# Forward pass (mirrors E2ENet.forward)
# ----------------------------------------------------------------------------
def e2enet_forward(params, x_nchw):
    x = jnp.transpose(x_nchw, (0, 2, 3, 1)).astype(jnp.bfloat16)     # NCHW -> NHWC
    B = x.shape[0]

    # backbone (stand-in ERFNet encoder): im2col + fused matmul/BN/ReLU kernel
    patches, Ho, Wo = _im2col(x, 3, 3, (2, 2), (1, 1))
    y0 = _front_conv(patches.reshape(B * Ho * Wo, patches.shape[-1]),
                     params['bb_w'], params['bb_s'], params['bb_b'])  # (B*Ho*Wo, 128)

    # three shared HRM blocks fused in ONE kernel (rows = B*Ho, cols = Wo*C)
    xf = y0.reshape(B * Ho, Wo * C_PAD)            # zero-copy row-major reshape
    sf = _shared_stack(xf, params['sh_w'], params['sh_s'], params['sh_b'], w_in=Wo)
    Ws = Wo >> params['sh_w'].shape[0]

    # lane-existence confidence head: M=B rows -> plain XLA (kernel = pure overhead)
    x4 = sf.reshape(B, Ho, Ws, C_PAD).astype(jnp.float32)
    pooled = jnp.mean(x4[..., :C_REAL], axis=(1, 2))                  # (B, 96)
    h = jnp.maximum(pooled @ params['fc1_w'] * params['fc1_s'] + params['fc1_b'], 0.0)
    lane_exit = h @ params['fc2_w'] + params['fc2_b']                 # (B, nlane)

    # the four lane-marker branches + both heads: ONE fused call, grid=(G,)
    v, r = _branch_pipeline(sf, params, w_in=Ws)
    G = v.shape[0]
    v = v[..., 0].reshape(G, B, Ho)                # real v channel (rest is lane padding)
    r = r.reshape(G, B, Ho, -1)

    out = {'lane_exit_out': lane_exit}
    for gi in range(G):
        # match PyTorch NCHW .squeeze() semantics
        out[f'vertex_wise_confidence_out_{gi + 1}'] = jnp.squeeze(v[gi])           # (B,H)
        out[f'row_wise_vertex_location_out_{gi + 1}'] = jnp.squeeze(
            jnp.transpose(r[gi], (0, 2, 1)))                                       # (B,256,H)
    return out


# ----------------------------------------------------------------------------
if __name__ == "__main__":
    key = jax.random.PRNGKey(0)
    k_param, k_in = jax.random.split(key)
    params = init_params(k_param)
    # small NCHW input consistent with the module: after the backbone (/2) and
    # 8 HRM width halvings the final width is 1, so the head .squeeze() calls
    # behave exactly as in the PyTorch model.
    x = jax.random.normal(k_in, (2, 3, 16, 64), jnp.float32)

    fwd = jax.jit(e2enet_forward)
    out = fwd(params, x)
    jax.block_until_ready(out)

    assert out['lane_exit_out'].shape == (2, 4)
    for i in range(1, 5):
        assert out[f'vertex_wise_confidence_out_{i}'].shape == (2, 8)
        assert out[f'row_wise_vertex_location_out_{i}'].shape == (2, 256, 8)

    print("KERNEL_OK")
</pallas_src>

<mosaic_0001>
module attributes {stable_mosaic.version = 11 : i64} {
  func.func @_mm_bn_relu_kernel(%arg0: i32, %arg1: memref<256x27xbf16, #tpu.memory_space<vmem>>, %arg2: memref<27x128xbf16, #tpu.memory_space<vmem>>, %arg3: memref<1x128xf32, #tpu.memory_space<vmem>>, %arg4: memref<1x128xf32, #tpu.memory_space<vmem>>, %arg5: memref<256x128xbf16, #tpu.memory_space<vmem>>) attributes {dimension_semantics = [#tpu.dimension_semantics<parallel>], iteration_bounds = array<i64: 2>, scalar_prefetch = 0 : i64, scratch_operands = 0 : i64, tpu.core_type = #tpu.core_type<tc>, window_params = [{transform_indices = @transform_0, window_bounds = array<i64: 256, 27>}, {pipeline_mode = #tpu.pipeline_mode<synchronous>, transform_indices = @transform_1, window_bounds = array<i64: 27, 128>}, {pipeline_mode = #tpu.pipeline_mode<synchronous>, transform_indices = @transform_2, window_bounds = array<i64: 1, 128>}, {pipeline_mode = #tpu.pipeline_mode<synchronous>, transform_indices = @transform_3, window_bounds = array<i64: 1, 128>}, {transform_indices = @transform_4, window_bounds = array<i64: 256, 128>}]} {
    %c0 = arith.constant 0 : index
    %c0_0 = arith.constant 0 : index
    %0 = vector.load %arg1[%c0, %c0_0] : memref<256x27xbf16, #tpu.memory_space<vmem>>, vector<256x27xbf16>
    %c0_1 = arith.constant 0 : index
    %c0_2 = arith.constant 0 : index
    %1 = vector.load %arg2[%c0_1, %c0_2] : memref<27x128xbf16, #tpu.memory_space<vmem>>, vector<27x128xbf16>
    %cst = arith.constant dense<0.000000e+00> : vector<256x128xf32>
    %2 = tpu.matmul %0, %1, %cst {dimension_numbers = #tpu.dot_dimension_numbers<[1], [0], [0], [1], [0, 0, 1, 1], [], []>} : vector<256x27xbf16>, vector<27x128xbf16>, vector<256x128xf32> -> vector<256x128xf32>
    %c0_3 = arith.constant 0 : index
    %c0_4 = arith.constant 0 : index
    %3 = vector.load %arg3[%c0_3, %c0_4] : memref<1x128xf32, #tpu.memory_space<vmem>>, vector<1x128xf32>
    %4 = vector.broadcast %3 : vector<1x128xf32> to vector<256x128xf32>
    %5 = arith.mulf %2, %4 : vector<256x128xf32>
    %c0_5 = arith.constant 0 : index
    %c0_6 = arith.constant 0 : index
    %6 = vector.load %arg4[%c0_5, %c0_6] : memref<1x128xf32, #tpu.memory_space<vmem>>, vector<1x128xf32>
    %7 = vector.broadcast %6 : vector<1x128xf32> to vector<256x128xf32>
    %8 = arith.addf %5, %7 : vector<256x128xf32>
    %cst_7 = arith.constant 0.000000e+00 : f32
    %9 = vector.broadcast %cst_7 : f32 to vector<256x128xf32>
    %10 = arith.maximumf %8, %9 : vector<256x128xf32>
    %11 = arith.truncf %10 : vector<256x128xf32> to vector<256x128xbf16>
    %c0_8 = arith.constant 0 : index
    %c0_9 = arith.constant 0 : index
    %12 = vector.load %arg5[%c0_8, %c0_9] : memref<256x128xbf16, #tpu.memory_space<vmem>>, vector<256x128xbf16>
    tpu.vector_store %arg5[%c0_8, %c0_9], %11 {strides = array<i32>} : memref<256x128xbf16, #tpu.memory_space<vmem>>, vector<256x128xbf16>,
    return
  }
  func.func @transform_0(%arg0: i32) -> (i32, i32) {
    %c0_i32 = arith.constant 0 : i32
    %c0_i32_0 = arith.constant 0 : i32
    return %arg0, %c0_i32 : i32, i32
  }
  func.func @transform_1(%arg0: i32) -> (i32, i32) {
    %c0_i32 = arith.constant 0 : i32
    %c0_i32_0 = arith.constant 0 : i32
    %c0_i32_1 = arith.constant 0 : i32
    return %c0_i32, %c0_i32_0 : i32, i32
  }
  func.func @transform_2(%arg0: i32) -> (i32, i32) {
    %c0_i32 = arith.constant 0 : i32
    %c0_i32_0 = arith.constant 0 : i32
    %c0_i32_1 = arith.constant 0 : i32
    return %c0_i32, %c0_i32_0 : i32, i32
  }
  func.func @transform_3(%arg0: i32) -> (i32, i32) {
    %c0_i32 = arith.constant 0 : i32
    %c0_i32_0 = arith.constant 0 : i32
    %c0_i32_1 = arith.constant 0 : i32
    return %c0_i32, %c0_i32_0 : i32, i32
  }
  func.func @transform_4(%arg0: i32) -> (i32, i32) {
    %c0_i32 = arith.constant 0 : i32
    %c0_i32_0 = arith.constant 0 : i32
    return %arg0, %c0_i32 : i32, i32
  }
}

module attributes {stable_mosaic.version = 11 : i64} {
  func.func @_shared_stack_kernel(%arg0: i32, %arg1: memref<8x4096xbf16, #tpu.memory_space<vmem>>, %arg2: memref<3x384x128xbf16, #tpu.memory_space<vmem>>, %arg3: memref<3x1x128xf32, #tpu.memory_space<vmem>>, %arg4: memref<3x1x128xf32, #tpu.memory_space<vmem>>, %arg5: memref<8x512xbf16, #tpu.memory_space<vmem>>) attributes {dimension_semantics = [#tpu.dimension_semantics<parallel>], iteration_bounds = array<i64: 2>, scalar_prefetch = 0 : i64, scratch_operands = 0 : i64, tpu.core_type = #tpu.core_type<tc>, window_params = [{transform_indices = @transform_0, window_bounds = array<i64: 8, 4096>}, {pipeline_mode = #tpu.pipeline_mode<synchronous>, transform_indices = @transform_1, window_bounds = array<i64: 3, 384, 128>}, {pipeline_mode = #tpu.pipeline_mode<synchronous>, transform_indices = @transform_2, window_bounds = array<i64: 3, 1, 128>}, {pipeline_mode = #tpu.pipeline_mode<synchronous>, transform_indices = @transform_3, window_bounds = array<i64: 3, 1, 128>}, {transform_indices = @transform_4, window_bounds = array<i64: 8, 512>}]} {
    %c0 = arith.constant 0 : index
    %c0_0 = arith.constant 0 : index
    %0 = vector.load %arg1[%c0, %c0_0] : memref<8x4096xbf16, #tpu.memory_space<vmem>>, vector<8x4096xbf16>
    %c0_1 = arith.constant 0 : index
    %c0_2 = arith.constant 0 : index
    %c0_3 = arith.constant 0 : index
    %1 = vector.load %arg2[%c0_1, %c0_2, %c0_3] : memref<3x384x128xbf16, #tpu.memory_space<vmem>>, vector<1x384x128xbf16>
    %2 = vector.shape_cast %1 : vector<1x384x128xbf16> to vector<384x128xbf16>
    %c0_4 = arith.constant 0 : index
    %c0_5 = arith.constant 0 : index
    %c0_6 = arith.constant 0 : index
    %3 = vector.load %arg3[%c0_4, %c0_5, %c0_6] : memref<3x1x128xf32, #tpu.memory_space<vmem>>, vector<1x1x128xf32>
    %4 = vector.shape_cast %3 : vector<1x1x128xf32> to vector<1x128xf32>
    %c0_7 = arith.constant 0 : index
    %c0_8 = arith.constant 0 : index
    %c0_9 = arith.constant 0 : index
    %5 = vector.load %arg4[%c0_7, %c0_8, %c0_9] : memref<3x1x128xf32, #tpu.memory_space<vmem>>, vector<1x1x128xf32>
    %6 = vector.shape_cast %5 : vector<1x1x128xf32> to vector<1x128xf32>
    %7 = vector.extract_strided_slice %0 {offsets = [0, 0], sizes = [8, 256], strides = [1, 1]} : vector<8x4096xbf16> to vector<8x256xbf16>
    %8 = vector.extract_strided_slice %2 {offsets = [128, 0], sizes = [256, 128], strides = [1, 1]} : vector<384x128xbf16> to vector<256x128xbf16>
    %cst = arith.constant dense<0.000000e+00> : vector<8x128xf32>
    %9 = tpu.matmul %7, %8, %cst {dimension_numbers = #tpu.dot_dimension_numbers<[1], [0], [0], [1], [0, 0, 1, 1], [], []>} : vector<8x256xbf16>, vector<256x128xbf16>, vector<8x128xf32> -> vector<8x128xf32>
    %10 = vector.broadcast %4 : vector<1x128xf32> to vector<8x128xf32>
    %11 = arith.mulf %9, %10 : vector<8x128xf32>
    %12 = vector.broadcast %6 : vector<1x128xf32> to vector<8x128xf32>
    %13 = arith.addf %11, %12 : vector<8x128xf32>
    %cst_10 = arith.constant 0.000000e+00 : f32
    %14 = vector.broadcast %cst_10 : f32 to vector<8x128xf32>
    %15 = arith.maximumf %13, %14 : vector<8x128xf32>
    %16 = vector.extract_strided_slice %0 {offsets = [0, 128], sizes = [8, 384], strides = [1, 1]} : vector<8x4096xbf16> to vector<8x384xbf16>
    %cst_11 = arith.constant dense<0.000000e+00> : vector<8x128xf32>
    %17 = tpu.matmul %16, %2, %cst_11 {dimension_numbers = #tpu.dot_dimension_numbers<[1], [0], [0], [1], [0, 0, 1, 1], [], []>} : vector<8x384xbf16>, vector<384x128xbf16>, vector<8x128xf32> -> vector<8x128xf32>
    %18 = vector.broadcast %4 : vector<1x128xf32> to vector<8x128xf32>
    %19 = arith.mulf %17, %18 : vector<8x128xf32>
    %20 = vector.broadcast %6 : vector<1x128xf32> to vector<8x128xf32>
    %21 = arith.addf %19, %20 : vector<8x128xf32>
    %cst_12 = arith.constant 0.000000e+00 : f32
    %22 = vector.broadcast %cst_12 : f32 to vector<8x128xf32>
    %23 = arith.maximumf %21, %22 : vector<8x128xf32>
    %24 = vector.extract_strided_slice %0 {offsets = [0, 384], sizes = [8, 384], strides = [1, 1]} : vector<8x4096xbf16> to vector<8x384xbf16>
    %cst_13 = arith.constant dense<0.000000e+00> : vector<8x128xf32>
    %25 = tpu.matmul %24, %2, %cst_13 {dimension_numbers = #tpu.dot_dimension_numbers<[1], [0], [0], [1], [0, 0, 1, 1], [], []>} : vector<8x384xbf16>, vector<384x128xbf16>, vector<8x128xf32> -> vector<8x128xf32>
    %26 = vector.broadcast %4 : vector<1x128xf32> to vector<8x128xf32>
    %27 = arith.mulf %25, %26 : vector<8x128xf32>
    %28 = vector.broadcast %6 : vector<1x128xf32> to vector<8x128xf32>
    %29 = arith.addf %27, %28 : vector<8x128xf32>
    %cst_14 = arith.constant 0.000000e+00 : f32
    %30 = vector.broadcast %cst_14 : f32 to vector<8x128xf32>
    %31 = arith.maximumf %29, %30 : vector<8x128xf32>
    %32 = vector.extract_strided_slice %0 {offsets = [0, 640], sizes = [8, 384], strides = [1, 1]} : vector<8x4096xbf16> to vector<8x384xbf16>
    %cst_15 = arith.constant dense<0.000000e+00> : vector<8x128xf32>
    %33 = tpu.matmul %32, %2, %cst_15 {dimension_numbers = #tpu.dot_dimension_numbers<[1], [0], [0], [1], [0, 0, 1, 1], [], []>} : vector<8x384xbf16>, vector<384x128xbf16>, vector<8x128xf32> -> vector<8x128xf32>
    %34 = vector.broadcast %4 : vector<1x128xf32> to vector<8x128xf32>
    %35 = arith.mulf %33, %34 : vector<8x128xf32>
    %36 = vector.broadcast %6 : vector<1x128xf32> to vector<8x128xf32>
    %37 = arith.addf %35, %36 : vector<8x128xf32>
    %cst_16 = arith.constant 0.000000e+00 : f32
    %38 = vector.broadcast %cst_16 : f32 to vector<8x128xf32>
    %39 = arith.maximumf %37, %38 : vector<8x128xf32>
    %40 = vector.extract_strided_slice %0 {offsets = [0, 896], sizes = [8, 384], strides = [1, 1]} : vector<8x4096xbf16> to vector<8x384xbf16>
    %cst_17 = arith.constant dense<0.000000e+00> : vector<8x128xf32>
    %41 = tpu.matmul %40, %2, %cst_17 {dimension_numbers = #tpu.dot_dimension_numbers<[1], [0], [0], [1], [0, 0, 1, 1], [], []>} : vector<8x384xbf16>, vector<384x128xbf16>, vector<8x128xf32> -> vector<8x128xf32>
    %42 = vector.broadcast %4 : vector<1x128xf32> to vector<8x128xf32>
    %43 = arith.mulf %41, %42 : vector<8x128xf32>
    %44 = vector.broadcast %6 : vector<1x128xf32> to vector<8x128xf32>
    %45 = arith.addf %43, %44 : vector<8x128xf32>
    %cst_18 = arith.constant 0.000000e+00 : f32
    %46 = vector.broadcast %cst_18 : f32 to vector<8x128xf32>
    %47 = arith.maximumf %45, %46 : vector<8x128xf32>
    %48 = vector.extract_strided_slice %0 {offsets = [0, 1152], sizes = [8, 384], strides = [1, 1]} : vector<8x4096xbf16> to vector<8x384xbf16>
    %cst_19 = arith.constant dense<0.000000e+00> : vector<8x128xf32>
    %49 = tpu.matmul %48, %2, %cst_19 {dimension_numbers = #tpu.dot_dimension_numbers<[1], [0], [0], [1], [0, 0, 1, 1], [], []>} : vector<8x384xbf16>, vector<384x128xbf16>, vector<8x128xf32> -> vector<8x128xf32>
    %50 = vector.broadcast %4 : vector<1x128xf32> to vector<8x128xf32>
    %51 = arith.mulf %49, %50 : vector<8x128xf32>
    %52 = vector.broadcast %6 : vector<1x128xf32> to vector<8x128xf32>
    %53 = arith.addf %51, %52 : vector<8x128xf32>
    %cst_20 = arith.constant 0.000000e+00 : f32
    %54 = vector.broadcast %cst_20 : f32 to vector<8x128xf32>
    %55 = arith.maximumf %53, %54 : vector<8x128xf32>
    %56 = vector.extract_strided_slice %0 {offsets = [0, 1408], sizes = [8, 384], strides = [1, 1]} : vector<8x4096xbf16> to vector<8x384xbf16>
    %cst_21 = arith.constant dense<0.000000e+00> : vector<8x128xf32>
    %57 = tpu.matmul %56, %2, %cst_21 {dimension_numbers = #tpu.dot_dimension_numbers<[1], [0], [0], [1], [0, 0, 1, 1], [], []>} : vector<8x384xbf16>, vector<384x128xbf16>, vector<8x128xf32> -> vector<8x128xf32>
    %58 = vector.broadcast %4 : vector<1x128xf32> to vector<8x128xf32>
    %59 = arith.mulf %57, %58 : vector<8x128xf32>
    %60 = vector.broadcast %6 : vector<1x128xf32> to vector<8x128xf32>
    %61 = arith.addf %59, %60 : vector<8x128xf32>
    %cst_22 = arith.constant 0.000000e+00 : f32
    %62 = vector.broadcast %cst_22 : f32 to vector<8x128xf32>
    %63 = arith.maximumf %61, %62 : vector<8x128xf32>
    %64 = vector.extract_strided_slice %0 {offsets = [0, 1664], sizes = [8, 384], strides = [1, 1]} : vector<8x4096xbf16> to vector<8x384xbf16>
    %cst_23 = arith.constant dense<0.000000e+00> : vector<8x128xf32>
    %65 = tpu.matmul %64, %2, %cst_23 {dimension_numbers = #tpu.dot_dimension_numbers<[1], [0], [0], [1], [0, 0, 1, 1], [], []>} : vector<8x384xbf16>, vector<384x128xbf16>, vector<8x128xf32> -> vector<8x128xf32>
    %66 = vector.broadcast %4 : vector<1x128xf32> to vector<8x128xf32>
    %67 = arith.mulf %65, %66 : vector<8x128xf32>
    %68 = vector.broadcast %6 : vector<1x128xf32> to vector<8x128xf32>
    %69 = arith.addf %67, %68 : vector<8x128xf32>
    %cst_24 = arith.constant 0.000000e+00 : f32
    %70 = vector.broadcast %cst_24 : f32 to vector<8x128xf32>
    %71 = arith.maximumf %69, %70 : vector<8x128xf32>
    %72 = vector.extract_strided_slice %0 {offsets = [0, 1920], sizes = [8, 384], strides = [1, 1]} : vector<8x4096xbf16> to vector<8x384xbf16>
    %cst_25 = arith.constant dense<0.000000e+00> : vector<8x128xf32>
    %73 = tpu.matmul %72, %2, %cst_25 {dimension_numbers = #tpu.dot_dimension_numbers<[1], [0], [0], [1], [0, 0, 1, 1], [], []>} : vector<8x384xbf16>, vector<384x128xbf16>, vector<8x128xf32> -> vector<8x128xf32>
    %74 = vector.broadcast %4 : vector<1x128xf32> to vector<8x128xf32>
    %75 = arith.mulf %73, %74 : vector<8x128xf32>
    %76 = vector.broadcast %6 : vector<1x128xf32> to vector<8x128xf32>
    %77 = arith.addf %75, %76 : vector<8x128xf32>
    %cst_26 = arith.constant 0.000000e+00 : f32
    %78 = vector.broadcast %cst_26 : f32 to vector<8x128xf32>
    %79 = arith.maximumf %77, %78 : vector<8x128xf32>
    %80 = vector.extract_strided_slice %0 {offsets = [0, 2176], sizes = [8, 384], strides = [1, 1]} : vector<8x4096xbf16> to vector<8x384xbf16>
    %cst_27 = arith.constant dense<0.000000e+00> : vector<8x128xf32>
    %81 = tpu.matmul %80, %2, %cst_27 {dimension_numbers = #tpu.dot_dimension_numbers<[1], [0], [0], [1], [0, 0, 1, 1], [], []>} : vector<8x384xbf16>, vector<384x128xbf16>, vector<8x128xf32> -> vector<8x128xf32>
    %82 = vector.broadcast %4 : vector<1x128xf32> to vector<8x128xf32>
    %83 = arith.mulf %81, %82 : vector<8x128xf32>
    %84 = vector.broadcast %6 : vector<1x128xf32> to vector<8x128xf32>
    %85 = arith.addf %83, %84 : vector<8x128xf32>
    %cst_28 = arith.constant 0.000000e+00 : f32
    %86 = vector.broadcast %cst_28 : f32 to vector<8x128xf32>
    %87 = arith.maximumf %85, %86 : vector<8x128xf32>
    %88 = vector.extract_strided_slice %0 {offsets = [0, 2432], sizes = [8, 384], strides = [1, 1]} : vector<8x4096xbf16> to vector<8x384xbf16>
    %cst_29 = arith.constant dense<0.000000e+00> : vector<8x128xf32>
    %89 = tpu.matmul %88, %2, %cst_29 {dimension_numbers = #tpu.dot_dimension_numbers<[1], [0], [0], [1], [0, 0, 1, 1], [], []>} : vector<8x384xbf16>, vector<384x128xbf16>, vector<8x128xf32> -> vector<8x128xf32>
    %90 = vector.broadcast %4 : vector<1x128xf32> to vector<8x128xf32>
    %91 = arith.mulf %89, %90 : vector<8x128xf32>
    %92 = vector.broadcast %6 : vector<1x128xf32> to vector<8x128xf32>
    %93 = arith.addf %91, %92 : vector<8x128xf32>
    %cst_30 = arith.constant 0.000000e+00 : f32
    %94 = vector.broadcast %cst_30 : f32 to vector<8x128xf32>
    %95 = arith.maximumf %93, %94 : vector<8x128xf32>
    %96 = vector.extract_strided_slice %0 {offsets = [0, 2688], sizes = [8, 384], strides = [1, 1]} : vector<8x4096xbf16> to vector<8x384xbf16>
    %cst_31 = arith.constant dense<0.000000e+00> : vector<8x128xf32>
    %97 = tpu.matmul %96, %2, %cst_31 {dimension_numbers = #tpu.dot_dimension_numbers<[1], [0], [0], [1], [0, 0, 1, 1], [], []>} : vector<8x384xbf16>, vector<384x128xbf16>, vector<8x128xf32> -> vector<8x128xf32>
    %98 = vector.broadcast %4 : vector<1x128xf32> to vector<8x128xf32>
    %99 = arith.mulf %97, %98 : vector<8x128xf32>
    %100 = vector.broadcast %6 : vector<1x128xf32> to vector<8x128xf32>
    %101 = arith.addf %99, %100 : vector<8x128xf32>
    %cst_32 = arith.constant 0.000000e+00 : f32
    %102 = vector.broadcast %cst_32 : f32 to vector<8x128xf32>
    %103 = arith.maximumf %101, %102 : vector<8x128xf32>
    %104 = vector.extract_strided_slice %0 {offsets = [0, 2944], sizes = [8, 384], strides = [1, 1]} : vector<8x4096xbf16> to vector<8x384xbf16>
    %cst_33 = arith.constant dense<0.000000e+00> : vector<8x128xf32>
    %105 = tpu.matmul %104, %2, %cst_33 {dimension_numbers = #tpu.dot_dimension_numbers<[1], [0], [0], [1], [0, 0, 1, 1], [], []>} : vector<8x384xbf16>, vector<384x128xbf16>, vector<8x128xf32> -> vector<8x128xf32>
    %106 = vector.broadcast %4 : vector<1x128xf32> to vector<8x128xf32>
    %107 = arith.mulf %105, %106 : vector<8x128xf32>
    %108 = vector.broadcast %6 : vector<1x128xf32> to vector<8x128xf32>
    %109 = arith.addf %107, %108 : vector<8x128xf32>
    %cst_34 = arith.constant 0.000000e+00 : f32
    %110 = vector.broadcast %cst_34 : f32 to vector<8x128xf32>
    %111 = arith.maximumf %109, %110 : vector<8x128xf32>
    %112 = vector.extract_strided_slice %0 {offsets = [0, 3200], sizes = [8, 384], strides = [1, 1]} : vector<8x4096xbf16> to vector<8x384xbf16>
    %cst_35 = arith.constant dense<0.000000e+00> : vector<8x128xf32>
    %113 = tpu.matmul %112, %2, %cst_35 {dimension_numbers = #tpu.dot_dimension_numbers<[1], [0], [0], [1], [0, 0, 1, 1], [], []>} : vector<8x384xbf16>, vector<384x128xbf16>, vector<8x128xf32> -> vector<8x128xf32>
    %114 = vector.broadcast %4 : vector<1x128xf32> to vector<8x128xf32>
    %115 = arith.mulf %113, %114 : vector<8x128xf32>
    %116 = vector.broadcast %6 : vector<1x128xf32> to vector<8x128xf32>
    %117 = arith.addf %115, %116 : vector<8x128xf32>
    %cst_36 = arith.constant 0.000000e+00 : f32
    %118 = vector.broadcast %cst_36 : f32 to vector<8x128xf32>
    %119 = arith.maximumf %117, %118 : vector<8x128xf32>
    %120 = vector.extract_strided_slice %0 {offsets = [0, 3456], sizes = [8, 384], strides = [1, 1]} : vector<8x4096xbf16> to vector<8x384xbf16>
    %cst_37 = arith.constant dense<0.000000e+00> : vector<8x128xf32>
    %121 = tpu.matmul %120, %2, %cst_37 {dimension_numbers = #tpu.dot_dimension_numbers<[1], [0], [0], [1], [0, 0, 1, 1], [], []>} : vector<8x384xbf16>, vector<384x128xbf16>, vector<8x128xf32> -> vector<8x128xf32>
    %122 = vector.broadcast %4 : vector<1x128xf32> to vector<8x128xf32>
    %123 = arith.mulf %121, %122 : vector<8x128xf32>
    %124 = vector.broadcast %6 : vector<1x128xf32> to vector<8x128xf32>
    %125 = arith.addf %123, %124 : vector<8x128xf32>
    %cst_38 = arith.constant 0.000000e+00 : f32
    %126 = vector.broadcast %cst_38 : f32 to vector<8x128xf32>
    %127 = arith.maximumf %125, %126 : vector<8x128xf32>
    %128 = vector.extract_strided_slice %0 {offsets = [0, 3712], sizes = [8, 384], strides = [1, 1]} : vector<8x4096xbf16> to vector<8x384xbf16>
    %cst_39 = arith.constant dense<0.000000e+00> : vector<8x128xf32>
    %129 = tpu.matmul %128, %2, %cst_39 {dimension_numbers = #tpu.dot_dimension_numbers<[1], [0], [0], [1], [0, 0, 1, 1], [], []>} : vector<8x384xbf16>, vector<384x128xbf16>, vector<8x128xf32> -> vector<8x128xf32>
    %130 = vector.broadcast %4 : vector<1x128xf32> to vector<8x128xf32>
    %131 = arith.mulf %129, %130 : vector<8x128xf32>
    %132 = vector.broadcast %6 : vector<1x128xf32> to vector<8x128xf32>
    %133 = arith.addf %131, %132 : vector<8x128xf32>
    %cst_40 = arith.constant 0.000000e+00 : f32
    %134 = vector.broadcast %cst_40 : f32 to vector<8x128xf32>
    %135 = arith.maximumf %133, %134 : vector<8x128xf32>
    %136 = tpu.concatenate %15, %23, %31, %39, %47, %55, %63, %71, %79, %87, %95, %103, %111, %119, %127, %135 in 1 : vector<8x128xf32>, vector<8x128xf32>, vector<8x128xf32>, vector<8x128xf32>, vector<8x128xf32>, vector<8x128xf32>, vector<8x128xf32>, vector<8x128xf32>, vector<8x128xf32>, vector<8x128xf32>, vector<8x128xf32>, vector<8x128xf32>, vector<8x128xf32>, vector<8x128xf32>, vector<8x128xf32>, vector<8x128xf32> -> vector<8x2048xf32>
    %137 = arith.truncf %136 : vector<8x2048xf32> to vector<8x2048xbf16>
    %c1 = arith.constant 1 : index
    %c0_41 = arith.constant 0 : index
    %c0_42 = arith.constant 0 : index
    %138 = vector.load %arg2[%c1, %c0_41, %c0_42] : memref<3x384x128xbf16, #tpu.memory_space<vmem>>, vector<1x384x128xbf16>
    %139 = vector.shape_cast %138 : vector<1x384x128xbf16> to vector<384x128xbf16>
    %c1_43 = arith.constant 1 : index
    %c0_44 = arith.constant 0 : index
    %c0_45 = arith.constant 0 : index
    %140 = vector.load %arg3[%c1_43, %c0_44, %c0_45] : memref<3x1x128xf32, #tpu.memory_space<vmem>>, vector<1x1x128xf32>
    %141 = vector.shape_cast %140 : vector<1x1x128xf32> to vector<1x128xf32>
    %c1_46 = arith.constant 1 : index
    %c0_47 = arith.constant 0 : index
    %c0_48 = arith.constant 0 : index
    %142 = vector.load %arg4[%c1_46, %c0_47, %c0_48] : memref<3x1x128xf32, #tpu.memory_space<vmem>>, vector<1x1x128xf32>
    %143 = vector.shape_cast %142 : vector<1x1x128xf32> to vector<1x128xf32>
    %144 = vector.extract_strided_slice %137 {offsets = [0, 0], sizes = [8, 256], strides = [1, 1]} : vector<8x2048xbf16> to vector<8x256xbf16>
    %145 = vector.extract_strided_slice %139 {offsets = [128, 0], sizes = [256, 128], strides = [1, 1]} : vector<384x128xbf16> to vector<256x128xbf16>
    %cst_49 = arith.constant dense<0.000000e+00> : vector<8x128xf32>
    %146 = tpu.matmul %144, %145, %cst_49 {dimension_numbers = #tpu.dot_dimension_numbers<[1], [0], [0], [1], [0, 0, 1, 1], [], []>} : vector<8x256xbf16>, vector<256x128xbf16>, vector<8x128xf32> -> vector<8x128xf32>
    %147 = vector.broadcast %141 : vector<1x128xf32> to vector<8x128xf32>
    %148 = arith.mulf %146, %147 : vector<8x128xf32>
    %149 = vector.broadcast %143 : vector<1x128xf32> to vector<8x128xf32>
    %150 = arith.addf %148, %149 : vector<8x128xf32>
    %cst_50 = arith.constant 0.000000e+00 : f32
    %151 = vector.broadcast %cst_50 : f32 to vector<8x128xf32>
    %152 = arith.maximumf %150, %151 : vector<8x128xf32>
    %153 = vector.extract_strided_slice %137 {offsets = [0, 128], sizes = [8, 384], strides = [1, 1]} : vector<8x2048xbf16> to vector<8x384xbf16>
    %cst_51 = arith.constant dense<0.000000e+00> : vector<8x128xf32>
    %154 = tpu.matmul %153, %139, %cst_51 {dimension_numbers = #tpu.dot_dimension_numbers<[1], [0], [0], [1], [0, 0, 1, 1], [], []>} : vector<8x384xbf16>, vector<384x128xbf16>, vector<8x128xf32> -> vector<8x128xf32>
    %155 = vector.broadcast %141 : vector<1x128xf32> to vector<8x128xf32>
    %156 = arith.mulf %154, %155 : vector<8x128xf32>
    %157 = vector.broadcast %143 : vector<1x128xf32> to vector<8x128xf32>
    %158 = arith.addf %156, %157 : vector<8x128xf32>
    %cst_52 = arith.constant 0.000000e+00 : f32
    %159 = vector.broadcast %cst_52 : f32 to vector<8x128xf32>
    %160 = arith.maximumf %158, %159 : vector<8x128xf32>
    %161 = vector.extract_strided_slice %137 {offsets = [0, 384], sizes = [8, 384], strides = [1, 1]} : vector<8x2048xbf16> to vector<8x384xbf16>
    %cst_53 = arith.constant dense<0.000000e+00> : vector<8x128xf32>
    %162 = tpu.matmul %161, %139, %cst_53 {dimension_numbers = #tpu.dot_dimension_numbers<[1], [0], [0], [1], [0, 0, 1, 1], [], []>} : vector<8x384xbf16>, vector<384x128xbf16>, vector<8x128xf32> -> vector<8x128xf32>
    %163 = vector.broadcast %141 : vector<1x128xf32> to vector<8x128xf32>
    %164 = arith.mulf %162, %163 : vector<8x128xf32>
    %165 = vector.broadcast %143 : vector<1x128xf32> to vector<8x128xf32>
    %166 = arith.addf %164, %165 : vector<8x128xf32>
    %cst_54 = arith.constant 0.000000e+00 : f32
    %167 = vector.broadcast %cst_54 : f32 to vector<8x128xf32>
    %168 = arith.maximumf %166, %167 : vector<8x128xf32>
    %169 = vector.extract_strided_slice %137 {offsets = [0, 640], sizes = [8, 384], strides = [1, 1]} : vector<8x2048xbf16> to vector<8x384xbf16>
    %cst_55 = arith.constant dense<0.000000e+00> : vector<8x128xf32>
    %170 = tpu.matmul %169, %139, %cst_55 {dimension_numbers = #tpu.dot_dimension_numbers<[1], [0], [0], [1], [0, 0, 1, 1], [], []>} : vector<8x384xbf16>, vector<384x128xbf16>, vector<8x128xf32> -> vector<8x128xf32>
    %171 = vector.broadcast %141 : vector<1x128xf32> to vector<8x128xf32>
    %172 = arith.mulf %170, %171 : vector<8x128xf32>
    %173 = vector.broadcast %143 : vector<1x128xf32> to vector<8x128xf32>
    %174 = arith.addf %172, %173 : vector<8x128xf32>
    %cst_56 = arith.constant 0.000000e+00 : f32
    %175 = vector.broadcast %cst_56 : f32 to vector<8x128xf32>
    %176 = arith.maximumf %174, %175 : vector<8x128xf32>
    %177 = vector.extract_strided_slice %137 {offsets = [0, 896], sizes = [8, 384], strides = [1, 1]} : vector<8x2048xbf16> to vector<8x384xbf16>
    %cst_57 = arith.constant dense<0.000000e+00> : vector<8x128xf32>
    %178 = tpu.matmul %177, %139, %cst_57 {dimension_numbers = #tpu.dot_dimension_numbers<[1], [0], [0], [1], [0, 0, 1, 1], [], []>} : vector<8x384xbf16>, vector<384x128xbf16>, vector<8x128xf32> -> vector<8x128xf32>
    %179 = vector.broadcast %141 : vector<1x128xf32> to vector<8x128xf32>
    %180 = arith.mulf %178, %179 : vector<8x128xf32>
    %181 = vector.broadcast %143 : vector<1x128xf32> to vector<8x128xf32>
    %182 = arith.addf %180, %181 : vector<8x128xf32>
    %cst_58 = arith.constant 0.000000e+00 : f32
    %183 = vector.broadcast %cst_58 : f32 to vector<8x128xf32>
    %184 = arith.maximumf %182, %183 : vector<8x128xf32>
    %185 = vector.extract_strided_slice %137 {offsets = [0, 1152], sizes = [8, 384], strides = [1, 1]} : vector<8x2048xbf16> to vector<8x384xbf16>
    %cst_59 = arith.constant dense<0.000000e+00> : vector<8x128xf32>
    %186 = tpu.matmul %185, %139, %cst_59 {dimension_numbers = #tpu.dot_dimension_numbers<[1], [0], [0], [1], [0, 0, 1, 1], [], []>} : vector<8x384xbf16>, vector<384x128xbf16>, vector<8x128xf32> -> vector<8x128xf32>
    %187 = vector.broadcast %141 : vector<1x128xf32> to vector<8x128xf32>
    %188 = arith.mulf %186, %187 : vector<8x128xf32>
    %189 = vector.broadcast %143 : vector<1x128xf32> to vector<8x128xf32>
    %190 = arith.addf %188, %189 : vector<8x128xf32>
    %cst_60 = arith.constant 0.000000e+00 : f32
    %191 = vector.broadcast %cst_60 : f32 to vector<8x128xf32>
    %192 = arith.maximumf %190, %191 : vector<8x128xf32>
    %193 = vector.extract_strided_slice %137 {offsets = [0, 1408], sizes = [8, 384], strides = [1, 1]} : vector<8x2048xbf16> to vector<8x384xbf16>
    %cst_61 = arith.constant dense<0.000000e+00> : vector<8x128xf32>
    %194 = tpu.matmul %193, %139, %cst_61 {dimension_numbers = #tpu.dot_dimension_numbers<[1], [0], [0], [1], [0, 0, 1, 1], [], []>} : vector<8x384xbf16>, vector<384x128xbf16>, vector<8x128xf32> -> vector<8x128xf32>
    %195 = vector.broadcast %141 : vector<1x128xf32> to vector<8x128xf32>
    %196 = arith.mulf %194, %195 : vector<8x128xf32>
    %197 = vector.broadcast %143 : vector<1x128xf32> to vector<8x128xf32>
    %198 = arith.addf %196, %197 : vector<8x128xf32>
    %cst_62 = arith.constant 0.000000e+00 : f32
    %199 = vector.broadcast %cst_62 : f32 to vector<8x128xf32>
    %200 = arith.maximumf %198, %199 : vector<8x128xf32>
    %201 = vector.extract_strided_slice %137 {offsets = [0, 1664], sizes = [8, 384], strides = [1, 1]} : vector<8x2048xbf16> to vector<8x384xbf16>
    %cst_63 = arith.constant dense<0.000000e+00> : vector<8x128xf32>
    %202 = tpu.matmul %201, %139, %cst_63 {dimension_numbers = #tpu.dot_dimension_numbers<[1], [0], [0], [1], [0, 0, 1, 1], [], []>} : vector<8x384xbf16>, vector<384x128xbf16>, vector<8x128xf32> -> vector<8x128xf32>
    %203 = vector.broadcast %141 : vector<1x128xf32> to vector<8x128xf32>
    %204 = arith.mulf %202, %203 : vector<8x128xf32>
    %205 = vector.broadcast %143 : vector<1x128xf32> to vector<8x128xf32>
    %206 = arith.addf %204, %205 : vector<8x128xf32>
    %cst_64 = arith.constant 0.000000e+00 : f32
    %207 = vector.broadcast %cst_64 : f32 to vector<8x128xf32>
    %208 = arith.maximumf %206, %207 : vector<8x128xf32>
    %209 = tpu.concatenate %152, %160, %168, %176, %184, %192, %200, %208 in 1 : vector<8x128xf32>, vector<8x128xf32>, vector<8x128xf32>, vector<8x128xf32>, vector<8x128xf32>, vector<8x128xf32>, vector<8x128xf32>, vector<8x128xf32> -> vector<8x1024xf32>
    %210 = arith.truncf %209 : vector<8x1024xf32> to vector<8x1024xbf16>
    %c2 = arith.constant 2 : index
    %c0_65 = arith.constant 0 : index
    %c0_66 = arith.constant 0 : index
    %211 = vector.load %arg2[%c2, %c0_65, %c0_66] : memref<3x384x128xbf16, #tpu.memory_space<vmem>>, vector<1x384x128xbf16>
    %212 = vector.shape_cast %211 : vector<1x384x128xbf16> to vector<384x128xbf16>
    %c2_67 = arith.constant 2 : index
    %c0_68 = arith.constant 0 : index
    %c0_69 = arith.constant 0 : index
    %213 = vector.load %arg3[%c2_67, %c0_68, %c0_69] : memref<3x1x128xf32, #tpu.memory_space<vmem>>, vector<1x1x128xf32>
    %214 = vector.shape_cast %213 : vector<1x1x128xf32> to vector<1x128xf32>
    %c2_70 = arith.constant 2 : index
    %c0_71 = arith.constant 0 : index
    %c0_72 = arith.constant 0 : index
    %215 = vector.load %arg4[%c2_70, %c0_71, %c0_72] : memref<3x1x128xf32, #tpu.memory_space<vmem>>, vector<1x1x128xf32>
    %216 = vector.shape_cast %215 : vector<1x1x128xf32> to vector<1x128xf32>
    %217 = vector.extract_strided_slice %210 {offsets = [0, 0], sizes = [8, 256], strides = [1, 1]} : vector<8x1024xbf16> to vector<8x256xbf16>
    %218 = vector.extract_strided_slice %212 {offsets = [128, 0], sizes = [256, 128], strides = [1, 1]} : vector<384x128xbf16> to vector<256x128xbf16>
    %cst_73 = arith.constant dense<0.000000e+00> : vector<8x128xf32>
    %219 = tpu.matmul %217, %218, %cst_73 {dimension_numbers = #tpu.dot_dimension_numbers<[1], [0], [0], [1], [0, 0, 1, 1], [], []>} : vector<8x256xbf16>, vector<256x128xbf16>, vector<8x128xf32> -> vector<8x128xf32>
    %220 = vector.broadcast %214 : vector<1x128xf32> to vector<8x128xf32>
    %221 = arith.mulf %219, %220 : vector<8x128xf32>
    %222 = vector.broadcast %216 : vector<1x128xf32> to vector<8x128xf32>
    %223 = arith.addf %221, %222 : vector<8x128xf32>
    %cst_74 = arith.constant 0.000000e+00 : f32
    %224 = vector.broadcast %cst_74 : f32 to vector<8x128xf32>
    %225 = arith.maximumf %223, %224 : vector<8x128xf32>
    %226 = vector.extract_strided_slice %210 {offsets = [0, 128], sizes = [8, 384], strides = [1, 1]} : vector<8x1024xbf16> to vector<8x384xbf16>
    %cst_75 = arith.constant dense<0.000000e+00> : vector<8x128xf32>
    %227 = tpu.matmul %226, %212, %cst_75 {dimension_numbers = #tpu.dot_dimension_numbers<[1], [0], [0], [1], [0, 0, 1, 1], [], []>} : vector<8x384xbf16>, vector<384x128xbf16>, vector<8x128xf32> -> vector<8x128xf32>
    %228 = vector.broadcast %214 : vector<1x128xf32> to vector<8x128xf32>
    %229 = arith.mulf %227, %228 : vector<8x128xf32>
    %230 = vector.broadcast %216 : vector<1x128xf32> to vector<8x128xf32>
    %231 = arith.addf %229, %230 : vector<8x128xf32>
    %cst_76 = arith.constant 0.000000e+00 : f32
    %232 = vector.broadcast %cst_76 : f32 to vector<8x128xf32>
    %233 = arith.maximumf %231, %232 : vector<8x128xf32>
    %234 = vector.extract_strided_slice %210 {offsets = [0, 384], sizes = [8, 384], strides = [1, 1]} : vector<8x1024xbf16> to vector<8x384xbf16>
    %cst_77 = arith.constant dense<0.000000e+00> : vector<8x128xf32>
    %235 = tpu.matmul %234, %212, %cst_77 {dimension_numbers = #tpu.dot_dimension_numbers<[1], [0], [0], [1], [0, 0, 1, 1], [], []>} : vector<8x384xbf16>, vector<384x128xbf16>, vector<8x128xf32> -> vector<8x128xf32>
    %236 = vector.broadcast %214 : vector<1x128xf32> to vector<8x128xf32>
    %237 = arith.mulf %235, %236 : vector<8x128xf32>
    %238 = vector.broadcast %216 : vector<1x128xf32> to vector<8x128xf32>
    %239 = arith.addf %237, %238 : vector<8x128xf32>
    %cst_78 = arith.constant 0.000000e+00 : f32
    %240 = vector.broadcast %cst_78 : f32 to vector<8x128xf32>
    %241 = arith.maximumf %239, %240 : vector<8x128xf32>
    %242 = vector.extract_strided_slice %210 {offsets = [0, 640], sizes = [8, 384], strides = [1, 1]} : vector<8x1024xbf16> to vector<8x384xbf16>
    %cst_79 = arith.constant dense<0.000000e+00> : vector<8x128xf32>
    %243 = tpu.matmul %242, %212, %cst_79 {dimension_numbers = #tpu.dot_dimension_numbers<[1], [0], [0], [1], [0, 0, 1, 1], [], []>} : vector<8x384xbf16>, vector<384x128xbf16>, vector<8x128xf32> -> vector<8x128xf32>
    %244 = vector.broadcast %214 : vector<1x128xf32> to vector<8x128xf32>
    %245 = arith.mulf %243, %244 : vector<8x128xf32>
    %246 = vector.broadcast %216 : vector<1x128xf32> to vector<8x128xf32>
    %247 = arith.addf %245, %246 : vector<8x128xf32>
    %cst_80 = arith.constant 0.000000e+00 : f32
    %248 = vector.broadcast %cst_80 : f32 to vector<8x128xf32>
    %249 = arith.maximumf %247, %248 : vector<8x128xf32>
    %250 = tpu.concatenate %225, %233, %241, %249 in 1 : vector<8x128xf32>, vector<8x128xf32>, vector<8x128xf32>, vector<8x128xf32> -> vector<8x512xf32>
    %251 = arith.truncf %250 : vector<8x512xf32> to vector<8x512xbf16>
    %c0_81 = arith.constant 0 : index
    %c0_82 = arith.constant 0 : index
    %252 = vector.load %arg5[%c0_81, %c0_82] : memref<8x512xbf16, #tpu.memory_space<vmem>>, vector<8x512xbf16>
    tpu.vector_store %arg5[%c0_81, %c0_82], %251 {strides = array<i32>} : memref<8x512xbf16, #tpu.memory_space<vmem>>, vector<8x512xbf16>,
    return
  }
  func.func @transform_0(%arg0: i32) -> (i32, i32) {
    %c0_i32 = arith.constant 0 : i32
    %c0_i32_0 = arith.constant 0 : i32
    return %arg0, %c0_i32 : i32, i32
  }
  func.func @transform_1(%arg0: i32) -> (i32, i32, i32) {
    %c0_i32 = arith.constant 0 : i32
    %c0_i32_0 = arith.constant 0 : i32
    %c0_i32_1 = arith.constant 0 : i32
    %c0_i32_2 = arith.constant 0 : i32
    return %c0_i32, %c0_i32_0, %c0_i32_1 : i32, i32, i32
  }
  func.func @transform_2(%arg0: i32) -> (i32, i32, i32) {
    %c0_i32 = arith.constant 0 : i32
    %c0_i32_0 = arith.constant 0 : i32
    %c0_i32_1 = arith.constant 0 : i32
    %c0_i32_2 = arith.constant 0 : i32
    return %c0_i32, %c0_i32_0, %c0_i32_1 : i32, i32, i32
  }
  func.func @transform_3(%arg0: i32) -> (i32, i32, i32) {
    %c0_i32 = arith.constant 0 : i32
    %c0_i32_0 = arith.constant 0 : i32
    %c0_i32_1 = arith.constant 0 : i32
    %c0_i32_2 = arith.constant 0 : i32
    return %c0_i32, %c0_i32_0, %c0_i32_1 : i32, i32, i32
  }
  func.func @transform_4(%arg0: i32) -> (i32, i32) {
    %c0_i32 = arith.constant 0 : i32
    %c0_i32_0 = arith.constant 0 : i32
    return %arg0, %c0_i32 : i32, i32
  }
}

module attributes {stable_mosaic.version = 11 : i64} {
  func.func @_branch_kernel(%arg0: i32, %arg1: memref<16x512xbf16, #tpu.memory_space<vmem>>, %arg2: memref<1x4x384x128xbf16, #tpu.memory_space<vmem>>, %arg3: memref<1x128x128xbf16, #tpu.memory_space<vmem>>, %arg4: memref<1x5x1x128xf32, #tpu.memory_space<vmem>>, %arg5: memref<1x5x1x128xf32, #tpu.memory_space<vmem>>, %arg6: memref<1x128x48xbf16, #tpu.memory_space<vmem>>, %arg7: memref<1x1x48xf32, #tpu.memory_space<vmem>>, %arg8: memref<1x1x48xf32, #tpu.memory_space<vmem>>, %arg9: memref<1x48x128xbf16, #tpu.memory_space<vmem>>, %arg10: memref<1x1x128xf32, #tpu.memory_space<vmem>>, %arg11: memref<1x128x128xbf16, #tpu.memory_space<vmem>>, %arg12: memref<1x1x128xf32, #tpu.memory_space<vmem>>, %arg13: memref<1x1x128xf32, #tpu.memory_space<vmem>>, %arg14: memref<1x128x256xbf16, #tpu.memory_space<vmem>>, %arg15: memref<1x1x256xf32, #tpu.memory_space<vmem>>, %arg16: memref<1x16x128xf32, #tpu.memory_space<vmem>>, %arg17: memref<1x16x256xf32, #tpu.memory_space<vmem>>) attributes {dimension_semantics = [#tpu.dimension_semantics<parallel>], iteration_bounds = array<i64: 4>, scalar_prefetch = 0 : i64, scratch_operands = 0 : i64, tpu.core_type = #tpu.core_type<tc>, window_params = [{pipeline_mode = #tpu.pipeline_mode<synchronous>, transform_indices = @transform_0, window_bounds = array<i64: 16, 512>}, {transform_indices = @transform_1, window_bounds = array<i64: 1, 4, 384, 128>}, {transform_indices = @transform_2, window_bounds = array<i64: 1, 128, 128>}, {transform_indices = @transform_3, window_bounds = array<i64: 1, 5, 1, 128>}, {transform_indices = @transform_4, window_bounds = array<i64: 1, 5, 1, 128>}, {transform_indices = @transform_5, window_bounds = array<i64: 1, 128, 48>}, {transform_indices = @transform_6, window_bounds = array<i64: 1, 1, 48>}, {transform_indices = @transform_7, window_bounds = array<i64: 1, 1, 48>}, {transform_indices = @transform_8, window_bounds = array<i64: 1, 48, 128>}, {transform_indices = @transform_9, window_bounds = array<i64: 1, 1, 128>}, {transform_indices = @transform_10, window_bounds = array<i64: 1, 128, 128>}, {transform_indices = @transform_11, window_bounds = array<i64: 1, 1, 128>}, {transform_indices = @transform_12, window_bounds = array<i64: 1, 1, 128>}, {transform_indices = @transform_13, window_bounds = array<i64: 1, 128, 256>}, {transform_indices = @transform_14, window_bounds = array<i64: 1, 1, 256>}, {transform_indices = @transform_15, window_bounds = array<i64: 1, 16, 128>}, {transform_indices = @transform_16, window_bounds = array<i64: 1, 16, 256>}]} {
    %c0 = arith.constant 0 : index
    %c0_0 = arith.constant 0 : index
    %0 = vector.load %arg1[%c0, %c0_0] : memref<16x512xbf16, #tpu.memory_space<vmem>>, vector<16x512xbf16>
    %c0_1 = arith.constant 0 : index
    %c0_2 = arith.constant 0 : index
    %c0_3 = arith.constant 0 : index
    %c0_4 = arith.constant 0 : index
    %1 = vector.load %arg2[%c0_1, %c0_2, %c0_3, %c0_4] : memref<1x4x384x128xbf16, #tpu.memory_space<vmem>>, vector<1x1x384x128xbf16>
    %2 = vector.shape_cast %1 : vector<1x1x384x128xbf16> to vector<384x128xbf16>
    %c0_5 = arith.constant 0 : index
    %c0_6 = arith.constant 0 : index
    %c0_7 = arith.constant 0 : index
    %c0_8 = arith.constant 0 : index
    %3 = vector.load %arg4[%c0_5, %c0_6, %c0_7, %c0_8] : memref<1x5x1x128xf32, #tpu.memory_space<vmem>>, vector<1x1x1x128xf32>
    %4 = vector.shape_cast %3 : vector<1x1x1x128xf32> to vector<1x128xf32>
    %c0_9 = arith.constant 0 : index
    %c0_10 = arith.constant 0 : index
    %c0_11 = arith.constant 0 : index
    %c0_12 = arith.constant 0 : index
    %5 = vector.load %arg5[%c0_9, %c0_10, %c0_11, %c0_12] : memref<1x5x1x128xf32, #tpu.memory_space<vmem>>, vector<1x1x1x128xf32>
    %6 = vector.shape_cast %5 : vector<1x1x1x128xf32> to vector<1x128xf32>
    %7 = vector.extract_strided_slice %0 {offsets = [0, 0], sizes = [16, 256], strides = [1, 1]} : vector<16x512xbf16> to vector<16x256xbf16>
    %8 = vector.extract_strided_slice %2 {offsets = [128, 0], sizes = [256, 128], strides = [1, 1]} : vector<384x128xbf16> to vector<256x128xbf16>
    %cst = arith.constant dense<0.000000e+00> : vector<16x128xf32>
    %9 = tpu.matmul %7, %8, %cst {dimension_numbers = #tpu.dot_dimension_numbers<[1], [0], [0], [1], [0, 0, 1, 1], [], []>} : vector<16x256xbf16>, vector<256x128xbf16>, vector<16x128xf32> -> vector<16x128xf32>
    %10 = vector.broadcast %4 : vector<1x128xf32> to vector<16x128xf32>
    %11 = arith.mulf %9, %10 : vector<16x128xf32>
    %12 = vector.broadcast %6 : vector<1x128xf32> to vector<16x128xf32>
    %13 = arith.addf %11, %12 : vector<16x128xf32>
    %cst_13 = arith.constant 0.000000e+00 : f32
    %14 = vector.broadcast %cst_13 : f32 to vector<16x128xf32>
    %15 = arith.maximumf %13, %14 : vector<16x128xf32>
    %16 = vector.extract_strided_slice %0 {offsets = [0, 128], sizes = [16, 384], strides = [1, 1]} : vector<16x512xbf16> to vector<16x384xbf16>
    %cst_14 = arith.constant dense<0.000000e+00> : vector<16x128xf32>
    %17 = tpu.matmul %16, %2, %cst_14 {dimension_numbers = #tpu.dot_dimension_numbers<[1], [0], [0], [1], [0, 0, 1, 1], [], []>} : vector<16x384xbf16>, vector<384x128xbf16>, vector<16x128xf32> -> vector<16x128xf32>
    %18 = vector.broadcast %4 : vector<1x128xf32> to vector<16x128xf32>
    %19 = arith.mulf %17, %18 : vector<16x128xf32>
    %20 = vector.broadcast %6 : vector<1x128xf32> to vector<16x128xf32>
    %21 = arith.addf %19, %20 : vector<16x128xf32>
    %cst_15 = arith.constant 0.000000e+00 : f32
    %22 = vector.broadcast %cst_15 : f32 to vector<16x128xf32>
    %23 = arith.maximumf %21, %22 : vector<16x128xf32>
    %24 = tpu.concatenate %15, %23 in 1 : vector<16x128xf32>, vector<16x128xf32> -> vector<16x256xf32>
    %25 = arith.truncf %24 : vector<16x256xf32> to vector<16x256xbf16>
    %c0_16 = arith.constant 0 : index
    %c1 = arith.constant 1 : index
    %c0_17 = arith.constant 0 : index
    %c0_18 = arith.constant 0 : index
    %26 = vector.load %arg2[%c0_16, %c1, %c0_17, %c0_18] : memref<1x4x384x128xbf16, #tpu.memory_space<vmem>>, vector<1x1x384x128xbf16>
    %27 = vector.shape_cast %26 : vector<1x1x384x128xbf16> to vector<384x128xbf16>
    %c0_19 = arith.constant 0 : index
    %c1_20 = arith.constant 1 : index
    %c0_21 = arith.constant 0 : index
    %c0_22 = arith.constant 0 : index
    %28 = vector.load %arg4[%c0_19, %c1_20, %c0_21, %c0_22] : memref<1x5x1x128xf32, #tpu.memory_space<vmem>>, vector<1x1x1x128xf32>
    %29 = vector.shape_cast %28 : vector<1x1x1x128xf32> to vector<1x128xf32>
    %c0_23 = arith.constant 0 : index
    %c1_24 = arith.constant 1 : index
    %c0_25 = arith.constant 0 : index
    %c0_26 = arith.constant 0 : index
    %30 = vector.load %arg5[%c0_23, %c1_24, %c0_25, %c0_26] : memref<1x5x1x128xf32, #tpu.memory_space<vmem>>, vector<1x1x1x128xf32>
    %31 = vector.shape_cast %30 : vector<1x1x1x128xf32> to vector<1x128xf32>
    %32 = vector.extract_strided_slice %27 {offsets = [128, 0], sizes = [256, 128], strides = [1, 1]} : vector<384x128xbf16> to vector<256x128xbf16>
    %cst_27 = arith.constant dense<0.000000e+00> : vector<16x128xf32>
    %33 = tpu.matmul %25, %32, %cst_27 {dimension_numbers = #tpu.dot_dimension_numbers<[1], [0], [0], [1], [0, 0, 1, 1], [], []>} : vector<16x256xbf16>, vector<256x128xbf16>, vector<16x128xf32> -> vector<16x128xf32>
    %34 = vector.broadcast %29 : vector<1x128xf32> to vector<16x128xf32>
    %35 = arith.mulf %33, %34 : vector<16x128xf32>
    %36 = vector.broadcast %31 : vector<1x128xf32> to vector<16x128xf32>
    %37 = arith.addf %35, %36 : vector<16x128xf32>
    %cst_28 = arith.constant 0.000000e+00 : f32
    %38 = vector.broadcast %cst_28 : f32 to vector<16x128xf32>
    %39 = arith.maximumf %37, %38 : vector<16x128xf32>
    %40 = arith.truncf %39 : vector<16x128xf32> to vector<16x128xbf16>
    %c0_29 = arith.constant 0 : index
    %c2 = arith.constant 2 : index
    %c0_30 = arith.constant 0 : index
    %c0_31 = arith.constant 0 : index
    %41 = vector.load %arg2[%c0_29, %c2, %c0_30, %c0_31] : memref<1x4x384x128xbf16, #tpu.memory_space<vmem>>, vector<1x1x384x128xbf16>
    %42 = vector.shape_cast %41 : vector<1x1x384x128xbf16> to vector<384x128xbf16>
    %c0_32 = arith.constant 0 : index
    %c2_33 = arith.constant 2 : index
    %c0_34 = arith.constant 0 : index
    %c0_35 = arith.constant 0 : index
    %43 = vector.load %arg4[%c0_32, %c2_33, %c0_34, %c0_35] : memref<1x5x1x128xf32, #tpu.memory_space<vmem>>, vector<1x1x1x128xf32>
    %44 = vector.shape_cast %43 : vector<1x1x1x128xf32> to vector<1x128xf32>
    %c0_36 = arith.constant 0 : index
    %c2_37 = arith.constant 2 : index
    %c0_38 = arith.constant 0 : index
    %c0_39 = arith.constant 0 : index
    %45 = vector.load %arg5[%c0_36, %c2_37, %c0_38, %c0_39] : memref<1x5x1x128xf32, #tpu.memory_space<vmem>>, vector<1x1x1x128xf32>
    %46 = vector.shape_cast %45 : vector<1x1x1x128xf32> to vector<1x128xf32>
    %47 = vector.extract_strided_slice %42 {offsets = [128, 0], sizes = [128, 128], strides = [1, 1]} : vector<384x128xbf16> to vector<128x128xbf16>
    %cst_40 = arith.constant dense<0.000000e+00> : vector<16x128xf32>
    %48 = tpu.matmul %40, %47, %cst_40 {dimension_numbers = #tpu.dot_dimension_numbers<[1], [0], [0], [1], [0, 0, 1, 1], [], []>} : vector<16x128xbf16>, vector<128x128xbf16>, vector<16x128xf32> -> vector<16x128xf32>
    %49 = vector.broadcast %44 : vector<1x128xf32> to vector<16x128xf32>
    %50 = arith.mulf %48, %49 : vector<16x128xf32>
    %51 = vector.broadcast %46 : vector<1x128xf32> to vector<16x128xf32>
    %52 = arith.addf %50, %51 : vector<16x128xf32>
    %cst_41 = arith.constant 0.000000e+00 : f32
    %53 = vector.broadcast %cst_41 : f32 to vector<16x128xf32>
    %54 = arith.maximumf %52, %53 : vector<16x128xf32>
    %55 = arith.truncf %54 : vector<16x128xf32> to vector<16x128xbf16>
    %c0_42 = arith.constant 0 : index
    %c3 = arith.constant 3 : index
    %c0_43 = arith.constant 0 : index
    %c0_44 = arith.constant 0 : index
    %56 = vector.load %arg2[%c0_42, %c3, %c0_43, %c0_44] : memref<1x4x384x128xbf16, #tpu.memory_space<vmem>>, vector<1x1x384x128xbf16>
    %57 = vector.shape_cast %56 : vector<1x1x384x128xbf16> to vector<384x128xbf16>
    %c0_45 = arith.constant 0 : index
    %c3_46 = arith.constant 3 : index
    %c0_47 = arith.constant 0 : index
    %c0_48 = arith.constant 0 : index
    %58 = vector.load %arg4[%c0_45, %c3_46, %c0_47, %c0_48] : memref<1x5x1x128xf32, #tpu.memory_space<vmem>>, vector<1x1x1x128xf32>
    %59 = vector.shape_cast %58 : vector<1x1x1x128xf32> to vector<1x128xf32>
    %c0_49 = arith.constant 0 : index
    %c3_50 = arith.constant 3 : index
    %c0_51 = arith.constant 0 : index
    %c0_52 = arith.constant 0 : index
    %60 = vector.load %arg5[%c0_49, %c3_50, %c0_51, %c0_52] : memref<1x5x1x128xf32, #tpu.memory_space<vmem>>, vector<1x1x1x128xf32>
    %61 = vector.shape_cast %60 : vector<1x1x1x128xf32> to vector<1x128xf32>
    %62 = vector.extract_strided_slice %57 {offsets = [128, 0], sizes = [128, 128], strides = [1, 1]} : vector<384x128xbf16> to vector<128x128xbf16>
    %cst_53 = arith.constant dense<0.000000e+00> : vector<16x128xf32>
    %63 = tpu.matmul %55, %62, %cst_53 {dimension_numbers = #tpu.dot_dimension_numbers<[1], [0], [0], [1], [0, 0, 1, 1], [], []>} : vector<16x128xbf16>, vector<128x128xbf16>, vector<16x128xf32> -> vector<16x128xf32>
    %64 = vector.broadcast %59 : vector<1x128xf32> to vector<16x128xf32>
    %65 = arith.mulf %63, %64 : vector<16x128xf32>
    %66 = vector.broadcast %61 : vector<1x128xf32> to vector<16x128xf32>
    %67 = arith.addf %65, %66 : vector<16x128xf32>
    %cst_54 = arith.constant 0.000000e+00 : f32
    %68 = vector.broadcast %cst_54 : f32 to vector<16x128xf32>
    %69 = arith.maximumf %67, %68 : vector<16x128xf32>
    %70 = arith.truncf %69 : vector<16x128xf32> to vector<16x128xbf16>
    %c0_55 = arith.constant 0 : index
    %c0_56 = arith.constant 0 : index
    %c0_57 = arith.constant 0 : index
    %71 = vector.load %arg3[%c0_55, %c0_56, %c0_57] : memref<1x128x128xbf16, #tpu.memory_space<vmem>>, vector<1x128x128xbf16>
    %72 = vector.shape_cast %71 : vector<1x128x128xbf16> to vector<128x128xbf16>
    %c0_58 = arith.constant 0 : index
    %c4 = arith.constant 4 : index
    %c0_59 = arith.constant 0 : index
    %c0_60 = arith.constant 0 : index
    %73 = vector.load %arg4[%c0_58, %c4, %c0_59, %c0_60] : memref<1x5x1x128xf32, #tpu.memory_space<vmem>>, vector<1x1x1x128xf32>
    %74 = vector.shape_cast %73 : vector<1x1x1x128xf32> to vector<1x128xf32>
    %c0_61 = arith.constant 0 : index
    %c4_62 = arith.constant 4 : index
    %c0_63 = arith.constant 0 : index
    %c0_64 = arith.constant 0 : index
    %75 = vector.load %arg5[%c0_61, %c4_62, %c0_63, %c0_64] : memref<1x5x1x128xf32, #tpu.memory_space<vmem>>, vector<1x1x1x128xf32>
    %76 = vector.shape_cast %75 : vector<1x1x1x128xf32> to vector<1x128xf32>
    %cst_65 = arith.constant dense<0.000000e+00> : vector<16x128xf32>
    %77 = tpu.matmul %70, %72, %cst_65 {dimension_numbers = #tpu.dot_dimension_numbers<[1], [0], [0], [1], [0, 0, 1, 1], [], []>} : vector<16x128xbf16>, vector<128x128xbf16>, vector<16x128xf32> -> vector<16x128xf32>
    %78 = vector.broadcast %74 : vector<1x128xf32> to vector<16x128xf32>
    %79 = arith.mulf %77, %78 : vector<16x128xf32>
    %80 = vector.broadcast %76 : vector<1x128xf32> to vector<16x128xf32>
    %81 = arith.addf %79, %80 : vector<16x128xf32>
    %cst_66 = arith.constant 0.000000e+00 : f32
    %82 = vector.broadcast %cst_66 : f32 to vector<16x128xf32>
    %83 = arith.maximumf %81, %82 : vector<16x128xf32>
    %84 = arith.truncf %83 : vector<16x128xf32> to vector<16x128xbf16>
    %c0_67 = arith.constant 0 : index
    %c0_68 = arith.constant 0 : index
    %c0_69 = arith.constant 0 : index
    %85 = vector.load %arg6[%c0_67, %c0_68, %c0_69] : memref<1x128x48xbf16, #tpu.memory_space<vmem>>, vector<1x128x48xbf16>
    %86 = vector.shape_cast %85 : vector<1x128x48xbf16> to vector<128x48xbf16>
    %cst_70 = arith.constant dense<0.000000e+00> : vector<16x48xf32>
    %87 = tpu.matmul %84, %86, %cst_70 {dimension_numbers = #tpu.dot_dimension_numbers<[1], [0], [0], [1], [0, 0, 1, 1], [], []>} : vector<16x128xbf16>, vector<128x48xbf16>, vector<16x48xf32> -> vector<16x48xf32>
    %c0_71 = arith.constant 0 : index
    %c0_72 = arith.constant 0 : index
    %c0_73 = arith.constant 0 : index
    %88 = vector.load %arg7[%c0_71, %c0_72, %c0_73] : memref<1x1x48xf32, #tpu.memory_space<vmem>>, vector<1x1x48xf32>
    %89 = vector.shape_cast %88 : vector<1x1x48xf32> to vector<1x48xf32>
    %90 = vector.broadcast %89 : vector<1x48xf32> to vector<16x48xf32>
    %91 = arith.mulf %87, %90 : vector<16x48xf32>
    %c0_74 = arith.constant 0 : index
    %c0_75 = arith.constant 0 : index
    %c0_76 = arith.constant 0 : index
    %92 = vector.load %arg8[%c0_74, %c0_75, %c0_76] : memref<1x1x48xf32, #tpu.memory_space<vmem>>, vector<1x1x48xf32>
    %93 = vector.shape_cast %92 : vector<1x1x48xf32> to vector<1x48xf32>
    %94 = vector.broadcast %93 : vector<1x48xf32> to vector<16x48xf32>
    %95 = arith.addf %91, %94 : vector<16x48xf32>
    %cst_77 = arith.constant 0.000000e+00 : f32
    %96 = vector.broadcast %cst_77 : f32 to vector<16x48xf32>
    %97 = arith.maximumf %95, %96 : vector<16x48xf32>
    %98 = arith.truncf %97 : vector<16x48xf32> to vector<16x48xbf16>
    %c0_78 = arith.constant 0 : index
    %c0_79 = arith.constant 0 : index
    %c0_80 = arith.constant 0 : index
    %99 = vector.load %arg9[%c0_78, %c0_79, %c0_80] : memref<1x48x128xbf16, #tpu.memory_space<vmem>>, vector<1x48x128xbf16>
    %100 = vector.shape_cast %99 : vector<1x48x128xbf16> to vector<48x128xbf16>
    %cst_81 = arith.constant dense<0.000000e+00> : vector<16x128xf32>
    %101 = tpu.matmul %98, %100, %cst_81 {dimension_numbers = #tpu.dot_dimension_numbers<[1], [0], [0], [1], [0, 0, 1, 1], [], []>} : vector<16x48xbf16>, vector<48x128xbf16>, vector<16x128xf32> -> vector<16x128xf32>
    %c0_82 = arith.constant 0 : index
    %c0_83 = arith.constant 0 : index
    %c0_84 = arith.constant 0 : index
    %102 = vector.load %arg10[%c0_82, %c0_83, %c0_84] : memref<1x1x128xf32, #tpu.memory_space<vmem>>, vector<1x1x128xf32>
    %103 = vector.shape_cast %102 : vector<1x1x128xf32> to vector<1x128xf32>
    %104 = vector.broadcast %103 : vector<1x128xf32> to vector<16x128xf32>
    %105 = arith.addf %101, %104 : vector<16x128xf32>
    %c0_85 = arith.constant 0 : index
    %c0_86 = arith.constant 0 : index
    %c0_87 = arith.constant 0 : index
    %106 = vector.load %arg16[%c0_85, %c0_86, %c0_87] : memref<1x16x128xf32, #tpu.memory_space<vmem>>, vector<1x16x128xf32>
    %107 = vector.shape_cast %106 : vector<1x16x128xf32> to vector<16x128xf32>
    %108 = vector.shape_cast %105 : vector<16x128xf32> to vector<1x16x128xf32>
    tpu.vector_store %arg16[%c0_85, %c0_86, %c0_87], %108 {strides = array<i32>} : memref<1x16x128xf32, #tpu.memory_space<vmem>>, vector<1x16x128xf32>,
    %c0_88 = arith.constant 0 : index
    %c0_89 = arith.constant 0 : index
    %c0_90 = arith.constant 0 : index
    %109 = vector.load %arg11[%c0_88, %c0_89, %c0_90] : memref<1x128x128xbf16, #tpu.memory_space<vmem>>, vector<1x128x128xbf16>
    %110 = vector.shape_cast %109 : vector<1x128x128xbf16> to vector<128x128xbf16>
    %cst_91 = arith.constant dense<0.000000e+00> : vector<16x128xf32>
    %111 = tpu.matmul %84, %110, %cst_91 {dimension_numbers = #tpu.dot_dimension_numbers<[1], [0], [0], [1], [0, 0, 1, 1], [], []>} : vector<16x128xbf16>, vector<128x128xbf16>, vector<16x128xf32> -> vector<16x128xf32>
    %c0_92 = arith.constant 0 : index
    %c0_93 = arith.constant 0 : index
    %c0_94 = arith.constant 0 : index
    %112 = vector.load %arg12[%c0_92, %c0_93, %c0_94] : memref<1x1x128xf32, #tpu.memory_space<vmem>>, vector<1x1x128xf32>
    %113 = vector.shape_cast %112 : vector<1x1x128xf32> to vector<1x128xf32>
    %114 = vector.broadcast %113 : vector<1x128xf32> to vector<16x128xf32>
    %115 = arith.mulf %111, %114 : vector<16x128xf32>
    %c0_95 = arith.constant 0 : index
    %c0_96 = arith.constant 0 : index
    %c0_97 = arith.constant 0 : index
    %116 = vector.load %arg13[%c0_95, %c0_96, %c0_97] : memref<1x1x128xf32, #tpu.memory_space<vmem>>, vector<1x1x128xf32>
    %117 = vector.shape_cast %116 : vector<1x1x128xf32> to vector<1x128xf32>
    %118 = vector.broadcast %117 : vector<1x128xf32> to vector<16x128xf32>
    %119 = arith.addf %115, %118 : vector<16x128xf32>
    %cst_98 = arith.constant 0.000000e+00 : f32
    %120 = vector.broadcast %cst_98 : f32 to vector<16x128xf32>
    %121 = arith.maximumf %119, %120 : vector<16x128xf32>
    %122 = arith.truncf %121 : vector<16x128xf32> to vector<16x128xbf16>
    %c0_99 = arith.constant 0 : index
    %c0_100 = arith.constant 0 : index
    %c0_101 = arith.constant 0 : index
    %123 = vector.load %arg14[%c0_99, %c0_100, %c0_101] : memref<1x128x256xbf16, #tpu.memory_space<vmem>>, vector<1x128x256xbf16>
    %124 = vector.shape_cast %123 : vector<1x128x256xbf16> to vector<128x256xbf16>
    %cst_102 = arith.constant dense<0.000000e+00> : vector<16x256xf32>
    %125 = tpu.matmul %122, %124, %cst_102 {dimension_numbers = #tpu.dot_dimension_numbers<[1], [0], [0], [1], [0, 0, 1, 1], [], []>} : vector<16x128xbf16>, vector<128x256xbf16>, vector<16x256xf32> -> vector<16x256xf32>
    %c0_103 = arith.constant 0 : index
    %c0_104 = arith.constant 0 : index
    %c0_105 = arith.constant 0 : index
    %126 = vector.load %arg15[%c0_103, %c0_104, %c0_105] : memref<1x1x256xf32, #tpu.memory_space<vmem>>, vector<1x1x256xf32>
    %127 = vector.shape_cast %126 : vector<1x1x256xf32> to vector<1x256xf32>
    %128 = vector.broadcast %127 : vector<1x256xf32> to vector<16x256xf32>
    %129 = arith.addf %125, %128 : vector<16x256xf32>
    %c0_106 = arith.constant 0 : index
    %c0_107 = arith.constant 0 : index
    %c0_108 = arith.constant 0 : index
    %130 = vector.load %arg17[%c0_106, %c0_107, %c0_108] : memref<1x16x256xf32, #tpu.memory_space<vmem>>, vector<1x16x256xf32>
    %131 = vector.shape_cast %130 : vector<1x16x256xf32> to vector<16x256xf32>
    %132 = vector.shape_cast %129 : vector<16x256xf32> to vector<1x16x256xf32>
    tpu.vector_store %arg17[%c0_106, %c0_107, %c0_108], %132 {strides = array<i32>} : memref<1x16x256xf32, #tpu.memory_space<vmem>>, vector<1x16x256xf32>,
    return
  }
  func.func @transform_0(%arg0: i32) -> (i32, i32) {
    %c0_i32 = arith.constant 0 : i32
    %c0_i32_0 = arith.constant 0 : i32
    %c0_i32_1 = arith.constant 0 : i32
    return %c0_i32, %c0_i32_0 : i32, i32
  }
  func.func @transform_1(%arg0: i32) -> (i32, i32, i32, i32) {
    %c0_i32 = arith.constant 0 : i32
    %c0_i32_0 = arith.constant 0 : i32
    %c0_i32_1 = arith.constant 0 : i32
    %c0_i32_2 = arith.constant 0 : i32
    return %arg0, %c0_i32, %c0_i32_0, %c0_i32_1 : i32, i32, i32, i32
  }
  func.func @transform_2(%arg0: i32) -> (i32, i32, i32) {
    %c0_i32 = arith.constant 0 : i32
    %c0_i32_0 = arith.constant 0 : i32
    %c0_i32_1 = arith.constant 0 : i32
    return %arg0, %c0_i32, %c0_i32_0 : i32, i32, i32
  }
  func.func @transform_3(%arg0: i32) -> (i32, i32, i32, i32) {
    %c0_i32 = arith.constant 0 : i32
    %c0_i32_0 = arith.constant 0 : i32
    %c0_i32_1 = arith.constant 0 : i32
    %c0_i32_2 = arith.constant 0 : i32
    return %arg0, %c0_i32, %c0_i32_0, %c0_i32_1 : i32, i32, i32, i32
  }
  func.func @transform_4(%arg0: i32) -> (i32, i32, i32, i32) {
    %c0_i32 = arith.constant 0 : i32
    %c0_i32_0 = arith.constant 0 : i32
    %c0_i32_1 = arith.constant 0 : i32
    %c0_i32_2 = arith.constant 0 : i32
    return %arg0, %c0_i32, %c0_i32_0, %c0_i32_1 : i32, i32, i32, i32
  }
  func.func @transform_5(%arg0: i32) -> (i32, i32, i32) {
    %c0_i32 = arith.constant 0 : i32
    %c0_i32_0 = arith.constant 0 : i32
    %c0_i32_1 = arith.constant 0 : i32
    return %arg0, %c0_i32, %c0_i32_0 : i32, i32, i32
  }
  func.func @transform_6(%arg0: i32) -> (i32, i32, i32) {
    %c0_i32 = arith.constant 0 : i32
    %c0_i32_0 = arith.constant 0 : i32
    %c0_i32_1 = arith.constant 0 : i32
    return %arg0, %c0_i32, %c0_i32_0 : i32, i32, i32
  }
  func.func @transform_7(%arg0: i32) -> (i32, i32, i32) {
    %c0_i32 = arith.constant 0 : i32
    %c0_i32_0 = arith.constant 0 : i32
    %c0_i32_1 = arith.constant 0 : i32
    return %arg0, %c0_i32, %c0_i32_0 : i32, i32, i32
  }
  func.func @transform_8(%arg0: i32) -> (i32, i32, i32) {
    %c0_i32 = arith.constant 0 : i32
    %c0_i32_0 = arith.constant 0 : i32
    %c0_i32_1 = arith.constant 0 : i32
    return %arg0, %c0_i32, %c0_i32_0 : i32, i32, i32
  }
  func.func @transform_9(%arg0: i32) -> (i32, i32, i32) {
    %c0_i32 = arith.constant 0 : i32
    %c0_i32_0 = arith.constant 0 : i32
    %c0_i32_1 = arith.constant 0 : i32
    return %arg0, %c0_i32, %c0_i32_0 : i32, i32, i32
  }
  func.func @transform_10(%arg0: i32) -> (i32, i32, i32) {
    %c0_i32 = arith.constant 0 : i32
    %c0_i32_0 = arith.constant 0 : i32
    %c0_i32_1 = arith.constant 0 : i32
    return %arg0, %c0_i32, %c0_i32_0 : i32, i32, i32
  }
  func.func @transform_11(%arg0: i32) -> (i32, i32, i32) {
    %c0_i32 = arith.constant 0 : i32
    %c0_i32_0 = arith.constant 0 : i32
    %c0_i32_1 = arith.constant 0 : i32
    return %arg0, %c0_i32, %c0_i32_0 : i32, i32, i32
  }
  func.func @transform_12(%arg0: i32) -> (i32, i32, i32) {
    %c0_i32 = arith.constant 0 : i32
    %c0_i32_0 = arith.constant 0 : i32
    %c0_i32_1 = arith.constant 0 : i32
    return %arg0, %c0_i32, %c0_i32_0 : i32, i32, i32
  }
  func.func @transform_13(%arg0: i32) -> (i32, i32, i32) {
    %c0_i32 = arith.constant 0 : i32
    %c0_i32_0 = arith.constant 0 : i32
    %c0_i32_1 = arith.constant 0 : i32
    return %arg0, %c0_i32, %c0_i32_0 : i32, i32, i32
  }
  func.func @transform_14(%arg0: i32) -> (i32, i32, i32) {
    %c0_i32 = arith.constant 0 : i32
    %c0_i32_0 = arith.constant 0 : i32
    %c0_i32_1 = arith.constant 0 : i32
    return %arg0, %c0_i32, %c0_i32_0 : i32, i32, i32
  }
  func.func @transform_15(%arg0: i32) -> (i32, i32, i32) {
    %c0_i32 = arith.constant 0 : i32
    %c0_i32_0 = arith.constant 0 : i32
    %c0_i32_1 = arith.constant 0 : i32
    return %arg0, %c0_i32, %c0_i32_0 : i32, i32, i32
  }
  func.func @transform_16(%arg0: i32) -> (i32, i32, i32) {
    %c0_i32 = arith.constant 0 : i32
    %c0_i32_0 = arith.constant 0 : i32
    %c0_i32_1 = arith.constant 0 : i32
    return %arg0, %c0_i32, %c0_i32_0 : i32, i32, i32
  }
}

</mosaic_0001>

<llo_original>
// kernel: e2enet_forward.3
$region0: #{e2enet_forward.3}
  #allocation0 [shape = 'u32[]', space=smem, size = 0x4, offset = 0x4, fixed_abs, tag = 'smem constant byte address 0x4 - core index']
  #allocation1 [shape = 'u32[144,128]{1,0:T(1,128)}', space=vmem, size = 0x12000, scoped, tag = 'internal scratch']
  %s0 = inlined_call_operand.vmem [shape: bf16[512,27], index: 0, kind: input, shape index: {}]
  %s1 = inlined_call_operand.hbm [shape: bf16[27,128], index: 1, kind: input, shape index: {}]
  %s2 = inlined_call_operand.hbm [shape: f32[1,128], index: 2, kind: input, shape index: {}]
  %s3 = inlined_call_operand.hbm [shape: f32[1,128], index: 3, kind: input, shape index: {}]
  %s4 = inlined_call_operand.vmem [shape: bf16[512,128], index: 4, kind: output, shape index: {}]
  %s5 = sld [smem:[#allocation0]]
  $region61: #{e2enet_forward.3} parent=0
    _
  %s7 = ssub.s32 1, %s5
  %s8 = scalar_select 0, %s7, %s5
  $region1: #{e2enet_forward.3} parent=0
    #allocation2 [shape = 'u8[8192]{0}', space=vmem, size = 0x2000, scoped, tag = 'input window, operand 1, single buffered']
    #allocation3 [shape = 's32[2]{0}', space=sflag, size = 0x8, scoped, tag = 'scoped memory for e2enet_forward.3']
    #allocation4 [shape = 'u8[512]{0}', space=vmem, size = 0x400, scoped, tag = 'input window, operand 2, single buffered']
    #allocation5 [shape = 's32[1]{0}', space=sflag, size = 0x4, scoped, tag = 'scoped memory for e2enet_forward.3']
    #allocation6 [shape = 'u8[512]{0}', space=vmem, size = 0x400, scoped, tag = 'input window, operand 3, single buffered']
    %9 = vsyncpa [#allocation3], 0
    %10 = vsyncpa [#allocation5], 0
    loop: start=0, step=1, limit=4
    $region2: #{e2enet_forward.3} parent=1 // loop_pre_header
      _
    $region3: #{e2enet_forward.3} parent=1 // loop_header
      %s12 = sphi 0, %s16
      %p13 = scmp.ge.s32.totalorder %s12, 4
      %s22 = sphi 0, %s24
      %s25 = sphi 0, %s22
      %s26 = sphi 0, %s25
      %s42 = sphi 0, %s26
      %s46 = sphi 0, %s46
      %s48 = sphi 0, %s46
      %s49 = sphi 0, %s48
      %s63 = sphi 0, %s49
      %s67 = sphi 0, %s67
      %s69 = sphi 0, %s67
      %s70 = sphi 0, %s69
      %s84 = sphi 0, %s70
      %s88 = sphi 0, %s88
      %s90 = sphi 0, %s88
      %s91 = sphi 0, %s90
      %s105 = sphi 0, %s91
      %s111 = sphi 0, %s113
      %s114 = sphi 0, %s111
      %s115 = sphi 0, %s114
      %s131 = sphi 0, %s115
    $region4: #{e2enet_forward.3} parent=1 // loop_header_branch
      %15 = sbr.rel (%p13) target = $region8
    $region5: #{e2enet_forward.3} parent=1 // loop_body
      %s17 = ssub.s32 %s12, 1
      %s18 = ssub.s32 %s12, 2
      %s19 = sadd.s32 %s12, 1
      %s20 = ssub.s32 %s12, %s19
      %p21 = scmp.eq.s32.totalorder %s20, 0
      %s23 = sadd.s32 %s22, 1
      %s24 = scalar_select %p21, %s22, %s23
      %p27 = pneg %p21
      %p28 = scmp.eq.s32.totalorder %s12, 1
      %p29 = por %p27, %p28
      %p30 = scmp.ne.s32.totalorder %s22, %s25
      %p31 = scmp.eq.s32.totalorder %s12, 0
      %p32 = por %p30, %p31
      %p33 = scmp.ne.s32.totalorder %s22, %s25
      %p34 = scmp.eq.s32.totalorder %s17, 1
      %p35 = por %p33, %p34
      %p36 = scmp.ne.s32.totalorder %s25, %s26
      %p37 = scmp.eq.s32.totalorder %s17, 0
      %p38 = por %p36, %p37
      %p39 = scmp.ne.s32.totalorder %s25, %s26
      %p40 = scmp.eq.s32.totalorder %s18, 1
      %p41 = por %p39, %p40
      %p43 = scmp.ne.s32.totalorder %s26, %s42
      %p44 = scmp.eq.s32.totalorder %s18, 0
      %p45 = por %p43, %p44
      %s47 = sadd.s32 %s46, 1
      %p50 = scmp.eq.s32.totalorder %s12, 1
      %p51 = scmp.ne.s32.totalorder %s46, %s48
      %p52 = scmp.eq.s32.totalorder %s12, 0
      %p53 = por %p51, %p52
      %p54 = scmp.ne.s32.totalorder %s46, %s48
      %p55 = scmp.eq.s32.totalorder %s17, 1
      %p56 = por %p54, %p55
      %p57 = scmp.ne.s32.totalorder %s48, %s49
      %p58 = scmp.eq.s32.totalorder %s17, 0
      %p59 = por %p57, %p58
      %p60 = scmp.ne.s32.totalorder %s48, %s49
      %p61 = scmp.eq.s32.totalorder %s18, 1
      %p62 = por %p60, %p61
      %p64 = scmp.ne.s32.totalorder %s49, %s63
      %p65 = scmp.eq.s32.totalorder %s18, 0
      %p66 = por %p64, %p65
      %s68 = sadd.s32 %s67, 1
      %p71 = scmp.eq.s32.totalorder %s12, 1
      %p72 = scmp.ne.s32.totalorder %s67, %s69
      %p73 = scmp.eq.s32.totalorder %s12, 0
      %p74 = por %p72, %p73
      %p75 = scmp.ne.s32.totalorder %s67, %s69
      %p76 = scmp.eq.s32.totalorder %s17, 1
      %p77 = por %p75, %p76
      %p78 = scmp.ne.s32.totalorder %s69, %s70
      %p79 = scmp.eq.s32.totalorder %s17, 0
      %p80 = por %p78, %p79
      %p81 = scmp.ne.s32.totalorder %s69, %s70
      %p82 = scmp.eq.s32.totalorder %s18, 1
      %p83 = por %p81, %p82
      %p85 = scmp.ne.s32.totalorder %s70, %s84
      %p86 = scmp.eq.s32.totalorder %s18, 0
      %p87 = por %p85, %p86
      %s89 = sadd.s32 %s88, 1
      %p92 = scmp.eq.s32.totalorder %s12, 1
      %p93 = scmp.ne.s32.totalorder %s88, %s90
      %p94 = scmp.eq.s32.totalorder %s12, 0
      %p95 = por %p93, %p94
      %p96 = scmp.ne.s32.totalorder %s88, %s90
      %p97 = scmp.eq.s32.totalorder %s17, 1
      %p98 = por %p96, %p97
      %p99 = scmp.ne.s32.totalorder %s90, %s91
      %p100 = scmp.eq.s32.totalorder %s17, 0
      %p101 = por %p99, %p100
      %p102 = scmp.ne.s32.totalorder %s90, %s91
      %p103 = scmp.eq.s32.totalorder %s18, 1
      %p104 = por %p102, %p103
      %p106 = scmp.ne.s32.totalorder %s91, %s105
      %p107 = scmp.eq.s32.totalorder %s18, 0
      %p108 = por %p106, %p107
      %s109 = ssub.s32 %s12, %s19
      %p110 = scmp.eq.s32.totalorder %s109, 0
      %s112 = sadd.s32 %s111, 1
      %s113 = scalar_select %p110, %s111, %s112
      %p116 = pneg %p110
      %p117 = scmp.eq.s32.totalorder %s12, 1
      %p118 = por %p116, %p117
      %p119 = scmp.ne.s32.totalorder %s111, %s114
      %p120 = scmp.eq.s32.totalorder %s12, 0
      %p121 = por %p119, %p120
      %p122 = scmp.ne.s32.totalorder %s111, %s114
      %p123 = scmp.eq.s32.totalorder %s17, 1
      %p124 = por %p122, %p123
      %p125 = scmp.ne.s32.totalorder %s114, %s115
      %p126 = scmp.eq.s32.totalorder %s17, 0
      %p127 = por %p125, %p126
      %p128 = scmp.ne.s32.totalorder %s114, %s115
      %p129 = scmp.eq.s32.totalorder %s18, 1
      %p130 = por %p128, %p129
      %p132 = scmp.ne.s32.totalorder %s115, %s131
      %p133 = scmp.eq.s32.totalorder %s18, 0
      %p134 = por %p132, %p133
      %p135 = scmp.le.s32.totalorder 1, %s12
      %p136 = scmp.lt.s32.totalorder %s12, 3
      %p137 = pnand %p135, %p136
      %p138 = pneg %p137
      // Predicated region
      $region9: #{e2enet_forward.3} parent=5 // pred_check
        _
      $region10: #{e2enet_forward.3} parent=5 // pred_check_branch
        %140 = sbr.rel (%p137) target = $region12
      $region11: #{e2enet_forward.3} parent=5 // pred_region
        %s141 = ssub.s32 %s12, 1
        // Predicated region
        $region13: #{e2enet_forward.3} parent=11 // pred_check
          %p142 = pneg %p59
        $region14: #{e2enet_forward.3} parent=11 // pred_check_branch
          %144 = sbr.rel (%p142) target = $region16
        $region15: #{e2enet_forward.3} parent=11 // pred_region
          %s146 = ssub.s32 256, 256
          %147 = vsyncadd [#allocation3], %s146
          %s148 = sshll.u32 [#allocation2], 4
          %s149 = int_to_ptr.vmem [resolvable:$true] %s148
          %154 = dma.hbm_to_vmem [thread:$0]  %s1, 256, %s149, [#allocation3], 64, 64, 4
        $region16: #{e2enet_forward.3} parent=11 // pred_fallthru
          _
        // Predicated region
        $region17: #{e2enet_forward.3} parent=11 // pred_check
          %p155 = pneg %p80
        $region18: #{e2enet_forward.3} parent=11 // pred_check_branch
          %157 = sbr.rel (%p155) target = $region20
        $region19: #{e2enet_forward.3} parent=11 // pred_region
          %s159 = ssub.s32 16, 16
          %160 = vsyncadd [#allocation5], %s159
          %s162 = sshll.u32 [#allocation4], 4
          %s163 = int_to_ptr.vmem [resolvable:$true] %s162
          %165 = dma.hbm_to_vmem [thread:$0]  %s2, 16, %s163, [#allocation5]
        $region20: #{e2enet_forward.3} parent=11 // pred_fallthru
          _
        // Predicated region
        $region21: #{e2enet_forward.3} parent=11 // pred_check
          %p166 = pneg %p101
        $region22: #{e2enet_forward.3} parent=11 // pred_check_branch
          %168 = sbr.rel (%p166) target = $region24
        $region23: #{e2enet_forward.3} parent=11 // pred_region
          %s170 = ssub.s32 16, 16
          %171 = vsyncadd [#allocation5], %s170
          %s173 = sshll.u32 [#allocation6], 4
          %s174 = int_to_ptr.vmem [resolvable:$true] %s173
          %176 = dma.hbm_to_vmem [thread:$0]  %s3, 16, %s174, [#allocation5]
        $region24: #{e2enet_forward.3} parent=11 // pred_fallthru
          _
      $region12: #{e2enet_forward.3} parent=5 // pred_fallthru
        _
      %p177 = scmp.lt.s32.totalorder %s12, 2
      // Predicated region
      $region25: #{e2enet_forward.3} parent=5 // pred_check
        %p178 = pneg %p177
      $region26: #{e2enet_forward.3} parent=5 // pred_check_branch
        %180 = sbr.rel (%p178) target = $region28
      $region27: #{e2enet_forward.3} parent=5 // pred_region
        // Predicated region
        $region29: #{e2enet_forward.3} parent=27 // pred_check
          %p181 = pneg %p32
        $region30: #{e2enet_forward.3} parent=27 // pred_check_branch
          %183 = sbr.rel (%p181) target = $region32
        $region31: #{e2enet_forward.3} parent=27 // pred_region
          %s184 = smul.u32 32, %s12
          %p185 = scmp.lt.s32.totalorder %s184, 63
          %s186 = scalar_select %p185, %s184, 63
          %s187 = smul.addr %s186, 4
          %s188 = scalar_lea.vmem %s0, %s187
          %s189 = smul.u32 32, %s12
        $region32: #{e2enet_forward.3} parent=27 // pred_fallthru
          _
      $region28: #{e2enet_forward.3} parent=5 // pred_fallthru
        _
      %p190 = scmp.le.s32.totalorder 1, %s12
      %p191 = scmp.lt.s32.totalorder %s12, 3
      %p192 = pnand %p190, %p191
      %p193 = pneg %p192
      // Predicated region
      $region33: #{e2enet_forward.3} parent=5 // pred_check
        _
      $region34: #{e2enet_forward.3} parent=5 // pred_check_branch
        %195 = sbr.rel (%p192) target = $region36
      $region35: #{e2enet_forward.3} parent=5 // pred_region
        %s196 = ssub.s32 %s12, 1
        // Predicated region
        $region37: #{e2enet_forward.3} parent=35 // pred_check
          %p197 = pneg %p59
        $region38: #{e2enet_forward.3} parent=35 // pred_check_branch
          %199 = sbr.rel (%p197) target = $region40
        $region39: #{e2enet_forward.3} parent=35 // pred_region
          %200 = dma.done [#allocation3], 256
        $region40: #{e2enet_forward.3} parent=35 // pred_fallthru
          _
        // Predicated region
        $region41: #{e2enet_forward.3} parent=35 // pred_check
          %p201 = pneg %p80
        $region42: #{e2enet_forward.3} parent=35 // pred_check_branch
          %203 = sbr.rel (%p201) target = $region44
        $region43: #{e2enet_forward.3} parent=35 // pred_region
          %204 = dma.done [#allocation5], 16
        $region44: #{e2enet_forward.3} parent=35 // pred_fallthru
          _
        // Predicated region
        $region45: #{e2enet_forward.3} parent=35 // pred_check
          %p205 = pneg %p101
        $region46: #{e2enet_forward.3} parent=35 // pred_check_branch
          %207 = sbr.rel (%p205) target = $region48
        $region47: #{e2enet_forward.3} parent=35 // pred_region
          %208 = dma.done [#allocation5], 16
        $region48: #{e2enet_forward.3} parent=35 // pred_fallthru
          _
        %s209 = smul.u32 32, %s17
        %p210 = scmp.lt.s32.totalorder %s209, 63
        %s211 = scalar_select %p210, %s209, 63
        %s212 = smul.addr %s211, 4
        %s213 = scalar_lea.vmem %s0, %s212
        %p214 = pneg %p38
        %p215 = pneg %p35
        %p216 = pneg %p59
        %p217 = pneg %p56
        %p218 = pneg %p80
        %p219 = pneg %p77
        %p220 = pneg %p101
        %p221 = pneg %p98
        %p222 = pneg %p127
        %p223 = pneg %p124
        %s224 = smul.u32 32, %s17
        %p225 = scmp.lt.s32.totalorder %s224, 63
        %s226 = scalar_select %p225, %s224, 63
        %s227 = smul.addr %s226, 4
        %s228 = scalar_lea.vmem %s4, %s227
        %s229 = smul.u32 32, %s17
        %p230 = scmp.lt.s32.totalorder %s229, 63
        %s231 = scalar_select %p230, %s229, 63
        %s232 = smul.addr %s231, 4
        %s233 = scalar_lea.vmem %s0, %s232
        %s234 = smul.u32 32, %s17
        %s235 = smul.u32 32, %s17
        %p236 = scmp.lt.s32.totalorder %s235, 63
        %s237 = scalar_select %p236, %s235, 63
        %s238 = smul.addr %s237, 4
        %s239 = scalar_lea.vmem %s4, %s238
        %s240 = smul.u32 32, %s17
        %v242 = vld [vmem:[%s233] sm:$0xf]
        %v243 = vld [vmem:[%s233 + $0x4] sm:$0xf]
        %v244 = vld [vmem:[%s233 + $0x8] sm:$0xf]
        %v245 = vld [vmem:[%s233 + $0xc] sm:$0xf]
        %v246 = vld [vmem:[%s233 + $0x10] sm:$0xf]
        %v247 = vld [vmem:[%s233 + $0x14] sm:$0xf]
        %v248 = vld [vmem:[%s233 + $0x18] sm:$0xf]
        %v249 = vld [vmem:[%s233 + $0x1c] sm:$0xf]
        %v250 = vld [vmem:[%s233 + $0x20] sm:$0xf]
        %v251 = vld [vmem:[%s233 + $0x24] sm:$0xf]
        %v252 = vld [vmem:[%s233 + $0x28] sm:$0xf]
        %v253 = vld [vmem:[%s233 + $0x2c] sm:$0xf]
        %v254 = vld [vmem:[%s233 + $0x30] sm:$0xf]
        %v255 = vld [vmem:[%s233 + $0x34] sm:$0xf]
        %v256 = vld [vmem:[%s233 + $0x38] sm:$0xf]
        %v257 = vld [vmem:[%s233 + $0x3c] sm:$0xf]
        %v258 = vld [vmem:[%s233 + $0x40] sm:$0xf]
        %v259 = vld [vmem:[%s233 + $0x44] sm:$0xf]
        %v260 = vld [vmem:[%s233 + $0x48] sm:$0xf]
        %v261 = vld [vmem:[%s233 + $0x4c] sm:$0xf]
        %v262 = vld [vmem:[%s233 + $0x50] sm:$0xf]
        %v263 = vld [vmem:[%s233 + $0x54] sm:$0xf]
        %v264 = vld [vmem:[%s233 + $0x58] sm:$0xf]
        %v265 = vld [vmem:[%s233 + $0x5c] sm:$0xf]
        %v266 = vld [vmem:[%s233 + $0x60] sm:$0xf]
        %v267 = vld [vmem:[%s233 + $0x64] sm:$0xf]
        %v268 = vld [vmem:[%s233 + $0x68] sm:$0xf]
        %v269 = vld [vmem:[%s233 + $0x6c] sm:$0xf]
        %v270 = vld [vmem:[%s233 + $0x70] sm:$0xf]
        %v271 = vld [vmem:[%s233 + $0x74] sm:$0xf]
        %v272 = vld [vmem:[%s233 + $0x78] sm:$0xf]
        %v273 = vld [vmem:[%s233 + $0x7c] sm:$0xf]
        %v274 = vld [vmem:[#allocation2] sm:$0xf]
        %v275 = vld [vmem:[#allocation2 + $0x4] sm:$0xf]
        %v276 = vld [vmem:[#allocation2 + $0x8] sm:$0xf]
        %v277 = vld [vmem:[#allocation2 + $0xc] sm:$0x3]
        %v310 = vunpack.c.l.b16 %v242
        %v311 = vunpack.c.l.b16 %v243
        %v312 = vunpack.c.l.b16 %v244
        %v313 = vunpack.c.l.b16 %v245
        %v314 = vunpack.c.l.b16 %v246
        %v315 = vunpack.c.l.b16 %v247
        %v316 = vunpack.c.l.b16 %v248
        %v317 = vunpack.c.l.b16 %v249
        %v318 = vunpack.c.l.b16 %v250
        %v319 = vunpack.c.l.b16 %v251
        %v320 = vunpack.c.l.b16 %v252
        %v321 = vunpack.c.l.b16 %v253
        %v322 = vunpack.c.l.b16 %v254
        %v323 = vunpack.c.l.b16 %v255
        %v324 = vunpack.c.l.b16 %v256
        %v325 = vunpack.c.l.b16 %v257
        %v326 = vunpack.c.l.b16 %v258
        %v327 = vunpack.c.l.b16 %v259
        %v328 = vunpack.c.l.b16 %v260
        %v329 = vunpack.c.l.b16 %v261
        %v330 = vunpack.c.l.b16 %v262
        %v331 = vunpack.c.l.b16 %v263
        %v332 = vunpack.c.l.b16 %v264
        %v333 = vunpack.c.l.b16 %v265
        %v334 = vunpack.c.l.b16 %v266
        %v335 = vunpack.c.l.b16 %v267
        %v336 = vunpack.c.l.b16 %v268
        %v337 = vunpack.c.l.b16 %v269
        %v338 = vunpack.c.l.b16 %v270
        %v339 = vunpack.c.l.b16 %v271
        %v340 = vunpack.c.l.b16 %v272
        %v341 = vunpack.c.l.b16 %v273
        %v342 = vpack.c.b16 %v311, %v310
        %v343 = vpack.c.b16 %v313, %v312
        %v344 = vpack.c.b16 %v315, %v314
        %v345 = vpack.c.b16 %v317, %v316
        %v346 = vpack.c.b16 %v319, %v318
        %v347 = vpack.c.b16 %v321, %v320
        %v348 = vpack.c.b16 %v323, %v322
        %v349 = vpack.c.b16 %v325, %v324
        %v350 = vpack.c.b16 %v327, %v326
        %v351 = vpack.c.b16 %v329, %v328
        %v352 = vpack.c.b16 %v331, %v330
        %v353 = vpack.c.b16 %v333, %v332
        %v354 = vpack.c.b16 %v335, %v334
        %v355 = vpack.c.b16 %v337, %v336
        %v356 = vpack.c.b16 %v339, %v338
        %v357 = vpack.c.b16 %v341, %v340
        %v362 = vunpack.c.l.b16 %v274
        %v363 = vunpack.c.l.b16 %v275
        %v364 = vunpack.c.l.b16 %v276
        %v365 = vunpack.c.l.b16 %v277
        %v366 = vpack.c.b16 %v363, %v362
        %v367 = vpack.c.b16 %v365, %v364
        %vm369 = vcmask 220160
        %v371 = vsel %vm369, %v342, 0
        %v374 = vsel %vm369, %v343, 0
        %v377 = vsel %vm369, %v344, 0
        %v380 = vsel %vm369, %v345, 0
        %v383 = vsel %vm369, %v346, 0
        %v386 = vsel %vm369, %v347, 0
        %v389 = vsel %vm369, %v348, 0
        %v392 = vsel %vm369, %v349, 0
        %v395 = vsel %vm369, %v350, 0
        %v398 = vsel %vm369, %v351, 0
        %v401 = vsel %vm369, %v352, 0
        %v404 = vsel %vm369, %v353, 0
        %v407 = vsel %vm369, %v354, 0
        %v410 = vsel %vm369, %v355, 0
        %v413 = vsel %vm369, %v356, 0
        %v416 = vsel %vm369, %v357, 0
        %vm418 = vcmask 1044480
        %vm419 = vcmask 1045504
        %v420 = vsel %vm418, 4294967295, 65535
        %v421 = vsel %vm419, %v420, 0
        %v423 = vand.u32 %v367, %v421
        %425 = vmatprep.subr.bf16.mxu0 0
        %426 = vmatpush1.bf16.msra.mxu0 %v366
        %427 = vmatprep.subr.bf16.mxu0 0
        %428 = vmatpush1.bf16.msra.mxu0 %v423
        %429 = vmatprep.subr.bf16.mxu0 0
        %430 = vmatpush1.bf16.msra.mxu0 0
        %431 = vmatprep.subr.bf16.mxu0 0
        %432 = vmatpush1.bf16.msra.mxu0 0
        %433 = vmatprep.subr.bf16.mxu0 0
        %434 = vmatpush1.bf16.msra.mxu0 0
        %435 = vmatprep.subr.bf16.mxu0 0
        %436 = vmatpush1.bf16.msra.mxu0 0
        %437 = vmatprep.subr.bf16.mxu0 0
        %438 = vmatpush1.bf16.msra.mxu0 0
        %439 = vmatprep.subr.bf16.mxu0 0
        %440 = vmatpush1.bf16.msra.mxu0 0
        %441 = vmatprep.subr.bf16.mxu0 0
        %442 = vmatpush1.bf16.msra.mxu0 0
        %443 = vmatprep.subr.bf16.mxu0 0
        %444 = vmatpush1.bf16.msra.mxu0 0
        %445 = vmatprep.subr.bf16.mxu0 0
        %446 = vmatpush1.bf16.msra.mxu0 0
        %447 = vmatprep.subr.bf16.mxu0 0
        %448 = vmatpush1.bf16.msra.mxu0 0
        %449 = vmatprep.subr.bf16.mxu0 0
        %450 = vmatpush1.bf16.msra.mxu0 0
        %451 = vmatprep.subr.bf16.mxu0 0
        %452 = vmatpush1.bf16.msra.mxu0 0
        %453 = vmatprep.subr.bf16.mxu0 0
        %454 = vmatpush1.bf16.msra.mxu0 0
        %455 = vmatprep.subr.bf16.mxu0 0
        %456 = vmatpush1.bf16.msra.mxu0 0
        %457 = vmatprep.mubr.bf16.mxu0 0
        %458 = vmatmul.mubr.bf16.gmra.mrb[0].mxu0 %v371
        %v459 = vpop.f32.mrb[0].mxu0
        %v460 = vadd.f32 0.0, %v459
        %v461 = vpop.f32.mrb[0].mxu0
        %v462 = vpop.f32.mrb[0].mxu0
        %v463 = vadd.f32 0.0, %v462
        %v464 = vpop.f32.mrb[0].mxu0
        %465 = vmatprep.mubr.bf16.mxu0 0
        %466 = vmatmul.mubr.bf16.gmra.mrb[0].mxu0 %v374
        %v467 = vpop.f32.mrb[0].mxu0
        %v468 = vadd.f32 0.0, %v467
        %v469 = vpop.f32.mrb[0].mxu0
        %v470 = vpop.f32.mrb[0].mxu0
        %v471 = vadd.f32 0.0, %v470
        %v472 = vpop.f32.mrb[0].mxu0
        %473 = vmatprep.mubr.bf16.mxu0 0
        %474 = vmatmul.mubr.bf16.gmra.mrb[0].mxu0 %v377
        %v475 = vpop.f32.mrb[0].mxu0
        %v476 = vadd.f32 0.0, %v475
        %v477 = vpop.f32.mrb[0].mxu0
        %v478 = vpop.f32.mrb[0].mxu0
        %v479 = vadd.f32 0.0, %v478
        %v480 = vpop.f32.mrb[0].mxu0
        %481 = vmatprep.mubr.bf16.mxu0 0
        %482 = vmatmul.mubr.bf16.gmra.mrb[0].mxu0 %v380
        %v483 = vpop.f32.mrb[0].mxu0
        %v484 = vadd.f32 0.0, %v483
        %v485 = vpop.f32.mrb[0].mxu0
        %v486 = vpop.f32.mrb[0].mxu0
        %v487 = vadd.f32 0.0, %v486
        %v488 = vpop.f32.mrb[0].mxu0
        %489 = vmatprep.mubr.bf16.mxu0 0
        %490 = vmatmul.mubr.bf16.gmra.mrb[0].mxu0 %v383
        %v491 = vpop.f32.mrb[0].mxu0
        %v492 = vadd.f32 0.0, %v491
        %v493 = vpop.f32.mrb[0].mxu0
        %v494 = vpop.f32.mrb[0].mxu0
        %v495 = vadd.f32 0.0, %v494
        %v496 = vpop.f32.mrb[0].mxu0
        %497 = vmatprep.mubr.bf16.mxu0 0
        %498 = vmatmul.mubr.bf16.gmra.mrb[0].mxu0 %v386
        %v499 = vpop.f32.mrb[0].mxu0
        %v500 = vadd.f32 0.0, %v499
        %v501 = vpop.f32.mrb[0].mxu0
        %v502 = vpop.f32.mrb[0].mxu0
        %v503 = vadd.f32 0.0, %v502
        %v504 = vpop.f32.mrb[0].mxu0
        %505 = vmatprep.mubr.bf16.mxu0 0
        %506 = vmatmul.mubr.bf16.gmra.mrb[0].mxu0 %v389
        %v507 = vpop.f32.mrb[0].mxu0
        %v508 = vadd.f32 0.0, %v507
        %v509 = vpop.f32.mrb[0].mxu0
        %v510 = vpop.f32.mrb[0].mxu0
        %v511 = vadd.f32 0.0, %v510
        %v512 = vpop.f32.mrb[0].mxu0
        %513 = vmatprep.mubr.bf16.mxu0 0
        %514 = vmatmul.mubr.bf16.gmra.mrb[0].mxu0 %v392
        %v515 = vpop.f32.mrb[0].mxu0
        %v516 = vadd.f32 0.0, %v515
        %v517 = vpop.f32.mrb[0].mxu0
        %v518 = vpop.f32.mrb[0].mxu0
        %v519 = vadd.f32 0.0, %v518
        %v520 = vpop.f32.mrb[0].mxu0
        %521 = vmatprep.mubr.bf16.mxu0 0
        %522 = vmatmul.mubr.bf16.gmra.mrb[0].mxu0 %v395
        %v523 = vpop.f32.mrb[0].mxu0
        %v524 = vadd.f32 0.0, %v523
        %v525 = vpop.f32.mrb[0].mxu0
        %v526 = vpop.f32.mrb[0].mxu0
        %v527 = vadd.f32 0.0, %v526
        %v528 = vpop.f32.mrb[0].mxu0
        %529 = vmatprep.mubr.bf16.mxu0 0
        %530 = vmatmul.mubr.bf16.gmra.mrb[0].mxu0 %v398
        %v531 = vpop.f32.mrb[0].mxu0
        %v532 = vadd.f32 0.0, %v531
        %v533 = vpop.f32.mrb[0].mxu0
        %v534 = vpop.f32.mrb[0].mxu0
        %v535 = vadd.f32 0.0, %v534
        %v536 = vpop.f32.mrb[0].mxu0
        %537 = vmatprep.mubr.bf16.mxu0 0
        %538 = vmatmul.mubr.bf16.gmra.mrb[0].mxu0 %v401
        %v539 = vpop.f32.mrb[0].mxu0
        %v540 = vadd.f32 0.0, %v539
        %v541 = vpop.f32.mrb[0].mxu0
        %v542 = vpop.f32.mrb[0].mxu0
        %v543 = vadd.f32 0.0, %v542
        %v544 = vpop.f32.mrb[0].mxu0
        %545 = vmatprep.mubr.bf16.mxu0 0
        %546 = vmatmul.mubr.bf16.gmra.mrb[0].mxu0 %v404
        %v547 = vpop.f32.mrb[0].mxu0
        %v548 = vadd.f32 0.0, %v547
        %v549 = vpop.f32.mrb[0].mxu0
        %v550 = vpop.f32.mrb[0].mxu0
        %v551 = vadd.f32 0.0, %v550
        %v552 = vpop.f32.mrb[0].mxu0
        %553 = vmatprep.mubr.bf16.mxu0 0
        %554 = vmatmul.mubr.bf16.gmra.mrb[0].mxu0 %v407
        %v555 = vpop.f32.mrb[0].mxu0
        %v556 = vadd.f32 0.0, %v555
        %v557 = vpop.f32.mrb[0].mxu0
        %v558 = vpop.f32.mrb[0].mxu0
        %v559 = vadd.f32 0.0, %v558
        %v560 = vpop.f32.mrb[0].mxu0
        %561 = vmatprep.mubr.bf16.mxu0 0
        %562 = vmatmul.mubr.bf16.gmra.mrb[0].mxu0 %v410
        %v563 = vpop.f32.mrb[0].mxu0
        %v564 = vadd.f32 0.0, %v563
        %v565 = vpop.f32.mrb[0].mxu0
        %v566 = vpop.f32.mrb[0].mxu0
        %v567 = vadd.f32 0.0, %v566
        %v568 = vpop.f32.mrb[0].mxu0
        %569 = vmatprep.mubr.bf16.mxu0 0
        %570 = vmatmul.mubr.bf16.gmra.mrb[0].mxu0 %v413
        %v571 = vpop.f32.mrb[0].mxu0
        %v572 = vadd.f32 0.0, %v571
        %v573 = vpop.f32.mrb[0].mxu0
        %v574 = vpop.f32.mrb[0].mxu0
        %v575 = vadd.f32 0.0, %v574
        %v576 = vpop.f32.mrb[0].mxu0
        %577 = vmatprep.mubr.bf16.mxu0 0
        %578 = vmatmul.mubr.bf16.gmra.mrb[0].mxu0 %v416
        %v579 = vpop.f32.mrb[0].mxu0
        %v580 = vadd.f32 0.0, %v579
        %v581 = vpop.f32.mrb[0].mxu0
        %v582 = vpop.f32.mrb[0].mxu0
        %v583 = vadd.f32 0.0, %v582
        %v584 = vpop.f32.mrb[0].mxu0
        %585 = vdwg.mxu0
        %v586 = vld [vmem:[#allocation4] sm:$0x1]
        %v588 = vlaneseq
        %v589 = vshrl.u32 %v588, 7
        %v590 = vsub.s32 0, %v589
        %v591 = vrot.slane %v586, %v590
        %v593 = vmul.f32 %v460, %v591
        %v594 = vmul.f32 %v463, %v591
        %v595 = vmul.f32 %v468, %v591
        %v596 = vmul.f32 %v471, %v591
        %v597 = vmul.f32 %v476, %v591
        %v598 = vmul.f32 %v479, %v591
        %v599 = vmul.f32 %v484, %v591
        %v600 = vmul.f32 %v487, %v591
        %v601 = vmul.f32 %v492, %v591
        %v602 = vmul.f32 %v495, %v591
        %v603 = vmul.f32 %v500, %v591
        %v604 = vmul.f32 %v503, %v591
        %v605 = vmul.f32 %v508, %v591
        %v606 = vmul.f32 %v511, %v591
        %v607 = vmul.f32 %v516, %v591
        %v608 = vmul.f32 %v519, %v591
        %v609 = vmul.f32 %v524, %v591
        %v610 = vmul.f32 %v527, %v591
        %v611 = vmul.f32 %v532, %v591
        %v612 = vmul.f32 %v535, %v591
        %v613 = vmul.f32 %v540, %v591
        %v614 = vmul.f32 %v543, %v591
        %v615 = vmul.f32 %v548, %v591
        %v616 = vmul.f32 %v551, %v591
        %v617 = vmul.f32 %v556, %v591
        %v618 = vmul.f32 %v559, %v591
        %v619 = vmul.f32 %v564, %v591
        %v620 = vmul.f32 %v567, %v591
        %v621 = vmul.f32 %v572, %v591
        %v622 = vmul.f32 %v575, %v591
        %v623 = vmul.f32 %v580, %v591
        %v624 = vmul.f32 %v583, %v591
        %v625 = vld [vmem:[#allocation6] sm:$0x1]
        %v627 = vlaneseq
        %v628 = vshrl.u32 %v627, 7
        %v629 = vsub.s32 0, %v628
        %v630 = vrot.slane %v625, %v629
        %v632 = vadd.f32 %v593, %v630
        %v633 = vadd.f32 %v594, %v630
        %v634 = vadd.f32 %v595, %v630
        %v635 = vadd.f32 %v596, %v630
        %v636 = vadd.f32 %v597, %v630
        %v637 = vadd.f32 %v598, %v630
        %v638 = vadd.f32 %v599, %v630
        %v639 = vadd.f32 %v600, %v630
        %v640 = vadd.f32 %v601, %v630
        %v641 = vadd.f32 %v602, %v630
        %v642 = vadd.f32 %v603, %v630
        %v643 = vadd.f32 %v604, %v630
        %v644 = vadd.f32 %v605, %v630
        %v645 = vadd.f32 %v606, %v630
        %v646 = vadd.f32 %v607, %v630
        %v647 = vadd.f32 %v608, %v630
        %v648 = vadd.f32 %v609, %v630
        %v649 = vadd.f32 %v610, %v630
        %v650 = vadd.f32 %v611, %v630
        %v651 = vadd.f32 %v612, %v630
        %v652 = vadd.f32 %v613, %v630
        %v653 = vadd.f32 %v614, %v630
        %v654 = vadd.f32 %v615, %v630
        %v655 = vadd.f32 %v616, %v630
        %v656 = vadd.f32 %v617, %v630
        %v657 = vadd.f32 %v618, %v630
        %v658 = vadd.f32 %v619, %v630
        %v659 = vadd.f32 %v620, %v630
        %v660 = vadd.f32 %v621, %v630
        %v661 = vadd.f32 %v622, %v630
        %v662 = vadd.f32 %v623, %v630
        %v663 = vadd.f32 %v624, %v630
        %v664 = vmax.f32 %v632, 0.0
        %v665 = vmax.f32 %v633, 0.0
        %v666 = vmax.f32 %v634, 0.0
        %v667 = vmax.f32 %v635, 0.0
        %v668 = vmax.f32 %v636, 0.0
        %v669 = vmax.f32 %v637, 0.0
        %v670 = vmax.f32 %v638, 0.0
        %v671 = vmax.f32 %v639, 0.0
        %v672 = vmax.f32 %v640, 0.0
        %v673 = vmax.f32 %v641, 0.0
        %v674 = vmax.f32 %v642, 0.0
        %v675 = vmax.f32 %v643, 0.0
        %v676 = vmax.f32 %v644, 0.0
        %v677 = vmax.f32 %v645, 0.0
        %v678 = vmax.f32 %v646, 0.0
        %v679 = vmax.f32 %v647, 0.0
        %v680 = vmax.f32 %v648, 0.0
        %v681 = vmax.f32 %v649, 0.0
        %v682 = vmax.f32 %v650, 0.0
        %v683 = vmax.f32 %v651, 0.0
        %v684 = vmax.f32 %v652, 0.0
        %v685 = vmax.f32 %v653, 0.0
        %v686 = vmax.f32 %v654, 0.0
        %v687 = vmax.f32 %v655, 0.0
        %v688 = vmax.f32 %v656, 0.0
        %v689 = vmax.f32 %v657, 0.0
        %v690 = vmax.f32 %v658, 0.0
        %v691 = vmax.f32 %v659, 0.0
        %v692 = vmax.f32 %v660, 0.0
        %v693 = vmax.f32 %v661, 0.0
        %v694 = vmax.f32 %v662, 0.0
        %v695 = vmax.f32 %v663, 0.0
        %v696 = vpack.c.bf16 %v665, %v664
        %v697 = vpack.c.bf16 %v667, %v666
        %v698 = vpack.c.bf16 %v669, %v668
        %v699 = vpack.c.bf16 %v671, %v670
        %v700 = vpack.c.bf16 %v673, %v672
        %v701 = vpack.c.bf16 %v675, %v674
        %v702 = vpack.c.bf16 %v677, %v676
        %v703 = vpack.c.bf16 %v679, %v678
        %v704 = vpack.c.bf16 %v681, %v680
        %v705 = vpack.c.bf16 %v683, %v682
        %v706 = vpack.c.bf16 %v685, %v684
        %v707 = vpack.c.bf16 %v687, %v686
        %v708 = vpack.c.bf16 %v689, %v688
        %v709 = vpack.c.bf16 %v691, %v690
        %v710 = vpack.c.bf16 %v693, %v692
        %v711 = vpack.c.bf16 %v695, %v694
        %v728 = vunpack.c.l.b16 %v696
        %v729 = vunpack.c.h.b16 %v696
        %v730 = vunpack.c.l.b16 %v697
        %v731 = vunpack.c.h.b16 %v697
        %v732 = vunpack.c.l.b16 %v698
        %v733 = vunpack.c.h.b16 %v698
        %v734 = vunpack.c.l.b16 %v699
        %v735 = vunpack.c.h.b16 %v699
        %v736 = vunpack.c.l.b16 %v700
        %v737 = vunpack.c.h.b16 %v700
        %v738 = vunpack.c.l.b16 %v701
        %v739 = vunpack.c.h.b16 %v701
        %v740 = vunpack.c.l.b16 %v702
        %v741 = vunpack.c.h.b16 %v702
        %v742 = vunpack.c.l.b16 %v703
        %v743 = vunpack.c.h.b16 %v703
        %v744 = vunpack.c.l.b16 %v704
        %v745 = vunpack.c.h.b16 %v704
        %v746 = vunpack.c.l.b16 %v705
        %v747 = vunpack.c.h.b16 %v705
        %v748 = vunpack.c.l.b16 %v706
        %v749 = vunpack.c.h.b16 %v706
        %v750 = vunpack.c.l.b16 %v707
        %v751 = vunpack.c.h.b16 %v707
        %v752 = vunpack.c.l.b16 %v708
        %v753 = vunpack.c.h.b16 %v708
        %v754 = vunpack.c.l.b16 %v709
        %v755 = vunpack.c.h.b16 %v709
        %v756 = vunpack.c.l.b16 %v710
        %v757 = vunpack.c.h.b16 %v710
        %v758 = vunpack.c.l.b16 %v711
        %v759 = vunpack.c.h.b16 %v711
        %v760 = vpack.c.b16 %v728, %v728
        %v761 = vpack.c.b16 %v729, %v729
        %v762 = vpack.c.b16 %v730, %v730
        %v763 = vpack.c.b16 %v731, %v731
        %v764 = vpack.c.b16 %v732, %v732
        %v765 = vpack.c.b16 %v733, %v733
        %v766 = vpack.c.b16 %v734, %v734
        %v767 = vpack.c.b16 %v735, %v735
        %v768 = vpack.c.b16 %v736, %v736
        %v769 = vpack.c.b16 %v737, %v737
        %v770 = vpack.c.b16 %v738, %v738
        %v771 = vpack.c.b16 %v739, %v739
        %v772 = vpack.c.b16 %v740, %v740
        %v773 = vpack.c.b16 %v741, %v741
        %v774 = vpack.c.b16 %v742, %v742
        %v775 = vpack.c.b16 %v743, %v743
        %v776 = vpack.c.b16 %v744, %v744
        %v777 = vpack.c.b16 %v745, %v745
        %v778 = vpack.c.b16 %v746, %v746
        %v779 = vpack.c.b16 %v747, %v747
        %v780 = vpack.c.b16 %v748, %v748
        %v781 = vpack.c.b16 %v749, %v749
        %v782 = vpack.c.b16 %v750, %v750
        %v783 = vpack.c.b16 %v751, %v751
        %v784 = vpack.c.b16 %v752, %v752
        %v785 = vpack.c.b16 %v753, %v753
        %v786 = vpack.c.b16 %v754, %v754
        %v787 = vpack.c.b16 %v755, %v755
        %v788 = vpack.c.b16 %v756, %v756
        %v789 = vpack.c.b16 %v757, %v757
        %v790 = vpack.c.b16 %v758, %v758
        %v791 = vpack.c.b16 %v759, %v759
        %824 = vst [vmem:[%s239] sm:$0xf] %v760
        %825 = vst [vmem:[%s239 + $0x4] sm:$0xf] %v761
        %826 = vst [vmem:[%s239 + $0x8] sm:$0xf] %v762
        %827 = vst [vmem:[%s239 + $0xc] sm:$0xf] %v763
        %828 = vst [vmem:[%s239 + $0x10] sm:$0xf] %v764
        %829 = vst [vmem:[%s239 + $0x14] sm:$0xf] %v765
        %830 = vst [vmem:[%s239 + $0x18] sm:$0xf] %v766
        %831 = vst [vmem:[%s239 + $0x1c] sm:$0xf] %v767
        %832 = vst [vmem:[%s239 + $0x20] sm:$0xf] %v768
        %833 = vst [vmem:[%s239 + $0x24] sm:$0xf] %v769
        %834 = vst [vmem:[%s239 + $0x28] sm:$0xf] %v770
        %835 = vst [vmem:[%s239 + $0x2c] sm:$0xf] %v771
        %836 = vst [vmem:[%s239 + $0x30] sm:$0xf] %v772
        %837 = vst [vmem:[%s239 + $0x34] sm:$0xf] %v773
        %838 = vst [vmem:[%s239 + $0x38] sm:$0xf] %v774
        %839 = vst [vmem:[%s239 + $0x3c] sm:$0xf] %v775
        %840 = vst [vmem:[%s239 + $0x40] sm:$0xf] %v776
        %841 = vst [vmem:[%s239 + $0x44] sm:$0xf] %v777
        %842 = vst [vmem:[%s239 + $0x48] sm:$0xf] %v778
        %843 = vst [vmem:[%s239 + $0x4c] sm:$0xf] %v779
        %844 = vst [vmem:[%s239 + $0x50] sm:$0xf] %v780
        %845 = vst [vmem:[%s239 + $0x54] sm:$0xf] %v781
        %846 = vst [vmem:[%s239 + $0x58] sm:$0xf] %v782
        %847 = vst [vmem:[%s239 + $0x5c] sm:$0xf] %v783
        %848 = vst [vmem:[%s239 + $0x60] sm:$0xf] %v784
        %849 = vst [vmem:[%s239 + $0x64] sm:$0xf] %v785
        %850 = vst [vmem:[%s239 + $0x68] sm:$0xf] %v786
        %851 = vst [vmem:[%s239 + $0x6c] sm:$0xf] %v787
        %852 = vst [vmem:[%s239 + $0x70] sm:$0xf] %v788
        %853 = vst [vmem:[%s239 + $0x74] sm:$0xf] %v789
        %854 = vst [vmem:[%s239 + $0x78] sm:$0xf] %v790
        %855 = vst [vmem:[%s239 + $0x7c] sm:$0xf] %v791
        %s856 = smul.u32 32, %s17
        %p857 = scmp.lt.s32.totalorder %s856, 63
        %s858 = scalar_select %p857, %s856, 63
        %s859 = smul.addr %s858, 4
        %s860 = scalar_lea.vmem %s4, %s859
        // Predicated region
        $region49: #{e2enet_forward.3} parent=35 // pred_check
          %p861 = pneg %p124
        $region50: #{e2enet_forward.3} parent=35 // pred_check_branch
          %863 = sbr.rel (%p861) target = $region52
        $region51: #{e2enet_forward.3} parent=35 // pred_region
          %s864 = smul.u32 32, %s17
        $region52: #{e2enet_forward.3} parent=35 // pred_fallthru
          _
      $region36: #{e2enet_forward.3} parent=5 // pred_fallthru
        _
      %p865 = scmp.le.s32.totalorder 2, %s12
      // Predicated region
      $region53: #{e2enet_forward.3} parent=5 // pred_check
        %p866 = pneg %p865
      $region54: #{e2enet_forward.3} parent=5 // pred_check_branch
        %868 = sbr.rel (%p866) target = $region56
      $region55: #{e2enet_forward.3} parent=5 // pred_region
        %s869 = ssub.s32 %s12, 2
        // Predicated region
        $region57: #{e2enet_forward.3} parent=55 // pred_check
          %p870 = pneg %p130
        $region58: #{e2enet_forward.3} parent=55 // pred_check_branch
          %872 = sbr.rel (%p870) target = $region60
        $region59: #{e2enet_forward.3} parent=55 // pred_region
          %s873 = smul.u32 32, %s18
          %p874 = scmp.lt.s32.totalorder %s873, 63
          %s875 = scalar_select %p874, %s873, 63
          %s876 = smul.addr %s875, 4
          %s877 = scalar_lea.vmem %s4, %s876
        $region60: #{e2enet_forward.3} parent=55 // pred_fallthru
          _
      $region56: #{e2enet_forward.3} parent=5 // pred_fallthru
        _
    $region6: #{e2enet_forward.3} parent=1 // loop_footer
      %s16 = sadd.s32 1, %s12
    $region7: #{e2enet_forward.3} parent=1 // loop_footer_branch
      %11 = sbr.rel target = $region3
    $region8: #{e2enet_forward.3} parent=1 // loop_exit
      _
    %878 = vsyncpa [#allocation3], 1
    %s879 = scalar_lea.sflag [#allocation3], 1
    %880 = vsyncpa %s879, 1
    %881 = vsyncpa [#allocation5], 1

// kernel: squeeze.9
$region0: #{squeeze.9}
  %s0 = inlined_call_operand.vmem [shape: f32[4,16], index: 0, kind: input, shape index: {}]
  %s1 = inlined_call_operand.vmem [shape: f32[4,2,8], index: 1, kind: output, shape index: {}]
  $region1: #{squeeze.9} parent=0
    #allocation0 [shape = 'u8[16384]{0}', space=vmem, size = 0x4000, scoped, tag = 'scoped mem for output reshape']
    #allocation1 [shape = 'u8[4096]{0}', space=vmem, size = 0x1000, scoped, tag = 'scoped mem for input reshape']
    %s3 = sshllo.u32 0, 4
    %v4 = vld [vmem:[%s0] sm:%s3]
    %5 = vst [vmem:[#allocation1] sm:%s3] %v4
    %v6 = vld [vmem:[#allocation1] sm:$0xf]
    %vm7 = vcmask 64512
    %8 = vst.msk [vmem:[#allocation0] ss:$8 sm:$0xf] %vm7, %v6
    %v9 = vld [vmem:[#allocation1] sm:$0xf]
    %10 = vrot.lane.b32.xlu0 %v9, 120
    %v11 = vpop.permute.xlu0 %10
    %vm12 = vcmask 64512
    %s13 = scalar_lea.vmem [#allocation0], 1
    %14 = vst.msk [vmem:[%s13] ss:$8 sm:$0xf] %vm12, %v11
    %s16 = sshllo.u32 0, 2
    %v18 = vld [vmem:[#allocation0] sm:%s16]
    %s19 = sshllo.u32 0, 2
    %20 = vst [vmem:[%s1] sm:%s19] %v18
    %s21 = scalar_lea.vmem [#allocation0], 8
    %v22 = vld [vmem:[%s21] sm:%s16]
    %s23 = sshllo.u32 0, 2
    %s24 = scalar_lea.vmem %s1, 2
    %25 = vst [vmem:[%s24] sm:%s23] %v22
    %s26 = scalar_lea.vmem [#allocation0], 16
    %v27 = vld [vmem:[%s26] sm:%s16]
    %s28 = sshllo.u32 0, 2
    %s29 = smul.addr 2, 2
    %s30 = scalar_lea.vmem %s1, %s29
    %31 = vst [vmem:[%s30] sm:%s28] %v27
    %s32 = scalar_lea.vmem [#allocation0], 24
    %v33 = vld [vmem:[%s32] sm:%s16]
    %s34 = sshllo.u32 0, 2
    %s35 = smul.addr 2, 3
    %s36 = scalar_lea.vmem %s1, %s35
    %37 = vst [vmem:[%s36] sm:%s34] %v33

// kernel: squeeze.10
$region0: #{squeeze.10}
  %s0 = inlined_call_operand.vmem [shape: f32[16], index: 0, kind: input, shape index: {}]
  %s1 = inlined_call_operand.hbm [shape: f32[2,8], index: 1, kind: output, shape index: {}]
  $region1: #{squeeze.10} parent=0
    #allocation0 [shape = 'u8[1024]{0}', space=vmem, size = 0x400, scoped, tag = 'operand span for operand 1']
    #allocation1 [shape = 's32[1]{0}', space=sflag, size = 0x4, scoped, tag = 'scoped memory for squeeze.10']
    #allocation2 [shape = 'u8[4096]{0}', space=vmem, size = 0x1000, scoped, tag = 'scoped mem for output reshape']
    #allocation3 [shape = 'u8[4096]{0}', space=vmem, size = 0x1000, scoped, tag = 'scoped mem for input reshape']
    %2 = vsyncpa [#allocation1], 0
    %s4 = sshllo.u32 0, 1
    %v5 = vld [vmem:[%s0] sm:%s4]
    %6 = vst [vmem:[#allocation3] sm:%s4] %v5
    %v7 = vld [vmem:[#allocation3] sm:$0x1]
    %vm8 = vcmask 64512
    %9 = vst.msk [vmem:[#allocation2] sm:$0x1] %vm8, %v7
    %v10 = vld [vmem:[#allocation3] sm:$0x1]
    %11 = vrot.lane.b32.xlu0 %v10, 120
    %v12 = vpop.permute.xlu0 %11
    %vm13 = vcmask 64512
    %s14 = scalar_lea.vmem [#allocation2], 1
    %15 = vst.msk [vmem:[%s14] sm:$0x1] %vm13, %v12
    %s17 = sshllo.u32 0, 2
    %v19 = vld [vmem:[#allocation2] sm:%s17]
    %s20 = sshllo.u32 0, 2
    %21 = vst [vmem:[#allocation0] sm:%s20] %v19
    %s23 = ssub.s32 32, 32
    %24 = vsyncadd [#allocation1], %s23
    %s26 = sshll.u32 [#allocation0], 4
    %s27 = int_to_ptr.vmem [resolvable:$true] %s26
    %29 = dma.vmem_to_hbm [thread:$0]  %s27, 32, %s1, [#allocation1]
    %30 = dma.done [#allocation1], 32
    %31 = vsyncpa [#allocation1], 1

// kernel: e2enet_forward.4
$region0: #{e2enet_forward.4}
  #allocation0 [shape = 'u32[]', space=smem, size = 0x4, offset = 0x4, fixed_abs, tag = 'smem constant byte address 0x4 - core index']
  #allocation1 [shape = 'u32[144,128]{1,0:T(1,128)}', space=vmem, size = 0x12000, scoped, tag = 'internal scratch']
  %s0 = inlined_call_operand.vmem [shape: bf16[16,4096], index: 0, kind: input, shape index: {}]
  %s1 = inlined_call_operand.vmem [shape: bf16[3,384,128], index: 1, kind: input, shape index: {}]
  %s2 = inlined_call_operand.hbm [shape: f32[3,1,128], index: 2, kind: input, shape index: {}]
  %s3 = inlined_call_operand.hbm [shape: f32[3,1,128], index: 3, kind: input, shape index: {}]
  %s4 = inlined_call_operand.vmem [shape: bf16[16,512], index: 4, kind: output, shape index: {}]
  %s5 = sld [smem:[#allocation0]]
  $region57: #{e2enet_forward.4} parent=0
    _
  %s7 = ssub.s32 1, %s5
  %s8 = scalar_select 0, %s7, %s5
  $region1: #{e2enet_forward.4} parent=0
    #allocation2 [shape = 'u8[1536]{0}', space=vmem, size = 0x800, scoped, tag = 'input window, operand 2, single buffered']
    #allocation3 [shape = 's32[2]{0}', space=sflag, size = 0x8, scoped, tag = 'scoped memory for e2enet_forward.4']
    #allocation4 [shape = 'u8[1536]{0}', space=vmem, size = 0x800, scoped, tag = 'input window, operand 3, single buffered']
    #allocation5 [shape = 's32[1]{0}', space=sflag, size = 0x4, scoped, tag = 'scoped memory for e2enet_forward.4']
    %9 = vsyncpa [#allocation3], 0
    %10 = vsyncpa [#allocation5], 0
    loop: start=0, step=1, limit=4
    $region2: #{e2enet_forward.4} parent=1 // loop_pre_header
      _
    $region3: #{e2enet_forward.4} parent=1 // loop_header
      %s12 = sphi 0, %s16
      %p13 = scmp.ge.s32.totalorder %s12, 4
      %s22 = sphi 0, %s24
      %s25 = sphi 0, %s22
      %s26 = sphi 0, %s25
      %s42 = sphi 0, %s26
      %s46 = sphi 0, %s46
      %s48 = sphi 0, %s46
      %s49 = sphi 0, %s48
      %s63 = sphi 0, %s49
      %s67 = sphi 0, %s67
      %s69 = sphi 0, %s67
      %s70 = sphi 0, %s69
      %s84 = sphi 0, %s70
      %s88 = sphi 0, %s88
      %s90 = sphi 0, %s88
      %s91 = sphi 0, %s90
      %s105 = sphi 0, %s91
      %s111 = sphi 0, %s113
      %s114 = sphi 0, %s111
      %s115 = sphi 0, %s114
      %s131 = sphi 0, %s115
    $region4: #{e2enet_forward.4} parent=1 // loop_header_branch
      %15 = sbr.rel (%p13) target = $region8
    $region5: #{e2enet_forward.4} parent=1 // loop_body
      %s17 = ssub.s32 %s12, 1
      %s18 = ssub.s32 %s12, 2
      %s19 = sadd.s32 %s12, 1
      %s20 = ssub.s32 %s12, %s19
      %p21 = scmp.eq.s32.totalorder %s20, 0
      %s23 = sadd.s32 %s22, 1
      %s24 = scalar_select %p21, %s22, %s23
      %p27 = pneg %p21
      %p28 = scmp.eq.s32.totalorder %s12, 1
      %p29 = por %p27, %p28
      %p30 = scmp.ne.s32.totalorder %s22, %s25
      %p31 = scmp.eq.s32.totalorder %s12, 0
      %p32 = por %p30, %p31
      %p33 = scmp.ne.s32.totalorder %s22, %s25
      %p34 = scmp.eq.s32.totalorder %s17, 1
      %p35 = por %p33, %p34
      %p36 = scmp.ne.s32.totalorder %s25, %s26
      %p37 = scmp.eq.s32.totalorder %s17, 0
      %p38 = por %p36, %p37
      %p39 = scmp.ne.s32.totalorder %s25, %s26
      %p40 = scmp.eq.s32.totalorder %s18, 1
      %p41 = por %p39, %p40
      %p43 = scmp.ne.s32.totalorder %s26, %s42
      %p44 = scmp.eq.s32.totalorder %s18, 0
      %p45 = por %p43, %p44
      %s47 = sadd.s32 %s46, 1
      %p50 = scmp.eq.s32.totalorder %s12, 1
      %p51 = scmp.ne.s32.totalorder %s46, %s48
      %p52 = scmp.eq.s32.totalorder %s12, 0
      %p53 = por %p51, %p52
      %p54 = scmp.ne.s32.totalorder %s46, %s48
      %p55 = scmp.eq.s32.totalorder %s17, 1
      %p56 = por %p54, %p55
      %p57 = scmp.ne.s32.totalorder %s48, %s49
      %p58 = scmp.eq.s32.totalorder %s17, 0
      %p59 = por %p57, %p58
      %p60 = scmp.ne.s32.totalorder %s48, %s49
      %p61 = scmp.eq.s32.totalorder %s18, 1
      %p62 = por %p60, %p61
      %p64 = scmp.ne.s32.totalorder %s49, %s63
      %p65 = scmp.eq.s32.totalorder %s18, 0
      %p66 = por %p64, %p65
      %s68 = sadd.s32 %s67, 1
      %p71 = scmp.eq.s32.totalorder %s12, 1
      %p72 = scmp.ne.s32.totalorder %s67, %s69
      %p73 = scmp.eq.s32.totalorder %s12, 0
      %p74 = por %p72, %p73
      %p75 = scmp.ne.s32.totalorder %s67, %s69
      %p76 = scmp.eq.s32.totalorder %s17, 1
      %p77 = por %p75, %p76
      %p78 = scmp.ne.s32.totalorder %s69, %s70
      %p79 = scmp.eq.s32.totalorder %s17, 0
      %p80 = por %p78, %p79
      %p81 = scmp.ne.s32.totalorder %s69, %s70
      %p82 = scmp.eq.s32.totalorder %s18, 1
      %p83 = por %p81, %p82
      %p85 = scmp.ne.s32.totalorder %s70, %s84
      %p86 = scmp.eq.s32.totalorder %s18, 0
      %p87 = por %p85, %p86
      %s89 = sadd.s32 %s88, 1
      %p92 = scmp.eq.s32.totalorder %s12, 1
      %p93 = scmp.ne.s32.totalorder %s88, %s90
      %p94 = scmp.eq.s32.totalorder %s12, 0
      %p95 = por %p93, %p94
      %p96 = scmp.ne.s32.totalorder %s88, %s90
      %p97 = scmp.eq.s32.totalorder %s17, 1
      %p98 = por %p96, %p97
      %p99 = scmp.ne.s32.totalorder %s90, %s91
      %p100 = scmp.eq.s32.totalorder %s17, 0
      %p101 = por %p99, %p100
      %p102 = scmp.ne.s32.totalorder %s90, %s91
      %p103 = scmp.eq.s32.totalorder %s18, 1
      %p104 = por %p102, %p103
      %p106 = scmp.ne.s32.totalorder %s91, %s105
      %p107 = scmp.eq.s32.totalorder %s18, 0
      %p108 = por %p106, %p107
      %s109 = ssub.s32 %s12, %s19
      %p110 = scmp.eq.s32.totalorder %s109, 0
      %s112 = sadd.s32 %s111, 1
      %s113 = scalar_select %p110, %s111, %s112
      %p116 = pneg %p110
      %p117 = scmp.eq.s32.totalorder %s12, 1
      %p118 = por %p116, %p117
      %p119 = scmp.ne.s32.totalorder %s111, %s114
      %p120 = scmp.eq.s32.totalorder %s12, 0
      %p121 = por %p119, %p120
      %p122 = scmp.ne.s32.totalorder %s111, %s114
      %p123 = scmp.eq.s32.totalorder %s17, 1
      %p124 = por %p122, %p123
      %p125 = scmp.ne.s32.totalorder %s114, %s115
      %p126 = scmp.eq.s32.totalorder %s17, 0
      %p127 = por %p125, %p126
      %p128 = scmp.ne.s32.totalorder %s114, %s115
      %p129 = scmp.eq.s32.totalorder %s18, 1
      %p130 = por %p128, %p129
      %p132 = scmp.ne.s32.totalorder %s115, %s131
      %p133 = scmp.eq.s32.totalorder %s18, 0
      %p134 = por %p132, %p133
      %p135 = scmp.le.s32.totalorder 1, %s12
      %p136 = scmp.lt.s32.totalorder %s12, 3
      %p137 = pnand %p135, %p136
      %p138 = pneg %p137
      // Predicated region
      $region9: #{e2enet_forward.4} parent=5 // pred_check
        _
      $region10: #{e2enet_forward.4} parent=5 // pred_check_branch
        %140 = sbr.rel (%p137) target = $region12
      $region11: #{e2enet_forward.4} parent=5 // pred_region
        %s141 = ssub.s32 %s12, 1
        // Predicated region
        $region13: #{e2enet_forward.4} parent=11 // pred_check
          %p142 = pneg %p59
        $region14: #{e2enet_forward.4} parent=11 // pred_check_branch
          %144 = sbr.rel (%p142) target = $region16
        $region15: #{e2enet_forward.4} parent=11 // pred_region
          _
        $region16: #{e2enet_forward.4} parent=11 // pred_fallthru
          _
        // Predicated region
        $region17: #{e2enet_forward.4} parent=11 // pred_check
          %p145 = pneg %p80
        $region18: #{e2enet_forward.4} parent=11 // pred_check_branch
          %147 = sbr.rel (%p145) target = $region20
        $region19: #{e2enet_forward.4} parent=11 // pred_region
          %s149 = ssub.s32 48, 48
          %150 = vsyncadd [#allocation3], %s149
          %s151 = sshll.u32 [#allocation2], 4
          %s152 = int_to_ptr.vmem [resolvable:$true] %s151
          %157 = dma.hbm_to_vmem [thread:$0]  %s2, 48, %s152, [#allocation3], 16, 16, 1
        $region20: #{e2enet_forward.4} parent=11 // pred_fallthru
          _
        // Predicated region
        $region21: #{e2enet_forward.4} parent=11 // pred_check
          %p158 = pneg %p101
        $region22: #{e2enet_forward.4} parent=11 // pred_check_branch
          %160 = sbr.rel (%p158) target = $region24
        $region23: #{e2enet_forward.4} parent=11 // pred_region
          %s162 = ssub.s32 48, 48
          %163 = vsyncadd [#allocation5], %s162
          %s164 = sshll.u32 [#allocation4], 4
          %s165 = int_to_ptr.vmem [resolvable:$true] %s164
          %170 = dma.hbm_to_vmem [thread:$0]  %s3, 48, %s165, [#allocation5], 16, 16, 1
        $region24: #{e2enet_forward.4} parent=11 // pred_fallthru
          _
      $region12: #{e2enet_forward.4} parent=5 // pred_fallthru
        _
      %p171 = scmp.lt.s32.totalorder %s12, 2
      // Predicated region
      $region25: #{e2enet_forward.4} parent=5 // pred_check
        %p172 = pneg %p171
      $region26: #{e2enet_forward.4} parent=5 // pred_check_branch
        %174 = sbr.rel (%p172) target = $region28
      $region27: #{e2enet_forward.4} parent=5 // pred_region
        // Predicated region
        $region29: #{e2enet_forward.4} parent=27 // pred_check
          %p175 = pneg %p32
        $region30: #{e2enet_forward.4} parent=27 // pred_check_branch
          %177 = sbr.rel (%p175) target = $region32
        $region31: #{e2enet_forward.4} parent=27 // pred_region
          %p178 = scmp.lt.s32.totalorder %s12, 1
          %s179 = scalar_select %p178, %s12, 1
          %s180 = smul.addr %s179, 32
          %s181 = smul.addr %s180, 4
          %s182 = scalar_lea.vmem %s0, %s181
        $region32: #{e2enet_forward.4} parent=27 // pred_fallthru
          _
      $region28: #{e2enet_forward.4} parent=5 // pred_fallthru
        _
      %p183 = scmp.le.s32.totalorder 1, %s12
      %p184 = scmp.lt.s32.totalorder %s12, 3
      %p185 = pnand %p183, %p184
      %p186 = pneg %p185
      // Predicated region
      $region33: #{e2enet_forward.4} parent=5 // pred_check
        _
      $region34: #{e2enet_forward.4} parent=5 // pred_check_branch
        %188 = sbr.rel (%p185) target = $region36
      $region35: #{e2enet_forward.4} parent=5 // pred_region
        %s189 = ssub.s32 %s12, 1
        // Predicated region
        $region37: #{e2enet_forward.4} parent=35 // pred_check
          %p190 = pneg %p80
        $region38: #{e2enet_forward.4} parent=35 // pred_check_branch
          %192 = sbr.rel (%p190) target = $region40
        $region39: #{e2enet_forward.4} parent=35 // pred_region
          %193 = dma.done [#allocation3], 48
        $region40: #{e2enet_forward.4} parent=35 // pred_fallthru
          _
        // Predicated region
        $region41: #{e2enet_forward.4} parent=35 // pred_check
          %p194 = pneg %p101
        $region42: #{e2enet_forward.4} parent=35 // pred_check_branch
          %196 = sbr.rel (%p194) target = $region44
        $region43: #{e2enet_forward.4} parent=35 // pred_region
          %197 = dma.done [#allocation5], 48
        $region44: #{e2enet_forward.4} parent=35 // pred_fallthru
          _
        %p198 = scmp.lt.s32.totalorder %s17, 1
        %s199 = scalar_select %p198, %s17, 1
        %s200 = smul.addr %s199, 32
        %s201 = smul.addr %s200, 4
        %s202 = scalar_lea.vmem %s0, %s201
        %p203 = pneg %p38
        %p204 = pneg %p35
        %p205 = pneg %p59
        %p206 = pneg %p56
        %p207 = pneg %p80
        %p208 = pneg %p77
        %p209 = pneg %p101
        %p210 = pneg %p98
        %p211 = pneg %p127
        %p212 = pneg %p124
        %p213 = scmp.lt.s32.totalorder %s17, 1
        %s214 = scalar_select %p213, %s17, 1
        %s215 = smul.addr %s214, 4
        %s216 = smul.addr %s215, 4
        %s217 = scalar_lea.vmem %s4, %s216
        %p218 = scmp.lt.s32.totalorder %s17, 1
        %s219 = scalar_select %p218, %s17, 1
        %s220 = smul.addr %s219, 32
        %s221 = smul.addr %s220, 4
        %s222 = scalar_lea.vmem %s0, %s221
        %p223 = scmp.lt.s32.totalorder %s17, 1
        %s224 = scalar_select %p223, %s17, 1
        %s225 = smul.addr %s224, 4
        %s226 = smul.addr %s225, 4
        %s227 = scalar_lea.vmem %s4, %s226
        %v229 = vld [vmem:[%s222] sm:$0xff]
        %v230 = vld [vmem:[%s222 + $0x8] sm:$0xff]
        %v231 = vld [vmem:[%s222 + $0x10] sm:$0xff]
        %v232 = vld [vmem:[%s222 + $0x18] sm:$0xff]
        %v233 = vld [vmem:[%s222 + $0x20] sm:$0xff]
        %v234 = vld [vmem:[%s222 + $0x28] sm:$0xff]
        %v235 = vld [vmem:[%s222 + $0x30] sm:$0xff]
        %v236 = vld [vmem:[%s222 + $0x38] sm:$0xff]
        %v237 = vld [vmem:[%s222 + $0x40] sm:$0xff]
        %v238 = vld [vmem:[%s222 + $0x48] sm:$0xff]
        %v239 = vld [vmem:[%s222 + $0x50] sm:$0xff]
        %v240 = vld [vmem:[%s222 + $0x58] sm:$0xff]
        %v241 = vld [vmem:[%s222 + $0x60] sm:$0xff]
        %v242 = vld [vmem:[%s222 + $0x68] sm:$0xff]
        %v243 = vld [vmem:[%s222 + $0x70] sm:$0xff]
        %v244 = vld [vmem:[%s222 + $0x78] sm:$0xff]
        %v245 = vld [vmem:[%s1] sm:$0xf]
        %v246 = vld [vmem:[%s1 + $0x4] sm:$0xf]
        %v247 = vld [vmem:[%s1 + $0x8] sm:$0xf]
        %v248 = vld [vmem:[%s1 + $0xc] sm:$0xf]
        %v249 = vld [vmem:[%s1 + $0x10] sm:$0xf]
        %v250 = vld [vmem:[%s1 + $0x14] sm:$0xf]
        %v251 = vld [vmem:[%s1 + $0x18] sm:$0xf]
        %v252 = vld [vmem:[%s1 + $0x1c] sm:$0xf]
        %v253 = vld [vmem:[%s1 + $0x20] sm:$0xf]
        %v254 = vld [vmem:[%s1 + $0x24] sm:$0xf]
        %v255 = vld [vmem:[%s1 + $0x28] sm:$0xf]
        %v256 = vld [vmem:[%s1 + $0x2c] sm:$0xf]
        %v257 = vld [vmem:[%s1 + $0x30] sm:$0xf]
        %v258 = vld [vmem:[%s1 + $0x34] sm:$0xf]
        %v259 = vld [vmem:[%s1 + $0x38] sm:$0xf]
        %v260 = vld [vmem:[%s1 + $0x3c] sm:$0xf]
        %v261 = vld [vmem:[%s1 + $0x40] sm:$0xf]
        %v262 = vld [vmem:[%s1 + $0x44] sm:$0xf]
        %v263 = vld [vmem:[%s1 + $0x48] sm:$0xf]
        %v264 = vld [vmem:[%s1 + $0x4c] sm:$0xf]
        %v265 = vld [vmem:[%s1 + $0x50] sm:$0xf]
        %v266 = vld [vmem:[%s1 + $0x54] sm:$0xf]
        %v267 = vld [vmem:[%s1 + $0x58] sm:$0xf]
        %v268 = vld [vmem:[%s1 + $0x5c] sm:$0xf]
        %v269 = vld [vmem:[%s1 + $0x60] sm:$0xf]
        %v270 = vld [vmem:[%s1 + $0x64] sm:$0xf]
        %v271 = vld [vmem:[%s1 + $0x68] sm:$0xf]
        %v272 = vld [vmem:[%s1 + $0x6c] sm:$0xf]
        %v273 = vld [vmem:[%s1 + $0x70] sm:$0xf]
        %v274 = vld [vmem:[%s1 + $0x74] sm:$0xf]
        %v275 = vld [vmem:[%s1 + $0x78] sm:$0xf]
        %v276 = vld [vmem:[%s1 + $0x7c] sm:$0xf]
        %v277 = vld [vmem:[%s1 + $0x80] sm:$0xf]
        %v278 = vld [vmem:[%s1 + $0x84] sm:$0xf]
        %v279 = vld [vmem:[%s1 + $0x88] sm:$0xf]
        %v280 = vld [vmem:[%s1 + $0x8c] sm:$0xf]
        %v281 = vld [vmem:[%s1 + $0x90] sm:$0xf]
        %v282 = vld [vmem:[%s1 + $0x94] sm:$0xf]
        %v283 = vld [vmem:[%s1 + $0x98] sm:$0xf]
        %v284 = vld [vmem:[%s1 + $0x9c] sm:$0xf]
        %v285 = vld [vmem:[%s1 + $0xa0] sm:$0xf]
        %v286 = vld [vmem:[%s1 + $0xa4] sm:$0xf]
        %v287 = vld [vmem:[%s1 + $0xa8] sm:$0xf]
        %v288 = vld [vmem:[%s1 + $0xac] sm:$0xf]
        %v289 = vld [vmem:[%s1 + $0xb0] sm:$0xf]
        %v290 = vld [vmem:[%s1 + $0xb4] sm:$0xf]
        %v291 = vld [vmem:[%s1 + $0xb8] sm:$0xf]
        %v292 = vld [vmem:[%s1 + $0xbc] sm:$0xf]
        %v293 = vld [vmem:[#allocation2] sm:$0x1]
        %v294 = vld [vmem:[#allocation4] sm:$0x1]
        %v296 = vunpack.c.l.b16 %v229
        %v297 = vunpack.c.h.b16 %v229
        %v298 = vpack.c.b16 %v296, %v296
        %v299 = vpack.c.b16 %v297, %v297
        %v334 = vunpack.c.l.b16 %v261
        %v335 = vunpack.c.l.b16 %v262
        %v336 = vunpack.c.l.b16 %v263
        %v337 = vunpack.c.l.b16 %v264
        %v338 = vunpack.c.l.b16 %v265
        %v339 = vunpack.c.l.b16 %v266
        %v340 = vunpack.c.l.b16 %v267
        %v341 = vunpack.c.l.b16 %v268
        %v342 = vunpack.c.l.b16 %v269
        %v343 = vunpack.c.l.b16 %v270
        %v344 = vunpack.c.l.b16 %v271
        %v345 = vunpack.c.l.b16 %v272
        %v346 = vunpack.c.l.b16 %v273
        %v347 = vunpack.c.l.b16 %v274
        %v348 = vunpack.c.l.b16 %v275
        %v349 = vunpack.c.l.b16 %v276
        %v350 = vunpack.c.l.b16 %v277
        %v351 = vunpack.c.l.b16 %v278
        %v352 = vunpack.c.l.b16 %v279
        %v353 = vunpack.c.l.b16 %v280
        %v354 = vunpack.c.l.b16 %v281
        %v355 = vunpack.c.l.b16 %v282
        %v356 = vunpack.c.l.b16 %v283
        %v357 = vunpack.c.l.b16 %v284
        %v358 = vunpack.c.l.b16 %v285
        %v359 = vunpack.c.l.b16 %v286
        %v360 = vunpack.c.l.b16 %v287
        %v361 = vunpack.c.l.b16 %v288
        %v362 = vunpack.c.l.b16 %v289
        %v363 = vunpack.c.l.b16 %v290
        %v364 = vunpack.c.l.b16 %v291
        %v365 = vunpack.c.l.b16 %v292
        %v366 = vpack.c.b16 %v335, %v334
        %v367 = vpack.c.b16 %v337, %v336
        %v368 = vpack.c.b16 %v339, %v338
        %v369 = vpack.c.b16 %v341, %v340
        %v370 = vpack.c.b16 %v343, %v342
        %v371 = vpack.c.b16 %v345, %v344
        %v372 = vpack.c.b16 %v347, %v346
        %v373 = vpack.c.b16 %v349, %v348
        %v374 = vpack.c.b16 %v351, %v350
        %v375 = vpack.c.b16 %v353, %v352
        %v376 = vpack.c.b16 %v355, %v354
        %v377 = vpack.c.b16 %v357, %v356
        %v378 = vpack.c.b16 %v359, %v358
        %v379 = vpack.c.b16 %v361, %v360
        %v380 = vpack.c.b16 %v363, %v362
        %v381 = vpack.c.b16 %v365, %v364
        %398 = vmatprep.subr.bf16.mxu0 0
        %399 = vmatpush1.bf16.msra.mxu0 %v366
        %400 = vmatprep.subr.bf16.mxu0 0
        %401 = vmatpush1.bf16.msra.mxu0 %v367
        %402 = vmatprep.subr.bf16.mxu0 0
        %403 = vmatpush1.bf16.msra.mxu0 %v368
        %404 = vmatprep.subr.bf16.mxu0 0
        %405 = vmatpush1.bf16.msra.mxu0 %v369
        %406 = vmatprep.subr.bf16.mxu0 0
        %407 = vmatpush1.bf16.msra.mxu0 %v370
        %408 = vmatprep.subr.bf16.mxu0 0
        %409 = vmatpush1.bf16.msra.mxu0 %v371
        %410 = vmatprep.subr.bf16.mxu0 0
        %411 = vmatpush1.bf16.msra.mxu0 %v372
        %412 = vmatprep.subr.bf16.mxu0 0
        %413 = vmatpush1.bf16.msra.mxu0 %v373
        %414 = vmatprep.subr.bf16.mxu0 0
        %415 = vmatpush1.bf16.msra.mxu0 %v374
        %416 = vmatprep.subr.bf16.mxu0 0
        %417 = vmatpush1.bf16.msra.mxu0 %v375
        %418 = vmatprep.subr.bf16.mxu0 0
        %419 = vmatpush1.bf16.msra.mxu0 %v376
        %420 = vmatprep.subr.bf16.mxu0 0
        %421 = vmatpush1.bf16.msra.mxu0 %v377
        %422 = vmatprep.subr.bf16.mxu0 0
        %423 = vmatpush1.bf16.msra.mxu0 %v378
        %424 = vmatprep.subr.bf16.mxu0 0
        %425 = vmatpush1.bf16.msra.mxu0 %v379
        %426 = vmatprep.subr.bf16.mxu0 0
        %427 = vmatpush1.bf16.msra.mxu0 %v380
        %428 = vmatprep.subr.bf16.mxu0 0
        %429 = vmatpush1.bf16.msra.mxu0 %v381
        %430 = vmatprep.mubr.bf16.mxu0 %v299
        %431 = vmatmul.mubr.bf16.gmra.mrb[0].mxu0 %v298
        %v432 = vpop.f32.mrb[0].mxu0
        %v433 = vadd.f32 0.0, %v432
        %v434 = vpop.f32.mrb[0].mxu0
        %v435 = vpop.f32.mrb[0].mxu0
        %v436 = vpop.f32.mrb[0].mxu0
        %437 = vdwg.mxu0
        %v439 = vlaneseq
        %v440 = vshrl.u32 %v439, 7
        %v441 = vsub.s32 0, %v440
        %v442 = vrot.slane %v293, %v441
        %v444 = vmul.f32 %v433, %v442
        %v446 = vlaneseq
        %v447 = vshrl.u32 %v446, 7
        %v448 = vsub.s32 0, %v447
        %v449 = vrot.slane %v294, %v448
        %v451 = vadd.f32 %v444, %v449
        %v452 = vmax.f32 %v451, 0.0
        %v454 = vunpack.c.l.b16 %v230
        %v455 = vunpack.c.h.b16 %v230
        %v456 = vpack.c.b16 %v454, %v454
        %v457 = vpack.c.b16 %v455, %v455
        %v476 = vunpack.c.l.b16 %v245
        %v477 = vunpack.c.l.b16 %v246
        %v478 = vunpack.c.l.b16 %v247
        %v479 = vunpack.c.l.b16 %v248
        %v480 = vunpack.c.l.b16 %v249
        %v481 = vunpack.c.l.b16 %v250
        %v482 = vunpack.c.l.b16 %v251
        %v483 = vunpack.c.l.b16 %v252
        %v484 = vunpack.c.l.b16 %v253
        %v485 = vunpack.c.l.b16 %v254
        %v486 = vunpack.c.l.b16 %v255
        %v487 = vunpack.c.l.b16 %v256
        %v488 = vunpack.c.l.b16 %v257
        %v489 = vunpack.c.l.b16 %v258
        %v490 = vunpack.c.l.b16 %v259
        %v491 = vunpack.c.l.b16 %v260
        %v492 = vpack.c.b16 %v477, %v476
        %v493 = vpack.c.b16 %v479, %v478
        %v494 = vpack.c.b16 %v481, %v480
        %v495 = vpack.c.b16 %v483, %v482
        %v496 = vpack.c.b16 %v485, %v484
        %v497 = vpack.c.b16 %v487, %v486
        %v498 = vpack.c.b16 %v489, %v488
        %v499 = vpack.c.b16 %v491, %v490
        %508 = vmatprep.subr.bf16.mxu0 0
        %509 = vmatpush1.bf16.msra.mxu0 %v492
        %510 = vmatprep.subr.bf16.mxu0 0
        %511 = vmatpush1.bf16.msra.mxu0 %v493
        %512 = vmatprep.subr.bf16.mxu0 0
        %513 = vmatpush1.bf16.msra.mxu0 %v494
        %514 = vmatprep.subr.bf16.mxu0 0
        %515 = vmatpush1.bf16.msra.mxu0 %v495
        %516 = vmatprep.subr.bf16.mxu0 0
        %517 = vmatpush1.bf16.msra.mxu0 %v496
        %518 = vmatprep.subr.bf16.mxu0 0
        %519 = vmatpush1.bf16.msra.mxu0 %v497
        %520 = vmatprep.subr.bf16.mxu0 0
        %521 = vmatpush1.bf16.msra.mxu0 %v498
        %522 = vmatprep.subr.bf16.mxu0 0
        %523 = vmatpush1.bf16.msra.mxu0 %v499
        %524 = vmatprep.subr.bf16.mxu0 0
        %525 = vmatpush1.bf16.msra.mxu0 %v366
        %526 = vmatprep.subr.bf16.mxu0 0
        %527 = vmatpush1.bf16.msra.mxu0 %v367
        %528 = vmatprep.subr.bf16.mxu0 0
        %529 = vmatpush1.bf16.msra.mxu0 %v368
        %530 = vmatprep.subr.bf16.mxu0 0
        %531 = vmatpush1.bf16.msra.mxu0 %v369
        %532 = vmatprep.subr.bf16.mxu0 0
        %533 = vmatpush1.bf16.msra.mxu0 %v370
        %534 = vmatprep.subr.bf16.mxu0 0
        %535 = vmatpush1.bf16.msra.mxu0 %v371
        %536 = vmatprep.subr.bf16.mxu0 0
        %537 = vmatpush1.bf16.msra.mxu0 %v372
        %538 = vmatprep.subr.bf16.mxu0 0
        %539 = vmatpush1.bf16.msra.mxu0 %v373
        %540 = vmatprep.mubr.bf16.mxu0 %v456
        %541 = vmatmul.mubr.bf16.gmra.mrb[0].mxu0 %v299
        %v542 = vpop.f32.mrb[0].mxu0
        %v543 = vadd.f32 0.0, %v542
        %v544 = vpop.f32.mrb[0].mxu0
        %v545 = vpop.f32.mrb[0].mxu0
        %v546 = vpop.f32.mrb[0].mxu0
        %547 = vdwg.mxu0
        %548 = vmatprep.subr.bf16.mxu0 0
        %549 = vmatpush1.bf16.msra.mxu0 %v374
        %550 = vmatprep.subr.bf16.mxu0 0
        %551 = vmatpush1.bf16.msra.mxu0 %v375
        %552 = vmatprep.subr.bf16.mxu0 0
        %553 = vmatpush1.bf16.msra.mxu0 %v376
        %554 = vmatprep.subr.bf16.mxu0 0
        %555 = vmatpush1.bf16.msra.mxu0 %v377
        %556 = vmatprep.subr.bf16.mxu0 0
        %557 = vmatpush1.bf16.msra.mxu0 %v378
        %558 = vmatprep.subr.bf16.mxu0 0
        %559 = vmatpush1.bf16.msra.mxu0 %v379
        %560 = vmatprep.subr.bf16.mxu0 0
        %561 = vmatpush1.bf16.msra.mxu0 %v380
        %562 = vmatprep.subr.bf16.mxu0 0
        %563 = vmatpush1.bf16.msra.mxu0 %v381
        %564 = vmatprep.subr.bf16.mxu0 0
        %565 = vmatpush1.bf16.msra.mxu0 0
        %566 = vmatprep.subr.bf16.mxu0 0
        %567 = vmatpush1.bf16.msra.mxu0 0
        %568 = vmatprep.subr.bf16.mxu0 0
        %569 = vmatpush1.bf16.msra.mxu0 0
        %570 = vmatprep.subr.bf16.mxu0 0
        %571 = vmatpush1.bf16.msra.mxu0 0
        %572 = vmatprep.subr.bf16.mxu0 0
        %573 = vmatpush1.bf16.msra.mxu0 0
        %574 = vmatprep.subr.bf16.mxu0 0
        %575 = vmatpush1.bf16.msra.mxu0 0
        %576 = vmatprep.subr.bf16.mxu0 0
        %577 = vmatpush1.bf16.msra.mxu0 0
        %578 = vmatprep.subr.bf16.mxu0 0
        %579 = vmatpush1.bf16.msra.mxu0 0
        %580 = vmatprep.mubr.bf16.mxu0 0
        %581 = vmatmul.mubr.bf16.gmra.mrb[0].mxu0 %v457
        %v582 = vpop.f32.mrb[0].mxu0
        %v583 = vadd.f32 %v543, %v582
        %v584 = vpop.f32.mrb[0].mxu0
        %v585 = vpop.f32.mrb[0].mxu0
        %v586 = vpop.f32.mrb[0].mxu0
        %587 = vdwg.mxu0
        %v588 = vmul.f32 %v583, %v442
        %v589 = vadd.f32 %v588, %v449
        %v590 = vmax.f32 %v589, 0.0
        %v592 = vunpack.c.l.b16 %v231
        %v593 = vunpack.c.h.b16 %v231
        %v594 = vpack.c.b16 %v592, %v592
        %v595 = vpack.c.b16 %v593, %v593
        %598 = vmatprep.subr.bf16.mxu0 0
        %599 = vmatpush1.bf16.msra.mxu0 %v492
        %600 = vmatprep.subr.bf16.mxu0 0
        %601 = vmatpush1.bf16.msra.mxu0 %v493
        %602 = vmatprep.subr.bf16.mxu0 0
        %603 = vmatpush1.bf16.msra.mxu0 %v494
        %604 = vmatprep.subr.bf16.mxu0 0
        %605 = vmatpush1.bf16.msra.mxu0 %v495
        %606 = vmatprep.subr.bf16.mxu0 0
        %607 = vmatpush1.bf16.msra.mxu0 %v496
        %608 = vmatprep.subr.bf16.mxu0 0
        %609 = vmatpush1.bf16.msra.mxu0 %v497
        %610 = vmatprep.subr.bf16.mxu0 0
        %611 = vmatpush1.bf16.msra.mxu0 %v498
        %612 = vmatprep.subr.bf16.mxu0 0
        %613 = vmatpush1.bf16.msra.mxu0 %v499
        %614 = vmatprep.subr.bf16.mxu0 0
        %615 = vmatpush1.bf16.msra.mxu0 %v366
        %616 = vmatprep.subr.bf16.mxu0 0
        %617 = vmatpush1.bf16.msra.mxu0 %v367
        %618 = vmatprep.subr.bf16.mxu0 0
        %619 = vmatpush1.bf16.msra.mxu0 %v368
        %620 = vmatprep.subr.bf16.mxu0 0
        %621 = vmatpush1.bf16.msra.mxu0 %v369
        %622 = vmatprep.subr.bf16.mxu0 0
        %623 = vmatpush1.bf16.msra.mxu0 %v370
        %624 = vmatprep.subr.bf16.mxu0 0
        %625 = vmatpush1.bf16.msra.mxu0 %v371
        %626 = vmatprep.subr.bf16.mxu0 0
        %627 = vmatpush1.bf16.msra.mxu0 %v372
        %628 = vmatprep.subr.bf16.mxu0 0
        %629 = vmatpush1.bf16.msra.mxu0 %v373
        %630 = vmatprep.mubr.bf16.mxu0 %v594
        %631 = vmatmul.mubr.bf16.gmra.mrb[0].mxu0 %v457
        %v632 = vpop.f32.mrb[0].mxu0
        %v633 = vadd.f32 0.0, %v632
        %v634 = vpop.f32.mrb[0].mxu0
        %v635 = vpop.f32.mrb[0].mxu0
        %v636 = vpop.f32.mrb[0].mxu0
        %637 = vdwg.mxu0
        %638 = vmatprep.subr.bf16.mxu0 0
        %639 = vmatpush1.bf16.msra.mxu0 %v374
        %640 = vmatprep.subr.bf16.mxu0 0
        %641 = vmatpush1.bf16.msra.mxu0 %v375
        %642 = vmatprep.subr.bf16.mxu0 0
        %643 = vmatpush1.bf16.msra.mxu0 %v376
        %644 = vmatprep.subr.bf16.mxu0 0
        %645 = vmatpush1.bf16.msra.mxu0 %v377
        %646 = vmatprep.subr.bf16.mxu0 0
        %647 = vmatpush1.bf16.msra.mxu0 %v378
        %648 = vmatprep.subr.bf16.mxu0 0
        %649 = vmatpush1.bf16.msra.mxu0 %v379
        %650 = vmatprep.subr.bf16.mxu0 0
        %651 = vmatpush1.bf16.msra.mxu0 %v380
        %652 = vmatprep.subr.bf16.mxu0 0
        %653 = vmatpush1.bf16.msra.mxu0 %v381
        %654 = vmatprep.subr.bf16.mxu0 0
        %655 = vmatpush1.bf16.msra.mxu0 0
        %656 = vmatprep.subr.bf16.mxu0 0
        %657 = vmatpush1.bf16.msra.mxu0 0
        %658 = vmatprep.subr.bf16.mxu0 0
        %659 = vmatpush1.bf16.msra.mxu0 0
        %660 = vmatprep.subr.bf16.mxu0 0
        %661 = vmatpush1.bf16.msra.mxu0 0
        %662 = vmatprep.subr.bf16.mxu0 0
        %663 = vmatpush1.bf16.msra.mxu0 0
        %664 = vmatprep.subr.bf16.mxu0 0
        %665 = vmatpush1.bf16.msra.mxu0 0
        %666 = vmatprep.subr.bf16.mxu0 0
        %667 = vmatpush1.bf16.msra.mxu0 0
        %668 = vmatprep.subr.bf16.mxu0 0
        %669 = vmatpush1.bf16.msra.mxu0 0
        %670 = vmatprep.mubr.bf16.mxu0 0
        %671 = vmatmul.mubr.bf16.gmra.mrb[0].mxu0 %v595
        %v672 = vpop.f32.mrb[0].mxu0
        %v673 = vadd.f32 %v633, %v672
        %v674 = vpop.f32.mrb[0].mxu0
        %v675 = vpop.f32.mrb[0].mxu0
        %v676 = vpop.f32.mrb[0].mxu0
        %677 = vdwg.mxu0
        %v678 = vmul.f32 %v673, %v442
        %v679 = vadd.f32 %v678, %v449
        %v680 = vmax.f32 %v679, 0.0
        %v682 = vunpack.c.l.b16 %v232
        %v683 = vunpack.c.h.b16 %v232
        %v684 = vpack.c.b16 %v682, %v682
        %v685 = vpack.c.b16 %v683, %v683
        %688 = vmatprep.subr.bf16.mxu0 0
        %689 = vmatpush1.bf16.msra.mxu0 %v492
        %690 = vmatprep.subr.bf16.mxu0 0
        %691 = vmatpush1.bf16.msra.mxu0 %v493
        %692 = vmatprep.subr.bf16.mxu0 0
        %693 = vmatpush1.bf16.msra.mxu0 %v494
        %694 = vmatprep.subr.bf16.mxu0 0
        %695 = vmatpush1.bf16.msra.mxu0 %v495
        %696 = vmatprep.subr.bf16.mxu0 0
        %697 = vmatpush1.bf16.msra.mxu0 %v496
        %698 = vmatprep.subr.bf16.mxu0 0
        %699 = vmatpush1.bf16.msra.mxu0 %v497
        %700 = vmatprep.subr.bf16.mxu0 0
        %701 = vmatpush1.bf16.msra.mxu0 %v498
        %702 = vmatprep.subr.bf16.mxu0 0
        %703 = vmatpush1.bf16.msra.mxu0 %v499
        %704 = vmatprep.subr.bf16.mxu0 0
        %705 = vmatpush1.bf16.msra.mxu0 %v366
        %706 = vmatprep.subr.bf16.mxu0 0
        %707 = vmatpush1.bf16.msra.mxu0 %v367
        %708 = vmatprep.subr.bf16.mxu0 0
        %709 = vmatpush1.bf16.msra.mxu0 %v368
        %710 = vmatprep.subr.bf16.mxu0 0
        %711 = vmatpush1.bf16.msra.mxu0 %v369
        %712 = vmatprep.subr.bf16.mxu0 0
        %713 = vmatpush1.bf16.msra.mxu0 %v370
        %714 = vmatprep.subr.bf16.mxu0 0
        %715 = vmatpush1.bf16.msra.mxu0 %v371
        %716 = vmatprep.subr.bf16.mxu0 0
        %717 = vmatpush1.bf16.msra.mxu0 %v372
        %718 = vmatprep.subr.bf16.mxu0 0
        %719 = vmatpush1.bf16.msra.mxu0 %v373
        %720 = vmatprep.mubr.bf16.mxu0 %v684
        %721 = vmatmul.mubr.bf16.gmra.mrb[0].mxu0 %v595
        %v722 = vpop.f32.mrb[0].mxu0
        %v723 = vadd.f32 0.0, %v722
        %v724 = vpop.f32.mrb[0].mxu0
        %v725 = vpop.f32.mrb[0].mxu0
        %v726 = vpop.f32.mrb[0].mxu0
        %727 = vdwg.mxu0
        %728 = vmatprep.subr.bf16.mxu0 0
        %729 = vmatpush1.bf16.msra.mxu0 %v374
        %730 = vmatprep.subr.bf16.mxu0 0
        %731 = vmatpush1.bf16.msra.mxu0 %v375
        %732 = vmatprep.subr.bf16.mxu0 0
        %733 = vmatpush1.bf16.msra.mxu0 %v376
        %734 = vmatprep.subr.bf16.mxu0 0
        %735 = vmatpush1.bf16.msra.mxu0 %v377
        %736 = vmatprep.subr.bf16.mxu0 0
        %737 = vmatpush1.bf16.msra.mxu0 %v378
        %738 = vmatprep.subr.bf16.mxu0 0
        %739 = vmatpush1.bf16.msra.mxu0 %v379
        %740 = vmatprep.subr.bf16.mxu0 0
        %741 = vmatpush1.bf16.msra.mxu0 %v380
        %742 = vmatprep.subr.bf16.mxu0 0
        %743 = vmatpush1.bf16.msra.mxu0 %v381
        %744 = vmatprep.subr.bf16.mxu0 0
        %745 = vmatpush1.bf16.msra.mxu0 0
        %746 = vmatprep.subr.bf16.mxu0 0
        %747 = vmatpush1.bf16.msra.mxu0 0
        %748 = vmatprep.subr.bf16.mxu0 0
        %749 = vmatpush1.bf16.msra.mxu0 0
        %750 = vmatprep.subr.bf16.mxu0 0
        %751 = vmatpush1.bf16.msra.mxu0 0
        %752 = vmatprep.subr.bf16.mxu0 0
        %753 = vmatpush1.bf16.msra.mxu0 0
        %754 = vmatprep.subr.bf16.mxu0 0
        %755 = vmatpush1.bf16.msra.mxu0 0
        %756 = vmatprep.subr.bf16.mxu0 0
        %757 = vmatpush1.bf16.msra.mxu0 0
        %758 = vmatprep.subr.bf16.mxu0 0
        %759 = vmatpush1.bf16.msra.mxu0 0
        %760 = vmatprep.mubr.bf16.mxu0 0
        %761 = vmatmul.mubr.bf16.gmra.mrb[0].mxu0 %v685
        %v762 = vpop.f32.mrb[0].mxu0
        %v763 = vadd.f32 %v723, %v762
        %v764 = vpop.f32.mrb[0].mxu0
        %v765 = vpop.f32.mrb[0].mxu0
        %v766 = vpop.f32.mrb[0].mxu0
        %767 = vdwg.mxu0
        %v768 = vmul.f32 %v763, %v442
        %v769 = vadd.f32 %v768, %v449
        %v770 = vmax.f32 %v769, 0.0
        %v772 = vunpack.c.l.b16 %v233
        %v773 = vunpack.c.h.b16 %v233
        %v774 = vpack.c.b16 %v772, %v772
        %v775 = vpack.c.b16 %v773, %v773
        %778 = vmatprep.subr.bf16.mxu0 0
        %779 = vmatpush1.bf16.msra.mxu0 %v492
        %780 = vmatprep.subr.bf16.mxu0 0
        %781 = vmatpush1.bf16.msra.mxu0 %v493
        %782 = vmatprep.subr.bf16.mxu0 0
        %783 = vmatpush1.bf16.msra.mxu0 %v494
        %784 = vmatprep.subr.bf16.mxu0 0
        %785 = vmatpush1.bf16.msra.mxu0 %v495
        %786 = vmatprep.subr.bf16.mxu0 0
        %787 = vmatpush1.bf16.msra.mxu0 %v496
        %788 = vmatprep.subr.bf16.mxu0 0
        %789 = vmatpush1.bf16.msra.mxu0 %v497
        %790 = vmatprep.subr.bf16.mxu0 0
        %791 = vmatpush1.bf16.msra.mxu0 %v498
        %792 = vmatprep.subr.bf16.mxu0 0
        %793 = vmatpush1.bf16.msra.mxu0 %v499
        %794 = vmatprep.subr.bf16.mxu0 0
        %795 = vmatpush1.bf16.msra.mxu0 %v366
        %796 = vmatprep.subr.bf16.mxu0 0
        %797 = vmatpush1.bf16.msra.mxu0 %v367
        %798 = vmatprep.subr.bf16.mxu0 0
        %799 = vmatpush1.bf16.msra.mxu0 %v368
        %800 = vmatprep.subr.bf16.mxu0 0
        %801 = vmatpush1.bf16.msra.mxu0 %v369
        %802 = vmatprep.subr.bf16.mxu0 0
        %803 = vmatpush1.bf16.msra.mxu0 %v370
        %804 = vmatprep.subr.bf16.mxu0 0
        %805 = vmatpush1.bf16.msra.mxu0 %v371
        %806 = vmatprep.subr.bf16.mxu0 0
        %807 = vmatpush1.bf16.msra.mxu0 %v372
        %808 = vmatprep.subr.bf16.mxu0 0
        %809 = vmatpush1.bf16.msra.mxu0 %v373
        %810 = vmatprep.mubr.bf16.mxu0 %v774
        %811 = vmatmul.mubr.bf16.gmra.mrb[0].mxu0 %v685
        %v812 = vpop.f32.mrb[0].mxu0
        %v813 = vadd.f32 0.0, %v812
        %v814 = vpop.f32.mrb[0].mxu0
        %v815 = vpop.f32.mrb[0].mxu0
        %v816 = vpop.f32.mrb[0].mxu0
        %817 = vdwg.mxu0
        %818 = vmatprep.subr.bf16.mxu0 0
        %819 = vmatpush1.bf16.msra.mxu0 %v374
        %820 = vmatprep.subr.bf16.mxu0 0
        %821 = vmatpush1.bf16.msra.mxu0 %v375
        %822 = vmatprep.subr.bf16.mxu0 0
        %823 = vmatpush1.bf16.msra.mxu0 %v376
        %824 = vmatprep.subr.bf16.mxu0 0
        %825 = vmatpush1.bf16.msra.mxu0 %v377
        %826 = vmatprep.subr.bf16.mxu0 0
        %827 = vmatpush1.bf16.msra.mxu0 %v378
        %828 = vmatprep.subr.bf16.mxu0 0
        %829 = vmatpush1.bf16.msra.mxu0 %v379
        %830 = vmatprep.subr.bf16.mxu0 0
        %831 = vmatpush1.bf16.msra.mxu0 %v380
        %832 = vmatprep.subr.bf16.mxu0 0
        %833 = vmatpush1.bf16.msra.mxu0 %v381
        %834 = vmatprep.subr.bf16.mxu0 0
        %835 = vmatpush1.bf16.msra.mxu0 0
        %836 = vmatprep.subr.bf16.mxu0 0
        %837 = vmatpush1.bf16.msra.mxu0 0
        %838 = vmatprep.subr.bf16.mxu0 0
        %839 = vmatpush1.bf16.msra.mxu0 0
        %840 = vmatprep.subr.bf16.mxu0 0
        %841 = vmatpush1.bf16.msra.mxu0 0
        %842 = vmatprep.subr.bf16.mxu0 0
        %843 = vmatpush1.bf16.msra.mxu0 0
        %844 = vmatprep.subr.bf16.mxu0 0
        %845 = vmatpush1.bf16.msra.mxu0 0
        %846 = vmatprep.subr.bf16.mxu0 0
        %847 = vmatpush1.bf16.msra.mxu0 0
        %848 = vmatprep.subr.bf16.mxu0 0
        %849 = vmatpush1.bf16.msra.mxu0 0
        %850 = vmatprep.mubr.bf16.mxu0 0
        %851 = vmatmul.mubr.bf16.gmra.mrb[0].mxu0 %v775
        %v852 = vpop.f32.mrb[0].mxu0
        %v853 = vadd.f32 %v813, %v852
        %v854 = vpop.f32.mrb[0].mxu0
        %v855 = vpop.f32.mrb[0].mxu0
        %v856 = vpop.f32.mrb[0].mxu0
        %857 = vdwg.mxu0
        %v858 = vmul.f32 %v853, %v442
        %v859 = vadd.f32 %v858, %v449
        %v860 = vmax.f32 %v859, 0.0
        %v862 = vunpack.c.l.b16 %v234
        %v863 = vunpack.c.h.b16 %v234
        %v864 = vpack.c.b16 %v862, %v862
        %v865 = vpack.c.b16 %v863, %v863
        %868 = vmatprep.subr.bf16.mxu0 0
        %869 = vmatpush1.bf16.msra.mxu0 %v492
        %870 = vmatprep.subr.bf16.mxu0 0
        %871 = vmatpush1.bf16.msra.mxu0 %v493
        %872 = vmatprep.subr.bf16.mxu0 0
        %873 = vmatpush1.bf16.msra.mxu0 %v494
        %874 = vmatprep.subr.bf16.mxu0 0
        %875 = vmatpush1.bf16.msra.mxu0 %v495
        %876 = vmatprep.subr.bf16.mxu0 0
        %877 = vmatpush1.bf16.msra.mxu0 %v496
        %878 = vmatprep.subr.bf16.mxu0 0
        %879 = vmatpush1.bf16.msra.mxu0 %v497
        %880 = vmatprep.subr.bf16.mxu0 0
        %881 = vmatpush1.bf16.msra.mxu0 %v498
        %882 = vmatprep.subr.bf16.mxu0 0
        %883 = vmatpush1.bf16.msra.mxu0 %v499
        %884 = vmatprep.subr.bf16.mxu0 0
        %885 = vmatpush1.bf16.msra.mxu0 %v366
        %886 = vmatprep.subr.bf16.mxu0 0
        %887 = vmatpush1.bf16.msra.mxu0 %v367
        %888 = vmatprep.subr.bf16.mxu0 0
        %889 = vmatpush1.bf16.msra.mxu0 %v368
        %890 = vmatprep.subr.bf16.mxu0 0
        %891 = vmatpush1.bf16.msra.mxu0 %v369
        %892 = vmatprep.subr.bf16.mxu0 0
        %893 = vmatpush1.bf16.msra.mxu0 %v370
        %894 = vmatprep.subr.bf16.mxu0 0
        %895 = vmatpush1.bf16.msra.mxu0 %v371
        %896 = vmatprep.subr.bf16.mxu0 0
        %897 = vmatpush1.bf16.msra.mxu0 %v372
        %898 = vmatprep.subr.bf16.mxu0 0
        %899 = vmatpush1.bf16.msra.mxu0 %v373
        %900 = vmatprep.mubr.bf16.mxu0 %v864
        %901 = vmatmul.mubr.bf16.gmra.mrb[0].mxu0 %v775
        %v902 = vpop.f32.mrb[0].mxu0
        %v903 = vadd.f32 0.0, %v902
        %v904 = vpop.f32.mrb[0].mxu0
        %v905 = vpop.f32.mrb[0].mxu0
        %v906 = vpop.f32.mrb[0].mxu0
        %907 = vdwg.mxu0
        %908 = vmatprep.subr.bf16.mxu0 0
        %909 = vmatpush1.bf16.msra.mxu0 %v374
        %910 = vmatprep.subr.bf16.mxu0 0
        %911 = vmatpush1.bf16.msra.mxu0 %v375
        %912 = vmatprep.subr.bf16.mxu0 0
        %913 = vmatpush1.bf16.msra.mxu0 %v376
        %914 = vmatprep.subr.bf16.mxu0 0
        %915 = vmatpush1.bf16.msra.mxu0 %v377
        %916 = vmatprep.subr.bf16.mxu0 0
        %917 = vmatpush1.bf16.msra.mxu0 %v378
        %918 = vmatprep.subr.bf16.mxu0 0
        %919 = vmatpush1.bf16.msra.mxu0 %v379
        %920 = vmatprep.subr.bf16.mxu0 0
        %921 = vmatpush1.bf16.msra.mxu0 %v380
        %922 = vmatprep.subr.bf16.mxu0 0
        %923 = vmatpush1.bf16.msra.mxu0 %v381
        %924 = vmatprep.subr.bf16.mxu0 0
        %925 = vmatpush1.bf16.msra.mxu0 0
        %926 = vmatprep.subr.bf16.mxu0 0
        %927 = vmatpush1.bf16.msra.mxu0 0
        %928 = vmatprep.subr.bf16.mxu0 0
        %929 = vmatpush1.bf16.msra.mxu0 0
        %930 = vmatprep.subr.bf16.mxu0 0
        %931 = vmatpush1.bf16.msra.mxu0 0
        %932 = vmatprep.subr.bf16.mxu0 0
        %933 = vmatpush1.bf16.msra.mxu0 0
        %934 = vmatprep.subr.bf16.mxu0 0
        %935 = vmatpush1.bf16.msra.mxu0 0
        %936 = vmatprep.subr.bf16.mxu0 0
        %937 = vmatpush1.bf16.msra.mxu0 0
        %938 = vmatprep.subr.bf16.mxu0 0
        %939 = vmatpush1.bf16.msra.mxu0 0
        %940 = vmatprep.mubr.bf16.mxu0 0
        %941 = vmatmul.mubr.bf16.gmra.mrb[0].mxu0 %v865
        %v942 = vpop.f32.mrb[0].mxu0
        %v943 = vadd.f32 %v903, %v942
        %v944 = vpop.f32.mrb[0].mxu0
        %v945 = vpop.f32.mrb[0].mxu0
        %v946 = vpop.f32.mrb[0].mxu0
        %947 = vdwg.mxu0
        %v948 = vmul.f32 %v943, %v442
        %v949 = vadd.f32 %v948, %v449
        %v950 = vmax.f32 %v949, 0.0
        %v952 = vunpack.c.l.b16 %v235
        %v953 = vunpack.c.h.b16 %v235
        %v954 = vpack.c.b16 %v952, %v952
        %v955 = vpack.c.b16 %v953, %v953
        %958 = vmatprep.subr.bf16.mxu0 0
        %959 = vmatpush1.bf16.msra.mxu0 %v492
        %960 = vmatprep.subr.bf16.mxu0 0
        %961 = vmatpush1.bf16.msra.mxu0 %v493
        %962 = vmatprep.subr.bf16.mxu0 0
        %963 = vmatpush1.bf16.msra.mxu0 %v494
        %964 = vmatprep.subr.bf16.mxu0 0
        %965 = vmatpush1.bf16.msra.mxu0 %v495
        %966 = vmatprep.subr.bf16.mxu0 0
        %967 = vmatpush1.bf16.msra.mxu0 %v496
        %968 = vmatprep.subr.bf16.mxu0 0
        %969 = vmatpush1.bf16.msra.mxu0 %v497
        %970 = vmatprep.subr.bf16.mxu0 0
        %971 = vmatpush1.bf16.msra.mxu0 %v498
        %972 = vmatprep.subr.bf16.mxu0 0
        %973 = vmatpush1.bf16.msra.mxu0 %v499
        %974 = vmatprep.subr.bf16.mxu0 0
        %975 = vmatpush1.bf16.msra.mxu0 %v366
        %976 = vmatprep.subr.bf16.mxu0 0
        %977 = vmatpush1.bf16.msra.mxu0 %v367
        %978 = vmatprep.subr.bf16.mxu0 0
        %979 = vmatpush1.bf16.msra.mxu0 %v368
        %980 = vmatprep.subr.bf16.mxu0 0
        %981 = vmatpush1.bf16.msra.mxu0 %v369
        %982 = vmatprep.subr.bf16.mxu0 0
        %983 = vmatpush1.bf16.msra.mxu0 %v370
        %984 = vmatprep.subr.bf16.mxu0 0
        %985 = vmatpush1.bf16.msra.mxu0 %v371
        %986 = vmatprep.subr.bf16.mxu0 0
        %987 = vmatpush1.bf16.msra.mxu0 %v372
        %988 = vmatprep.subr.bf16.mxu0 0
        %989 = vmatpush1.bf16.msra.mxu0 %v373
        %990 = vmatprep.mubr.bf16.mxu0 %v954
        %991 = vmatmul.mubr.bf16.gmra.mrb[0].mxu0 %v865
        %v992 = vpop.f32.mrb[0].mxu0
        %v993 = vadd.f32 0.0, %v992
        %v994 = vpop.f32.mrb[0].mxu0
        %v995 = vpop.f32.mrb[0].mxu0
        %v996 = vpop.f32.mrb[0].mxu0
        %997 = vdwg.mxu0
        %998 = vmatprep.subr.bf16.mxu0 0
        %999 = vmatpush1.bf16.msra.mxu0 %v374
        %1000 = vmatprep.subr.bf16.mxu0 0
        %1001 = vmatpush1.bf16.msra.mxu0 %v375
        %1002 = vmatprep.subr.bf16.mxu0 0
        %1003 = vmatpush1.bf16.msra.mxu0 %v376
        %1004 = vmatprep.subr.bf16.mxu0 0
        %1005 = vmatpush1.bf16.msra.mxu0 %v377
        %1006 = vmatprep.subr.bf16.mxu0 0
        %1007 = vmatpush1.bf16.msra.mxu0 %v378
        %1008 = vmatprep.subr.bf16.mxu0 0
        %1009 = vmatpush1.bf16.msra.mxu0 %v379
        %1010 = vmatprep.subr.bf16.mxu0 0
        %1011 = vmatpush1.bf16.msra.mxu0 %v380
        %1012 = vmatprep.subr.bf16.mxu0 0
        %1013 = vmatpush1.bf16.msra.mxu0 %v381
        %1014 = vmatprep.subr.bf16.mxu0 0
        %1015 = vmatpush1.bf16.msra.mxu0 0
        %1016 = vmatprep.subr.bf16.mxu0 0
        %1017 = vmatpush1.bf16.msra.mxu0 0
        %1018 = vmatprep.subr.bf16.mxu0 0
        %1019 = vmatpush1.bf16.msra.mxu0 0
        %1020 = vmatprep.subr.bf16.mxu0 0
        %1021 = vmatpush1.bf16.msra.mxu0 0
        %1022 = vmatprep.subr.bf16.mxu0 0
        %1023 = vmatpush1.bf16.msra.mxu0 0
        %1024 = vmatprep.subr.bf16.mxu0 0
        %1025 = vmatpush1.bf16.msra.mxu0 0
        %1026 = vmatprep.subr.bf16.mxu0 0
        %1027 = vmatpush1.bf16.msra.mxu0 0
        %1028 = vmatprep.subr.bf16.mxu0 0
        %1029 = vmatpush1.bf16.msra.mxu0 0
        %1030 = vmatprep.mubr.bf16.mxu0 0
        %1031 = vmatmul.mubr.bf16.gmra.mrb[0].mxu0 %v955
        %v1032 = vpop.f32.mrb[0].mxu0
        %v1033 = vadd.f32 %v993, %v1032
        %v1034 = vpop.f32.mrb[0].mxu0
        %v1035 = vpop.f32.mrb[0].mxu0
        %v1036 = vpop.f32.mrb[0].mxu0
        %1037 = vdwg.mxu0
        %v1038 = vmul.f32 %v1033, %v442
        %v1039 = vadd.f32 %v1038, %v449
        %v1040 = vmax.f32 %v1039, 0.0
        %v1042 = vunpack.c.l.b16 %v236
        %v1043 = vunpack.c.h.b16 %v236
        %v1044 = vpack.c.b16 %v1042, %v1042
        %v1045 = vpack.c.b16 %v1043, %v1043
        %1048 = vmatprep.subr.bf16.mxu0 0
        %1049 = vmatpush1.bf16.msra.mxu0 %v492
        %1050 = vmatprep.subr.bf16.mxu0 0
        %1051 = vmatpush1.bf16.msra.mxu0 %v493
        %1052 = vmatprep.subr.bf16.mxu0 0
        %1053 = vmatpush1.bf16.msra.mxu0 %v494
        %1054 = vmatprep.subr.bf16.mxu0 0
        %1055 = vmatpush1.bf16.msra.mxu0 %v495
        %1056 = vmatprep.subr.bf16.mxu0 0
        %1057 = vmatpush1.bf16.msra.mxu0 %v496
        %1058 = vmatprep.subr.bf16.mxu0 0
        %1059 = vmatpush1.bf16.msra.mxu0 %v497
        %1060 = vmatprep.subr.bf16.mxu0 0
        %1061 = vmatpush1.bf16.msra.mxu0 %v498
        %1062 = vmatprep.subr.bf16.mxu0 0
        %1063 = vmatpush1.bf16.msra.mxu0 %v499
        %1064 = vmatprep.subr.bf16.mxu0 0
        %1065 = vmatpush1.bf16.msra.mxu0 %v366
        %1066 = vmatprep.subr.bf16.mxu0 0
        %1067 = vmatpush1.bf16.msra.mxu0 %v367
        %1068 = vmatprep.subr.bf16.mxu0 0
        %1069 = vmatpush1.bf16.msra.mxu0 %v368
        %1070 = vmatprep.subr.bf16.mxu0 0
        %1071 = vmatpush1.bf16.msra.mxu0 %v369
        %1072 = vmatprep.subr.bf16.mxu0 0
        %1073 = vmatpush1.bf16.msra.mxu0 %v370
        %1074 = vmatprep.subr.bf16.mxu0 0
        %1075 = vmatpush1.bf16.msra.mxu0 %v371
        %1076 = vmatprep.subr.bf16.mxu0 0
        %1077 = vmatpush1.bf16.msra.mxu0 %v372
        %1078 = vmatprep.subr.bf16.mxu0 0
        %1079 = vmatpush1.bf16.msra.mxu0 %v373
        %1080 = vmatprep.mubr.bf16.mxu0 %v1044
        %1081 = vmatmul.mubr.bf16.gmra.mrb[0].mxu0 %v955
        %v1082 = vpop.f32.mrb[0].mxu0
        %v1083 = vadd.f32 0.0, %v1082
        %v1084 = vpop.f32.mrb[0].mxu0
        %v1085 = vpop.f32.mrb[0].mxu0
        %v1086 = vpop.f32.mrb[0].mxu0
        %1087 = vdwg.mxu0
        %1088 = vmatprep.subr.bf16.mxu0 0
        %1089 = vmatpush1.bf16.msra.mxu0 %v374
        %1090 = vmatprep.subr.bf16.mxu0 0
        %1091 = vmatpush1.bf16.msra.mxu0 %v375
        %1092 = vmatprep.subr.bf16.mxu0 0
        %1093 = vmatpush1.bf16.msra.mxu0 %v376
        %1094 = vmatprep.subr.bf16.mxu0 0
        %1095 = vmatpush1.bf16.msra.mxu0 %v377
        %1096 = vmatprep.subr.bf16.mxu0 0
        %1097 = vmatpush1.bf16.msra.mxu0 %v378
        %1098 = vmatprep.subr.bf16.mxu0 0
        %1099 = vmatpush1.bf16.msra.mxu0 %v379
        %1100 = vmatprep.subr.bf16.mxu0 0
        %1101 = vmatpush1.bf16.msra.mxu0 %v380
        %1102 = vmatprep.subr.bf16.mxu0 0
        %1103 = vmatpush1.bf16.msra.mxu0 %v381
        %1104 = vmatprep.subr.bf16.mxu0 0
        %1105 = vmatpush1.bf16.msra.mxu0 0
        %1106 = vmatprep.subr.bf16.mxu0 0
        %1107 = vmatpush1.bf16.msra.mxu0 0
        %1108 = vmatprep.subr.bf16.mxu0 0
        %1109 = vmatpush1.bf16.msra.mxu0 0
        %1110 = vmatprep.subr.bf16.mxu0 0
        %1111 = vmatpush1.bf16.msra.mxu0 0
        %1112 = vmatprep.subr.bf16.mxu0 0
        %1113 = vmatpush1.bf16.msra.mxu0 0
        %1114 = vmatprep.subr.bf16.mxu0 0
        %1115 = vmatpush1.bf16.msra.mxu0 0
        %1116 = vmatprep.subr.bf16.mxu0 0
        %1117 = vmatpush1.bf16.msra.mxu0 0
        %1118 = vmatprep.subr.bf16.mxu0 0
        %1119 = vmatpush1.bf16.msra.mxu0 0
        %1120 = vmatprep.mubr.bf16.mxu0 0
        %1121 = vmatmul.mubr.bf16.gmra.mrb[0].mxu0 %v1045
        %v1122 = vpop.f32.mrb[0].mxu0
        %v1123 = vadd.f32 %v1083, %v1122
        %v1124 = vpop.f32.mrb[0].mxu0
        %v1125 = vpop.f32.mrb[0].mxu0
        %v1126 = vpop.f32.mrb[0].mxu0
        %1127 = vdwg.mxu0
        %v1128 = vmul.f32 %v1123, %v442
        %v1129 = vadd.f32 %v1128, %v449
        %v1130 = vmax.f32 %v1129, 0.0
        %v1132 = vunpack.c.l.b16 %v237
        %v1133 = vunpack.c.h.b16 %v237
        %v1134 = vpack.c.b16 %v1132, %v1132
        %v1135 = vpack.c.b16 %v1133, %v1133
        %1138 = vmatprep.subr.bf16.mxu0 0
        %1139 = vmatpush1.bf16.msra.mxu0 %v492
        %1140 = vmatprep.subr.bf16.mxu0 0
        %1141 = vmatpush1.bf16.msra.mxu0 %v493
        %1142 = vmatprep.subr.bf16.mxu0 0
        %1143 = vmatpush1.bf16.msra.mxu0 %v494
        %1144 = vmatprep.subr.bf16.mxu0 0
        %1145 = vmatpush1.bf16.msra.mxu0 %v495
        %1146 = vmatprep.subr.bf16.mxu0 0
        %1147 = vmatpush1.bf16.msra.mxu0 %v496
        %1148 = vmatprep.subr.bf16.mxu0 0
        %1149 = vmatpush1.bf16.msra.mxu0 %v497
        %1150 = vmatprep.subr.bf16.mxu0 0
        %1151 = vmatpush1.bf16.msra.mxu0 %v498
        %1152 = vmatprep.subr.bf16.mxu0 0
        %1153 = vmatpush1.bf16.msra.mxu0 %v499
        %1154 = vmatprep.subr.bf16.mxu0 0
        %1155 = vmatpush1.bf16.msra.mxu0 %v366
        %1156 = vmatprep.subr.bf16.mxu0 0
        %1157 = vmatpush1.bf16.msra.mxu0 %v367
        %1158 = vmatprep.subr.bf16.mxu0 0
        %1159 = vmatpush1.bf16.msra.mxu0 %v368
        %1160 = vmatprep.subr.bf16.mxu0 0
        %1161 = vmatpush1.bf16.msra.mxu0 %v369
        %1162 = vmatprep.subr.bf16.mxu0 0
        %1163 = vmatpush1.bf16.msra.mxu0 %v370
        %1164 = vmatprep.subr.bf16.mxu0 0
        %1165 = vmatpush1.bf16.msra.mxu0 %v371
        %1166 = vmatprep.subr.bf16.mxu0 0
        %1167 = vmatpush1.bf16.msra.mxu0 %v372
        %1168 = vmatprep.subr.bf16.mxu0 0
        %1169 = vmatpush1.bf16.msra.mxu0 %v373
        %1170 = vmatprep.mubr.bf16.mxu0 %v1134
        %1171 = vmatmul.mubr.bf16.gmra.mrb[0].mxu0 %v1045
        %v1172 = vpop.f32.mrb[0].mxu0
        %v1173 = vadd.f32 0.0, %v1172
        %v1174 = vpop.f32.mrb[0].mxu0
        %v1175 = vpop.f32.mrb[0].mxu0
        %v1176 = vpop.f32.mrb[0].mxu0
        %1177 = vdwg.mxu0
        %1178 = vmatprep.subr.bf16.mxu0 0
        %1179 = vmatpush1.bf16.msra.mxu0 %v374
        %1180 = vmatprep.subr.bf16.mxu0 0
        %1181 = vmatpush1.bf16.msra.mxu0 %v375
        %1182 = vmatprep.subr.bf16.mxu0 0
        %1183 = vmatpush1.bf16.msra.mxu0 %v376
        %1184 = vmatprep.subr.bf16.mxu0 0
        %1185 = vmatpush1.bf16.msra.mxu0 %v377
        %1186 = vmatprep.subr.bf16.mxu0 0
        %1187 = vmatpush1.bf16.msra.mxu0 %v378
        %1188 = vmatprep.subr.bf16.mxu0 0
        %1189 = vmatpush1.bf16.msra.mxu0 %v379
        %1190 = vmatprep.subr.bf16.mxu0 0
        %1191 = vmatpush1.bf16.msra.mxu0 %v380
        %1192 = vmatprep.subr.bf16.mxu0 0
        %1193 = vmatpush1.bf16.msra.mxu0 %v381
        %1194 = vmatprep.subr.bf16.mxu0 0
        %1195 = vmatpush1.bf16.msra.mxu0 0
        %1196 = vmatprep.subr.bf16.mxu0 0
        %1197 = vmatpush1.bf16.msra.mxu0 0
        %1198 = vmatprep.subr.bf16.mxu0 0
        %1199 = vmatpush1.bf16.msra.mxu0 0
        %1200 = vmatprep.subr.bf16.mxu0 0
        %1201 = vmatpush1.bf16.msra.mxu0 0
        %1202 = vmatprep.subr.bf16.mxu0 0
        %1203 = vmatpush1.bf16.msra.mxu0 0
        %1204 = vmatprep.subr.bf16.mxu0 0
        %1205 = vmatpush1.bf16.msra.mxu0 0
        %1206 = vmatprep.subr.bf16.mxu0 0
        %1207 = vmatpush1.bf16.msra.mxu0 0
        %1208 = vmatprep.subr.bf16.mxu0 0
        %1209 = vmatpush1.bf16.msra.mxu0 0
        %1210 = vmatprep.mubr.bf16.mxu0 0
        %1211 = vmatmul.mubr.bf16.gmra.mrb[0].mxu0 %v1135
        %v1212 = vpop.f32.mrb[0].mxu0
        %v1213 = vadd.f32 %v1173, %v1212
        %v1214 = vpop.f32.mrb[0].mxu0
        %v1215 = vpop.f32.mrb[0].mxu0
        %v1216 = vpop.f32.mrb[0].mxu0
        %1217 = vdwg.mxu0
        %v1218 = vmul.f32 %v1213, %v442
        %v1219 = vadd.f32 %v1218, %v449
        %v1220 = vmax.f32 %v1219, 0.0
        %v1222 = vunpack.c.l.b16 %v238
        %v1223 = vunpack.c.h.b16 %v238
        %v1224 = vpack.c.b16 %v1222, %v1222
        %v1225 = vpack.c.b16 %v1223, %v1223
        %1228 = vmatprep.subr.bf16.mxu0 0
        %1229 = vmatpush1.bf16.msra.mxu0 %v492
        %1230 = vmatprep.subr.bf16.mxu0 0
        %1231 = vmatpush1.bf16.msra.mxu0 %v493
        %1232 = vmatprep.subr.bf16.mxu0 0
        %1233 = vmatpush1.bf16.msra.mxu0 %v494
        %1234 = vmatprep.subr.bf16.mxu0 0
        %1235 = vmatpush1.bf16.msra.mxu0 %v495
        %1236 = vmatprep.subr.bf16.mxu0 0
        %1237 = vmatpush1.bf16.msra.mxu0 %v496
        %1238 = vmatprep.subr.bf16.mxu0 0
        %1239 = vmatpush1.bf16.msra.mxu0 %v497
        %1240 = vmatprep.subr.bf16.mxu0 0
        %1241 = vmatpush1.bf16.msra.mxu0 %v498
        %1242 = vmatprep.subr.bf16.mxu0 0
        %1243 = vmatpush1.bf16.msra.mxu0 %v499
        %1244 = vmatprep.subr.bf16.mxu0 0
        %1245 = vmatpush1.bf16.msra.mxu0 %v366
        %1246 = vmatprep.subr.bf16.mxu0 0
        %1247 = vmatpush1.bf16.msra.mxu0 %v367
        %1248 = vmatprep.subr.bf16.mxu0 0
        %1249 = vmatpush1.bf16.msra.mxu0 %v368
        %1250 = vmatprep.subr.bf16.mxu0 0
        %1251 = vmatpush1.bf16.msra.mxu0 %v369
        %1252 = vmatprep.subr.bf16.mxu0 0
        %1253 = vmatpush1.bf16.msra.mxu0 %v370
        %1254 = vmatprep.subr.bf16.mxu0 0
        %1255 = vmatpush1.bf16.msra.mxu0 %v371
        %1256 = vmatprep.subr.bf16.mxu0 0
        %1257 = vmatpush1.bf16.msra.mxu0 %v372
        %1258 = vmatprep.subr.bf16.mxu0 0
        %1259 = vmatpush1.bf16.msra.mxu0 %v373
        %1260 = vmatprep.mubr.bf16.mxu0 %v1224
        %1261 = vmatmul.mubr.bf16.gmra.mrb[0].mxu0 %v1135
        %v1262 = vpop.f32.mrb[0].mxu0
        %v1263 = vadd.f32 0.0, %v1262
        %v1264 = vpop.f32.mrb[0].mxu0
        %v1265 = vpop.f32.mrb[0].mxu0
        %v1266 = vpop.f32.mrb[0].mxu0
        %1267 = vdwg.mxu0
        %1268 = vmatprep.subr.bf16.mxu0 0
        %1269 = vmatpush1.bf16.msra.mxu0 %v374
        %1270 = vmatprep.subr.bf16.mxu0 0
        %1271 = vmatpush1.bf16.msra.mxu0 %v375
        %1272 = vmatprep.subr.bf16.mxu0 0
        %1273 = vmatpush1.bf16.msra.mxu0 %v376
        %1274 = vmatprep.subr.bf16.mxu0 0
        %1275 = vmatpush1.bf16.msra.mxu0 %v377
        %1276 = vmatprep.subr.bf16.mxu0 0
        %1277 = vmatpush1.bf16.msra.mxu0 %v378
        %1278 = vmatprep.subr.bf16.mxu0 0
        %1279 = vmatpush1.bf16.msra.mxu0 %v379
        %1280 = vmatprep.subr.bf16.mxu0 0
        %1281 = vmatpush1.bf16.msra.mxu0 %v380
        %1282 = vmatprep.subr.bf16.mxu0 0
        %1283 = vmatpush1.bf16.msra.mxu0 %v381
        %1284 = vmatprep.subr.bf16.mxu0 0
        %1285 = vmatpush1.bf16.msra.mxu0 0
        %1286 = vmatprep.subr.bf16.mxu0 0
        %1287 = vmatpush1.bf16.msra.mxu0 0
        %1288 = vmatprep.subr.bf16.mxu0 0
        %1289 = vmatpush1.bf16.msra.mxu0 0
        %1290 = vmatprep.subr.bf16.mxu0 0
        %1291 = vmatpush1.bf16.msra.mxu0 0
        %1292 = vmatprep.subr.bf16.mxu0 0
        %1293 = vmatpush1.bf16.msra.mxu0 0
        %1294 = vmatprep.subr.bf16.mxu0 0
        %1295 = vmatpush1.bf16.msra.mxu0 0
        %1296 = vmatprep.subr.bf16.mxu0 0
        %1297 = vmatpush1.bf16.msra.mxu0 0
        %1298 = vmatprep.subr.bf16.mxu0 0
        %1299 = vmatpush1.bf16.msra.mxu0 0
        %1300 = vmatprep.mubr.bf16.mxu0 0
        %1301 = vmatmul.mubr.bf16.gmra.mrb[0].mxu0 %v1225
        %v1302 = vpop.f32.mrb[0].mxu0
        %v1303 = vadd.f32 %v1263, %v1302
        %v1304 = vpop.f32.mrb[0].mxu0
        %v1305 = vpop.f32.mrb[0].mxu0
        %v1306 = vpop.f32.mrb[0].mxu0
        %1307 = vdwg.mxu0
        %v1308 = vmul.f32 %v1303, %v442
        %v1309 = vadd.f32 %v1308, %v449
        %v1310 = vmax.f32 %v1309, 0.0
        %v1312 = vunpack.c.l.b16 %v239
        %v1313 = vunpack.c.h.b16 %v239
        %v1314 = vpack.c.b16 %v1312, %v1312
        %v1315 = vpack.c.b16 %v1313, %v1313
        %1318 = vmatprep.subr.bf16.mxu0 0
        %1319 = vmatpush1.bf16.msra.mxu0 %v492
        %1320 = vmatprep.subr.bf16.mxu0 0
        %1321 = vmatpush1.bf16.msra.mxu0 %v493
        %1322 = vmatprep.subr.bf16.mxu0 0
        %1323 = vmatpush1.bf16.msra.mxu0 %v494
        %1324 = vmatprep.subr.bf16.mxu0 0
        %1325 = vmatpush1.bf16.msra.mxu0 %v495
        %1326 = vmatprep.subr.bf16.mxu0 0
        %1327 = vmatpush1.bf16.msra.mxu0 %v496
        %1328 = vmatprep.subr.bf16.mxu0 0
        %1329 = vmatpush1.bf16.msra.mxu0 %v497
        %1330 = vmatprep.subr.bf16.mxu0 0
        %1331 = vmatpush1.bf16.msra.mxu0 %v498
        %1332 = vmatprep.subr.bf16.mxu0 0
        %1333 = vmatpush1.bf16.msra.mxu0 %v499
        %1334 = vmatprep.subr.bf16.mxu0 0
        %1335 = vmatpush1.bf16.msra.mxu0 %v366
        %1336 = vmatprep.subr.bf16.mxu0 0
        %1337 = vmatpush1.bf16.msra.mxu0 %v367
        %1338 = vmatprep.subr.bf16.mxu0 0
        %1339 = vmatpush1.bf16.msra.mxu0 %v368
        %1340 = vmatprep.subr.bf16.mxu0 0
        %1341 = vmatpush1.bf16.msra.mxu0 %v369
        %1342 = vmatprep.subr.bf16.mxu0 0
        %1343 = vmatpush1.bf16.msra.mxu0 %v370
        %1344 = vmatprep.subr.bf16.mxu0 0
        %1345 = vmatpush1.bf16.msra.mxu0 %v371
        %1346 = vmatprep.subr.bf16.mxu0 0
        %1347 = vmatpush1.bf16.msra.mxu0 %v372
        %1348 = vmatprep.subr.bf16.mxu0 0
        %1349 = vmatpush1.bf16.msra.mxu0 %v373
        %1350 = vmatprep.mubr.bf16.mxu0 %v1314
        %1351 = vmatmul.mubr.bf16.gmra.mrb[0].mxu0 %v1225
        %v1352 = vpop.f32.mrb[0].mxu0
        %v1353 = vadd.f32 0.0, %v1352
        %v1354 = vpop.f32.mrb[0].mxu0
        %v1355 = vpop.f32.mrb[0].mxu0
        %v1356 = vpop.f32.mrb[0].mxu0
        %1357 = vdwg.mxu0
        %1358 = vmatprep.subr.bf16.mxu0 0
        %1359 = vmatpush1.bf16.msra.mxu0 %v374
        %1360 = vmatprep.subr.bf16.mxu0 0
        %1361 = vmatpush1.bf16.msra.mxu0 %v375
        %1362 = vmatprep.subr.bf16.mxu0 0
        %1363 = vmatpush1.bf16.msra.mxu0 %v376
        %1364 = vmatprep.subr.bf16.mxu0 0
        %1365 = vmatpush1.bf16.msra.mxu0 %v377
        %1366 = vmatprep.subr.bf16.mxu0 0
        %1367 = vmatpush1.bf16.msra.mxu0 %v378
        %1368 = vmatprep.subr.bf16.mxu0 0
        %1369 = vmatpush1.bf16.msra.mxu0 %v379
        %1370 = vmatprep.subr.bf16.mxu0 0
        %1371 = vmatpush1.bf16.msra.mxu0 %v380
        %1372 = vmatprep.subr.bf16.mxu0 0
        %1373 = vmatpush1.bf16.msra.mxu0 %v381
        %1374 = vmatprep.subr.bf16.mxu0 0
        %1375 = vmatpush1.bf16.msra.mxu0 0
        %1376 = vmatprep.subr.bf16.mxu0 0
        %1377 = vmatpush1.bf16.msra.mxu0 0
        %1378 = vmatprep.subr.bf16.mxu0 0
        %1379 = vmatpush1.bf16.msra.mxu0 0
        %1380 = vmatprep.subr.bf16.mxu0 0
        %1381 = vmatpush1.bf16.msra.mxu0 0
        %1382 = vmatprep.subr.bf16.mxu0 0
        %1383 = vmatpush1.bf16.msra.mxu0 0
        %1384 = vmatprep.subr.bf16.mxu0 0
        %1385 = vmatpush1.bf16.msra.mxu0 0
        %1386 = vmatprep.subr.bf16.mxu0 0
        %1387 = vmatpush1.bf16.msra.mxu0 0
        %1388 = vmatprep.subr.bf16.mxu0 0
        %1389 = vmatpush1.bf16.msra.mxu0 0
        %1390 = vmatprep.mubr.bf16.mxu0 0
        %1391 = vmatmul.mubr.bf16.gmra.mrb[0].mxu0 %v1315
        %v1392 = vpop.f32.mrb[0].mxu0
        %v1393 = vadd.f32 %v1353, %v1392
        %v1394 = vpop.f32.mrb[0].mxu0
        %v1395 = vpop.f32.mrb[0].mxu0
        %v1396 = vpop.f32.mrb[0].mxu0
        %1397 = vdwg.mxu0
        %v1398 = vmul.f32 %v1393, %v442
        %v1399 = vadd.f32 %v1398, %v449
        %v1400 = vmax.f32 %v1399, 0.0
        %v1402 = vunpack.c.l.b16 %v240
        %v1403 = vunpack.c.h.b16 %v240
        %v1404 = vpack.c.b16 %v1402, %v1402
        %v1405 = vpack.c.b16 %v1403, %v1403
        %1408 = vmatprep.subr.bf16.mxu0 0
        %1409 = vmatpush1.bf16.msra.mxu0 %v492
        %1410 = vmatprep.subr.bf16.mxu0 0
        %1411 = vmatpush1.bf16.msra.mxu0 %v493
        %1412 = vmatprep.subr.bf16.mxu0 0
        %1413 = vmatpush1.bf16.msra.mxu0 %v494
        %1414 = vmatprep.subr.bf16.mxu0 0
        %1415 = vmatpush1.bf16.msra.mxu0 %v495
        %1416 = vmatprep.subr.bf16.mxu0 0
        %1417 = vmatpush1.bf16.msra.mxu0 %v496
        %1418 = vmatprep.subr.bf16.mxu0 0
        %1419 = vmatpush1.bf16.msra.mxu0 %v497
        %1420 = vmatprep.subr.bf16.mxu0 0
        %1421 = vmatpush1.bf16.msra.mxu0 %v498
        %1422 = vmatprep.subr.bf16.mxu0 0
        %1423 = vmatpush1.bf16.msra.mxu0 %v499
        %1424 = vmatprep.subr.bf16.mxu0 0
        %1425 = vmatpush1.bf16.msra.mxu0 %v366
        %1426 = vmatprep.subr.bf16.mxu0 0
        %1427 = vmatpush1.bf16.msra.mxu0 %v367
        %1428 = vmatprep.subr.bf16.mxu0 0
        %1429 = vmatpush1.bf16.msra.mxu0 %v368
        %1430 = vmatprep.subr.bf16.mxu0 0
        %1431 = vmatpush1.bf16.msra.mxu0 %v369
        %1432 = vmatprep.subr.bf16.mxu0 0
        %1433 = vmatpush1.bf16.msra.mxu0 %v370
        %1434 = vmatprep.subr.bf16.mxu0 0
        %1435 = vmatpush1.bf16.msra.mxu0 %v371
        %1436 = vmatprep.subr.bf16.mxu0 0
        %1437 = vmatpush1.bf16.msra.mxu0 %v372
        %1438 = vmatprep.subr.bf16.mxu0 0
        %1439 = vmatpush1.bf16.msra.mxu0 %v373
        %1440 = vmatprep.mubr.bf16.mxu0 %v1404
        %1441 = vmatmul.mubr.bf16.gmra.mrb[0].mxu0 %v1315
        %v1442 = vpop.f32.mrb[0].mxu0
        %v1443 = vadd.f32 0.0, %v1442
        %v1444 = vpop.f32.mrb[0].mxu0
        %v1445 = vpop.f32.mrb[0].mxu0
        %v1446 = vpop.f32.mrb[0].mxu0
        %1447 = vdwg.mxu0
        %1448 = vmatprep.subr.bf16.mxu0 0
        %1449 = vmatpush1.bf16.msra.mxu0 %v374
        %1450 = vmatprep.subr.bf16.mxu0 0
        %1451 = vmatpush1.bf16.msra.mxu0 %v375
        %1452 = vmatprep.subr.bf16.mxu0 0
        %1453 = vmatpush1.bf16.msra.mxu0 %v376
        %1454 = vmatprep.subr.bf16.mxu0 0
        %1455 = vmatpush1.bf16.msra.mxu0 %v377
        %1456 = vmatprep.subr.bf16.mxu0 0
        %1457 = vmatpush1.bf16.msra.mxu0 %v378
        %1458 = vmatprep.subr.bf16.mxu0 0
        %1459 = vmatpush1.bf16.msra.mxu0 %v379
        %1460 = vmatprep.subr.bf16.mxu0 0
        %1461 = vmatpush1.bf16.msra.mxu0 %v380
        %1462 = vmatprep.subr.bf16.mxu0 0
        %1463 = vmatpush1.bf16.msra.mxu0 %v381
        %1464 = vmatprep.subr.bf16.mxu0 0
        %1465 = vmatpush1.bf16.msra.mxu0 0
        %1466 = vmatprep.subr.bf16.mxu0 0
        %1467 = vmatpush1.bf16.msra.mxu0 0
        %1468 = vmatprep.subr.bf16.mxu0 0
        %1469 = vmatpush1.bf16.msra.mxu0 0
        %1470 = vmatprep.subr.bf16.mxu0 0
        %1471 = vmatpush1.bf16.msra.mxu0 0
        %1472 = vmatprep.subr.bf16.mxu0 0
        %1473 = vmatpush1.bf16.msra.mxu0 0
        %1474 = vmatprep.subr.bf16.mxu0 0
        %1475 = vmatpush1.bf16.msra.mxu0 0
        %1476 = vmatprep.subr.bf16.mxu0 0
        %1477 = vmatpush1.bf16.msra.mxu0 0
        %1478 = vmatprep.subr.bf16.mxu0 0
        %1479 = vmatpush1.bf16.msra.mxu0 0
        %1480 = vmatprep.mubr.bf16.mxu0 0
        %1481 = vmatmul.mubr.bf16.gmra.mrb[0].mxu0 %v1405
        %v1482 = vpop.f32.mrb[0].mxu0
        %v1483 = vadd.f32 %v1443, %v1482
        %v1484 = vpop.f32.mrb[0].mxu0
        %v1485 = vpop.f32.mrb[0].mxu0
        %v1486 = vpop.f32.mrb[0].mxu0
        %1487 = vdwg.mxu0
        %v1488 = vmul.f32 %v1483, %v442
        %v1489 = vadd.f32 %v1488, %v449
        %v1490 = vmax.f32 %v1489, 0.0
        %v1492 = vunpack.c.l.b16 %v241
        %v1493 = vunpack.c.h.b16 %v241
        %v1494 = vpack.c.b16 %v1492, %v1492
        %v1495 = vpack.c.b16 %v1493, %v1493
        %1498 = vmatprep.subr.bf16.mxu0 0
        %1499 = vmatpush1.bf16.msra.mxu0 %v492
        %1500 = vmatprep.subr.bf16.mxu0 0
        %1501 = vmatpush1.bf16.msra.mxu0 %v493
        %1502 = vmatprep.subr.bf16.mxu0 0
        %1503 = vmatpush1.bf16.msra.mxu0 %v494
        %1504 = vmatprep.subr.bf16.mxu0 0
        %1505 = vmatpush1.bf16.msra.mxu0 %v495
        %1506 = vmatprep.subr.bf16.mxu0 0
        %1507 = vmatpush1.bf16.msra.mxu0 %v496
        %1508 = vmatprep.subr.bf16.mxu0 0
        %1509 = vmatpush1.bf16.msra.mxu0 %v497
        %1510 = vmatprep.subr.bf16.mxu0 0
        %1511 = vmatpush1.bf16.msra.mxu0 %v498
        %1512 = vmatprep.subr.bf16.mxu0 0
        %1513 = vmatpush1.bf16.msra.mxu0 %v499
        %1514 = vmatprep.subr.bf16.mxu0 0
        %1515 = vmatpush1.bf16.msra.mxu0 %v366
        %1516 = vmatprep.subr.bf16.mxu0 0
        %1517 = vmatpush1.bf16.msra.mxu0 %v367
        %1518 = vmatprep.subr.bf16.mxu0 0
        %1519 = vmatpush1.bf16.msra.mxu0 %v368
        %1520 = vmatprep.subr.bf16.mxu0 0
        %1521 = vmatpush1.bf16.msra.mxu0 %v369
        %1522 = vmatprep.subr.bf16.mxu0 0
        %1523 = vmatpush1.bf16.msra.mxu0 %v370
        %1524 = vmatprep.subr.bf16.mxu0 0
        %1525 = vmatpush1.bf16.msra.mxu0 %v371
        %1526 = vmatprep.subr.bf16.mxu0 0
        %1527 = vmatpush1.bf16.msra.mxu0 %v372
        %1528 = vmatprep.subr.bf16.mxu0 0
        %1529 = vmatpush1.bf16.msra.mxu0 %v373
        %1530 = vmatprep.mubr.bf16.mxu0 %v1494
        %1531 = vmatmul.mubr.bf16.gmra.mrb[0].mxu0 %v1405
        %v1532 = vpop.f32.mrb[0].mxu0
        %v1533 = vadd.f32 0.0, %v1532
        %v1534 = vpop.f32.mrb[0].mxu0
        %v1535 = vpop.f32.mrb[0].mxu0
        %v1536 = vpop.f32.mrb[0].mxu0
        %1537 = vdwg.mxu0
        %1538 = vmatprep.subr.bf16.mxu0 0
        %1539 = vmatpush1.bf16.msra.mxu0 %v374
        %1540 = vmatprep.subr.bf16.mxu0 0
        %1541 = vmatpush1.bf16.msra.mxu0 %v375
        %1542 = vmatprep.subr.bf16.mxu0 0
        %1543 = vmatpush1.bf16.msra.mxu0 %v376
        %1544 = vmatprep.subr.bf16.mxu0 0
        %1545 = vmatpush1.bf16.msra.mxu0 %v377
        %1546 = vmatprep.subr.bf16.mxu0 0
        %1547 = vmatpush1.bf16.msra.mxu0 %v378
        %1548 = vmatprep.subr.bf16.mxu0 0
        %1549 = vmatpush1.bf16.msra.mxu0 %v379
        %1550 = vmatprep.subr.bf16.mxu0 0
        %1551 = vmatpush1.bf16.msra.mxu0 %v380
        %1552 = vmatprep.subr.bf16.mxu0 0
        %1553 = vmatpush1.bf16.msra.mxu0 %v381
        %1554 = vmatprep.subr.bf16.mxu0 0
        %1555 = vmatpush1.bf16.msra.mxu0 0
        %1556 = vmatprep.subr.bf16.mxu0 0
        %1557 = vmatpush1.bf16.msra.mxu0 0
        %1558 = vmatprep.subr.bf16.mxu0 0
        %1559 = vmatpush1.bf16.msra.mxu0 0
        %1560 = vmatprep.subr.bf16.mxu0 0
        %1561 = vmatpush1.bf16.msra.mxu0 0
        %1562 = vmatprep.subr.bf16.mxu0 0
        %1563 = vmatpush1.bf16.msra.mxu0 0
        %1564 = vmatprep.subr.bf16.mxu0 0
        %1565 = vmatpush1.bf16.msra.mxu0 0
        %1566 = vmatprep.subr.bf16.mxu0 0
        %1567 = vmatpush1.bf16.msra.mxu0 0
        %1568 = vmatprep.subr.bf16.mxu0 0
        %1569 = vmatpush1.bf16.msra.mxu0 0
        %1570 = vmatprep.mubr.bf16.mxu0 0
        %1571 = vmatmul.mubr.bf16.gmra.mrb[0].mxu0 %v1495
        %v1572 = vpop.f32.mrb[0].mxu0
        %v1573 = vadd.f32 %v1533, %v1572
        %v1574 = vpop.f32.mrb[0].mxu0
        %v1575 = vpop.f32.mrb[0].mxu0
        %v1576 = vpop.f32.mrb[0].mxu0
        %1577 = vdwg.mxu0
        %v1578 = vmul.f32 %v1573, %v442
        %v1579 = vadd.f32 %v1578, %v449
        %v1580 = vmax.f32 %v1579, 0.0
        %v1582 = vunpack.c.l.b16 %v242
        %v1583 = vunpack.c.h.b16 %v242
        %v1584 = vpack.c.b16 %v1582, %v1582
        %v1585 = vpack.c.b16 %v1583, %v1583
        %1588 = vmatprep.subr.bf16.mxu0 0
        %1589 = vmatpush1.bf16.msra.mxu0 %v492
        %1590 = vmatprep.subr.bf16.mxu0 0
        %1591 = vmatpush1.bf16.msra.mxu0 %v493
        %1592 = vmatprep.subr.bf16.mxu0 0
        %1593 = vmatpush1.bf16.msra.mxu0 %v494
        %1594 = vmatprep.subr.bf16.mxu0 0
        %1595 = vmatpush1.bf16.msra.mxu0 %v495
        %1596 = vmatprep.subr.bf16.mxu0 0
        %1597 = vmatpush1.bf16.msra.mxu0 %v496
        %1598 = vmatprep.subr.bf16.mxu0 0
        %1599 = vmatpush1.bf16.msra.mxu0 %v497
        %1600 = vmatprep.subr.bf16.mxu0 0
        %1601 = vmatpush1.bf16.msra.mxu0 %v498
        %1602 = vmatprep.subr.bf16.mxu0 0
        %1603 = vmatpush1.bf16.msra.mxu0 %v499
        %1604 = vmatprep.subr.bf16.mxu0 0
        %1605 = vmatpush1.bf16.msra.mxu0 %v366
        %1606 = vmatprep.subr.bf16.mxu0 0
        %1607 = vmatpush1.bf16.msra.mxu0 %v367
        %1608 = vmatprep.subr.bf16.mxu0 0
        %1609 = vmatpush1.bf16.msra.mxu0 %v368
        %1610 = vmatprep.subr.bf16.mxu0 0
        %1611 = vmatpush1.bf16.msra.mxu0 %v369
        %1612 = vmatprep.subr.bf16.mxu0 0
        %1613 = vmatpush1.bf16.msra.mxu0 %v370
        %1614 = vmatprep.subr.bf16.mxu0 0
        %1615 = vmatpush1.bf16.msra.mxu0 %v371
        %1616 = vmatprep.subr.bf16.mxu0 0
        %1617 = vmatpush1.bf16.msra.mxu0 %v372
        %1618 = vmatprep.subr.bf16.mxu0 0
        %1619 = vmatpush1.bf16.msra.mxu0 %v373
        %1620 = vmatprep.mubr.bf16.mxu0 %v1584
        %1621 = vmatmul.mubr.bf16.gmra.mrb[0].mxu0 %v1495
        %v1622 = vpop.f32.mrb[0].mxu0
        %v1623 = vadd.f32 0.0, %v1622
        %v1624 = vpop.f32.mrb[0].mxu0
        %v1625 = vpop.f32.mrb[0].mxu0
        %v1626 = vpop.f32.mrb[0].mxu0
        %1627 = vdwg.mxu0
        %1628 = vmatprep.subr.bf16.mxu0 0
        %1629 = vmatpush1.bf16.msra.mxu0 %v374
        %1630 = vmatprep.subr.bf16.mxu0 0
        %1631 = vmatpush1.bf16.msra.mxu0 %v375
        %1632 = vmatprep.subr.bf16.mxu0 0
        %1633 = vmatpush1.bf16.msra.mxu0 %v376
        %1634 = vmatprep.subr.bf16.mxu0 0
        %1635 = vmatpush1.bf16.msra.mxu0 %v377
        %1636 = vmatprep.subr.bf16.mxu0 0
        %1637 = vmatpush1.bf16.msra.mxu0 %v378
        %1638 = vmatprep.subr.bf16.mxu0 0
        %1639 = vmatpush1.bf16.msra.mxu0 %v379
        %1640 = vmatprep.subr.bf16.mxu0 0
        %1641 = vmatpush1.bf16.msra.mxu0 %v380
        %1642 = vmatprep.subr.bf16.mxu0 0
        %1643 = vmatpush1.bf16.msra.mxu0 %v381
        %1644 = vmatprep.subr.bf16.mxu0 0
        %1645 = vmatpush1.bf16.msra.mxu0 0
        %1646 = vmatprep.subr.bf16.mxu0 0
        %1647 = vmatpush1.bf16.msra.mxu0 0
        %1648 = vmatprep.subr.bf16.mxu0 0
        %1649 = vmatpush1.bf16.msra.mxu0 0
        %1650 = vmatprep.subr.bf16.mxu0 0
        %1651 = vmatpush1.bf16.msra.mxu0 0
        %1652 = vmatprep.subr.bf16.mxu0 0
        %1653 = vmatpush1.bf16.msra.mxu0 0
        %1654 = vmatprep.subr.bf16.mxu0 0
        %1655 = vmatpush1.bf16.msra.mxu0 0
        %1656 = vmatprep.subr.bf16.mxu0 0
        %1657 = vmatpush1.bf16.msra.mxu0 0
        %1658 = vmatprep.subr.bf16.mxu0 0
        %1659 = vmatpush1.bf16.msra.mxu0 0
        %1660 = vmatprep.mubr.bf16.mxu0 0
        %1661 = vmatmul.mubr.bf16.gmra.mrb[0].mxu0 %v1585
        %v1662 = vpop.f32.mrb[0].mxu0
        %v1663 = vadd.f32 %v1623, %v1662
        %v1664 = vpop.f32.mrb[0].mxu0
        %v1665 = vpop.f32.mrb[0].mxu0
        %v1666 = vpop.f32.mrb[0].mxu0
        %1667 = vdwg.mxu0
        %v1668 = vmul.f32 %v1663, %v442
        %v1669 = vadd.f32 %v1668, %v449
        %v1670 = vmax.f32 %v1669, 0.0
        %v1672 = vunpack.c.l.b16 %v243
        %v1673 = vunpack.c.h.b16 %v243
        %v1674 = vpack.c.b16 %v1672, %v1672
        %v1675 = vpack.c.b16 %v1673, %v1673
        %1678 = vmatprep.subr.bf16.mxu0 0
        %1679 = vmatpush1.bf16.msra.mxu0 %v492
        %1680 = vmatprep.subr.bf16.mxu0 0
        %1681 = vmatpush1.bf16.msra.mxu0 %v493
        %1682 = vmatprep.subr.bf16.mxu0 0
        %1683 = vmatpush1.bf16.msra.mxu0 %v494
        %1684 = vmatprep.subr.bf16.mxu0 0
        %1685 = vmatpush1.bf16.msra.mxu0 %v495
        %1686 = vmatprep.subr.bf16.mxu0 0
        %1687 = vmatpush1.bf16.msra.mxu0 %v496
        %1688 = vmatprep.subr.bf16.mxu0 0
        %1689 = vmatpush1.bf16.msra.mxu0 %v497
        %1690 = vmatprep.subr.bf16.mxu0 0
        %1691 = vmatpush1.bf16.msra.mxu0 %v498
        %1692 = vmatprep.subr.bf16.mxu0 0
        %1693 = vmatpush1.bf16.msra.mxu0 %v499
        %1694 = vmatprep.subr.bf16.mxu0 0
        %1695 = vmatpush1.bf16.msra.mxu0 %v366
        %1696 = vmatprep.subr.bf16.mxu0 0
        %1697 = vmatpush1.bf16.msra.mxu0 %v367
        %1698 = vmatprep.subr.bf16.mxu0 0
        %1699 = vmatpush1.bf16.msra.mxu0 %v368
        %1700 = vmatprep.subr.bf16.mxu0 0
        %1701 = vmatpush1.bf16.msra.mxu0 %v369
        %1702 = vmatprep.subr.bf16.mxu0 0
        %1703 = vmatpush1.bf16.msra.mxu0 %v370
        %1704 = vmatprep.subr.bf16.mxu0 0
        %1705 = vmatpush1.bf16.msra.mxu0 %v371
        %1706 = vmatprep.subr.bf16.mxu0 0
        %1707 = vmatpush1.bf16.msra.mxu0 %v372
        %1708 = vmatprep.subr.bf16.mxu0 0
        %1709 = vmatpush1.bf16.msra.mxu0 %v373
        %1710 = vmatprep.mubr.bf16.mxu0 %v1674
        %1711 = vmatmul.mubr.bf16.gmra.mrb[0].mxu0 %v1585
        %v1712 = vpop.f32.mrb[0].mxu0
        %v1713 = vadd.f32 0.0, %v1712
        %v1714 = vpop.f32.mrb[0].mxu0
        %v1715 = vpop.f32.mrb[0].mxu0
        %v1716 = vpop.f32.mrb[0].mxu0
        %1717 = vdwg.mxu0
        %1718 = vmatprep.subr.bf16.mxu0 0
        %1719 = vmatpush1.bf16.msra.mxu0 %v374
        %1720 = vmatprep.subr.bf16.mxu0 0
        %1721 = vmatpush1.bf16.msra.mxu0 %v375
        %1722 = vmatprep.subr.bf16.mxu0 0
        %1723 = vmatpush1.bf16.msra.mxu0 %v376
        %1724 = vmatprep.subr.bf16.mxu0 0
        %1725 = vmatpush1.bf16.msra.mxu0 %v377
        %1726 = vmatprep.subr.bf16.mxu0 0
        %1727 = vmatpush1.bf16.msra.mxu0 %v378
        %1728 = vmatprep.subr.bf16.mxu0 0
        %1729 = vmatpush1.bf16.msra.mxu0 %v379
        %1730 = vmatprep.subr.bf16.mxu0 0
        %1731 = vmatpush1.bf16.msra.mxu0 %v380
        %1732 = vmatprep.subr.bf16.mxu0 0
        %1733 = vmatpush1.bf16.msra.mxu0 %v381
        %1734 = vmatprep.subr.bf16.mxu0 0
        %1735 = vmatpush1.bf16.msra.mxu0 0
        %1736 = vmatprep.subr.bf16.mxu0 0
        %1737 = vmatpush1.bf16.msra.mxu0 0
        %1738 = vmatprep.subr.bf16.mxu0 0
        %1739 = vmatpush1.bf16.msra.mxu0 0
        %1740 = vmatprep.subr.bf16.mxu0 0
        %1741 = vmatpush1.bf16.msra.mxu0 0
        %1742 = vmatprep.subr.bf16.mxu0 0
        %1743 = vmatpush1.bf16.msra.mxu0 0
        %1744 = vmatprep.subr.bf16.mxu0 0
        %1745 = vmatpush1.bf16.msra.mxu0 0
        %1746 = vmatprep.subr.bf16.mxu0 0
        %1747 = vmatpush1.bf16.msra.mxu0 0
        %1748 = vmatprep.subr.bf16.mxu0 0
        %1749 = vmatpush1.bf16.msra.mxu0 0
        %1750 = vmatprep.mubr.bf16.mxu0 0
        %1751 = vmatmul.mubr.bf16.gmra.mrb[0].mxu0 %v1675
        %v1752 = vpop.f32.mrb[0].mxu0
        %v1753 = vadd.f32 %v1713, %v1752
        %v1754 = vpop.f32.mrb[0].mxu0
        %v1755 = vpop.f32.mrb[0].mxu0
        %v1756 = vpop.f32.mrb[0].mxu0
        %1757 = vdwg.mxu0
        %v1758 = vmul.f32 %v1753, %v442
        %v1759 = vadd.f32 %v1758, %v449
        %v1760 = vmax.f32 %v1759, 0.0
        %v1762 = vunpack.c.l.b16 %v244
        %v1763 = vunpack.c.h.b16 %v244
        %v1764 = vpack.c.b16 %v1762, %v1762
        %v1765 = vpack.c.b16 %v1763, %v1763
        %1768 = vmatprep.subr.bf16.mxu0 0
        %1769 = vmatpush1.bf16.msra.mxu0 %v492
        %1770 = vmatprep.subr.bf16.mxu0 0
        %1771 = vmatpush1.bf16.msra.mxu0 %v493
        %1772 = vmatprep.subr.bf16.mxu0 0
        %1773 = vmatpush1.bf16.msra.mxu0 %v494
        %1774 = vmatprep.subr.bf16.mxu0 0
        %1775 = vmatpush1.bf16.msra.mxu0 %v495
        %1776 = vmatprep.subr.bf16.mxu0 0
        %1777 = vmatpush1.bf16.msra.mxu0 %v496
        %1778 = vmatprep.subr.bf16.mxu0 0
        %1779 = vmatpush1.bf16.msra.mxu0 %v497
        %1780 = vmatprep.subr.bf16.mxu0 0
        %1781 = vmatpush1.bf16.msra.mxu0 %v498
        %1782 = vmatprep.subr.bf16.mxu0 0
        %1783 = vmatpush1.bf16.msra.mxu0 %v499
        %1784 = vmatprep.subr.bf16.mxu0 0
        %1785 = vmatpush1.bf16.msra.mxu0 %v366
        %1786 = vmatprep.subr.bf16.mxu0 0
        %1787 = vmatpush1.bf16.msra.mxu0 %v367
        %1788 = vmatprep.subr.bf16.mxu0 0
        %1789 = vmatpush1.bf16.msra.mxu0 %v368
        %1790 = vmatprep.subr.bf16.mxu0 0
        %1791 = vmatpush1.bf16.msra.mxu0 %v369
        %1792 = vmatprep.subr.bf16.mxu0 0
        %1793 = vmatpush1.bf16.msra.mxu0 %v370
        %1794 = vmatprep.subr.bf16.mxu0 0
        %1795 = vmatpush1.bf16.msra.mxu0 %v371
        %1796 = vmatprep.subr.bf16.mxu0 0
        %1797 = vmatpush1.bf16.msra.mxu0 %v372
        %1798 = vmatprep.subr.bf16.mxu0 0
        %1799 = vmatpush1.bf16.msra.mxu0 %v373
        %1800 = vmatprep.mubr.bf16.mxu0 %v1764
        %1801 = vmatmul.mubr.bf16.gmra.mrb[0].mxu0 %v1675
        %v1802 = vpop.f32.mrb[0].mxu0
        %v1803 = vadd.f32 0.0, %v1802
        %v1804 = vpop.f32.mrb[0].mxu0
        %v1805 = vpop.f32.mrb[0].mxu0
        %v1806 = vpop.f32.mrb[0].mxu0
        %1807 = vdwg.mxu0
        %1808 = vmatprep.subr.bf16.mxu0 0
        %1809 = vmatpush1.bf16.msra.mxu0 %v374
        %1810 = vmatprep.subr.bf16.mxu0 0
        %1811 = vmatpush1.bf16.msra.mxu0 %v375
        %1812 = vmatprep.subr.bf16.mxu0 0
        %1813 = vmatpush1.bf16.msra.mxu0 %v376
        %1814 = vmatprep.subr.bf16.mxu0 0
        %1815 = vmatpush1.bf16.msra.mxu0 %v377
        %1816 = vmatprep.subr.bf16.mxu0 0
        %1817 = vmatpush1.bf16.msra.mxu0 %v378
        %1818 = vmatprep.subr.bf16.mxu0 0
        %1819 = vmatpush1.bf16.msra.mxu0 %v379
        %1820 = vmatprep.subr.bf16.mxu0 0
        %1821 = vmatpush1.bf16.msra.mxu0 %v380
        %1822 = vmatprep.subr.bf16.mxu0 0
        %1823 = vmatpush1.bf16.msra.mxu0 %v381
        %1824 = vmatprep.subr.bf16.mxu0 0
        %1825 = vmatpush1.bf16.msra.mxu0 0
        %1826 = vmatprep.subr.bf16.mxu0 0
        %1827 = vmatpush1.bf16.msra.mxu0 0
        %1828 = vmatprep.subr.bf16.mxu0 0
        %1829 = vmatpush1.bf16.msra.mxu0 0
        %1830 = vmatprep.subr.bf16.mxu0 0
        %1831 = vmatpush1.bf16.msra.mxu0 0
        %1832 = vmatprep.subr.bf16.mxu0 0
        %1833 = vmatpush1.bf16.msra.mxu0 0
        %1834 = vmatprep.subr.bf16.mxu0 0
        %1835 = vmatpush1.bf16.msra.mxu0 0
        %1836 = vmatprep.subr.bf16.mxu0 0
        %1837 = vmatpush1.bf16.msra.mxu0 0
        %1838 = vmatprep.subr.bf16.mxu0 0
        %1839 = vmatpush1.bf16.msra.mxu0 0
        %1840 = vmatprep.mubr.bf16.mxu0 0
        %1841 = vmatmul.mubr.bf16.gmra.mrb[0].mxu0 %v1765
        %v1842 = vpop.f32.mrb[0].mxu0
        %v1843 = vadd.f32 %v1803, %v1842
        %v1844 = vpop.f32.mrb[0].mxu0
        %v1845 = vpop.f32.mrb[0].mxu0
        %v1846 = vpop.f32.mrb[0].mxu0
        %1847 = vdwg.mxu0
        %v1848 = vmul.f32 %v1843, %v442
        %v1849 = vadd.f32 %v1848, %v449
        %v1850 = vmax.f32 %v1849, 0.0
        %v1851 = vpack.c.bf16 %v452, %v452
        %v1852 = vpack.c.bf16 %v590, %v590
        %v1853 = vpack.c.bf16 %v680, %v680
        %v1854 = vpack.c.bf16 %v770, %v770
        %v1855 = vpack.c.bf16 %v860, %v860
        %v1856 = vpack.c.bf16 %v950, %v950
        %v1857 = vpack.c.bf16 %v1040, %v1040
        %v1858 = vpack.c.bf16 %v1130, %v1130
        %v1859 = vpack.c.bf16 %v1220, %v1220
        %v1860 = vpack.c.bf16 %v1310, %v1310
        %v1861 = vpack.c.bf16 %v1400, %v1400
        %v1862 = vpack.c.bf16 %v1490, %v1490
        %v1863 = vpack.c.bf16 %v1580, %v1580
        %v1864 = vpack.c.bf16 %v1670, %v1670
        %v1865 = vpack.c.bf16 %v1760, %v1760
        %v1866 = vpack.c.bf16 %v1850, %v1850
        %s1867 = scalar_lea.vmem %s1, 192
        %v1868 = vld [vmem:[%s1867] sm:$0xf]
        %v1869 = vld [vmem:[%s1867 + $0x4] sm:$0xf]
        %v1870 = vld [vmem:[%s1867 + $0x8] sm:$0xf]
        %v1871 = vld [vmem:[%s1867 + $0xc] sm:$0xf]
        %v1872 = vld [vmem:[%s1867 + $0x10] sm:$0xf]
        %v1873 = vld [vmem:[%s1867 + $0x14] sm:$0xf]
        %v1874 = vld [vmem:[%s1867 + $0x18] sm:$0xf]
        %v1875 = vld [vmem:[%s1867 + $0x1c] sm:$0xf]
        %v1876 = vld [vmem:[%s1867 + $0x20] sm:$0xf]
        %v1877 = vld [vmem:[%s1867 + $0x24] sm:$0xf]
        %v1878 = vld [vmem:[%s1867 + $0x28] sm:$0xf]
        %v1879 = vld [vmem:[%s1867 + $0x2c] sm:$0xf]
        %v1880 = vld [vmem:[%s1867 + $0x30] sm:$0xf]
        %v1881 = vld [vmem:[%s1867 + $0x34] sm:$0xf]
        %v1882 = vld [vmem:[%s1867 + $0x38] sm:$0xf]
        %v1883 = vld [vmem:[%s1867 + $0x3c] sm:$0xf]
        %v1884 = vld [vmem:[%s1867 + $0x40] sm:$0xf]
        %v1885 = vld [vmem:[%s1867 + $0x44] sm:$0xf]
        %v1886 = vld [vmem:[%s1867 + $0x48] sm:$0xf]
        %v1887 = vld [vmem:[%s1867 + $0x4c] sm:$0xf]
        %v1888 = vld [vmem:[%s1867 + $0x50] sm:$0xf]
        %v1889 = vld [vmem:[%s1867 + $0x54] sm:$0xf]
        %v1890 = vld [vmem:[%s1867 + $0x58] sm:$0xf]
        %v1891 = vld [vmem:[%s1867 + $0x5c] sm:$0xf]
        %v1892 = vld [vmem:[%s1867 + $0x60] sm:$0xf]
        %v1893 = vld [vmem:[%s1867 + $0x64] sm:$0xf]
        %v1894 = vld [vmem:[%s1867 + $0x68] sm:$0xf]
        %v1895 = vld [vmem:[%s1867 + $0x6c] sm:$0xf]
        %v1896 = vld [vmem:[%s1867 + $0x70] sm:$0xf]
        %v1897 = vld [vmem:[%s1867 + $0x74] sm:$0xf]
        %v1898 = vld [vmem:[%s1867 + $0x78] sm:$0xf]
        %v1899 = vld [vmem:[%s1867 + $0x7c] sm:$0xf]
        %v1900 = vld [vmem:[%s1867 + $0x80] sm:$0xf]
        %v1901 = vld [vmem:[%s1867 + $0x84] sm:$0xf]
        %v1902 = vld [vmem:[%s1867 + $0x88] sm:$0xf]
        %v1903 = vld [vmem:[%s1867 + $0x8c] sm:$0xf]
        %v1904 = vld [vmem:[%s1867 + $0x90] sm:$0xf]
        %v1905 = vld [vmem:[%s1867 + $0x94] sm:$0xf]
        %v1906 = vld [vmem:[%s1867 + $0x98] sm:$0xf]
        %v1907 = vld [vmem:[%s1867 + $0x9c] sm:$0xf]
        %v1908 = vld [vmem:[%s1867 + $0xa0] sm:$0xf]
        %v1909 = vld [vmem:[%s1867 + $0xa4] sm:$0xf]
        %v1910 = vld [vmem:[%s1867 + $0xa8] sm:$0xf]
        %v1911 = vld [vmem:[%s1867 + $0xac] sm:$0xf]
        %v1912 = vld [vmem:[%s1867 + $0xb0] sm:$0xf]
        %v1913 = vld [vmem:[%s1867 + $0xb4] sm:$0xf]
        %v1914 = vld [vmem:[%s1867 + $0xb8] sm:$0xf]
        %v1915 = vld [vmem:[%s1867 + $0xbc] sm:$0xf]
        %s1916 = scalar_lea.vmem [#allocation2], 1
        %v1917 = vld [vmem:[%s1916] sm:$0x1]
        %s1918 = scalar_lea.vmem [#allocation4], 1
        %v1919 = vld [vmem:[%s1918] sm:$0x1]
        %v1952 = vunpack.c.l.b16 %v1884
        %v1953 = vunpack.c.l.b16 %v1885
        %v1954 = vunpack.c.l.b16 %v1886
        %v1955 = vunpack.c.l.b16 %v1887
        %v1956 = vunpack.c.l.b16 %v1888
        %v1957 = vunpack.c.l.b16 %v1889
        %v1958 = vunpack.c.l.b16 %v1890
        %v1959 = vunpack.c.l.b16 %v1891
        %v1960 = vunpack.c.l.b16 %v1892
        %v1961 = vunpack.c.l.b16 %v1893
        %v1962 = vunpack.c.l.b16 %v1894
        %v1963 = vunpack.c.l.b16 %v1895
        %v1964 = vunpack.c.l.b16 %v1896
        %v1965 = vunpack.c.l.b16 %v1897
        %v1966 = vunpack.c.l.b16 %v1898
        %v1967 = vunpack.c.l.b16 %v1899
        %v1968 = vunpack.c.l.b16 %v1900
        %v1969 = vunpack.c.l.b16 %v1901
        %v1970 = vunpack.c.l.b16 %v1902
        %v1971 = vunpack.c.l.b16 %v1903
        %v1972 = vunpack.c.l.b16 %v1904
        %v1973 = vunpack.c.l.b16 %v1905
        %v1974 = vunpack.c.l.b16 %v1906
        %v1975 = vunpack.c.l.b16 %v1907
        %v1976 = vunpack.c.l.b16 %v1908
        %v1977 = vunpack.c.l.b16 %v1909
        %v1978 = vunpack.c.l.b16 %v1910
        %v1979 = vunpack.c.l.b16 %v1911
        %v1980 = vunpack.c.l.b16 %v1912
        %v1981 = vunpack.c.l.b16 %v1913
        %v1982 = vunpack.c.l.b16 %v1914
        %v1983 = vunpack.c.l.b16 %v1915
        %v1984 = vpack.c.b16 %v1953, %v1952
        %v1985 = vpack.c.b16 %v1955, %v1954
        %v1986 = vpack.c.b16 %v1957, %v1956
        %v1987 = vpack.c.b16 %v1959, %v1958
        %v1988 = vpack.c.b16 %v1961, %v1960
        %v1989 = vpack.c.b16 %v1963, %v1962
        %v1990 = vpack.c.b16 %v1965, %v1964
        %v1991 = vpack.c.b16 %v1967, %v1966
        %v1992 = vpack.c.b16 %v1969, %v1968
        %v1993 = vpack.c.b16 %v1971, %v1970
        %v1994 = vpack.c.b16 %v1973, %v1972
        %v1995 = vpack.c.b16 %v1975, %v1974
        %v1996 = vpack.c.b16 %v1977, %v1976
        %v1997 = vpack.c.b16 %v1979, %v1978
        %v1998 = vpack.c.b16 %v1981, %v1980
        %v1999 = vpack.c.b16 %v1983, %v1982
        %2016 = vmatprep.subr.bf16.mxu0 0
        %2017 = vmatpush1.bf16.msra.mxu0 %v1984
        %2018 = vmatprep.subr.bf16.mxu0 0
        %2019 = vmatpush1.bf16.msra.mxu0 %v1985
        %2020 = vmatprep.subr.bf16.mxu0 0
        %2021 = vmatpush1.bf16.msra.mxu0 %v1986
        %2022 = vmatprep.subr.bf16.mxu0 0
        %2023 = vmatpush1.bf16.msra.mxu0 %v1987
        %2024 = vmatprep.subr.bf16.mxu0 0
        %2025 = vmatpush1.bf16.msra.mxu0 %v1988
        %2026 = vmatprep.subr.bf16.mxu0 0
        %2027 = vmatpush1.bf16.msra.mxu0 %v1989
        %2028 = vmatprep.subr.bf16.mxu0 0
        %2029 = vmatpush1.bf16.msra.mxu0 %v1990
        %2030 = vmatprep.subr.bf16.mxu0 0
        %2031 = vmatpush1.bf16.msra.mxu0 %v1991
        %2032 = vmatprep.subr.bf16.mxu0 0
        %2033 = vmatpush1.bf16.msra.mxu0 %v1992
        %2034 = vmatprep.subr.bf16.mxu0 0
        %2035 = vmatpush1.bf16.msra.mxu0 %v1993
        %2036 = vmatprep.subr.bf16.mxu0 0
        %2037 = vmatpush1.bf16.msra.mxu0 %v1994
        %2038 = vmatprep.subr.bf16.mxu0 0
        %2039 = vmatpush1.bf16.msra.mxu0 %v1995
        %2040 = vmatprep.subr.bf16.mxu0 0
        %2041 = vmatpush1.bf16.msra.mxu0 %v1996
        %2042 = vmatprep.subr.bf16.mxu0 0
        %2043 = vmatpush1.bf16.msra.mxu0 %v1997
        %2044 = vmatprep.subr.bf16.mxu0 0
        %2045 = vmatpush1.bf16.msra.mxu0 %v1998
        %2046 = vmatprep.subr.bf16.mxu0 0
        %2047 = vmatpush1.bf16.msra.mxu0 %v1999
        %2048 = vmatprep.mubr.bf16.mxu0 %v1852
        %2049 = vmatmul.mubr.bf16.gmra.mrb[0].mxu0 %v1851
        %v2050 = vpop.f32.mrb[0].mxu0
        %v2051 = vadd.f32 0.0, %v2050
        %v2052 = vpop.f32.mrb[0].mxu0
        %v2053 = vpop.f32.mrb[0].mxu0
        %v2054 = vpop.f32.mrb[0].mxu0
        %2055 = vdwg.mxu0
        %v2057 = vlaneseq
        %v2058 = vshrl.u32 %v2057, 7
        %v2059 = vsub.s32 0, %v2058
        %v2060 = vrot.slane %v1917, %v2059
        %v2062 = vmul.f32 %v2051, %v2060
        %v2064 = vlaneseq
        %v2065 = vshrl.u32 %v2064, 7
        %v2066 = vsub.s32 0, %v2065
        %v2067 = vrot.slane %v1919, %v2066
        %v2069 = vadd.f32 %v2062, %v2067
        %v2070 = vmax.f32 %v2069, 0.0
        %v2087 = vunpack.c.l.b16 %v1868
        %v2088 = vunpack.c.l.b16 %v1869
        %v2089 = vunpack.c.l.b16 %v1870
        %v2090 = vunpack.c.l.b16 %v1871
        %v2091 = vunpack.c.l.b16 %v1872
        %v2092 = vunpack.c.l.b16 %v1873
        %v2093 = vunpack.c.l.b16 %v1874
        %v2094 = vunpack.c.l.b16 %v1875
        %v2095 = vunpack.c.l.b16 %v1876
        %v2096 = vunpack.c.l.b16 %v1877
        %v2097 = vunpack.c.l.b16 %v1878
        %v2098 = vunpack.c.l.b16 %v1879
        %v2099 = vunpack.c.l.b16 %v1880
        %v2100 = vunpack.c.l.b16 %v1881
        %v2101 = vunpack.c.l.b16 %v1882
        %v2102 = vunpack.c.l.b16 %v1883
        %v2103 = vpack.c.b16 %v2088, %v2087
        %v2104 = vpack.c.b16 %v2090, %v2089
        %v2105 = vpack.c.b16 %v2092, %v2091
        %v2106 = vpack.c.b16 %v2094, %v2093
        %v2107 = vpack.c.b16 %v2096, %v2095
        %v2108 = vpack.c.b16 %v2098, %v2097
        %v2109 = vpack.c.b16 %v2100, %v2099
        %v2110 = vpack.c.b16 %v2102, %v2101
        %2119 = vmatprep.subr.bf16.mxu0 0
        %2120 = vmatpush1.bf16.msra.mxu0 %v2103
        %2121 = vmatprep.subr.bf16.mxu0 0
        %2122 = vmatpush1.bf16.msra.mxu0 %v2104
        %2123 = vmatprep.subr.bf16.mxu0 0
        %2124 = vmatpush1.bf16.msra.mxu0 %v2105
        %2125 = vmatprep.subr.bf16.mxu0 0
        %2126 = vmatpush1.bf16.msra.mxu0 %v2106
        %2127 = vmatprep.subr.bf16.mxu0 0
        %2128 = vmatpush1.bf16.msra.mxu0 %v2107
        %2129 = vmatprep.subr.bf16.mxu0 0
        %2130 = vmatpush1.bf16.msra.mxu0 %v2108
        %2131 = vmatprep.subr.bf16.mxu0 0
        %2132 = vmatpush1.bf16.msra.mxu0 %v2109
        %2133 = vmatprep.subr.bf16.mxu0 0
        %2134 = vmatpush1.bf16.msra.mxu0 %v2110
        %2135 = vmatprep.subr.bf16.mxu0 0
        %2136 = vmatpush1.bf16.msra.mxu0 %v1984
        %2137 = vmatprep.subr.bf16.mxu0 0
        %2138 = vmatpush1.bf16.msra.mxu0 %v1985
        %2139 = vmatprep.subr.bf16.mxu0 0
        %2140 = vmatpush1.bf16.msra.mxu0 %v1986
        %2141 = vmatprep.subr.bf16.mxu0 0
        %2142 = vmatpush1.bf16.msra.mxu0 %v1987
        %2143 = vmatprep.subr.bf16.mxu0 0
        %2144 = vmatpush1.bf16.msra.mxu0 %v1988
        %2145 = vmatprep.subr.bf16.mxu0 0
        %2146 = vmatpush1.bf16.msra.mxu0 %v1989
        %2147 = vmatprep.subr.bf16.mxu0 0
        %2148 = vmatpush1.bf16.msra.mxu0 %v1990
        %2149 = vmatprep.subr.bf16.mxu0 0
        %2150 = vmatpush1.bf16.msra.mxu0 %v1991
        %2151 = vmatprep.mubr.bf16.mxu0 %v1853
        %2152 = vmatmul.mubr.bf16.gmra.mrb[0].mxu0 %v1852
        %v2153 = vpop.f32.mrb[0].mxu0
        %v2154 = vadd.f32 0.0, %v2153
        %v2155 = vpop.f32.mrb[0].mxu0
        %v2156 = vpop.f32.mrb[0].mxu0
        %v2157 = vpop.f32.mrb[0].mxu0
        %2158 = vdwg.mxu0
        %2159 = vmatprep.subr.bf16.mxu0 0
        %2160 = vmatpush1.bf16.msra.mxu0 %v1992
        %2161 = vmatprep.subr.bf16.mxu0 0
        %2162 = vmatpush1.bf16.msra.mxu0 %v1993
        %2163 = vmatprep.subr.bf16.mxu0 0
        %2164 = vmatpush1.bf16.msra.mxu0 %v1994
        %2165 = vmatprep.subr.bf16.mxu0 0
        %2166 = vmatpush1.bf16.msra.mxu0 %v1995
        %2167 = vmatprep.subr.bf16.mxu0 0
        %2168 = vmatpush1.bf16.msra.mxu0 %v1996
        %2169 = vmatprep.subr.bf16.mxu0 0
        %2170 = vmatpush1.bf16.msra.mxu0 %v1997
        %2171 = vmatprep.subr.bf16.mxu0 0
        %2172 = vmatpush1.bf16.msra.mxu0 %v1998
        %2173 = vmatprep.subr.bf16.mxu0 0
        %2174 = vmatpush1.bf16.msra.mxu0 %v1999
        %2175 = vmatprep.subr.bf16.mxu0 0
        %2176 = vmatpush1.bf16.msra.mxu0 0
        %2177 = vmatprep.subr.bf16.mxu0 0
        %2178 = vmatpush1.bf16.msra.mxu0 0
        %2179 = vmatprep.subr.bf16.mxu0 0
        %2180 = vmatpush1.bf16.msra.mxu0 0
        %2181 = vmatprep.subr.bf16.mxu0 0
        %2182 = vmatpush1.bf16.msra.mxu0 0
        %2183 = vmatprep.subr.bf16.mxu0 0
        %2184 = vmatpush1.bf16.msra.mxu0 0
        %2185 = vmatprep.subr.bf16.mxu0 0
        %2186 = vmatpush1.bf16.msra.mxu0 0
        %2187 = vmatprep.subr.bf16.mxu0 0
        %2188 = vmatpush1.bf16.msra.mxu0 0
        %2189 = vmatprep.subr.bf16.mxu0 0
        %2190 = vmatpush1.bf16.msra.mxu0 0
        %2191 = vmatprep.mubr.bf16.mxu0 0
        %2192 = vmatmul.mubr.bf16.gmra.mrb[0].mxu0 %v1854
        %v2193 = vpop.f32.mrb[0].mxu0
        %v2194 = vadd.f32 %v2154, %v2193
        %v2195 = vpop.f32.mrb[0].mxu0
        %v2196 = vpop.f32.mrb[0].mxu0
        %v2197 = vpop.f32.mrb[0].mxu0
        %2198 = vdwg.mxu0
        %v2199 = vmul.f32 %v2194, %v2060
        %v2200 = vadd.f32 %v2199, %v2067
        %v2201 = vmax.f32 %v2200, 0.0
        %2202 = vmatprep.subr.bf16.mxu0 0
        %2203 = vmatpush1.bf16.msra.mxu0 %v2103
        %2204 = vmatprep.subr.bf16.mxu0 0
        %2205 = vmatpush1.bf16.msra.mxu0 %v2104
        %2206 = vmatprep.subr.bf16.mxu0 0
        %2207 = vmatpush1.bf16.msra.mxu0 %v2105
        %2208 = vmatprep.subr.bf16.mxu0 0
        %2209 = vmatpush1.bf16.msra.mxu0 %v2106
        %2210 = vmatprep.subr.bf16.mxu0 0
        %2211 = vmatpush1.bf16.msra.mxu0 %v2107
        %2212 = vmatprep.subr.bf16.mxu0 0
        %2213 = vmatpush1.bf16.msra.mxu0 %v2108
        %2214 = vmatprep.subr.bf16.mxu0 0
        %2215 = vmatpush1.bf16.msra.mxu0 %v2109
        %2216 = vmatprep.subr.bf16.mxu0 0
        %2217 = vmatpush1.bf16.msra.mxu0 %v2110
        %2218 = vmatprep.subr.bf16.mxu0 0
        %2219 = vmatpush1.bf16.msra.mxu0 %v1984
        %2220 = vmatprep.subr.bf16.mxu0 0
        %2221 = vmatpush1.bf16.msra.mxu0 %v1985
        %2222 = vmatprep.subr.bf16.mxu0 0
        %2223 = vmatpush1.bf16.msra.mxu0 %v1986
        %2224 = vmatprep.subr.bf16.mxu0 0
        %2225 = vmatpush1.bf16.msra.mxu0 %v1987
        %2226 = vmatprep.subr.bf16.mxu0 0
        %2227 = vmatpush1.bf16.msra.mxu0 %v1988
        %2228 = vmatprep.subr.bf16.mxu0 0
        %2229 = vmatpush1.bf16.msra.mxu0 %v1989
        %2230 = vmatprep.subr.bf16.mxu0 0
        %2231 = vmatpush1.bf16.msra.mxu0 %v1990
        %2232 = vmatprep.subr.bf16.mxu0 0
        %2233 = vmatpush1.bf16.msra.mxu0 %v1991
        %2234 = vmatprep.mubr.bf16.mxu0 %v1855
        %2235 = vmatmul.mubr.bf16.gmra.mrb[0].mxu0 %v1854
        %v2236 = vpop.f32.mrb[0].mxu0
        %v2237 = vadd.f32 0.0, %v2236
        %v2238 = vpop.f32.mrb[0].mxu0
        %v2239 = vpop.f32.mrb[0].mxu0
        %v2240 = vpop.f32.mrb[0].mxu0
        %2241 = vdwg.mxu0
        %2242 = vmatprep.subr.bf16.mxu0 0
        %2243 = vmatpush1.bf16.msra.mxu0 %v1992
        %2244 = vmatprep.subr.bf16.mxu0 0
        %2245 = vmatpush1.bf16.msra.mxu0 %v1993
        %2246 = vmatprep.subr.bf16.mxu0 0
        %2247 = vmatpush1.bf16.msra.mxu0 %v1994
        %2248 = vmatprep.subr.bf16.mxu0 0
        %2249 = vmatpush1.bf16.msra.mxu0 %v1995
        %2250 = vmatprep.subr.bf16.mxu0 0
        %2251 = vmatpush1.bf16.msra.mxu0 %v1996
        %2252 = vmatprep.subr.bf16.mxu0 0
        %2253 = vmatpush1.bf16.msra.mxu0 %v1997
        %2254 = vmatprep.subr.bf16.mxu0 0
        %2255 = vmatpush1.bf16.msra.mxu0 %v1998
        %2256 = vmatprep.subr.bf16.mxu0 0
        %2257 = vmatpush1.bf16.msra.mxu0 %v1999
        %2258 = vmatprep.subr.bf16.mxu0 0
        %2259 = vmatpush1.bf16.msra.mxu0 0
        %2260 = vmatprep.subr.bf16.mxu0 0
        %2261 = vmatpush1.bf16.msra.mxu0 0
        %2262 = vmatprep.subr.bf16.mxu0 0
        %2263 = vmatpush1.bf16.msra.mxu0 0
        %2264 = vmatprep.subr.bf16.mxu0 0
        %2265 = vmatpush1.bf16.msra.mxu0 0
        %2266 = vmatprep.subr.bf16.mxu0 0
        %2267 = vmatpush1.bf16.msra.mxu0 0
        %2268 = vmatprep.subr.bf16.mxu0 0
        %2269 = vmatpush1.bf16.msra.mxu0 0
        %2270 = vmatprep.subr.bf16.mxu0 0
        %2271 = vmatpush1.bf16.msra.mxu0 0
        %2272 = vmatprep.subr.bf16.mxu0 0
        %2273 = vmatpush1.bf16.msra.mxu0 0
        %2274 = vmatprep.mubr.bf16.mxu0 0
        %2275 = vmatmul.mubr.bf16.gmra.mrb[0].mxu0 %v1856
        %v2276 = vpop.f32.mrb[0].mxu0
        %v2277 = vadd.f32 %v2237, %v2276
        %v2278 = vpop.f32.mrb[0].mxu0
        %v2279 = vpop.f32.mrb[0].mxu0
        %v2280 = vpop.f32.mrb[0].mxu0
        %2281 = vdwg.mxu0
        %v2282 = vmul.f32 %v2277, %v2060
        %v2283 = vadd.f32 %v2282, %v2067
        %v2284 = vmax.f32 %v2283, 0.0
        %2285 = vmatprep.subr.bf16.mxu0 0
        %2286 = vmatpush1.bf16.msra.mxu0 %v2103
        %2287 = vmatprep.subr.bf16.mxu0 0
        %2288 = vmatpush1.bf16.msra.mxu0 %v2104
        %2289 = vmatprep.subr.bf16.mxu0 0
        %2290 = vmatpush1.bf16.msra.mxu0 %v2105
        %2291 = vmatprep.subr.bf16.mxu0 0
        %2292 = vmatpush1.bf16.msra.mxu0 %v2106
        %2293 = vmatprep.subr.bf16.mxu0 0
        %2294 = vmatpush1.bf16.msra.mxu0 %v2107
        %2295 = vmatprep.subr.bf16.mxu0 0
        %2296 = vmatpush1.bf16.msra.mxu0 %v2108
        %2297 = vmatprep.subr.bf16.mxu0 0
        %2298 = vmatpush1.bf16.msra.mxu0 %v2109
        %2299 = vmatprep.subr.bf16.mxu0 0
        %2300 = vmatpush1.bf16.msra.mxu0 %v2110
        %2301 = vmatprep.subr.bf16.mxu0 0
        %2302 = vmatpush1.bf16.msra.mxu0 %v1984
        %2303 = vmatprep.subr.bf16.mxu0 0
        %2304 = vmatpush1.bf16.msra.mxu0 %v1985
        %2305 = vmatprep.subr.bf16.mxu0 0
        %2306 = vmatpush1.bf16.msra.mxu0 %v1986
        %2307 = vmatprep.subr.bf16.mxu0 0
        %2308 = vmatpush1.bf16.msra.mxu0 %v1987
        %2309 = vmatprep.subr.bf16.mxu0 0
        %2310 = vmatpush1.bf16.msra.mxu0 %v1988
        %2311 = vmatprep.subr.bf16.mxu0 0
        %2312 = vmatpush1.bf16.msra.mxu0 %v1989
        %2313 = vmatprep.subr.bf16.mxu0 0
        %2314 = vmatpush1.bf16.msra.mxu0 %v1990
        %2315 = vmatprep.subr.bf16.mxu0 0
        %2316 = vmatpush1.bf16.msra.mxu0 %v1991
        %2317 = vmatprep.mubr.bf16.mxu0 %v1857
        %2318 = vmatmul.mubr.bf16.gmra.mrb[0].mxu0 %v1856
        %v2319 = vpop.f32.mrb[0].mxu0
        %v2320 = vadd.f32 0.0, %v2319
        %v2321 = vpop.f32.mrb[0].mxu0
        %v2322 = vpop.f32.mrb[0].mxu0
        %v2323 = vpop.f32.mrb[0].mxu0
        %2324 = vdwg.mxu0
        %2325 = vmatprep.subr.bf16.mxu0 0
        %2326 = vmatpush1.bf16.msra.mxu0 %v1992
        %2327 = vmatprep.subr.bf16.mxu0 0
        %2328 = vmatpush1.bf16.msra.mxu0 %v1993
        %2329 = vmatprep.subr.bf16.mxu0 0
        %2330 = vmatpush1.bf16.msra.mxu0 %v1994
        %2331 = vmatprep.subr.bf16.mxu0 0
        %2332 = vmatpush1.bf16.msra.mxu0 %v1995
        %2333 = vmatprep.subr.bf16.mxu0 0
        %2334 = vmatpush1.bf16.msra.mxu0 %v1996
        %2335 = vmatprep.subr.bf16.mxu0 0
        %2336 = vmatpush1.bf16.msra.mxu0 %v1997
        %2337 = vmatprep.subr.bf16.mxu0 0
        %2338 = vmatpush1.bf16.msra.mxu0 %v1998
        %2339 = vmatprep.subr.bf16.mxu0 0
        %2340 = vmatpush1.bf16.msra.mxu0 %v1999
        %2341 = vmatprep.subr.bf16.mxu0 0
        %2342 = vmatpush1.bf16.msra.mxu0 0
        %2343 = vmatprep.subr.bf16.mxu0 0
        %2344 = vmatpush1.bf16.msra.mxu0 0
        %2345 = vmatprep.subr.bf16.mxu0 0
        %2346 = vmatpush1.bf16.msra.mxu0 0
        %2347 = vmatprep.subr.bf16.mxu0 0
        %2348 = vmatpush1.bf16.msra.mxu0 0
        %2349 = vmatprep.subr.bf16.mxu0 0
        %2350 = vmatpush1.bf16.msra.mxu0 0
        %2351 = vmatprep.subr.bf16.mxu0 0
        %2352 = vmatpush1.bf16.msra.mxu0 0
        %2353 = vmatprep.subr.bf16.mxu0 0
        %2354 = vmatpush1.bf16.msra.mxu0 0
        %2355 = vmatprep.subr.bf16.mxu0 0
        %2356 = vmatpush1.bf16.msra.mxu0 0
        %2357 = vmatprep.mubr.bf16.mxu0 0
        %2358 = vmatmul.mubr.bf16.gmra.mrb[0].mxu0 %v1858
        %v2359 = vpop.f32.mrb[0].mxu0
        %v2360 = vadd.f32 %v2320, %v2359
        %v2361 = vpop.f32.mrb[0].mxu0
        %v2362 = vpop.f32.mrb[0].mxu0
        %v2363 = vpop.f32.mrb[0].mxu0
        %2364 = vdwg.mxu0
        %v2365 = vmul.f32 %v2360, %v2060
        %v2366 = vadd.f32 %v2365, %v2067
        %v2367 = vmax.f32 %v2366, 0.0
        %2368 = vmatprep.subr.bf16.mxu0 0
        %2369 = vmatpush1.bf16.msra.mxu0 %v2103
        %2370 = vmatprep.subr.bf16.mxu0 0
        %2371 = vmatpush1.bf16.msra.mxu0 %v2104
        %2372 = vmatprep.subr.bf16.mxu0 0
        %2373 = vmatpush1.bf16.msra.mxu0 %v2105
        %2374 = vmatprep.subr.bf16.mxu0 0
        %2375 = vmatpush1.bf16.msra.mxu0 %v2106
        %2376 = vmatprep.subr.bf16.mxu0 0
        %2377 = vmatpush1.bf16.msra.mxu0 %v2107
        %2378 = vmatprep.subr.bf16.mxu0 0
        %2379 = vmatpush1.bf16.msra.mxu0 %v2108
        %2380 = vmatprep.subr.bf16.mxu0 0
        %2381 = vmatpush1.bf16.msra.mxu0 %v2109
        %2382 = vmatprep.subr.bf16.mxu0 0
        %2383 = vmatpush1.bf16.msra.mxu0 %v2110
        %2384 = vmatprep.subr.bf16.mxu0 0
        %2385 = vmatpush1.bf16.msra.mxu0 %v1984
        %2386 = vmatprep.subr.bf16.mxu0 0
        %2387 = vmatpush1.bf16.msra.mxu0 %v1985
        %2388 = vmatprep.subr.bf16.mxu0 0
        %2389 = vmatpush1.bf16.msra.mxu0 %v1986
        %2390 = vmatprep.subr.bf16.mxu0 0
        %2391 = vmatpush1.bf16.msra.mxu0 %v1987
        %2392 = vmatprep.subr.bf16.mxu0 0
        %2393 = vmatpush1.bf16.msra.mxu0 %v1988
        %2394 = vmatprep.subr.bf16.mxu0 0
        %2395 = vmatpush1.bf16.msra.mxu0 %v1989
        %2396 = vmatprep.subr.bf16.mxu0 0
        %2397 = vmatpush1.bf16.msra.mxu0 %v1990
        %2398 = vmatprep.subr.bf16.mxu0 0
        %2399 = vmatpush1.bf16.msra.mxu0 %v1991
        %2400 = vmatprep.mubr.bf16.mxu0 %v1859
        %2401 = vmatmul.mubr.bf16.gmra.mrb[0].mxu0 %v1858
        %v2402 = vpop.f32.mrb[0].mxu0
        %v2403 = vadd.f32 0.0, %v2402
        %v2404 = vpop.f32.mrb[0].mxu0
        %v2405 = vpop.f32.mrb[0].mxu0
        %v2406 = vpop.f32.mrb[0].mxu0
        %2407 = vdwg.mxu0
        %2408 = vmatprep.subr.bf16.mxu0 0
        %2409 = vmatpush1.bf16.msra.mxu0 %v1992
        %2410 = vmatprep.subr.bf16.mxu0 0
        %2411 = vmatpush1.bf16.msra.mxu0 %v1993
        %2412 = vmatprep.subr.bf16.mxu0 0
        %2413 = vmatpush1.bf16.msra.mxu0 %v1994
        %2414 = vmatprep.subr.bf16.mxu0 0
        %2415 = vmatpush1.bf16.msra.mxu0 %v1995
        %2416 = vmatprep.subr.bf16.mxu0 0
        %2417 = vmatpush1.bf16.msra.mxu0 %v1996
        %2418 = vmatprep.subr.bf16.mxu0 0
        %2419 = vmatpush1.bf16.msra.mxu0 %v1997
        %2420 = vmatprep.subr.bf16.mxu0 0
        %2421 = vmatpush1.bf16.msra.mxu0 %v1998
        %2422 = vmatprep.subr.bf16.mxu0 0
        %2423 = vmatpush1.bf16.msra.mxu0 %v1999
        %2424 = vmatprep.subr.bf16.mxu0 0
        %2425 = vmatpush1.bf16.msra.mxu0 0
        %2426 = vmatprep.subr.bf16.mxu0 0
        %2427 = vmatpush1.bf16.msra.mxu0 0
        %2428 = vmatprep.subr.bf16.mxu0 0
        %2429 = vmatpush1.bf16.msra.mxu0 0
        %2430 = vmatprep.subr.bf16.mxu0 0
        %2431 = vmatpush1.bf16.msra.mxu0 0
        %2432 = vmatprep.subr.bf16.mxu0 0
        %2433 = vmatpush1.bf16.msra.mxu0 0
        %2434 = vmatprep.subr.bf16.mxu0 0
        %2435 = vmatpush1.bf16.msra.mxu0 0
        %2436 = vmatprep.subr.bf16.mxu0 0
        %2437 = vmatpush1.bf16.msra.mxu0 0
        %2438 = vmatprep.subr.bf16.mxu0 0
        %2439 = vmatpush1.bf16.msra.mxu0 0
        %2440 = vmatprep.mubr.bf16.mxu0 0
        %2441 = vmatmul.mubr.bf16.gmra.mrb[0].mxu0 %v1860
        %v2442 = vpop.f32.mrb[0].mxu0
        %v2443 = vadd.f32 %v2403, %v2442
        %v2444 = vpop.f32.mrb[0].mxu0
        %v2445 = vpop.f32.mrb[0].mxu0
        %v2446 = vpop.f32.mrb[0].mxu0
        %2447 = vdwg.mxu0
        %v2448 = vmul.f32 %v2443, %v2060
        %v2449 = vadd.f32 %v2448, %v2067
        %v2450 = vmax.f32 %v2449, 0.0
        %2451 = vmatprep.subr.bf16.mxu0 0
        %2452 = vmatpush1.bf16.msra.mxu0 %v2103
        %2453 = vmatprep.subr.bf16.mxu0 0
        %2454 = vmatpush1.bf16.msra.mxu0 %v2104
        %2455 = vmatprep.subr.bf16.mxu0 0
        %2456 = vmatpush1.bf16.msra.mxu0 %v2105
        %2457 = vmatprep.subr.bf16.mxu0 0
        %2458 = vmatpush1.bf16.msra.mxu0 %v2106
        %2459 = vmatprep.subr.bf16.mxu0 0
        %2460 = vmatpush1.bf16.msra.mxu0 %v2107
        %2461 = vmatprep.subr.bf16.mxu0 0
        %2462 = vmatpush1.bf16.msra.mxu0 %v2108
        %2463 = vmatprep.subr.bf16.mxu0 0
        %2464 = vmatpush1.bf16.msra.mxu0 %v2109
        %2465 = vmatprep.subr.bf16.mxu0 0
        %2466 = vmatpush1.bf16.msra.mxu0 %v2110
        %2467 = vmatprep.subr.bf16.mxu0 0
        %2468 = vmatpush1.bf16.msra.mxu0 %v1984
        %2469 = vmatprep.subr.bf16.mxu0 0
        %2470 = vmatpush1.bf16.msra.mxu0 %v1985
        %2471 = vmatprep.subr.bf16.mxu0 0
        %2472 = vmatpush1.bf16.msra.mxu0 %v1986
        %2473 = vmatprep.subr.bf16.mxu0 0
        %2474 = vmatpush1.bf16.msra.mxu0 %v1987
        %2475 = vmatprep.subr.bf16.mxu0 0
        %2476 = vmatpush1.bf16.msra.mxu0 %v1988
        %2477 = vmatprep.subr.bf16.mxu0 0
        %2478 = vmatpush1.bf16.msra.mxu0 %v1989
        %2479 = vmatprep.subr.bf16.mxu0 0
        %2480 = vmatpush1.bf16.msra.mxu0 %v1990
        %2481 = vmatprep.subr.bf16.mxu0 0
        %2482 = vmatpush1.bf16.msra.mxu0 %v1991
        %2483 = vmatprep.mubr.bf16.mxu0 %v1861
        %2484 = vmatmul.mubr.bf16.gmra.mrb[0].mxu0 %v1860
        %v2485 = vpop.f32.mrb[0].mxu0
        %v2486 = vadd.f32 0.0, %v2485
        %v2487 = vpop.f32.mrb[0].mxu0
        %v2488 = vpop.f32.mrb[0].mxu0
        %v2489 = vpop.f32.mrb[0].mxu0
        %2490 = vdwg.mxu0
        %2491 = vmatprep.subr.bf16.mxu0 0
        %2492 = vmatpush1.bf16.msra.mxu0 %v1992
        %2493 = vmatprep.subr.bf16.mxu0 0
        %2494 = vmatpush1.bf16.msra.mxu0 %v1993
        %2495 = vmatprep.subr.bf16.mxu0 0
        %2496 = vmatpush1.bf16.msra.mxu0 %v1994
        %2497 = vmatprep.subr.bf16.mxu0 0
        %2498 = vmatpush1.bf16.msra.mxu0 %v1995
        %2499 = vmatprep.subr.bf16.mxu0 0
        %2500 = vmatpush1.bf16.msra.mxu0 %v1996
        %2501 = vmatprep.subr.bf16.mxu0 0
        %2502 = vmatpush1.bf16.msra.mxu0 %v1997
        %2503 = vmatprep.subr.bf16.mxu0 0
        %2504 = vmatpush1.bf16.msra.mxu0 %v1998
        %2505 = vmatprep.subr.bf16.mxu0 0
        %2506 = vmatpush1.bf16.msra.mxu0 %v1999
        %2507 = vmatprep.subr.bf16.mxu0 0
        %2508 = vmatpush1.bf16.msra.mxu0 0
        %2509 = vmatprep.subr.bf16.mxu0 0
        %2510 = vmatpush1.bf16.msra.mxu0 0
        %2511 = vmatprep.subr.bf16.mxu0 0
        %2512 = vmatpush1.bf16.msra.mxu0 0
        %2513 = vmatprep.subr.bf16.mxu0 0
        %2514 = vmatpush1.bf16.msra.mxu0 0
        %2515 = vmatprep.subr.bf16.mxu0 0
        %2516 = vmatpush1.bf16.msra.mxu0 0
        %2517 = vmatprep.subr.bf16.mxu0 0
        %2518 = vmatpush1.bf16.msra.mxu0 0
        %2519 = vmatprep.subr.bf16.mxu0 0
        %2520 = vmatpush1.bf16.msra.mxu0 0
        %2521 = vmatprep.subr.bf16.mxu0 0
        %2522 = vmatpush1.bf16.msra.mxu0 0
        %2523 = vmatprep.mubr.bf16.mxu0 0
        %2524 = vmatmul.mubr.bf16.gmra.mrb[0].mxu0 %v1862
        %v2525 = vpop.f32.mrb[0].mxu0
        %v2526 = vadd.f32 %v2486, %v2525
        %v2527 = vpop.f32.mrb[0].mxu0
        %v2528 = vpop.f32.mrb[0].mxu0
        %v2529 = vpop.f32.mrb[0].mxu0
        %2530 = vdwg.mxu0
        %v2531 = vmul.f32 %v2526, %v2060
        %v2532 = vadd.f32 %v2531, %v2067
        %v2533 = vmax.f32 %v2532, 0.0
        %2534 = vmatprep.subr.bf16.mxu0 0
        %2535 = vmatpush1.bf16.msra.mxu0 %v2103
        %2536 = vmatprep.subr.bf16.mxu0 0
        %2537 = vmatpush1.bf16.msra.mxu0 %v2104
        %2538 = vmatprep.subr.bf16.mxu0 0
        %2539 = vmatpush1.bf16.msra.mxu0 %v2105
        %2540 = vmatprep.subr.bf16.mxu0 0
        %2541 = vmatpush1.bf16.msra.mxu0 %v2106
        %2542 = vmatprep.subr.bf16.mxu0 0
        %2543 = vmatpush1.bf16.msra.mxu0 %v2107
        %2544 = vmatprep.subr.bf16.mxu0 0
        %2545 = vmatpush1.bf16.msra.mxu0 %v2108
        %2546 = vmatprep.subr.bf16.mxu0 0
        %2547 = vmatpush1.bf16.msra.mxu0 %v2109
        %2548 = vmatprep.subr.bf16.mxu0 0
        %2549 = vmatpush1.bf16.msra.mxu0 %v2110
        %2550 = vmatprep.subr.bf16.mxu0 0
        %2551 = vmatpush1.bf16.msra.mxu0 %v1984
        %2552 = vmatprep.subr.bf16.mxu0 0
        %2553 = vmatpush1.bf16.msra.mxu0 %v1985
        %2554 = vmatprep.subr.bf16.mxu0 0
        %2555 = vmatpush1.bf16.msra.mxu0 %v1986
        %2556 = vmatprep.subr.bf16.mxu0 0
        %2557 = vmatpush1.bf16.msra.mxu0 %v1987
        %2558 = vmatprep.subr.bf16.mxu0 0
        %2559 = vmatpush1.bf16.msra.mxu0 %v1988
        %2560 = vmatprep.subr.bf16.mxu0 0
        %2561 = vmatpush1.bf16.msra.mxu0 %v1989
        %2562 = vmatprep.subr.bf16.mxu0 0
        %2563 = vmatpush1.bf16.msra.mxu0 %v1990
        %2564 = vmatprep.subr.bf16.mxu0 0
        %2565 = vmatpush1.bf16.msra.mxu0 %v1991
        %2566 = vmatprep.mubr.bf16.mxu0 %v1863
        %2567 = vmatmul.mubr.bf16.gmra.mrb[0].mxu0 %v1862
        %v2568 = vpop.f32.mrb[0].mxu0
        %v2569 = vadd.f32 0.0, %v2568
        %v2570 = vpop.f32.mrb[0].mxu0
        %v2571 = vpop.f32.mrb[0].mxu0
        %v2572 = vpop.f32.mrb[0].mxu0
        %2573 = vdwg.mxu0
        %2574 = vmatprep.subr.bf16.mxu0 0
        %2575 = vmatpush1.bf16.msra.mxu0 %v1992
        %2576 = vmatprep.subr.bf16.mxu0 0
        %2577 = vmatpush1.bf16.msra.mxu0 %v1993
        %2578 = vmatprep.subr.bf16.mxu0 0
        %2579 = vmatpush1.bf16.msra.mxu0 %v1994
        %2580 = vmatprep.subr.bf16.mxu0 0
        %2581 = vmatpush1.bf16.msra.mxu0 %v1995
        %2582 = vmatprep.subr.bf16.mxu0 0
        %2583 = vmatpush1.bf16.msra.mxu0 %v1996
        %2584 = vmatprep.subr.bf16.mxu0 0
        %2585 = vmatpush1.bf16.msra.mxu0 %v1997
        %2586 = vmatprep.subr.bf16.mxu0 0
        %2587 = vmatpush1.bf16.msra.mxu0 %v1998
        %2588 = vmatprep.subr.bf16.mxu0 0
        %2589 = vmatpush1.bf16.msra.mxu0 %v1999
        %2590 = vmatprep.subr.bf16.mxu0 0
        %2591 = vmatpush1.bf16.msra.mxu0 0
        %2592 = vmatprep.subr.bf16.mxu0 0
        %2593 = vmatpush1.bf16.msra.mxu0 0
        %2594 = vmatprep.subr.bf16.mxu0 0
        %2595 = vmatpush1.bf16.msra.mxu0 0
        %2596 = vmatprep.subr.bf16.mxu0 0
        %2597 = vmatpush1.bf16.msra.mxu0 0
        %2598 = vmatprep.subr.bf16.mxu0 0
        %2599 = vmatpush1.bf16.msra.mxu0 0
        %2600 = vmatprep.subr.bf16.mxu0 0
        %2601 = vmatpush1.bf16.msra.mxu0 0
        %2602 = vmatprep.subr.bf16.mxu0 0
        %2603 = vmatpush1.bf16.msra.mxu0 0
        %2604 = vmatprep.subr.bf16.mxu0 0
        %2605 = vmatpush1.bf16.msra.mxu0 0
        %2606 = vmatprep.mubr.bf16.mxu0 0
        %2607 = vmatmul.mubr.bf16.gmra.mrb[0].mxu0 %v1864
        %v2608 = vpop.f32.mrb[0].mxu0
        %v2609 = vadd.f32 %v2569, %v2608
        %v2610 = vpop.f32.mrb[0].mxu0
        %v2611 = vpop.f32.mrb[0].mxu0
        %v2612 = vpop.f32.mrb[0].mxu0
        %2613 = vdwg.mxu0
        %v2614 = vmul.f32 %v2609, %v2060
        %v2615 = vadd.f32 %v2614, %v2067
        %v2616 = vmax.f32 %v2615, 0.0
        %2617 = vmatprep.subr.bf16.mxu0 0
        %2618 = vmatpush1.bf16.msra.mxu0 %v2103
        %2619 = vmatprep.subr.bf16.mxu0 0
        %2620 = vmatpush1.bf16.msra.mxu0 %v2104
        %2621 = vmatprep.subr.bf16.mxu0 0
        %2622 = vmatpush1.bf16.msra.mxu0 %v2105
        %2623 = vmatprep.subr.bf16.mxu0 0
        %2624 = vmatpush1.bf16.msra.mxu0 %v2106
        %2625 = vmatprep.subr.bf16.mxu0 0
        %2626 = vmatpush1.bf16.msra.mxu0 %v2107
        %2627 = vmatprep.subr.bf16.mxu0 0
        %2628 = vmatpush1.bf16.msra.mxu0 %v2108
        %2629 = vmatprep.subr.bf16.mxu0 0
        %2630 = vmatpush1.bf16.msra.mxu0 %v2109
        %2631 = vmatprep.subr.bf16.mxu0 0
        %2632 = vmatpush1.bf16.msra.mxu0 %v2110
        %2633 = vmatprep.subr.bf16.mxu0 0
        %2634 = vmatpush1.bf16.msra.mxu0 %v1984
        %2635 = vmatprep.subr.bf16.mxu0 0
        %2636 = vmatpush1.bf16.msra.mxu0 %v1985
        %2637 = vmatprep.subr.bf16.mxu0 0
        %2638 = vmatpush1.bf16.msra.mxu0 %v1986
        %2639 = vmatprep.subr.bf16.mxu0 0
        %2640 = vmatpush1.bf16.msra.mxu0 %v1987
        %2641 = vmatprep.subr.bf16.mxu0 0
        %2642 = vmatpush1.bf16.msra.mxu0 %v1988
        %2643 = vmatprep.subr.bf16.mxu0 0
        %2644 = vmatpush1.bf16.msra.mxu0 %v1989
        %2645 = vmatprep.subr.bf16.mxu0 0
        %2646 = vmatpush1.bf16.msra.mxu0 %v1990
        %2647 = vmatprep.subr.bf16.mxu0 0
        %2648 = vmatpush1.bf16.msra.mxu0 %v1991
        %2649 = vmatprep.mubr.bf16.mxu0 %v1865
        %2650 = vmatmul.mubr.bf16.gmra.mrb[0].mxu0 %v1864
        %v2651 = vpop.f32.mrb[0].mxu0
        %v2652 = vadd.f32 0.0, %v2651
        %v2653 = vpop.f32.mrb[0].mxu0
        %v2654 = vpop.f32.mrb[0].mxu0
        %v2655 = vpop.f32.mrb[0].mxu0
        %2656 = vdwg.mxu0
        %2657 = vmatprep.subr.bf16.mxu0 0
        %2658 = vmatpush1.bf16.msra.mxu0 %v1992
        %2659 = vmatprep.subr.bf16.mxu0 0
        %2660 = vmatpush1.bf16.msra.mxu0 %v1993
        %2661 = vmatprep.subr.bf16.mxu0 0
        %2662 = vmatpush1.bf16.msra.mxu0 %v1994
        %2663 = vmatprep.subr.bf16.mxu0 0
        %2664 = vmatpush1.bf16.msra.mxu0 %v1995
        %2665 = vmatprep.subr.bf16.mxu0 0
        %2666 = vmatpush1.bf16.msra.mxu0 %v1996
        %2667 = vmatprep.subr.bf16.mxu0 0
        %2668 = vmatpush1.bf16.msra.mxu0 %v1997
        %2669 = vmatprep.subr.bf16.mxu0 0
        %2670 = vmatpush1.bf16.msra.mxu0 %v1998
        %2671 = vmatprep.subr.bf16.mxu0 0
        %2672 = vmatpush1.bf16.msra.mxu0 %v1999
        %2673 = vmatprep.subr.bf16.mxu0 0
        %2674 = vmatpush1.bf16.msra.mxu0 0
        %2675 = vmatprep.subr.bf16.mxu0 0
        %2676 = vmatpush1.bf16.msra.mxu0 0
        %2677 = vmatprep.subr.bf16.mxu0 0
        %2678 = vmatpush1.bf16.msra.mxu0 0
        %2679 = vmatprep.subr.bf16.mxu0 0
        %2680 = vmatpush1.bf16.msra.mxu0 0
        %2681 = vmatprep.subr.bf16.mxu0 0
        %2682 = vmatpush1.bf16.msra.mxu0 0
        %2683 = vmatprep.subr.bf16.mxu0 0
        %2684 = vmatpush1.bf16.msra.mxu0 0
        %2685 = vmatprep.subr.bf16.mxu0 0
        %2686 = vmatpush1.bf16.msra.mxu0 0
        %2687 = vmatprep.subr.bf16.mxu0 0
        %2688 = vmatpush1.bf16.msra.mxu0 0
        %2689 = vmatprep.mubr.bf16.mxu0 0
        %2690 = vmatmul.mubr.bf16.gmra.mrb[0].mxu0 %v1866
        %v2691 = vpop.f32.mrb[0].mxu0
        %v2692 = vadd.f32 %v2652, %v2691
        %v2693 = vpop.f32.mrb[0].mxu0
        %v2694 = vpop.f32.mrb[0].mxu0
        %v2695 = vpop.f32.mrb[0].mxu0
        %2696 = vdwg.mxu0
        %v2697 = vmul.f32 %v2692, %v2060
        %v2698 = vadd.f32 %v2697, %v2067
        %v2699 = vmax.f32 %v2698, 0.0
        %v2700 = vpack.c.bf16 %v2070, %v2070
        %v2701 = vpack.c.bf16 %v2201, %v2201
        %v2702 = vpack.c.bf16 %v2284, %v2284
        %v2703 = vpack.c.bf16 %v2367, %v2367
        %v2704 = vpack.c.bf16 %v2450, %v2450
        %v2705 = vpack.c.bf16 %v2533, %v2533
        %v2706 = vpack.c.bf16 %v2616, %v2616
        %v2707 = vpack.c.bf16 %v2699, %v2699
        %s2708 = scalar_lea.vmem %s1, 384
        %v2709 = vld [vmem:[%s2708] sm:$0xf]
        %v2710 = vld [vmem:[%s2708 + $0x4] sm:$0xf]
        %v2711 = vld [vmem:[%s2708 + $0x8] sm:$0xf]
        %v2712 = vld [vmem:[%s2708 + $0xc] sm:$0xf]
        %v2713 = vld [vmem:[%s2708 + $0x10] sm:$0xf]
        %v2714 = vld [vmem:[%s2708 + $0x14] sm:$0xf]
        %v2715 = vld [vmem:[%s2708 + $0x18] sm:$0xf]
        %v2716 = vld [vmem:[%s2708 + $0x1c] sm:$0xf]
        %v2717 = vld [vmem:[%s2708 + $0x20] sm:$0xf]
        %v2718 = vld [vmem:[%s2708 + $0x24] sm:$0xf]
        %v2719 = vld [vmem:[%s2708 + $0x28] sm:$0xf]
        %v2720 = vld [vmem:[%s2708 + $0x2c] sm:$0xf]
        %v2721 = vld [vmem:[%s2708 + $0x30] sm:$0xf]
        %v2722 = vld [vmem:[%s2708 + $0x34] sm:$0xf]
        %v2723 = vld [vmem:[%s2708 + $0x38] sm:$0xf]
        %v2724 = vld [vmem:[%s2708 + $0x3c] sm:$0xf]
        %v2725 = vld [vmem:[%s2708 + $0x40] sm:$0xf]
        %v2726 = vld [vmem:[%s2708 + $0x44] sm:$0xf]
        %v2727 = vld [vmem:[%s2708 + $0x48] sm:$0xf]
        %v2728 = vld [vmem:[%s2708 + $0x4c] sm:$0xf]
        %v2729 = vld [vmem:[%s2708 + $0x50] sm:$0xf]
        %v2730 = vld [vmem:[%s2708 + $0x54] sm:$0xf]
        %v2731 = vld [vmem:[%s2708 + $0x58] sm:$0xf]
        %v2732 = vld [vmem:[%s2708 + $0x5c] sm:$0xf]
        %v2733 = vld [vmem:[%s2708 + $0x60] sm:$0xf]
        %v2734 = vld [vmem:[%s2708 + $0x64] sm:$0xf]
        %v2735 = vld [vmem:[%s2708 + $0x68] sm:$0xf]
        %v2736 = vld [vmem:[%s2708 + $0x6c] sm:$0xf]
        %v2737 = vld [vmem:[%s2708 + $0x70] sm:$0xf]
        %v2738 = vld [vmem:[%s2708 + $0x74] sm:$0xf]
        %v2739 = vld [vmem:[%s2708 + $0x78] sm:$0xf]
        %v2740 = vld [vmem:[%s2708 + $0x7c] sm:$0xf]
        %v2741 = vld [vmem:[%s2708 + $0x80] sm:$0xf]
        %v2742 = vld [vmem:[%s2708 + $0x84] sm:$0xf]
        %v2743 = vld [vmem:[%s2708 + $0x88] sm:$0xf]
        %v2744 = vld [vmem:[%s2708 + $0x8c] sm:$0xf]
        %v2745 = vld [vmem:[%s2708 + $0x90] sm:$0xf]
        %v2746 = vld [vmem:[%s2708 + $0x94] sm:$0xf]
        %v2747 = vld [vmem:[%s2708 + $0x98] sm:$0xf]
        %v2748 = vld [vmem:[%s2708 + $0x9c] sm:$0xf]
        %v2749 = vld [vmem:[%s2708 + $0xa0] sm:$0xf]
        %v2750 = vld [vmem:[%s2708 + $0xa4] sm:$0xf]
        %v2751 = vld [vmem:[%s2708 + $0xa8] sm:$0xf]
        %v2752 = vld [vmem:[%s2708 + $0xac] sm:$0xf]
        %v2753 = vld [vmem:[%s2708 + $0xb0] sm:$0xf]
        %v2754 = vld [vmem:[%s2708 + $0xb4] sm:$0xf]
        %v2755 = vld [vmem:[%s2708 + $0xb8] sm:$0xf]
        %v2756 = vld [vmem:[%s2708 + $0xbc] sm:$0xf]
        %s2757 = scalar_lea.vmem [#allocation2], 2
        %v2758 = vld [vmem:[%s2757] sm:$0x1]
        %s2759 = scalar_lea.vmem [#allocation4], 2
        %v2760 = vld [vmem:[%s2759] sm:$0x1]
        %v2793 = vunpack.c.l.b16 %v2725
        %v2794 = vunpack.c.l.b16 %v2726
        %v2795 = vunpack.c.l.b16 %v2727
        %v2796 = vunpack.c.l.b16 %v2728
        %v2797 = vunpack.c.l.b16 %v2729
        %v2798 = vunpack.c.l.b16 %v2730
        %v2799 = vunpack.c.l.b16 %v2731
        %v2800 = vunpack.c.l.b16 %v2732
        %v2801 = vunpack.c.l.b16 %v2733
        %v2802 = vunpack.c.l.b16 %v2734
        %v2803 = vunpack.c.l.b16 %v2735
        %v2804 = vunpack.c.l.b16 %v2736
        %v2805 = vunpack.c.l.b16 %v2737
        %v2806 = vunpack.c.l.b16 %v2738
        %v2807 = vunpack.c.l.b16 %v2739
        %v2808 = vunpack.c.l.b16 %v2740
        %v2809 = vunpack.c.l.b16 %v2741
        %v2810 = vunpack.c.l.b16 %v2742
        %v2811 = vunpack.c.l.b16 %v2743
        %v2812 = vunpack.c.l.b16 %v2744
        %v2813 = vunpack.c.l.b16 %v2745
        %v2814 = vunpack.c.l.b16 %v2746
        %v2815 = vunpack.c.l.b16 %v2747
        %v2816 = vunpack.c.l.b16 %v2748
        %v2817 = vunpack.c.l.b16 %v2749
        %v2818 = vunpack.c.l.b16 %v2750
        %v2819 = vunpack.c.l.b16 %v2751
        %v2820 = vunpack.c.l.b16 %v2752
        %v2821 = vunpack.c.l.b16 %v2753
        %v2822 = vunpack.c.l.b16 %v2754
        %v2823 = vunpack.c.l.b16 %v2755
        %v2824 = vunpack.c.l.b16 %v2756
        %v2825 = vpack.c.b16 %v2794, %v2793
        %v2826 = vpack.c.b16 %v2796, %v2795
        %v2827 = vpack.c.b16 %v2798, %v2797
        %v2828 = vpack.c.b16 %v2800, %v2799
        %v2829 = vpack.c.b16 %v2802, %v2801
        %v2830 = vpack.c.b16 %v2804, %v2803
        %v2831 = vpack.c.b16 %v2806, %v2805
        %v2832 = vpack.c.b16 %v2808, %v2807
        %v2833 = vpack.c.b16 %v2810, %v2809
        %v2834 = vpack.c.b16 %v2812, %v2811
        %v2835 = vpack.c.b16 %v2814, %v2813
        %v2836 = vpack.c.b16 %v2816, %v2815
        %v2837 = vpack.c.b16 %v2818, %v2817
        %v2838 = vpack.c.b16 %v2820, %v2819
        %v2839 = vpack.c.b16 %v2822, %v2821
        %v2840 = vpack.c.b16 %v2824, %v2823
        %2857 = vmatprep.subr.bf16.mxu0 0
        %2858 = vmatpush1.bf16.msra.mxu0 %v2825
        %2859 = vmatprep.subr.bf16.mxu0 0
        %2860 = vmatpush1.bf16.msra.mxu0 %v2826
        %2861 = vmatprep.subr.bf16.mxu0 0
        %2862 = vmatpush1.bf16.msra.mxu0 %v2827
        %2863 = vmatprep.subr.bf16.mxu0 0
        %2864 = vmatpush1.bf16.msra.mxu0 %v2828
        %2865 = vmatprep.subr.bf16.mxu0 0
        %2866 = vmatpush1.bf16.msra.mxu0 %v2829
        %2867 = vmatprep.subr.bf16.mxu0 0
        %2868 = vmatpush1.bf16.msra.mxu0 %v2830
        %2869 = vmatprep.subr.bf16.mxu0 0
        %2870 = vmatpush1.bf16.msra.mxu0 %v2831
        %2871 = vmatprep.subr.bf16.mxu0 0
        %2872 = vmatpush1.bf16.msra.mxu0 %v2832
        %2873 = vmatprep.subr.bf16.mxu0 0
        %2874 = vmatpush1.bf16.msra.mxu0 %v2833
        %2875 = vmatprep.subr.bf16.mxu0 0
        %2876 = vmatpush1.bf16.msra.mxu0 %v2834
        %2877 = vmatprep.subr.bf16.mxu0 0
        %2878 = vmatpush1.bf16.msra.mxu0 %v2835
        %2879 = vmatprep.subr.bf16.mxu0 0
        %2880 = vmatpush1.bf16.msra.mxu0 %v2836
        %2881 = vmatprep.subr.bf16.mxu0 0
        %2882 = vmatpush1.bf16.msra.mxu0 %v2837
        %2883 = vmatprep.subr.bf16.mxu0 0
        %2884 = vmatpush1.bf16.msra.mxu0 %v2838
        %2885 = vmatprep.subr.bf16.mxu0 0
        %2886 = vmatpush1.bf16.msra.mxu0 %v2839
        %2887 = vmatprep.subr.bf16.mxu0 0
        %2888 = vmatpush1.bf16.msra.mxu0 %v2840
        %2889 = vmatprep.mubr.bf16.mxu0 %v2701
        %2890 = vmatmul.mubr.bf16.gmra.mrb[0].mxu0 %v2700
        %v2891 = vpop.f32.mrb[0].mxu0
        %v2892 = vadd.f32 0.0, %v2891
        %v2893 = vpop.f32.mrb[0].mxu0
        %v2894 = vpop.f32.mrb[0].mxu0
        %v2895 = vpop.f32.mrb[0].mxu0
        %2896 = vdwg.mxu0
        %v2898 = vlaneseq
        %v2899 = vshrl.u32 %v2898, 7
        %v2900 = vsub.s32 0, %v2899
        %v2901 = vrot.slane %v2758, %v2900
        %v2903 = vmul.f32 %v2892, %v2901
        %v2905 = vlaneseq
        %v2906 = vshrl.u32 %v2905, 7
        %v2907 = vsub.s32 0, %v2906
        %v2908 = vrot.slane %v2760, %v2907
        %v2910 = vadd.f32 %v2903, %v2908
        %v2911 = vmax.f32 %v2910, 0.0
        %v2928 = vunpack.c.l.b16 %v2709
        %v2929 = vunpack.c.l.b16 %v2710
        %v2930 = vunpack.c.l.b16 %v2711
        %v2931 = vunpack.c.l.b16 %v2712
        %v2932 = vunpack.c.l.b16 %v2713
        %v2933 = vunpack.c.l.b16 %v2714
        %v2934 = vunpack.c.l.b16 %v2715
        %v2935 = vunpack.c.l.b16 %v2716
        %v2936 = vunpack.c.l.b16 %v2717
        %v2937 = vunpack.c.l.b16 %v2718
        %v2938 = vunpack.c.l.b16 %v2719
        %v2939 = vunpack.c.l.b16 %v2720
        %v2940 = vunpack.c.l.b16 %v2721
        %v2941 = vunpack.c.l.b16 %v2722
        %v2942 = vunpack.c.l.b16 %v2723
        %v2943 = vunpack.c.l.b16 %v2724
        %v2944 = vpack.c.b16 %v2929, %v2928
        %v2945 = vpack.c.b16 %v2931, %v2930
        %v2946 = vpack.c.b16 %v2933, %v2932
        %v2947 = vpack.c.b16 %v2935, %v2934
        %v2948 = vpack.c.b16 %v2937, %v2936
        %v2949 = vpack.c.b16 %v2939, %v2938
        %v2950 = vpack.c.b16 %v2941, %v2940
        %v2951 = vpack.c.b16 %v2943, %v2942
        %2960 = vmatprep.subr.bf16.mxu0 0
        %2961 = vmatpush1.bf16.msra.mxu0 %v2944
        %2962 = vmatprep.subr.bf16.mxu0 0
        %2963 = vmatpush1.bf16.msra.mxu0 %v2945
        %2964 = vmatprep.subr.bf16.mxu0 0
        %2965 = vmatpush1.bf16.msra.mxu0 %v2946
        %2966 = vmatprep.subr.bf16.mxu0 0
        %2967 = vmatpush1.bf16.msra.mxu0 %v2947
        %2968 = vmatprep.subr.bf16.mxu0 0
        %2969 = vmatpush1.bf16.msra.mxu0 %v2948
        %2970 = vmatprep.subr.bf16.mxu0 0
        %2971 = vmatpush1.bf16.msra.mxu0 %v2949
        %2972 = vmatprep.subr.bf16.mxu0 0
        %2973 = vmatpush1.bf16.msra.mxu0 %v2950
        %2974 = vmatprep.subr.bf16.mxu0 0
        %2975 = vmatpush1.bf16.msra.mxu0 %v2951
        %2976 = vmatprep.subr.bf16.mxu0 0
        %2977 = vmatpush1.bf16.msra.mxu0 %v2825
        %2978 = vmatprep.subr.bf16.mxu0 0
        %2979 = vmatpush1.bf16.msra.mxu0 %v2826
        %2980 = vmatprep.subr.bf16.mxu0 0
        %2981 = vmatpush1.bf16.msra.mxu0 %v2827
        %2982 = vmatprep.subr.bf16.mxu0 0
        %2983 = vmatpush1.bf16.msra.mxu0 %v2828
        %2984 = vmatprep.subr.bf16.mxu0 0
        %2985 = vmatpush1.bf16.msra.mxu0 %v2829
        %2986 = vmatprep.subr.bf16.mxu0 0
        %2987 = vmatpush1.bf16.msra.mxu0 %v2830
        %2988 = vmatprep.subr.bf16.mxu0 0
        %2989 = vmatpush1.bf16.msra.mxu0 %v2831
        %2990 = vmatprep.subr.bf16.mxu0 0
        %2991 = vmatpush1.bf16.msra.mxu0 %v2832
        %2992 = vmatprep.mubr.bf16.mxu0 %v2702
        %2993 = vmatmul.mubr.bf16.gmra.mrb[0].mxu0 %v2701
        %v2994 = vpop.f32.mrb[0].mxu0
        %v2995 = vadd.f32 0.0, %v2994
        %v2996 = vpop.f32.mrb[0].mxu0
        %v2997 = vpop.f32.mrb[0].mxu0
        %v2998 = vpop.f32.mrb[0].mxu0
        %2999 = vdwg.mxu0
        %3000 = vmatprep.subr.bf16.mxu0 0
        %3001 = vmatpush1.bf16.msra.mxu0 %v2833
        %3002 = vmatprep.subr.bf16.mxu0 0
        %3003 = vmatpush1.bf16.msra.mxu0 %v2834
        %3004 = vmatprep.subr.bf16.mxu0 0
        %3005 = vmatpush1.bf16.msra.mxu0 %v2835
        %3006 = vmatprep.subr.bf16.mxu0 0
        %3007 = vmatpush1.bf16.msra.mxu0 %v2836
        %3008 = vmatprep.subr.bf16.mxu0 0
        %3009 = vmatpush1.bf16.msra.mxu0 %v2837
        %3010 = vmatprep.subr.bf16.mxu0 0
        %3011 = vmatpush1.bf16.msra.mxu0 %v2838
        %3012 = vmatprep.subr.bf16.mxu0 0
        %3013 = vmatpush1.bf16.msra.mxu0 %v2839
        %3014 = vmatprep.subr.bf16.mxu0 0
        %3015 = vmatpush1.bf16.msra.mxu0 %v2840
        %3016 = vmatprep.subr.bf16.mxu0 0
        %3017 = vmatpush1.bf16.msra.mxu0 0
        %3018 = vmatprep.subr.bf16.mxu0 0
        %3019 = vmatpush1.bf16.msra.mxu0 0
        %3020 = vmatprep.subr.bf16.mxu0 0
        %3021 = vmatpush1.bf16.msra.mxu0 0
        %3022 = vmatprep.subr.bf16.mxu0 0
        %3023 = vmatpush1.bf16.msra.mxu0 0
        %3024 = vmatprep.subr.bf16.mxu0 0
        %3025 = vmatpush1.bf16.msra.mxu0 0
        %3026 = vmatprep.subr.bf16.mxu0 0
        %3027 = vmatpush1.bf16.msra.mxu0 0
        %3028 = vmatprep.subr.bf16.mxu0 0
        %3029 = vmatpush1.bf16.msra.mxu0 0
        %3030 = vmatprep.subr.bf16.mxu0 0
        %3031 = vmatpush1.bf16.msra.mxu0 0
        %3032 = vmatprep.mubr.bf16.mxu0 0
        %3033 = vmatmul.mubr.bf16.gmra.mrb[0].mxu0 %v2703
        %v3034 = vpop.f32.mrb[0].mxu0
        %v3035 = vadd.f32 %v2995, %v3034
        %v3036 = vpop.f32.mrb[0].mxu0
        %v3037 = vpop.f32.mrb[0].mxu0
        %v3038 = vpop.f32.mrb[0].mxu0
        %3039 = vdwg.mxu0
        %v3040 = vmul.f32 %v3035, %v2901
        %v3041 = vadd.f32 %v3040, %v2908
        %v3042 = vmax.f32 %v3041, 0.0
        %3043 = vmatprep.subr.bf16.mxu0 0
        %3044 = vmatpush1.bf16.msra.mxu0 %v2944
        %3045 = vmatprep.subr.bf16.mxu0 0
        %3046 = vmatpush1.bf16.msra.mxu0 %v2945
        %3047 = vmatprep.subr.bf16.mxu0 0
        %3048 = vmatpush1.bf16.msra.mxu0 %v2946
        %3049 = vmatprep.subr.bf16.mxu0 0
        %3050 = vmatpush1.bf16.msra.mxu0 %v2947
        %3051 = vmatprep.subr.bf16.mxu0 0
        %3052 = vmatpush1.bf16.msra.mxu0 %v2948
        %3053 = vmatprep.subr.bf16.mxu0 0
        %3054 = vmatpush1.bf16.msra.mxu0 %v2949
        %3055 = vmatprep.subr.bf16.mxu0 0
        %3056 = vmatpush1.bf16.msra.mxu0 %v2950
        %3057 = vmatprep.subr.bf16.mxu0 0
        %3058 = vmatpush1.bf16.msra.mxu0 %v2951
        %3059 = vmatprep.subr.bf16.mxu0 0
        %3060 = vmatpush1.bf16.msra.mxu0 %v2825
        %3061 = vmatprep.subr.bf16.mxu0 0
        %3062 = vmatpush1.bf16.msra.mxu0 %v2826
        %3063 = vmatprep.subr.bf16.mxu0 0
        %3064 = vmatpush1.bf16.msra.mxu0 %v2827
        %3065 = vmatprep.subr.bf16.mxu0 0
        %3066 = vmatpush1.bf16.msra.mxu0 %v2828
        %3067 = vmatprep.subr.bf16.mxu0 0
        %3068 = vmatpush1.bf16.msra.mxu0 %v2829
        %3069 = vmatprep.subr.bf16.mxu0 0
        %3070 = vmatpush1.bf16.msra.mxu0 %v2830
        %3071 = vmatprep.subr.bf16.mxu0 0
        %3072 = vmatpush1.bf16.msra.mxu0 %v2831
        %3073 = vmatprep.subr.bf16.mxu0 0
        %3074 = vmatpush1.bf16.msra.mxu0 %v2832
        %3075 = vmatprep.mubr.bf16.mxu0 %v2704
        %3076 = vmatmul.mubr.bf16.gmra.mrb[0].mxu0 %v2703
        %v3077 = vpop.f32.mrb[0].mxu0
        %v3078 = vadd.f32 0.0, %v3077
        %v3079 = vpop.f32.mrb[0].mxu0
        %v3080 = vpop.f32.mrb[0].mxu0
        %v3081 = vpop.f32.mrb[0].mxu0
        %3082 = vdwg.mxu0
        %3083 = vmatprep.subr.bf16.mxu0 0
        %3084 = vmatpush1.bf16.msra.mxu0 %v2833
        %3085 = vmatprep.subr.bf16.mxu0 0
        %3086 = vmatpush1.bf16.msra.mxu0 %v2834
        %3087 = vmatprep.subr.bf16.mxu0 0
        %3088 = vmatpush1.bf16.msra.mxu0 %v2835
        %3089 = vmatprep.subr.bf16.mxu0 0
        %3090 = vmatpush1.bf16.msra.mxu0 %v2836
        %3091 = vmatprep.subr.bf16.mxu0 0
        %3092 = vmatpush1.bf16.msra.mxu0 %v2837
        %3093 = vmatprep.subr.bf16.mxu0 0
        %3094 = vmatpush1.bf16.msra.mxu0 %v2838
        %3095 = vmatprep.subr.bf16.mxu0 0
        %3096 = vmatpush1.bf16.msra.mxu0 %v2839
        %3097 = vmatprep.subr.bf16.mxu0 0
        %3098 = vmatpush1.bf16.msra.mxu0 %v2840
        %3099 = vmatprep.subr.bf16.mxu0 0
        %3100 = vmatpush1.bf16.msra.mxu0 0
        %3101 = vmatprep.subr.bf16.mxu0 0
        %3102 = vmatpush1.bf16.msra.mxu0 0
        %3103 = vmatprep.subr.bf16.mxu0 0
        %3104 = vmatpush1.bf16.msra.mxu0 0
        %3105 = vmatprep.subr.bf16.mxu0 0
        %3106 = vmatpush1.bf16.msra.mxu0 0
        %3107 = vmatprep.subr.bf16.mxu0 0
        %3108 = vmatpush1.bf16.msra.mxu0 0
        %3109 = vmatprep.subr.bf16.mxu0 0
        %3110 = vmatpush1.bf16.msra.mxu0 0
        %3111 = vmatprep.subr.bf16.mxu0 0
        %3112 = vmatpush1.bf16.msra.mxu0 0
        %3113 = vmatprep.subr.bf16.mxu0 0
        %3114 = vmatpush1.bf16.msra.mxu0 0
        %3115 = vmatprep.mubr.bf16.mxu0 0
        %3116 = vmatmul.mubr.bf16.gmra.mrb[0].mxu0 %v2705
        %v3117 = vpop.f32.mrb[0].mxu0
        %v3118 = vadd.f32 %v3078, %v3117
        %v3119 = vpop.f32.mrb[0].mxu0
        %v3120 = vpop.f32.mrb[0].mxu0
        %v3121 = vpop.f32.mrb[0].mxu0
        %3122 = vdwg.mxu0
        %v3123 = vmul.f32 %v3118, %v2901
        %v3124 = vadd.f32 %v3123, %v2908
        %v3125 = vmax.f32 %v3124, 0.0
        %3126 = vmatprep.subr.bf16.mxu0 0
        %3127 = vmatpush1.bf16.msra.mxu0 %v2944
        %3128 = vmatprep.subr.bf16.mxu0 0
        %3129 = vmatpush1.bf16.msra.mxu0 %v2945
        %3130 = vmatprep.subr.bf16.mxu0 0
        %3131 = vmatpush1.bf16.msra.mxu0 %v2946
        %3132 = vmatprep.subr.bf16.mxu0 0
        %3133 = vmatpush1.bf16.msra.mxu0 %v2947
        %3134 = vmatprep.subr.bf16.mxu0 0
        %3135 = vmatpush1.bf16.msra.mxu0 %v2948
        %3136 = vmatprep.subr.bf16.mxu0 0
        %3137 = vmatpush1.bf16.msra.mxu0 %v2949
        %3138 = vmatprep.subr.bf16.mxu0 0
        %3139 = vmatpush1.bf16.msra.mxu0 %v2950
        %3140 = vmatprep.subr.bf16.mxu0 0
        %3141 = vmatpush1.bf16.msra.mxu0 %v2951
        %3142 = vmatprep.subr.bf16.mxu0 0
        %3143 = vmatpush1.bf16.msra.mxu0 %v2825
        %3144 = vmatprep.subr.bf16.mxu0 0
        %3145 = vmatpush1.bf16.msra.mxu0 %v2826
        %3146 = vmatprep.subr.bf16.mxu0 0
        %3147 = vmatpush1.bf16.msra.mxu0 %v2827
        %3148 = vmatprep.subr.bf16.mxu0 0
        %3149 = vmatpush1.bf16.msra.mxu0 %v2828
        %3150 = vmatprep.subr.bf16.mxu0 0
        %3151 = vmatpush1.bf16.msra.mxu0 %v2829
        %3152 = vmatprep.subr.bf16.mxu0 0
        %3153 = vmatpush1.bf16.msra.mxu0 %v2830
        %3154 = vmatprep.subr.bf16.mxu0 0
        %3155 = vmatpush1.bf16.msra.mxu0 %v2831
        %3156 = vmatprep.subr.bf16.mxu0 0
        %3157 = vmatpush1.bf16.msra.mxu0 %v2832
        %3158 = vmatprep.mubr.bf16.mxu0 %v2706
        %3159 = vmatmul.mubr.bf16.gmra.mrb[0].mxu0 %v2705
        %v3160 = vpop.f32.mrb[0].mxu0
        %v3161 = vadd.f32 0.0, %v3160
        %v3162 = vpop.f32.mrb[0].mxu0
        %v3163 = vpop.f32.mrb[0].mxu0
        %v3164 = vpop.f32.mrb[0].mxu0
        %3165 = vdwg.mxu0
        %3166 = vmatprep.subr.bf16.mxu0 0
        %3167 = vmatpush1.bf16.msra.mxu0 %v2833
        %3168 = vmatprep.subr.bf16.mxu0 0
        %3169 = vmatpush1.bf16.msra.mxu0 %v2834
        %3170 = vmatprep.subr.bf16.mxu0 0
        %3171 = vmatpush1.bf16.msra.mxu0 %v2835
        %3172 = vmatprep.subr.bf16.mxu0 0
        %3173 = vmatpush1.bf16.msra.mxu0 %v2836
        %3174 = vmatprep.subr.bf16.mxu0 0
        %3175 = vmatpush1.bf16.msra.mxu0 %v2837
        %3176 = vmatprep.subr.bf16.mxu0 0
        %3177 = vmatpush1.bf16.msra.mxu0 %v2838
        %3178 = vmatprep.subr.bf16.mxu0 0
        %3179 = vmatpush1.bf16.msra.mxu0 %v2839
        %3180 = vmatprep.subr.bf16.mxu0 0
        %3181 = vmatpush1.bf16.msra.mxu0 %v2840
        %3182 = vmatprep.subr.bf16.mxu0 0
        %3183 = vmatpush1.bf16.msra.mxu0 0
        %3184 = vmatprep.subr.bf16.mxu0 0
        %3185 = vmatpush1.bf16.msra.mxu0 0
        %3186 = vmatprep.subr.bf16.mxu0 0
        %3187 = vmatpush1.bf16.msra.mxu0 0
        %3188 = vmatprep.subr.bf16.mxu0 0
        %3189 = vmatpush1.bf16.msra.mxu0 0
        %3190 = vmatprep.subr.bf16.mxu0 0
        %3191 = vmatpush1.bf16.msra.mxu0 0
        %3192 = vmatprep.subr.bf16.mxu0 0
        %3193 = vmatpush1.bf16.msra.mxu0 0
        %3194 = vmatprep.subr.bf16.mxu0 0
        %3195 = vmatpush1.bf16.msra.mxu0 0
        %3196 = vmatprep.subr.bf16.mxu0 0
        %3197 = vmatpush1.bf16.msra.mxu0 0
        %3198 = vmatprep.mubr.bf16.mxu0 0
        %3199 = vmatmul.mubr.bf16.gmra.mrb[0].mxu0 %v2707
        %v3200 = vpop.f32.mrb[0].mxu0
        %v3201 = vadd.f32 %v3161, %v3200
        %v3202 = vpop.f32.mrb[0].mxu0
        %v3203 = vpop.f32.mrb[0].mxu0
        %v3204 = vpop.f32.mrb[0].mxu0
        %3205 = vdwg.mxu0
        %v3206 = vmul.f32 %v3201, %v2901
        %v3207 = vadd.f32 %v3206, %v2908
        %v3208 = vmax.f32 %v3207, 0.0
        %v3209 = vpack.c.bf16 %v2911, %v2911
        %v3210 = vpack.c.bf16 %v3042, %v3042
        %v3211 = vpack.c.bf16 %v3125, %v3125
        %v3212 = vpack.c.bf16 %v3208, %v3208
        %v3217 = vunpack.c.l.b16 %v3209
        %v3218 = vunpack.c.l.b16 %v3210
        %v3219 = vunpack.c.l.b16 %v3211
        %v3220 = vunpack.c.l.b16 %v3212
        %v3221 = vpack.c.b16 %v3218, %v3217
        %v3222 = vpack.c.b16 %v3220, %v3219
        %3225 = vst [vmem:[%s227] sm:$0xff] %v3221
        %3226 = vst [vmem:[%s227 + $0x8] sm:$0xff] %v3222
        %p3227 = scmp.lt.s32.totalorder %s17, 1
        %s3228 = scalar_select %p3227, %s17, 1
        %s3229 = smul.addr %s3228, 4
        %s3230 = smul.addr %s3229, 4
        %s3231 = scalar_lea.vmem %s4, %s3230
        // Predicated region
        $region45: #{e2enet_forward.4} parent=35 // pred_check
          %p3232 = pneg %p124
        $region46: #{e2enet_forward.4} parent=35 // pred_check_branch
          %3234 = sbr.rel (%p3232) target = $region48
        $region47: #{e2enet_forward.4} parent=35 // pred_region
          _
        $region48: #{e2enet_forward.4} parent=35 // pred_fallthru
          _
      $region36: #{e2enet_forward.4} parent=5 // pred_fallthru
        _
      %p3235 = scmp.le.s32.totalorder 2, %s12
      // Predicated region
      $region49: #{e2enet_forward.4} parent=5 // pred_check
        %p3236 = pneg %p3235
      $region50: #{e2enet_forward.4} parent=5 // pred_check_branch
        %3238 = sbr.rel (%p3236) target = $region52
      $region51: #{e2enet_forward.4} parent=5 // pred_region
        %s3239 = ssub.s32 %s12, 2
        // Predicated region
        $region53: #{e2enet_forward.4} parent=51 // pred_check
          %p3240 = pneg %p130
        $region54: #{e2enet_forward.4} parent=51 // pred_check_branch
          %3242 = sbr.rel (%p3240) target = $region56
        $region55: #{e2enet_forward.4} parent=51 // pred_region
          %p3243 = scmp.lt.s32.totalorder %s18, 1
          %s3244 = scalar_select %p3243, %s18, 1
          %s3245 = smul.addr %s3244, 4
          %s3246 = smul.addr %s3245, 4
          %s3247 = scalar_lea.vmem %s4, %s3246
        $region56: #{e2enet_forward.4} parent=51 // pred_fallthru
          _
      $region52: #{e2enet_forward.4} parent=5 // pred_fallthru
        _
    $region6: #{e2enet_forward.4} parent=1 // loop_footer
      %s16 = sadd.s32 1, %s12
    $region7: #{e2enet_forward.4} parent=1 // loop_footer_branch
      %11 = sbr.rel target = $region3
    $region8: #{e2enet_forward.4} parent=1 // loop_exit
      _
    %3248 = vsyncpa [#allocation3], 1
    %s3249 = scalar_lea.sflag [#allocation3], 1
    %3250 = vsyncpa %s3249, 1
    %3251 = vsyncpa [#allocation5], 1

// kernel: e2enet_forward.5
$region0: #{e2enet_forward.5}
  #allocation0 [shape = 'u32[]', space=smem, size = 0x4, offset = 0x4, fixed_abs, tag = 'smem constant byte address 0x4 - core index']
  #allocation1 [shape = 'u32[144,128]{1,0:T(1,128)}', space=vmem, size = 0x12000, scoped, tag = 'internal scratch']
  %s0 = inlined_call_operand.vmem [shape: bf16[16,512], index: 0, kind: input, shape index: {}]
  %s1 = inlined_call_operand.vmem [shape: bf16[4,4,384,128], index: 1, kind: input, shape index: {}]
  %s2 = inlined_call_operand.vmem [shape: bf16[4,128,128], index: 2, kind: input, shape index: {}]
  %s3 = inlined_call_operand.vmem [shape: f32[4,5,1,128], index: 3, kind: input, shape index: {}]
  %s4 = inlined_call_operand.hbm [shape: f32[4,5,1,128], index: 4, kind: input, shape index: {}]
  %s5 = inlined_call_operand.vmem [shape: bf16[4,128,48], index: 5, kind: input, shape index: {}]
  %s6 = inlined_call_operand.vmem [shape: f32[4,1,48], index: 6, kind: input, shape index: {}]
  %s7 = inlined_call_operand.vmem [shape: f32[4,1,48], index: 7, kind: input, shape index: {}]
  %s8 = inlined_call_operand.hbm [shape: bf16[4,48,128], index: 8, kind: input, shape index: {}]
  %s9 = inlined_call_operand.hbm [shape: f32[4,1,128], index: 9, kind: input, shape index: {}]
  %s10 = inlined_call_operand.hbm [shape: bf16[4,128,128], index: 10, kind: input, shape index: {}]
  %s11 = inlined_call_operand.hbm [shape: f32[4,1,128], index: 11, kind: input, shape index: {}]
  %s12 = inlined_call_operand.hbm [shape: f32[4,1,128], index: 12, kind: input, shape index: {}]
  %s13 = inlined_call_operand.hbm [shape: bf16[4,128,256], index: 13, kind: input, shape index: {}]
  %s14 = inlined_call_operand.vmem [shape: f32[4,1,256], index: 14, kind: input, shape index: {}]
  %s15 = inlined_call_operand.vmem [shape: f32[4,16,128], index: 15, kind: output, shape index: {0}]
  %s16 = inlined_call_operand.vmem [shape: f32[4,16,256], index: 16, kind: output, shape index: {1}]
  %17 = xla_tuple %s15, %s16
  %s18 = sld [smem:[#allocation0]]
  $region129: #{e2enet_forward.5} parent=0
    _
  %s20 = ssub.s32 1, %s18
  %s21 = scalar_select 0, %s20, %s18
  $region1: #{e2enet_forward.5} parent=0
    #allocation2 [shape = 'u8[5120]{0}', space=vmem, size = 0x1400, scoped, tag = 'input window, operand 4']
    #allocation3 [shape = 's32[2]{0}', space=sflag, size = 0x8, scoped, tag = 'scoped memory for e2enet_forward.5']
    #allocation4 [shape = 'u8[24576]{0}', space=vmem, size = 0x6000, scoped, tag = 'input window, operand 8']
    #allocation5 [shape = 's32[2]{0}', space=sflag, size = 0x8, scoped, tag = 'scoped memory for e2enet_forward.5']
    #allocation6 [shape = 'u8[1024]{0}', space=vmem, size = 0x400, scoped, tag = 'input window, operand 9']
    #allocation7 [shape = 'u8[65536]{0}', space=vmem, size = 0x10000, scoped, tag = 'input window, operand 10']
    #allocation8 [shape = 's32[2]{0}', space=sflag, size = 0x8, scoped, tag = 'scoped memory for e2enet_forward.5']
    #allocation9 [shape = 'u8[1024]{0}', space=vmem, size = 0x400, scoped, tag = 'input window, operand 11']
    #allocation10 [shape = 'u8[1024]{0}', space=vmem, size = 0x400, scoped, tag = 'input window, operand 12']
    #allocation11 [shape = 's32[2]{0}', space=sflag, size = 0x8, scoped, tag = 'scoped memory for e2enet_forward.5']
    #allocation12 [shape = 'u8[131072]{0}', space=vmem, size = 0x20000, scoped, tag = 'input window, operand 13']
    %22 = vsyncpa [#allocation3], 0
    %s23 = scalar_lea.sflag [#allocation3], 1
    %24 = vsyncpa %s23, 0
    %25 = vsyncpa [#allocation5], 0
    %s26 = scalar_lea.sflag [#allocation5], 1
    %27 = vsyncpa %s26, 0
    %28 = vsyncpa [#allocation8], 0
    %s29 = scalar_lea.sflag [#allocation8], 1
    %30 = vsyncpa %s29, 0
    %31 = vsyncpa [#allocation11], 0
    %s32 = scalar_lea.sflag [#allocation11], 1
    %33 = vsyncpa %s32, 0
    loop: start=0, step=1, limit=6
    $region2: #{e2enet_forward.5} parent=1 // loop_pre_header
      _
    $region3: #{e2enet_forward.5} parent=1 // loop_header
      %s35 = sphi 0, %s39
      %p36 = scmp.ge.s32.totalorder %s35, 6
      %s43 = sphi 0, %s43
      %s45 = sphi 0, %s43
      %s46 = sphi 0, %s45
      %s60 = sphi 0, %s46
      %s66 = sphi 0, %s68
      %s69 = sphi 0, %s66
      %s70 = sphi 0, %s69
      %s86 = sphi 0, %s70
      %s92 = sphi 0, %s94
      %s95 = sphi 0, %s92
      %s96 = sphi 0, %s95
      %s112 = sphi 0, %s96
      %s118 = sphi 0, %s120
      %s121 = sphi 0, %s118
      %s122 = sphi 0, %s121
      %s138 = sphi 0, %s122
      %s144 = sphi 0, %s146
      %s147 = sphi 0, %s144
      %s148 = sphi 0, %s147
      %s164 = sphi 0, %s148
      %s170 = sphi 0, %s172
      %s173 = sphi 0, %s170
      %s174 = sphi 0, %s173
      %s190 = sphi 0, %s174
      %s196 = sphi 0, %s198
      %s199 = sphi 0, %s196
      %s200 = sphi 0, %s199
      %s216 = sphi 0, %s200
      %s222 = sphi 0, %s224
      %s225 = sphi 0, %s222
      %s226 = sphi 0, %s225
      %s242 = sphi 0, %s226
      %s248 = sphi 0, %s250
      %s251 = sphi 0, %s248
      %s252 = sphi 0, %s251
      %s268 = sphi 0, %s252
      %s274 = sphi 0, %s276
      %s277 = sphi 0, %s274
      %s278 = sphi 0, %s277
      %s294 = sphi 0, %s278
      %s300 = sphi 0, %s302
      %s303 = sphi 0, %s300
      %s304 = sphi 0, %s303
      %s320 = sphi 0, %s304
      %s326 = sphi 0, %s328
      %s329 = sphi 0, %s326
      %s330 = sphi 0, %s329
      %s346 = sphi 0, %s330
      %s352 = sphi 0, %s354
      %s355 = sphi 0, %s352
      %s356 = sphi 0, %s355
      %s372 = sphi 0, %s356
      %s378 = sphi 0, %s380
      %s381 = sphi 0, %s378
      %s382 = sphi 0, %s381
      %s398 = sphi 0, %s382
      %s404 = sphi 0, %s406
      %s407 = sphi 0, %s404
      %s408 = sphi 0, %s407
      %s424 = sphi 0, %s408
      %s430 = sphi 0, %s432
      %s433 = sphi 0, %s430
      %s434 = sphi 0, %s433
      %s450 = sphi 0, %s434
      %s456 = sphi 0, %s458
      %s459 = sphi 0, %s456
      %s460 = sphi 0, %s459
      %s476 = sphi 0, %s460
    $region4: #{e2enet_forward.5} parent=1 // loop_header_branch
      %38 = sbr.rel (%p36) target = $region8
    $region5: #{e2enet_forward.5} parent=1 // loop_body
      %s40 = ssub.s32 %s35, 1
      %s41 = ssub.s32 %s35, 2
      %s42 = sadd.s32 %s35, 1
      %s44 = sadd.s32 %s43, 1
      %p47 = scmp.eq.s32.totalorder %s35, 3
      %p48 = scmp.ne.s32.totalorder %s43, %s45
      %p49 = scmp.eq.s32.totalorder %s35, 0
      %p50 = por %p48, %p49
      %p51 = scmp.ne.s32.totalorder %s43, %s45
      %p52 = scmp.eq.s32.totalorder %s40, 3
      %p53 = por %p51, %p52
      %p54 = scmp.ne.s32.totalorder %s45, %s46
      %p55 = scmp.eq.s32.totalorder %s40, 0
      %p56 = por %p54, %p55
      %p57 = scmp.ne.s32.totalorder %s45, %s46
      %p58 = scmp.eq.s32.totalorder %s41, 3
      %p59 = por %p57, %p58
      %p61 = scmp.ne.s32.totalorder %s46, %s60
      %p62 = scmp.eq.s32.totalorder %s41, 0
      %p63 = por %p61, %p62
      %s64 = ssub.s32 %s35, %s42
      %p65 = scmp.eq.s32.totalorder %s64, 0
      %s67 = sadd.s32 %s66, 1
      %s68 = scalar_select %p65, %s66, %s67
      %p71 = pneg %p65
      %p72 = scmp.eq.s32.totalorder %s35, 3
      %p73 = por %p71, %p72
      %p74 = scmp.ne.s32.totalorder %s66, %s69
      %p75 = scmp.eq.s32.totalorder %s35, 0
      %p76 = por %p74, %p75
      %p77 = scmp.ne.s32.totalorder %s66, %s69
      %p78 = scmp.eq.s32.totalorder %s40, 3
      %p79 = por %p77, %p78
      %p80 = scmp.ne.s32.totalorder %s69, %s70
      %p81 = scmp.eq.s32.totalorder %s40, 0
      %p82 = por %p80, %p81
      %p83 = scmp.ne.s32.totalorder %s69, %s70
      %p84 = scmp.eq.s32.totalorder %s41, 3
      %p85 = por %p83, %p84
      %p87 = scmp.ne.s32.totalorder %s70, %s86
      %p88 = scmp.eq.s32.totalorder %s41, 0
      %p89 = por %p87, %p88
      %s90 = ssub.s32 %s35, %s42
      %p91 = scmp.eq.s32.totalorder %s90, 0
      %s93 = sadd.s32 %s92, 1
      %s94 = scalar_select %p91, %s92, %s93
      %p97 = pneg %p91
      %p98 = scmp.eq.s32.totalorder %s35, 3
      %p99 = por %p97, %p98
      %p100 = scmp.ne.s32.totalorder %s92, %s95
      %p101 = scmp.eq.s32.totalorder %s35, 0
      %p102 = por %p100, %p101
      %p103 = scmp.ne.s32.totalorder %s92, %s95
      %p104 = scmp.eq.s32.totalorder %s40, 3
      %p105 = por %p103, %p104
      %p106 = scmp.ne.s32.totalorder %s95, %s96
      %p107 = scmp.eq.s32.totalorder %s40, 0
      %p108 = por %p106, %p107
      %p109 = scmp.ne.s32.totalorder %s95, %s96
      %p110 = scmp.eq.s32.totalorder %s41, 3
      %p111 = por %p109, %p110
      %p113 = scmp.ne.s32.totalorder %s96, %s112
      %p114 = scmp.eq.s32.totalorder %s41, 0
      %p115 = por %p113, %p114
      %s116 = ssub.s32 %s35, %s42
      %p117 = scmp.eq.s32.totalorder %s116, 0
      %s119 = sadd.s32 %s118, 1
      %s120 = scalar_select %p117, %s118, %s119
      %p123 = pneg %p117
      %p124 = scmp.eq.s32.totalorder %s35, 3
      %p125 = por %p123, %p124
      %p126 = scmp.ne.s32.totalorder %s118, %s121
      %p127 = scmp.eq.s32.totalorder %s35, 0
      %p128 = por %p126, %p127
      %p129 = scmp.ne.s32.totalorder %s118, %s121
      %p130 = scmp.eq.s32.totalorder %s40, 3
      %p131 = por %p129, %p130
      %p132 = scmp.ne.s32.totalorder %s121, %s122
      %p133 = scmp.eq.s32.totalorder %s40, 0
      %p134 = por %p132, %p133
      %p135 = scmp.ne.s32.totalorder %s121, %s122
      %p136 = scmp.eq.s32.totalorder %s41, 3
      %p137 = por %p135, %p136
      %p139 = scmp.ne.s32.totalorder %s122, %s138
      %p140 = scmp.eq.s32.totalorder %s41, 0
      %p141 = por %p139, %p140
      %s142 = ssub.s32 %s35, %s42
      %p143 = scmp.eq.s32.totalorder %s142, 0
      %s145 = sadd.s32 %s144, 1
      %s146 = scalar_select %p143, %s144, %s145
      %p149 = pneg %p143
      %p150 = scmp.eq.s32.totalorder %s35, 3
      %p151 = por %p149, %p150
      %p152 = scmp.ne.s32.totalorder %s144, %s147
      %p153 = scmp.eq.s32.totalorder %s35, 0
      %p154 = por %p152, %p153
      %p155 = scmp.ne.s32.totalorder %s144, %s147
      %p156 = scmp.eq.s32.totalorder %s40, 3
      %p157 = por %p155, %p156
      %p158 = scmp.ne.s32.totalorder %s147, %s148
      %p159 = scmp.eq.s32.totalorder %s40, 0
      %p160 = por %p158, %p159
      %p161 = scmp.ne.s32.totalorder %s147, %s148
      %p162 = scmp.eq.s32.totalorder %s41, 3
      %p163 = por %p161, %p162
      %p165 = scmp.ne.s32.totalorder %s148, %s164
      %p166 = scmp.eq.s32.totalorder %s41, 0
      %p167 = por %p165, %p166
      %s168 = ssub.s32 %s35, %s42
      %p169 = scmp.eq.s32.totalorder %s168, 0
      %s171 = sadd.s32 %s170, 1
      %s172 = scalar_select %p169, %s170, %s171
      %p175 = pneg %p169
      %p176 = scmp.eq.s32.totalorder %s35, 3
      %p177 = por %p175, %p176
      %p178 = scmp.ne.s32.totalorder %s170, %s173
      %p179 = scmp.eq.s32.totalorder %s35, 0
      %p180 = por %p178, %p179
      %p181 = scmp.ne.s32.totalorder %s170, %s173
      %p182 = scmp.eq.s32.totalorder %s40, 3
      %p183 = por %p181, %p182
      %p184 = scmp.ne.s32.totalorder %s173, %s174
      %p185 = scmp.eq.s32.totalorder %s40, 0
      %p186 = por %p184, %p185
      %p187 = scmp.ne.s32.totalorder %s173, %s174
      %p188 = scmp.eq.s32.totalorder %s41, 3
      %p189 = por %p187, %p188
      %p191 = scmp.ne.s32.totalorder %s174, %s190
      %p192 = scmp.eq.s32.totalorder %s41, 0
      %p193 = por %p191, %p192
      %s194 = ssub.s32 %s35, %s42
      %p195 = scmp.eq.s32.totalorder %s194, 0
      %s197 = sadd.s32 %s196, 1
      %s198 = scalar_select %p195, %s196, %s197
      %p201 = pneg %p195
      %p202 = scmp.eq.s32.totalorder %s35, 3
      %p203 = por %p201, %p202
      %p204 = scmp.ne.s32.totalorder %s196, %s199
      %p205 = scmp.eq.s32.totalorder %s35, 0
      %p206 = por %p204, %p205
      %p207 = scmp.ne.s32.totalorder %s196, %s199
      %p208 = scmp.eq.s32.totalorder %s40, 3
      %p209 = por %p207, %p208
      %p210 = scmp.ne.s32.totalorder %s199, %s200
      %p211 = scmp.eq.s32.totalorder %s40, 0
      %p212 = por %p210, %p211
      %p213 = scmp.ne.s32.totalorder %s199, %s200
      %p214 = scmp.eq.s32.totalorder %s41, 3
      %p215 = por %p213, %p214
      %p217 = scmp.ne.s32.totalorder %s200, %s216
      %p218 = scmp.eq.s32.totalorder %s41, 0
      %p219 = por %p217, %p218
      %s220 = ssub.s32 %s35, %s42
      %p221 = scmp.eq.s32.totalorder %s220, 0
      %s223 = sadd.s32 %s222, 1
      %s224 = scalar_select %p221, %s222, %s223
      %p227 = pneg %p221
      %p228 = scmp.eq.s32.totalorder %s35, 3
      %p229 = por %p227, %p228
      %p230 = scmp.ne.s32.totalorder %s222, %s225
      %p231 = scmp.eq.s32.totalorder %s35, 0
      %p232 = por %p230, %p231
      %p233 = scmp.ne.s32.totalorder %s222, %s225
      %p234 = scmp.eq.s32.totalorder %s40, 3
      %p235 = por %p233, %p234
      %p236 = scmp.ne.s32.totalorder %s225, %s226
      %p237 = scmp.eq.s32.totalorder %s40, 0
      %p238 = por %p236, %p237
      %p239 = scmp.ne.s32.totalorder %s225, %s226
      %p240 = scmp.eq.s32.totalorder %s41, 3
      %p241 = por %p239, %p240
      %p243 = scmp.ne.s32.totalorder %s226, %s242
      %p244 = scmp.eq.s32.totalorder %s41, 0
      %p245 = por %p243, %p244
      %s246 = ssub.s32 %s35, %s42
      %p247 = scmp.eq.s32.totalorder %s246, 0
      %s249 = sadd.s32 %s248, 1
      %s250 = scalar_select %p247, %s248, %s249
      %p253 = pneg %p247
      %p254 = scmp.eq.s32.totalorder %s35, 3
      %p255 = por %p253, %p254
      %p256 = scmp.ne.s32.totalorder %s248, %s251
      %p257 = scmp.eq.s32.totalorder %s35, 0
      %p258 = por %p256, %p257
      %p259 = scmp.ne.s32.totalorder %s248, %s251
      %p260 = scmp.eq.s32.totalorder %s40, 3
      %p261 = por %p259, %p260
      %p262 = scmp.ne.s32.totalorder %s251, %s252
      %p263 = scmp.eq.s32.totalorder %s40, 0
      %p264 = por %p262, %p263
      %p265 = scmp.ne.s32.totalorder %s251, %s252
      %p266 = scmp.eq.s32.totalorder %s41, 3
      %p267 = por %p265, %p266
      %p269 = scmp.ne.s32.totalorder %s252, %s268
      %p270 = scmp.eq.s32.totalorder %s41, 0
      %p271 = por %p269, %p270
      %s272 = ssub.s32 %s35, %s42
      %p273 = scmp.eq.s32.totalorder %s272, 0
      %s275 = sadd.s32 %s274, 1
      %s276 = scalar_select %p273, %s274, %s275
      %p279 = pneg %p273
      %p280 = scmp.eq.s32.totalorder %s35, 3
      %p281 = por %p279, %p280
      %p282 = scmp.ne.s32.totalorder %s274, %s277
      %p283 = scmp.eq.s32.totalorder %s35, 0
      %p284 = por %p282, %p283
      %p285 = scmp.ne.s32.totalorder %s274, %s277
      %p286 = scmp.eq.s32.totalorder %s40, 3
      %p287 = por %p285, %p286
      %p288 = scmp.ne.s32.totalorder %s277, %s278
      %p289 = scmp.eq.s32.totalorder %s40, 0
      %p290 = por %p288, %p289
      %p291 = scmp.ne.s32.totalorder %s277, %s278
      %p292 = scmp.eq.s32.totalorder %s41, 3
      %p293 = por %p291, %p292
      %p295 = scmp.ne.s32.totalorder %s278, %s294
      %p296 = scmp.eq.s32.totalorder %s41, 0
      %p297 = por %p295, %p296
      %s298 = ssub.s32 %s35, %s42
      %p299 = scmp.eq.s32.totalorder %s298, 0
      %s301 = sadd.s32 %s300, 1
      %s302 = scalar_select %p299, %s300, %s301
      %p305 = pneg %p299
      %p306 = scmp.eq.s32.totalorder %s35, 3
      %p307 = por %p305, %p306
      %p308 = scmp.ne.s32.totalorder %s300, %s303
      %p309 = scmp.eq.s32.totalorder %s35, 0
      %p310 = por %p308, %p309
      %p311 = scmp.ne.s32.totalorder %s300, %s303
      %p312 = scmp.eq.s32.totalorder %s40, 3
      %p313 = por %p311, %p312
      %p314 = scmp.ne.s32.totalorder %s303, %s304
      %p315 = scmp.eq.s32.totalorder %s40, 0
      %p316 = por %p314, %p315
      %p317 = scmp.ne.s32.totalorder %s303, %s304
      %p318 = scmp.eq.s32.totalorder %s41, 3
      %p319 = por %p317, %p318
      %p321 = scmp.ne.s32.totalorder %s304, %s320
      %p322 = scmp.eq.s32.totalorder %s41, 0
      %p323 = por %p321, %p322
      %s324 = ssub.s32 %s35, %s42
      %p325 = scmp.eq.s32.totalorder %s324, 0
      %s327 = sadd.s32 %s326, 1
      %s328 = scalar_select %p325, %s326, %s327
      %p331 = pneg %p325
      %p332 = scmp.eq.s32.totalorder %s35, 3
      %p333 = por %p331, %p332
      %p334 = scmp.ne.s32.totalorder %s326, %s329
      %p335 = scmp.eq.s32.totalorder %s35, 0
      %p336 = por %p334, %p335
      %p337 = scmp.ne.s32.totalorder %s326, %s329
      %p338 = scmp.eq.s32.totalorder %s40, 3
      %p339 = por %p337, %p338
      %p340 = scmp.ne.s32.totalorder %s329, %s330
      %p341 = scmp.eq.s32.totalorder %s40, 0
      %p342 = por %p340, %p341
      %p343 = scmp.ne.s32.totalorder %s329, %s330
      %p344 = scmp.eq.s32.totalorder %s41, 3
      %p345 = por %p343, %p344
      %p347 = scmp.ne.s32.totalorder %s330, %s346
      %p348 = scmp.eq.s32.totalorder %s41, 0
      %p349 = por %p347, %p348
      %s350 = ssub.s32 %s35, %s42
      %p351 = scmp.eq.s32.totalorder %s350, 0
      %s353 = sadd.s32 %s352, 1
      %s354 = scalar_select %p351, %s352, %s353
      %p357 = pneg %p351
      %p358 = scmp.eq.s32.totalorder %s35, 3
      %p359 = por %p357, %p358
      %p360 = scmp.ne.s32.totalorder %s352, %s355
      %p361 = scmp.eq.s32.totalorder %s35, 0
      %p362 = por %p360, %p361
      %p363 = scmp.ne.s32.totalorder %s352, %s355
      %p364 = scmp.eq.s32.totalorder %s40, 3
      %p365 = por %p363, %p364
      %p366 = scmp.ne.s32.totalorder %s355, %s356
      %p367 = scmp.eq.s32.totalorder %s40, 0
      %p368 = por %p366, %p367
      %p369 = scmp.ne.s32.totalorder %s355, %s356
      %p370 = scmp.eq.s32.totalorder %s41, 3
      %p371 = por %p369, %p370
      %p373 = scmp.ne.s32.totalorder %s356, %s372
      %p374 = scmp.eq.s32.totalorder %s41, 0
      %p375 = por %p373, %p374
      %s376 = ssub.s32 %s35, %s42
      %p377 = scmp.eq.s32.totalorder %s376, 0
      %s379 = sadd.s32 %s378, 1
      %s380 = scalar_select %p377, %s378, %s379
      %p383 = pneg %p377
      %p384 = scmp.eq.s32.totalorder %s35, 3
      %p385 = por %p383, %p384
      %p386 = scmp.ne.s32.totalorder %s378, %s381
      %p387 = scmp.eq.s32.totalorder %s35, 0
      %p388 = por %p386, %p387
      %p389 = scmp.ne.s32.totalorder %s378, %s381
      %p390 = scmp.eq.s32.totalorder %s40, 3
      %p391 = por %p389, %p390
      %p392 = scmp.ne.s32.totalorder %s381, %s382
      %p393 = scmp.eq.s32.totalorder %s40, 0
      %p394 = por %p392, %p393
      %p395 = scmp.ne.s32.totalorder %s381, %s382
      %p396 = scmp.eq.s32.totalorder %s41, 3
      %p397 = por %p395, %p396
      %p399 = scmp.ne.s32.totalorder %s382, %s398
      %p400 = scmp.eq.s32.totalorder %s41, 0
      %p401 = por %p399, %p400
      %s402 = ssub.s32 %s35, %s42
      %p403 = scmp.eq.s32.totalorder %s402, 0
      %s405 = sadd.s32 %s404, 1
      %s406 = scalar_select %p403, %s404, %s405
      %p409 = pneg %p403
      %p410 = scmp.eq.s32.totalorder %s35, 3
      %p411 = por %p409, %p410
      %p412 = scmp.ne.s32.totalorder %s404, %s407
      %p413 = scmp.eq.s32.totalorder %s35, 0
      %p414 = por %p412, %p413
      %p415 = scmp.ne.s32.totalorder %s404, %s407
      %p416 = scmp.eq.s32.totalorder %s40, 3
      %p417 = por %p415, %p416
      %p418 = scmp.ne.s32.totalorder %s407, %s408
      %p419 = scmp.eq.s32.totalorder %s40, 0
      %p420 = por %p418, %p419
      %p421 = scmp.ne.s32.totalorder %s407, %s408
      %p422 = scmp.eq.s32.totalorder %s41, 3
      %p423 = por %p421, %p422
      %p425 = scmp.ne.s32.totalorder %s408, %s424
      %p426 = scmp.eq.s32.totalorder %s41, 0
      %p427 = por %p425, %p426
      %s428 = ssub.s32 %s35, %s42
      %p429 = scmp.eq.s32.totalorder %s428, 0
      %s431 = sadd.s32 %s430, 1
      %s432 = scalar_select %p429, %s430, %s431
      %p435 = pneg %p429
      %p436 = scmp.eq.s32.totalorder %s35, 3
      %p437 = por %p435, %p436
      %p438 = scmp.ne.s32.totalorder %s430, %s433
      %p439 = scmp.eq.s32.totalorder %s35, 0
      %p440 = por %p438, %p439
      %p441 = scmp.ne.s32.totalorder %s430, %s433
      %p442 = scmp.eq.s32.totalorder %s40, 3
      %p443 = por %p441, %p442
      %p444 = scmp.ne.s32.totalorder %s433, %s434
      %p445 = scmp.eq.s32.totalorder %s40, 0
      %p446 = por %p444, %p445
      %p447 = scmp.ne.s32.totalorder %s433, %s434
      %p448 = scmp.eq.s32.totalorder %s41, 3
      %p449 = por %p447, %p448
      %p451 = scmp.ne.s32.totalorder %s434, %s450
      %p452 = scmp.eq.s32.totalorder %s41, 0
      %p453 = por %p451, %p452
      %s454 = ssub.s32 %s35, %s42
      %p455 = scmp.eq.s32.totalorder %s454, 0
      %s457 = sadd.s32 %s456, 1
      %s458 = scalar_select %p455, %s456, %s457
      %p461 = pneg %p455
      %p462 = scmp.eq.s32.totalorder %s35, 3
      %p463 = por %p461, %p462
      %p464 = scmp.ne.s32.totalorder %s456, %s459
      %p465 = scmp.eq.s32.totalorder %s35, 0
      %p466 = por %p464, %p465
      %p467 = scmp.ne.s32.totalorder %s456, %s459
      %p468 = scmp.eq.s32.totalorder %s40, 3
      %p469 = por %p467, %p468
      %p470 = scmp.ne.s32.totalorder %s459, %s460
      %p471 = scmp.eq.s32.totalorder %s40, 0
      %p472 = por %p470, %p471
      %p473 = scmp.ne.s32.totalorder %s459, %s460
      %p474 = scmp.eq.s32.totalorder %s41, 3
      %p475 = por %p473, %p474
      %p477 = scmp.ne.s32.totalorder %s460, %s476
      %p478 = scmp.eq.s32.totalorder %s41, 0
      %p479 = por %p477, %p478
      %p480 = scmp.le.s32.totalorder 1, %s35
      %p481 = scmp.lt.s32.totalorder %s35, 5
      %p482 = pnand %p480, %p481
      %p483 = pneg %p482
      // Predicated region
      $region9: #{e2enet_forward.5} parent=5 // pred_check
        _
      $region10: #{e2enet_forward.5} parent=5 // pred_check_branch
        %485 = sbr.rel (%p482) target = $region12
      $region11: #{e2enet_forward.5} parent=5 // pred_region
        %s486 = ssub.s32 %s35, 1
        // Predicated region
        $region13: #{e2enet_forward.5} parent=11 // pred_check
          %p487 = pneg %p56
        $region14: #{e2enet_forward.5} parent=11 // pred_check_branch
          %489 = sbr.rel (%p487) target = $region16
        $region15: #{e2enet_forward.5} parent=11 // pred_region
          _
        $region16: #{e2enet_forward.5} parent=11 // pred_fallthru
          _
      $region12: #{e2enet_forward.5} parent=5 // pred_fallthru
        _
      %p490 = scmp.lt.s32.totalorder %s35, 4
      // Predicated region
      $region17: #{e2enet_forward.5} parent=5 // pred_check
        %p491 = pneg %p490
      $region18: #{e2enet_forward.5} parent=5 // pred_check_branch
        %493 = sbr.rel (%p491) target = $region20
      $region19: #{e2enet_forward.5} parent=5 // pred_region
        // Predicated region
        $region21: #{e2enet_forward.5} parent=19 // pred_check
          %p494 = pneg %p76
        $region22: #{e2enet_forward.5} parent=19 // pred_check_branch
          %496 = sbr.rel (%p494) target = $region24
        $region23: #{e2enet_forward.5} parent=19 // pred_region
          %p497 = scmp.lt.s32.totalorder %s35, 3
          %s498 = scalar_select %p497, %s35, 3
          %s499 = smul.addr %s498, 192
          %s500 = smul.addr %s499, 4
          %s501 = scalar_lea.vmem %s1, %s500
        $region24: #{e2enet_forward.5} parent=19 // pred_fallthru
          _
        // Predicated region
        $region25: #{e2enet_forward.5} parent=19 // pred_check
          %p502 = pneg %p102
        $region26: #{e2enet_forward.5} parent=19 // pred_check_branch
          %504 = sbr.rel (%p502) target = $region28
        $region27: #{e2enet_forward.5} parent=19 // pred_region
          %p505 = scmp.lt.s32.totalorder %s35, 3
          %s506 = scalar_select %p505, %s35, 3
          %s507 = smul.addr %s506, 16
          %s508 = smul.addr %s507, 4
          %s509 = scalar_lea.vmem %s2, %s508
        $region28: #{e2enet_forward.5} parent=19 // pred_fallthru
          _
        // Predicated region
        $region29: #{e2enet_forward.5} parent=19 // pred_check
          %p510 = pneg %p128
        $region30: #{e2enet_forward.5} parent=19 // pred_check_branch
          %512 = sbr.rel (%p510) target = $region32
        $region31: #{e2enet_forward.5} parent=19 // pred_region
          %p513 = scmp.lt.s32.totalorder %s35, 3
          %s514 = scalar_select %p513, %s35, 3
          %s515 = smul.addr %s514, 5
          %s516 = scalar_lea.vmem %s3, %s515
        $region32: #{e2enet_forward.5} parent=19 // pred_fallthru
          _
        // Predicated region
        $region33: #{e2enet_forward.5} parent=19 // pred_check
          %p517 = pneg %p154
        $region34: #{e2enet_forward.5} parent=19 // pred_check_branch
          %519 = sbr.rel (%p517) target = $region36
        $region35: #{e2enet_forward.5} parent=19 // pred_region
          %s520 = sand.u32 %s144, 1
          %s521 = scalar_lea.sflag [#allocation3], %s520
          %s522 = sand.u32 %s144, 1
          %s523 = smul.addr %s522, 5
          %s524 = scalar_lea.vmem [#allocation2], %s523
          %s526 = ssub.s32 80, 80
          %527 = vsyncadd %s521, %s526
          %s528 = smul.addr %s35, 5
          %s529 = smul.addr %s528, 16
          %s530 = scalar_lea.hbm %s4, %s529
          %s531 = sshll.u32 %s524, 4
          %s532 = int_to_ptr.vmem [resolvable:$true] %s531
          %537 = dma.hbm_to_vmem [thread:$0]  %s530, 80, %s532, %s521, 16, 16, 1
        $region36: #{e2enet_forward.5} parent=19 // pred_fallthru
          _
        // Predicated region
        $region37: #{e2enet_forward.5} parent=19 // pred_check
          %p538 = pneg %p180
        $region38: #{e2enet_forward.5} parent=19 // pred_check_branch
          %540 = sbr.rel (%p538) target = $region40
        $region39: #{e2enet_forward.5} parent=19 // pred_region
          %p541 = scmp.lt.s32.totalorder %s35, 3
          %s542 = scalar_select %p541, %s35, 3
          %s543 = smul.addr %s542, 16
          %s544 = smul.addr %s543, 4
          %s545 = scalar_lea.vmem %s5, %s544
        $region40: #{e2enet_forward.5} parent=19 // pred_fallthru
          _
        // Predicated region
        $region41: #{e2enet_forward.5} parent=19 // pred_check
          %p546 = pneg %p206
        $region42: #{e2enet_forward.5} parent=19 // pred_check_branch
          %548 = sbr.rel (%p546) target = $region44
        $region43: #{e2enet_forward.5} parent=19 // pred_region
          %p549 = scmp.lt.s32.totalorder %s35, 3
          %s550 = scalar_select %p549, %s35, 3
          %s551 = scalar_lea.vmem %s6, %s550
        $region44: #{e2enet_forward.5} parent=19 // pred_fallthru
          _
        // Predicated region
        $region45: #{e2enet_forward.5} parent=19 // pred_check
          %p552 = pneg %p232
        $region46: #{e2enet_forward.5} parent=19 // pred_check_branch
          %554 = sbr.rel (%p552) target = $region48
        $region47: #{e2enet_forward.5} parent=19 // pred_region
          %p555 = scmp.lt.s32.totalorder %s35, 3
          %s556 = scalar_select %p555, %s35, 3
          %s557 = scalar_lea.vmem %s7, %s556
        $region48: #{e2enet_forward.5} parent=19 // pred_fallthru
          _
        // Predicated region
        $region49: #{e2enet_forward.5} parent=19 // pred_check
          %p558 = pneg %p258
        $region50: #{e2enet_forward.5} parent=19 // pred_check_branch
          %560 = sbr.rel (%p558) target = $region52
        $region51: #{e2enet_forward.5} parent=19 // pred_region
          %s561 = sand.u32 %s35, 1
          %s562 = scalar_lea.sflag [#allocation5], %s561
          %s563 = sand.u32 %s248, 1
          %s564 = smul.addr %s563, 24
          %s565 = scalar_lea.vmem [#allocation4], %s564
          %s567 = ssub.s32 384, 384
          %568 = vsyncadd %s562, %s567
          %s569 = smul.addr %s35, 6
          %s570 = smul.addr %s569, 64
          %s571 = scalar_lea.hbm %s8, %s570
          %s572 = sshll.u32 %s565, 4
          %s573 = int_to_ptr.vmem [resolvable:$true] %s572
          %578 = dma.hbm_to_vmem [thread:$0]  %s571, 384, %s573, %s562, 64, 64, 4
        $region52: #{e2enet_forward.5} parent=19 // pred_fallthru
          _
        // Predicated region
        $region53: #{e2enet_forward.5} parent=19 // pred_check
          %p579 = pneg %p284
        $region54: #{e2enet_forward.5} parent=19 // pred_check_branch
          %581 = sbr.rel (%p579) target = $region56
        $region55: #{e2enet_forward.5} parent=19 // pred_region
          %s582 = sand.u32 %s35, 1
          %s583 = scalar_lea.sflag [#allocation5], %s582
          %s584 = sand.u32 %s274, 1
          %s585 = scalar_lea.vmem [#allocation6], %s584
          %s587 = ssub.s32 16, 16
          %588 = vsyncadd %s583, %s587
          %s589 = smul.addr %s35, 16
          %s590 = scalar_lea.hbm %s9, %s589
          %s592 = sshll.u32 %s585, 4
          %s593 = int_to_ptr.vmem [resolvable:$true] %s592
          %595 = dma.hbm_to_vmem [thread:$0]  %s590, 16, %s593, %s583
        $region56: #{e2enet_forward.5} parent=19 // pred_fallthru
          _
        // Predicated region
        $region57: #{e2enet_forward.5} parent=19 // pred_check
          %p596 = pneg %p310
        $region58: #{e2enet_forward.5} parent=19 // pred_check_branch
          %598 = sbr.rel (%p596) target = $region60
        $region59: #{e2enet_forward.5} parent=19 // pred_region
          %s599 = sand.u32 %s35, 1
          %s600 = scalar_lea.sflag [#allocation8], %s599
          %s601 = sand.u32 %s300, 1
          %s602 = smul.addr %s601, 64
          %s603 = scalar_lea.vmem [#allocation7], %s602
          %s605 = ssub.s32 1024, 1024
          %606 = vsyncadd %s600, %s605
          %s607 = smul.addr %s35, 16
          %s608 = smul.addr %s607, 64
          %s609 = scalar_lea.hbm %s10, %s608
          %s610 = sshll.u32 %s603, 4
          %s611 = int_to_ptr.vmem [resolvable:$true] %s610
          %616 = dma.hbm_to_vmem [thread:$0]  %s609, 1024, %s611, %s600, 64, 64, 4
        $region60: #{e2enet_forward.5} parent=19 // pred_fallthru
          _
        // Predicated region
        $region61: #{e2enet_forward.5} parent=19 // pred_check
          %p617 = pneg %p336
        $region62: #{e2enet_forward.5} parent=19 // pred_check_branch
          %619 = sbr.rel (%p617) target = $region64
        $region63: #{e2enet_forward.5} parent=19 // pred_region
          %s620 = sand.u32 %s35, 1
          %s621 = scalar_lea.sflag [#allocation8], %s620
          %s622 = sand.u32 %s326, 1
          %s623 = scalar_lea.vmem [#allocation9], %s622
          %s625 = ssub.s32 16, 16
          %626 = vsyncadd %s621, %s625
          %s627 = smul.addr %s35, 16
          %s628 = scalar_lea.hbm %s11, %s627
          %s630 = sshll.u32 %s623, 4
          %s631 = int_to_ptr.vmem [resolvable:$true] %s630
          %633 = dma.hbm_to_vmem [thread:$0]  %s628, 16, %s631, %s621
        $region64: #{e2enet_forward.5} parent=19 // pred_fallthru
          _
        // Predicated region
        $region65: #{e2enet_forward.5} parent=19 // pred_check
          %p634 = pneg %p362
        $region66: #{e2enet_forward.5} parent=19 // pred_check_branch
          %636 = sbr.rel (%p634) target = $region68
        $region67: #{e2enet_forward.5} parent=19 // pred_region
          %s637 = sand.u32 %s35, 1
          %s638 = scalar_lea.sflag [#allocation11], %s637
          %s639 = sand.u32 %s352, 1
          %s640 = scalar_lea.vmem [#allocation10], %s639
          %s642 = ssub.s32 16, 16
          %643 = vsyncadd %s638, %s642
          %s644 = smul.addr %s35, 16
          %s645 = scalar_lea.hbm %s12, %s644
          %s647 = sshll.u32 %s640, 4
          %s648 = int_to_ptr.vmem [resolvable:$true] %s647
          %650 = dma.hbm_to_vmem [thread:$0]  %s645, 16, %s648, %s638
        $region68: #{e2enet_forward.5} parent=19 // pred_fallthru
          _
        // Predicated region
        $region69: #{e2enet_forward.5} parent=19 // pred_check
          %p651 = pneg %p388
        $region70: #{e2enet_forward.5} parent=19 // pred_check_branch
          %653 = sbr.rel (%p651) target = $region72
        $region71: #{e2enet_forward.5} parent=19 // pred_region
          %s654 = sand.u32 %s35, 1
          %s655 = scalar_lea.sflag [#allocation11], %s654
          %s656 = sand.u32 %s378, 1
          %s657 = smul.addr %s656, 128
          %s658 = scalar_lea.vmem [#allocation12], %s657
          %s660 = ssub.s32 2048, 2048
          %661 = vsyncadd %s655, %s660
          %s662 = smul.addr %s35, 32
          %s663 = smul.addr %s662, 64
          %s664 = scalar_lea.hbm %s13, %s663
          %s665 = sshll.u32 %s658, 4
          %s666 = int_to_ptr.vmem [resolvable:$true] %s665
          %671 = dma.hbm_to_vmem [thread:$0]  %s664, 2048, %s666, %s655, 128, 128, 8
        $region72: #{e2enet_forward.5} parent=19 // pred_fallthru
          _
        // Predicated region
        $region73: #{e2enet_forward.5} parent=19 // pred_check
          %p672 = pneg %p414
        $region74: #{e2enet_forward.5} parent=19 // pred_check_branch
          %674 = sbr.rel (%p672) target = $region76
        $region75: #{e2enet_forward.5} parent=19 // pred_region
          %p675 = scmp.lt.s32.totalorder %s35, 3
          %s676 = scalar_select %p675, %s35, 3
          %s677 = smul.addr %s676, 2
          %s678 = scalar_lea.vmem %s14, %s677
        $region76: #{e2enet_forward.5} parent=19 // pred_fallthru
          _
      $region20: #{e2enet_forward.5} parent=5 // pred_fallthru
        _
      %p679 = scmp.le.s32.totalorder 1, %s35
      %p680 = scmp.lt.s32.totalorder %s35, 5
      %p681 = pnand %p679, %p680
      %p682 = pneg %p681
      // Predicated region
      $region77: #{e2enet_forward.5} parent=5 // pred_check
        _
      $region78: #{e2enet_forward.5} parent=5 // pred_check_branch
        %684 = sbr.rel (%p681) target = $region80
      $region79: #{e2enet_forward.5} parent=5 // pred_region
        %s685 = ssub.s32 %s35, 1
        %s686 = sand.u32 %s147, 1
        %s687 = scalar_lea.sflag [#allocation3], %s686
        %s688 = sand.u32 %s147, 1
        %s689 = smul.addr %s688, 5
        %s690 = scalar_lea.vmem [#allocation2], %s689
        // Predicated region
        $region81: #{e2enet_forward.5} parent=79 // pred_check
          %p691 = pneg %p160
        $region82: #{e2enet_forward.5} parent=79 // pred_check_branch
          %693 = sbr.rel (%p691) target = $region84
        $region83: #{e2enet_forward.5} parent=79 // pred_region
          %694 = dma.done %s687, 80
        $region84: #{e2enet_forward.5} parent=79 // pred_fallthru
          _
        %s695 = sand.u32 %s40, 1
        %s696 = scalar_lea.sflag [#allocation5], %s695
        %s697 = sand.u32 %s251, 1
        %s698 = smul.addr %s697, 24
        %s699 = scalar_lea.vmem [#allocation4], %s698
        // Predicated region
        $region85: #{e2enet_forward.5} parent=79 // pred_check
          %p700 = pneg %p264
        $region86: #{e2enet_forward.5} parent=79 // pred_check_branch
          %702 = sbr.rel (%p700) target = $region88
        $region87: #{e2enet_forward.5} parent=79 // pred_region
          %703 = dma.done %s696, 384
        $region88: #{e2enet_forward.5} parent=79 // pred_fallthru
          _
        %s704 = sand.u32 %s40, 1
        %s705 = scalar_lea.sflag [#allocation5], %s704
        %s706 = sand.u32 %s277, 1
        %s707 = scalar_lea.vmem [#allocation6], %s706
        // Predicated region
        $region89: #{e2enet_forward.5} parent=79 // pred_check
          %p708 = pneg %p290
        $region90: #{e2enet_forward.5} parent=79 // pred_check_branch
          %710 = sbr.rel (%p708) target = $region92
        $region91: #{e2enet_forward.5} parent=79 // pred_region
          %711 = dma.done %s705, 16
        $region92: #{e2enet_forward.5} parent=79 // pred_fallthru
          _
        %s712 = sand.u32 %s40, 1
        %s713 = scalar_lea.sflag [#allocation8], %s712
        %s714 = sand.u32 %s303, 1
        %s715 = smul.addr %s714, 64
        %s716 = scalar_lea.vmem [#allocation7], %s715
        // Predicated region
        $region93: #{e2enet_forward.5} parent=79 // pred_check
          %p717 = pneg %p316
        $region94: #{e2enet_forward.5} parent=79 // pred_check_branch
          %719 = sbr.rel (%p717) target = $region96
        $region95: #{e2enet_forward.5} parent=79 // pred_region
          %720 = dma.done %s713, 1024
        $region96: #{e2enet_forward.5} parent=79 // pred_fallthru
          _
        %s721 = sand.u32 %s40, 1
        %s722 = scalar_lea.sflag [#allocation8], %s721
        %s723 = sand.u32 %s329, 1
        %s724 = scalar_lea.vmem [#allocation9], %s723
        // Predicated region
        $region97: #{e2enet_forward.5} parent=79 // pred_check
          %p725 = pneg %p342
        $region98: #{e2enet_forward.5} parent=79 // pred_check_branch
          %727 = sbr.rel (%p725) target = $region100
        $region99: #{e2enet_forward.5} parent=79 // pred_region
          %728 = dma.done %s722, 16
        $region100: #{e2enet_forward.5} parent=79 // pred_fallthru
          _
        %s729 = sand.u32 %s40, 1
        %s730 = scalar_lea.sflag [#allocation11], %s729
        %s731 = sand.u32 %s355, 1
        %s732 = scalar_lea.vmem [#allocation10], %s731
        // Predicated region
        $region101: #{e2enet_forward.5} parent=79 // pred_check
          %p733 = pneg %p368
        $region102: #{e2enet_forward.5} parent=79 // pred_check_branch
          %735 = sbr.rel (%p733) target = $region104
        $region103: #{e2enet_forward.5} parent=79 // pred_region
          %736 = dma.done %s730, 16
        $region104: #{e2enet_forward.5} parent=79 // pred_fallthru
          _
        %s737 = sand.u32 %s40, 1
        %s738 = scalar_lea.sflag [#allocation11], %s737
        %s739 = sand.u32 %s381, 1
        %s740 = smul.addr %s739, 128
        %s741 = scalar_lea.vmem [#allocation12], %s740
        // Predicated region
        $region105: #{e2enet_forward.5} parent=79 // pred_check
          %p742 = pneg %p394
        $region106: #{e2enet_forward.5} parent=79 // pred_check_branch
          %744 = sbr.rel (%p742) target = $region108
        $region107: #{e2enet_forward.5} parent=79 // pred_region
          %745 = dma.done %s738, 2048
        $region108: #{e2enet_forward.5} parent=79 // pred_fallthru
          _
        %p746 = pneg %p56
        %p747 = pneg %p53
        %p748 = scmp.lt.s32.totalorder %s40, 3
        %s749 = scalar_select %p748, %s40, 3
        %s750 = smul.addr %s749, 192
        %s751 = smul.addr %s750, 4
        %s752 = scalar_lea.vmem %s1, %s751
        %p753 = pneg %p82
        %p754 = pneg %p79
        %p755 = scmp.lt.s32.totalorder %s40, 3
        %s756 = scalar_select %p755, %s40, 3
        %s757 = smul.addr %s756, 16
        %s758 = smul.addr %s757, 4
        %s759 = scalar_lea.vmem %s2, %s758
        %p760 = pneg %p108
        %p761 = pneg %p105
        %p762 = scmp.lt.s32.totalorder %s40, 3
        %s763 = scalar_select %p762, %s40, 3
        %s764 = smul.addr %s763, 5
        %s765 = scalar_lea.vmem %s3, %s764
        %p766 = pneg %p134
        %p767 = pneg %p131
        %s768 = sand.u32 %s147, 1
        %s769 = scalar_lea.sflag [#allocation3], %s768
        %s770 = sand.u32 %s147, 1
        %s771 = smul.addr %s770, 5
        %s772 = scalar_lea.vmem [#allocation2], %s771
        %p773 = pneg %p160
        %p774 = pneg %p157
        %p775 = scmp.lt.s32.totalorder %s40, 3
        %s776 = scalar_select %p775, %s40, 3
        %s777 = smul.addr %s776, 16
        %s778 = smul.addr %s777, 4
        %s779 = scalar_lea.vmem %s5, %s778
        %p780 = pneg %p186
        %p781 = pneg %p183
        %p782 = scmp.lt.s32.totalorder %s40, 3
        %s783 = scalar_select %p782, %s40, 3
        %s784 = scalar_lea.vmem %s6, %s783
        %p785 = pneg %p212
        %p786 = pneg %p209
        %p787 = scmp.lt.s32.totalorder %s40, 3
        %s788 = scalar_select %p787, %s40, 3
        %s789 = scalar_lea.vmem %s7, %s788
        %p790 = pneg %p238
        %p791 = pneg %p235
        %s792 = sand.u32 %s40, 1
        %s793 = scalar_lea.sflag [#allocation5], %s792
        %s794 = sand.u32 %s251, 1
        %s795 = smul.addr %s794, 24
        %s796 = scalar_lea.vmem [#allocation4], %s795
        %p797 = pneg %p264
        %p798 = pneg %p261
        %s799 = sand.u32 %s40, 1
        %s800 = scalar_lea.sflag [#allocation5], %s799
        %s801 = sand.u32 %s277, 1
        %s802 = scalar_lea.vmem [#allocation6], %s801
        %p803 = pneg %p290
        %p804 = pneg %p287
        %s805 = sand.u32 %s40, 1
        %s806 = scalar_lea.sflag [#allocation8], %s805
        %s807 = sand.u32 %s303, 1
        %s808 = smul.addr %s807, 64
        %s809 = scalar_lea.vmem [#allocation7], %s808
        %p810 = pneg %p316
        %p811 = pneg %p313
        %s812 = sand.u32 %s40, 1
        %s813 = scalar_lea.sflag [#allocation8], %s812
        %s814 = sand.u32 %s329, 1
        %s815 = scalar_lea.vmem [#allocation9], %s814
        %p816 = pneg %p342
        %p817 = pneg %p339
        %s818 = sand.u32 %s40, 1
        %s819 = scalar_lea.sflag [#allocation11], %s818
        %s820 = sand.u32 %s355, 1
        %s821 = scalar_lea.vmem [#allocation10], %s820
        %p822 = pneg %p368
        %p823 = pneg %p365
        %s824 = sand.u32 %s40, 1
        %s825 = scalar_lea.sflag [#allocation11], %s824
        %s826 = sand.u32 %s381, 1
        %s827 = smul.addr %s826, 128
        %s828 = scalar_lea.vmem [#allocation12], %s827
        %p829 = pneg %p394
        %p830 = pneg %p391
        %p831 = scmp.lt.s32.totalorder %s40, 3
        %s832 = scalar_select %p831, %s40, 3
        %s833 = smul.addr %s832, 2
        %s834 = scalar_lea.vmem %s14, %s833
        %p835 = pneg %p420
        %p836 = pneg %p417
        %p837 = pneg %p446
        %p838 = pneg %p443
        %p839 = scmp.lt.s32.totalorder %s40, 3
        %s840 = scalar_select %p839, %s40, 3
        %s841 = smul.addr %s840, 2
        %s842 = smul.addr %s841, 8
        %s843 = scalar_lea.vmem %s15, %s842
        %p844 = pneg %p472
        %p845 = pneg %p469
        %p846 = scmp.lt.s32.totalorder %s40, 3
        %s847 = scalar_select %p846, %s40, 3
        %s848 = smul.addr %s847, 4
        %s849 = smul.addr %s848, 8
        %s850 = scalar_lea.vmem %s16, %s849
        %p851 = scmp.lt.s32.totalorder %s40, 3
        %s852 = scalar_select %p851, %s40, 3
        %s853 = smul.addr %s852, 192
        %s854 = smul.addr %s853, 4
        %s855 = scalar_lea.vmem %s1, %s854
        %p856 = scmp.lt.s32.totalorder %s40, 3
        %s857 = scalar_select %p856, %s40, 3
        %s858 = smul.addr %s857, 16
        %s859 = smul.addr %s858, 4
        %s860 = scalar_lea.vmem %s2, %s859
        %p861 = scmp.lt.s32.totalorder %s40, 3
        %s862 = scalar_select %p861, %s40, 3
        %s863 = smul.addr %s862, 5
        %s864 = scalar_lea.vmem %s3, %s863
        %p865 = scmp.lt.s32.totalorder %s40, 3
        %s866 = scalar_select %p865, %s40, 3
        %s867 = smul.addr %s866, 16
        %s868 = smul.addr %s867, 4
        %s869 = scalar_lea.vmem %s5, %s868
        %p870 = scmp.lt.s32.totalorder %s40, 3
        %s871 = scalar_select %p870, %s40, 3
        %s872 = scalar_lea.vmem %s6, %s871
        %p873 = scmp.lt.s32.totalorder %s40, 3
        %s874 = scalar_select %p873, %s40, 3
        %s875 = scalar_lea.vmem %s7, %s874
        %p876 = scmp.lt.s32.totalorder %s40, 3
        %s877 = scalar_select %p876, %s40, 3
        %s878 = smul.addr %s877, 2
        %s879 = scalar_lea.vmem %s14, %s878
        %p880 = scmp.lt.s32.totalorder %s40, 3
        %s881 = scalar_select %p880, %s40, 3
        %s882 = smul.addr %s881, 2
        %s883 = smul.addr %s882, 8
        %s884 = scalar_lea.vmem %s15, %s883
        %p885 = scmp.lt.s32.totalorder %s40, 3
        %s886 = scalar_select %p885, %s40, 3
        %s887 = smul.addr %s886, 4
        %s888 = smul.addr %s887, 8
        %s889 = scalar_lea.vmem %s16, %s888
        %v891 = vld [vmem:[%s0] sm:$0xff]
        %v892 = vld [vmem:[%s0 + $0x8] sm:$0xff]
        %v893 = vld [vmem:[%s0 + $0x10] sm:$0xff]
        %v894 = vld [vmem:[%s0 + $0x18] sm:$0xff]
        %v895 = vld [vmem:[%s855] sm:$0xf]
        %v896 = vld [vmem:[%s855 + $0x4] sm:$0xf]
        %v897 = vld [vmem:[%s855 + $0x8] sm:$0xf]
        %v898 = vld [vmem:[%s855 + $0xc] sm:$0xf]
        %v899 = vld [vmem:[%s855 + $0x10] sm:$0xf]
        %v900 = vld [vmem:[%s855 + $0x14] sm:$0xf]
        %v901 = vld [vmem:[%s855 + $0x18] sm:$0xf]
        %v902 = vld [vmem:[%s855 + $0x1c] sm:$0xf]
        %v903 = vld [vmem:[%s855 + $0x20] sm:$0xf]
        %v904 = vld [vmem:[%s855 + $0x24] sm:$0xf]
        %v905 = vld [vmem:[%s855 + $0x28] sm:$0xf]
        %v906 = vld [vmem:[%s855 + $0x2c] sm:$0xf]
        %v907 = vld [vmem:[%s855 + $0x30] sm:$0xf]
        %v908 = vld [vmem:[%s855 + $0x34] sm:$0xf]
        %v909 = vld [vmem:[%s855 + $0x38] sm:$0xf]
        %v910 = vld [vmem:[%s855 + $0x3c] sm:$0xf]
        %v911 = vld [vmem:[%s855 + $0x40] sm:$0xf]
        %v912 = vld [vmem:[%s855 + $0x44] sm:$0xf]
        %v913 = vld [vmem:[%s855 + $0x48] sm:$0xf]
        %v914 = vld [vmem:[%s855 + $0x4c] sm:$0xf]
        %v915 = vld [vmem:[%s855 + $0x50] sm:$0xf]
        %v916 = vld [vmem:[%s855 + $0x54] sm:$0xf]
        %v917 = vld [vmem:[%s855 + $0x58] sm:$0xf]
        %v918 = vld [vmem:[%s855 + $0x5c] sm:$0xf]
        %v919 = vld [vmem:[%s855 + $0x60] sm:$0xf]
        %v920 = vld [vmem:[%s855 + $0x64] sm:$0xf]
        %v921 = vld [vmem:[%s855 + $0x68] sm:$0xf]
        %v922 = vld [vmem:[%s855 + $0x6c] sm:$0xf]
        %v923 = vld [vmem:[%s855 + $0x70] sm:$0xf]
        %v924 = vld [vmem:[%s855 + $0x74] sm:$0xf]
        %v925 = vld [vmem:[%s855 + $0x78] sm:$0xf]
        %v926 = vld [vmem:[%s855 + $0x7c] sm:$0xf]
        %v927 = vld [vmem:[%s855 + $0x80] sm:$0xf]
        %v928 = vld [vmem:[%s855 + $0x84] sm:$0xf]
        %v929 = vld [vmem:[%s855 + $0x88] sm:$0xf]
        %v930 = vld [vmem:[%s855 + $0x8c] sm:$0xf]
        %v931 = vld [vmem:[%s855 + $0x90] sm:$0xf]
        %v932 = vld [vmem:[%s855 + $0x94] sm:$0xf]
        %v933 = vld [vmem:[%s855 + $0x98] sm:$0xf]
        %v934 = vld [vmem:[%s855 + $0x9c] sm:$0xf]
        %v935 = vld [vmem:[%s855 + $0xa0] sm:$0xf]
        %v936 = vld [vmem:[%s855 + $0xa4] sm:$0xf]
        %v937 = vld [vmem:[%s855 + $0xa8] sm:$0xf]
        %v938 = vld [vmem:[%s855 + $0xac] sm:$0xf]
        %v939 = vld [vmem:[%s855 + $0xb0] sm:$0xf]
        %v940 = vld [vmem:[%s855 + $0xb4] sm:$0xf]
        %v941 = vld [vmem:[%s855 + $0xb8] sm:$0xf]
        %v942 = vld [vmem:[%s855 + $0xbc] sm:$0xf]
        %v943 = vld [vmem:[%s864] sm:$0x1]
        %v944 = vld [vmem:[%s690] sm:$0x1]
        %v947 = vunpack.c.l.b16 %v891
        %v948 = vunpack.c.h.b16 %v891
        %v949 = vunpack.c.l.b16 %v893
        %v950 = vunpack.c.h.b16 %v893
        %v951 = vpack.c.b16 %v949, %v947
        %v952 = vpack.c.b16 %v950, %v948
        %v987 = vunpack.c.l.b16 %v911
        %v988 = vunpack.c.l.b16 %v912
        %v989 = vunpack.c.l.b16 %v913
        %v990 = vunpack.c.l.b16 %v914
        %v991 = vunpack.c.l.b16 %v915
        %v992 = vunpack.c.l.b16 %v916
        %v993 = vunpack.c.l.b16 %v917
        %v994 = vunpack.c.l.b16 %v918
        %v995 = vunpack.c.l.b16 %v919
        %v996 = vunpack.c.l.b16 %v920
        %v997 = vunpack.c.l.b16 %v921
        %v998 = vunpack.c.l.b16 %v922
        %v999 = vunpack.c.l.b16 %v923
        %v1000 = vunpack.c.l.b16 %v924
        %v1001 = vunpack.c.l.b16 %v925
        %v1002 = vunpack.c.l.b16 %v926
        %v1003 = vunpack.c.l.b16 %v927
        %v1004 = vunpack.c.l.b16 %v928
        %v1005 = vunpack.c.l.b16 %v929
        %v1006 = vunpack.c.l.b16 %v930
        %v1007 = vunpack.c.l.b16 %v931
        %v1008 = vunpack.c.l.b16 %v932
        %v1009 = vunpack.c.l.b16 %v933
        %v1010 = vunpack.c.l.b16 %v934
        %v1011 = vunpack.c.l.b16 %v935
        %v1012 = vunpack.c.l.b16 %v936
        %v1013 = vunpack.c.l.b16 %v937
        %v1014 = vunpack.c.l.b16 %v938
        %v1015 = vunpack.c.l.b16 %v939
        %v1016 = vunpack.c.l.b16 %v940
        %v1017 = vunpack.c.l.b16 %v941
        %v1018 = vunpack.c.l.b16 %v942
        %v1019 = vpack.c.b16 %v988, %v987
        %v1020 = vpack.c.b16 %v990, %v989
        %v1021 = vpack.c.b16 %v992, %v991
        %v1022 = vpack.c.b16 %v994, %v993
        %v1023 = vpack.c.b16 %v996, %v995
        %v1024 = vpack.c.b16 %v998, %v997
        %v1025 = vpack.c.b16 %v1000, %v999
        %v1026 = vpack.c.b16 %v1002, %v1001
        %v1027 = vpack.c.b16 %v1004, %v1003
        %v1028 = vpack.c.b16 %v1006, %v1005
        %v1029 = vpack.c.b16 %v1008, %v1007
        %v1030 = vpack.c.b16 %v1010, %v1009
        %v1031 = vpack.c.b16 %v1012, %v1011
        %v1032 = vpack.c.b16 %v1014, %v1013
        %v1033 = vpack.c.b16 %v1016, %v1015
        %v1034 = vpack.c.b16 %v1018, %v1017
        %1051 = vmatprep.subr.bf16.mxu0 0
        %1052 = vmatpush1.bf16.msra.mxu0 %v1019
        %1053 = vmatprep.subr.bf16.mxu0 0
        %1054 = vmatpush1.bf16.msra.mxu0 %v1020
        %1055 = vmatprep.subr.bf16.mxu0 0
        %1056 = vmatpush1.bf16.msra.mxu0 %v1021
        %1057 = vmatprep.subr.bf16.mxu0 0
        %1058 = vmatpush1.bf16.msra.mxu0 %v1022
        %1059 = vmatprep.subr.bf16.mxu0 0
        %1060 = vmatpush1.bf16.msra.mxu0 %v1023
        %1061 = vmatprep.subr.bf16.mxu0 0
        %1062 = vmatpush1.bf16.msra.mxu0 %v1024
        %1063 = vmatprep.subr.bf16.mxu0 0
        %1064 = vmatpush1.bf16.msra.mxu0 %v1025
        %1065 = vmatprep.subr.bf16.mxu0 0
        %1066 = vmatpush1.bf16.msra.mxu0 %v1026
        %1067 = vmatprep.subr.bf16.mxu0 0
        %1068 = vmatpush1.bf16.msra.mxu0 %v1027
        %1069 = vmatprep.subr.bf16.mxu0 0
        %1070 = vmatpush1.bf16.msra.mxu0 %v1028
        %1071 = vmatprep.subr.bf16.mxu0 0
        %1072 = vmatpush1.bf16.msra.mxu0 %v1029
        %1073 = vmatprep.subr.bf16.mxu0 0
        %1074 = vmatpush1.bf16.msra.mxu0 %v1030
        %1075 = vmatprep.subr.bf16.mxu0 0
        %1076 = vmatpush1.bf16.msra.mxu0 %v1031
        %1077 = vmatprep.subr.bf16.mxu0 0
        %1078 = vmatpush1.bf16.msra.mxu0 %v1032
        %1079 = vmatprep.subr.bf16.mxu0 0
        %1080 = vmatpush1.bf16.msra.mxu0 %v1033
        %1081 = vmatprep.subr.bf16.mxu0 0
        %1082 = vmatpush1.bf16.msra.mxu0 %v1034
        %1083 = vmatprep.mubr.bf16.mxu0 %v952
        %1084 = vmatmul.mubr.bf16.gmra.mrb[0].mxu0 %v951
        %v1085 = vpop.f32.mrb[0].mxu0
        %v1086 = vadd.f32 0.0, %v1085
        %v1087 = vpop.f32.mrb[0].mxu0
        %v1088 = vpop.f32.mrb[0].mxu0
        %v1089 = vadd.f32 0.0, %v1088
        %v1090 = vpop.f32.mrb[0].mxu0
        %1091 = vdwg.mxu0
        %v1093 = vlaneseq
        %v1094 = vshrl.u32 %v1093, 7
        %v1095 = vsub.s32 0, %v1094
        %v1096 = vrot.slane %v943, %v1095
        %v1098 = vmul.f32 %v1086, %v1096
        %v1099 = vmul.f32 %v1089, %v1096
        %v1101 = vlaneseq
        %v1102 = vshrl.u32 %v1101, 7
        %v1103 = vsub.s32 0, %v1102
        %v1104 = vrot.slane %v944, %v1103
        %v1106 = vadd.f32 %v1098, %v1104
        %v1107 = vadd.f32 %v1099, %v1104
        %v1108 = vmax.f32 %v1106, 0.0
        %v1109 = vmax.f32 %v1107, 0.0
        %v1112 = vunpack.c.l.b16 %v892
        %v1113 = vunpack.c.h.b16 %v892
        %v1114 = vunpack.c.l.b16 %v894
        %v1115 = vunpack.c.h.b16 %v894
        %v1116 = vpack.c.b16 %v1114, %v1112
        %v1117 = vpack.c.b16 %v1115, %v1113
        %v1136 = vunpack.c.l.b16 %v895
        %v1137 = vunpack.c.l.b16 %v896
        %v1138 = vunpack.c.l.b16 %v897
        %v1139 = vunpack.c.l.b16 %v898
        %v1140 = vunpack.c.l.b16 %v899
        %v1141 = vunpack.c.l.b16 %v900
        %v1142 = vunpack.c.l.b16 %v901
        %v1143 = vunpack.c.l.b16 %v902
        %v1144 = vunpack.c.l.b16 %v903
        %v1145 = vunpack.c.l.b16 %v904
        %v1146 = vunpack.c.l.b16 %v905
        %v1147 = vunpack.c.l.b16 %v906
        %v1148 = vunpack.c.l.b16 %v907
        %v1149 = vunpack.c.l.b16 %v908
        %v1150 = vunpack.c.l.b16 %v909
        %v1151 = vunpack.c.l.b16 %v910
        %v1152 = vpack.c.b16 %v1137, %v1136
        %v1153 = vpack.c.b16 %v1139, %v1138
        %v1154 = vpack.c.b16 %v1141, %v1140
        %v1155 = vpack.c.b16 %v1143, %v1142
        %v1156 = vpack.c.b16 %v1145, %v1144
        %v1157 = vpack.c.b16 %v1147, %v1146
        %v1158 = vpack.c.b16 %v1149, %v1148
        %v1159 = vpack.c.b16 %v1151, %v1150
        %1168 = vmatprep.subr.bf16.mxu0 0
        %1169 = vmatpush1.bf16.msra.mxu0 %v1152
        %1170 = vmatprep.subr.bf16.mxu0 0
        %1171 = vmatpush1.bf16.msra.mxu0 %v1153
        %1172 = vmatprep.subr.bf16.mxu0 0
        %1173 = vmatpush1.bf16.msra.mxu0 %v1154
        %1174 = vmatprep.subr.bf16.mxu0 0
        %1175 = vmatpush1.bf16.msra.mxu0 %v1155
        %1176 = vmatprep.subr.bf16.mxu0 0
        %1177 = vmatpush1.bf16.msra.mxu0 %v1156
        %1178 = vmatprep.subr.bf16.mxu0 0
        %1179 = vmatpush1.bf16.msra.mxu0 %v1157
        %1180 = vmatprep.subr.bf16.mxu0 0
        %1181 = vmatpush1.bf16.msra.mxu0 %v1158
        %1182 = vmatprep.subr.bf16.mxu0 0
        %1183 = vmatpush1.bf16.msra.mxu0 %v1159
        %1184 = vmatprep.subr.bf16.mxu0 0
        %1185 = vmatpush1.bf16.msra.mxu0 %v1019
        %1186 = vmatprep.subr.bf16.mxu0 0
        %1187 = vmatpush1.bf16.msra.mxu0 %v1020
        %1188 = vmatprep.subr.bf16.mxu0 0
        %1189 = vmatpush1.bf16.msra.mxu0 %v1021
        %1190 = vmatprep.subr.bf16.mxu0 0
        %1191 = vmatpush1.bf16.msra.mxu0 %v1022
        %1192 = vmatprep.subr.bf16.mxu0 0
        %1193 = vmatpush1.bf16.msra.mxu0 %v1023
        %1194 = vmatprep.subr.bf16.mxu0 0
        %1195 = vmatpush1.bf16.msra.mxu0 %v1024
        %1196 = vmatprep.subr.bf16.mxu0 0
        %1197 = vmatpush1.bf16.msra.mxu0 %v1025
        %1198 = vmatprep.subr.bf16.mxu0 0
        %1199 = vmatpush1.bf16.msra.mxu0 %v1026
        %1200 = vmatprep.mubr.bf16.mxu0 %v1116
        %1201 = vmatmul.mubr.bf16.gmra.mrb[0].mxu0 %v952
        %v1202 = vpop.f32.mrb[0].mxu0
        %v1203 = vadd.f32 0.0, %v1202
        %v1204 = vpop.f32.mrb[0].mxu0
        %v1205 = vpop.f32.mrb[0].mxu0
        %v1206 = vadd.f32 0.0, %v1205
        %v1207 = vpop.f32.mrb[0].mxu0
        %1208 = vdwg.mxu0
        %1209 = vmatprep.subr.bf16.mxu0 0
        %1210 = vmatpush1.bf16.msra.mxu0 %v1027
        %1211 = vmatprep.subr.bf16.mxu0 0
        %1212 = vmatpush1.bf16.msra.mxu0 %v1028
        %1213 = vmatprep.subr.bf16.mxu0 0
        %1214 = vmatpush1.bf16.msra.mxu0 %v1029
        %1215 = vmatprep.subr.bf16.mxu0 0
        %1216 = vmatpush1.bf16.msra.mxu0 %v1030
        %1217 = vmatprep.subr.bf16.mxu0 0
        %1218 = vmatpush1.bf16.msra.mxu0 %v1031
        %1219 = vmatprep.subr.bf16.mxu0 0
        %1220 = vmatpush1.bf16.msra.mxu0 %v1032
        %1221 = vmatprep.subr.bf16.mxu0 0
        %1222 = vmatpush1.bf16.msra.mxu0 %v1033
        %1223 = vmatprep.subr.bf16.mxu0 0
        %1224 = vmatpush1.bf16.msra.mxu0 %v1034
        %1225 = vmatprep.subr.bf16.mxu0 0
        %1226 = vmatpush1.bf16.msra.mxu0 0
        %1227 = vmatprep.subr.bf16.mxu0 0
        %1228 = vmatpush1.bf16.msra.mxu0 0
        %1229 = vmatprep.subr.bf16.mxu0 0
        %1230 = vmatpush1.bf16.msra.mxu0 0
        %1231 = vmatprep.subr.bf16.mxu0 0
        %1232 = vmatpush1.bf16.msra.mxu0 0
        %1233 = vmatprep.subr.bf16.mxu0 0
        %1234 = vmatpush1.bf16.msra.mxu0 0
        %1235 = vmatprep.subr.bf16.mxu0 0
        %1236 = vmatpush1.bf16.msra.mxu0 0
        %1237 = vmatprep.subr.bf16.mxu0 0
        %1238 = vmatpush1.bf16.msra.mxu0 0
        %1239 = vmatprep.subr.bf16.mxu0 0
        %1240 = vmatpush1.bf16.msra.mxu0 0
        %1241 = vmatprep.mubr.bf16.mxu0 0
        %1242 = vmatmul.mubr.bf16.gmra.mrb[0].mxu0 %v1117
        %v1243 = vpop.f32.mrb[0].mxu0
        %v1244 = vadd.f32 %v1203, %v1243
        %v1245 = vpop.f32.mrb[0].mxu0
        %v1246 = vpop.f32.mrb[0].mxu0
        %v1247 = vadd.f32 %v1206, %v1246
        %v1248 = vpop.f32.mrb[0].mxu0
        %1249 = vdwg.mxu0
        %v1250 = vmul.f32 %v1244, %v1096
        %v1251 = vmul.f32 %v1247, %v1096
        %v1252 = vadd.f32 %v1250, %v1104
        %v1253 = vadd.f32 %v1251, %v1104
        %v1254 = vmax.f32 %v1252, 0.0
        %v1255 = vmax.f32 %v1253, 0.0
        %v1256 = vpack.c.bf16 %v1109, %v1108
        %v1257 = vpack.c.bf16 %v1255, %v1254
        %s1258 = scalar_lea.vmem %s855, 192
        %v1259 = vld [vmem:[%s1258 + $0x40] sm:$0xf]
        %v1260 = vld [vmem:[%s1258 + $0x44] sm:$0xf]
        %v1261 = vld [vmem:[%s1258 + $0x48] sm:$0xf]
        %v1262 = vld [vmem:[%s1258 + $0x4c] sm:$0xf]
        %v1263 = vld [vmem:[%s1258 + $0x50] sm:$0xf]
        %v1264 = vld [vmem:[%s1258 + $0x54] sm:$0xf]
        %v1265 = vld [vmem:[%s1258 + $0x58] sm:$0xf]
        %v1266 = vld [vmem:[%s1258 + $0x5c] sm:$0xf]
        %v1267 = vld [vmem:[%s1258 + $0x60] sm:$0xf]
        %v1268 = vld [vmem:[%s1258 + $0x64] sm:$0xf]
        %v1269 = vld [vmem:[%s1258 + $0x68] sm:$0xf]
        %v1270 = vld [vmem:[%s1258 + $0x6c] sm:$0xf]
        %v1271 = vld [vmem:[%s1258 + $0x70] sm:$0xf]
        %v1272 = vld [vmem:[%s1258 + $0x74] sm:$0xf]
        %v1273 = vld [vmem:[%s1258 + $0x78] sm:$0xf]
        %v1274 = vld [vmem:[%s1258 + $0x7c] sm:$0xf]
        %v1275 = vld [vmem:[%s1258 + $0x80] sm:$0xf]
        %v1276 = vld [vmem:[%s1258 + $0x84] sm:$0xf]
        %v1277 = vld [vmem:[%s1258 + $0x88] sm:$0xf]
        %v1278 = vld [vmem:[%s1258 + $0x8c] sm:$0xf]
        %v1279 = vld [vmem:[%s1258 + $0x90] sm:$0xf]
        %v1280 = vld [vmem:[%s1258 + $0x94] sm:$0xf]
        %v1281 = vld [vmem:[%s1258 + $0x98] sm:$0xf]
        %v1282 = vld [vmem:[%s1258 + $0x9c] sm:$0xf]
        %v1283 = vld [vmem:[%s1258 + $0xa0] sm:$0xf]
        %v1284 = vld [vmem:[%s1258 + $0xa4] sm:$0xf]
        %v1285 = vld [vmem:[%s1258 + $0xa8] sm:$0xf]
        %v1286 = vld [vmem:[%s1258 + $0xac] sm:$0xf]
        %v1287 = vld [vmem:[%s1258 + $0xb0] sm:$0xf]
        %v1288 = vld [vmem:[%s1258 + $0xb4] sm:$0xf]
        %v1289 = vld [vmem:[%s1258 + $0xb8] sm:$0xf]
        %v1290 = vld [vmem:[%s1258 + $0xbc] sm:$0xf]
        %s1291 = scalar_lea.vmem %s864, 1
        %v1292 = vld [vmem:[%s1291] sm:$0x1]
        %s1293 = scalar_lea.vmem %s690, 1 [#allocation2]
        %v1294 = vld [vmem:[%s1293] sm:$0x1]
        %v1327 = vunpack.c.l.b16 %v1259
        %v1328 = vunpack.c.l.b16 %v1260
        %v1329 = vunpack.c.l.b16 %v1261
        %v1330 = vunpack.c.l.b16 %v1262
        %v1331 = vunpack.c.l.b16 %v1263
        %v1332 = vunpack.c.l.b16 %v1264
        %v1333 = vunpack.c.l.b16 %v1265
        %v1334 = vunpack.c.l.b16 %v1266
        %v1335 = vunpack.c.l.b16 %v1267
        %v1336 = vunpack.c.l.b16 %v1268
        %v1337 = vunpack.c.l.b16 %v1269
        %v1338 = vunpack.c.l.b16 %v1270
        %v1339 = vunpack.c.l.b16 %v1271
        %v1340 = vunpack.c.l.b16 %v1272
        %v1341 = vunpack.c.l.b16 %v1273
        %v1342 = vunpack.c.l.b16 %v1274
        %v1343 = vunpack.c.l.b16 %v1275
        %v1344 = vunpack.c.l.b16 %v1276
        %v1345 = vunpack.c.l.b16 %v1277
        %v1346 = vunpack.c.l.b16 %v1278
        %v1347 = vunpack.c.l.b16 %v1279
        %v1348 = vunpack.c.l.b16 %v1280
        %v1349 = vunpack.c.l.b16 %v1281
        %v1350 = vunpack.c.l.b16 %v1282
        %v1351 = vunpack.c.l.b16 %v1283
        %v1352 = vunpack.c.l.b16 %v1284
        %v1353 = vunpack.c.l.b16 %v1285
        %v1354 = vunpack.c.l.b16 %v1286
        %v1355 = vunpack.c.l.b16 %v1287
        %v1356 = vunpack.c.l.b16 %v1288
        %v1357 = vunpack.c.l.b16 %v1289
        %v1358 = vunpack.c.l.b16 %v1290
        %v1359 = vpack.c.b16 %v1328, %v1327
        %v1360 = vpack.c.b16 %v1330, %v1329
        %v1361 = vpack.c.b16 %v1332, %v1331
        %v1362 = vpack.c.b16 %v1334, %v1333
        %v1363 = vpack.c.b16 %v1336, %v1335
        %v1364 = vpack.c.b16 %v1338, %v1337
        %v1365 = vpack.c.b16 %v1340, %v1339
        %v1366 = vpack.c.b16 %v1342, %v1341
        %v1367 = vpack.c.b16 %v1344, %v1343
        %v1368 = vpack.c.b16 %v1346, %v1345
        %v1369 = vpack.c.b16 %v1348, %v1347
        %v1370 = vpack.c.b16 %v1350, %v1349
        %v1371 = vpack.c.b16 %v1352, %v1351
        %v1372 = vpack.c.b16 %v1354, %v1353
        %v1373 = vpack.c.b16 %v1356, %v1355
        %v1374 = vpack.c.b16 %v1358, %v1357
        %1391 = vmatprep.subr.bf16.mxu0 0
        %1392 = vmatpush1.bf16.msra.mxu0 %v1359
        %1393 = vmatprep.subr.bf16.mxu0 0
        %1394 = vmatpush1.bf16.msra.mxu0 %v1360
        %1395 = vmatprep.subr.bf16.mxu0 0
        %1396 = vmatpush1.bf16.msra.mxu0 %v1361
        %1397 = vmatprep.subr.bf16.mxu0 0
        %1398 = vmatpush1.bf16.msra.mxu0 %v1362
        %1399 = vmatprep.subr.bf16.mxu0 0
        %1400 = vmatpush1.bf16.msra.mxu0 %v1363
        %1401 = vmatprep.subr.bf16.mxu0 0
        %1402 = vmatpush1.bf16.msra.mxu0 %v1364
        %1403 = vmatprep.subr.bf16.mxu0 0
        %1404 = vmatpush1.bf16.msra.mxu0 %v1365
        %1405 = vmatprep.subr.bf16.mxu0 0
        %1406 = vmatpush1.bf16.msra.mxu0 %v1366
        %1407 = vmatprep.subr.bf16.mxu0 0
        %1408 = vmatpush1.bf16.msra.mxu0 %v1367
        %1409 = vmatprep.subr.bf16.mxu0 0
        %1410 = vmatpush1.bf16.msra.mxu0 %v1368
        %1411 = vmatprep.subr.bf16.mxu0 0
        %1412 = vmatpush1.bf16.msra.mxu0 %v1369
        %1413 = vmatprep.subr.bf16.mxu0 0
        %1414 = vmatpush1.bf16.msra.mxu0 %v1370
        %1415 = vmatprep.subr.bf16.mxu0 0
        %1416 = vmatpush1.bf16.msra.mxu0 %v1371
        %1417 = vmatprep.subr.bf16.mxu0 0
        %1418 = vmatpush1.bf16.msra.mxu0 %v1372
        %1419 = vmatprep.subr.bf16.mxu0 0
        %1420 = vmatpush1.bf16.msra.mxu0 %v1373
        %1421 = vmatprep.subr.bf16.mxu0 0
        %1422 = vmatpush1.bf16.msra.mxu0 %v1374
        %1423 = vmatprep.mubr.bf16.mxu0 %v1257
        %1424 = vmatmul.mubr.bf16.gmra.mrb[0].mxu0 %v1256
        %v1425 = vpop.f32.mrb[0].mxu0
        %v1426 = vadd.f32 0.0, %v1425
        %v1427 = vpop.f32.mrb[0].mxu0
        %v1428 = vpop.f32.mrb[0].mxu0
        %v1429 = vadd.f32 0.0, %v1428
        %v1430 = vpop.f32.mrb[0].mxu0
        %1431 = vdwg.mxu0
        %v1433 = vlaneseq
        %v1434 = vshrl.u32 %v1433, 7
        %v1435 = vsub.s32 0, %v1434
        %v1436 = vrot.slane %v1292, %v1435
        %v1438 = vmul.f32 %v1426, %v1436
        %v1439 = vmul.f32 %v1429, %v1436
        %v1441 = vlaneseq
        %v1442 = vshrl.u32 %v1441, 7
        %v1443 = vsub.s32 0, %v1442
        %v1444 = vrot.slane %v1294, %v1443
        %v1446 = vadd.f32 %v1438, %v1444
        %v1447 = vadd.f32 %v1439, %v1444
        %v1448 = vmax.f32 %v1446, 0.0
        %v1449 = vmax.f32 %v1447, 0.0
        %v1450 = vpack.c.bf16 %v1449, %v1448
        %s1451 = scalar_lea.vmem %s855, 384
        %v1452 = vld [vmem:[%s1451 + $0x40] sm:$0xf]
        %v1453 = vld [vmem:[%s1451 + $0x44] sm:$0xf]
        %v1454 = vld [vmem:[%s1451 + $0x48] sm:$0xf]
        %v1455 = vld [vmem:[%s1451 + $0x4c] sm:$0xf]
        %v1456 = vld [vmem:[%s1451 + $0x50] sm:$0xf]
        %v1457 = vld [vmem:[%s1451 + $0x54] sm:$0xf]
        %v1458 = vld [vmem:[%s1451 + $0x58] sm:$0xf]
        %v1459 = vld [vmem:[%s1451 + $0x5c] sm:$0xf]
        %v1460 = vld [vmem:[%s1451 + $0x60] sm:$0xf]
        %v1461 = vld [vmem:[%s1451 + $0x64] sm:$0xf]
        %v1462 = vld [vmem:[%s1451 + $0x68] sm:$0xf]
        %v1463 = vld [vmem:[%s1451 + $0x6c] sm:$0xf]
        %v1464 = vld [vmem:[%s1451 + $0x70] sm:$0xf]
        %v1465 = vld [vmem:[%s1451 + $0x74] sm:$0xf]
        %v1466 = vld [vmem:[%s1451 + $0x78] sm:$0xf]
        %v1467 = vld [vmem:[%s1451 + $0x7c] sm:$0xf]
        %s1468 = scalar_lea.vmem %s864, 2
        %v1469 = vld [vmem:[%s1468] sm:$0x1]
        %s1470 = scalar_lea.vmem %s690, 2 [#allocation2]
        %v1471 = vld [vmem:[%s1470] sm:$0x1]
        %v1488 = vunpack.c.l.b16 %v1452
        %v1489 = vunpack.c.l.b16 %v1453
        %v1490 = vunpack.c.l.b16 %v1454
        %v1491 = vunpack.c.l.b16 %v1455
        %v1492 = vunpack.c.l.b16 %v1456
        %v1493 = vunpack.c.l.b16 %v1457
        %v1494 = vunpack.c.l.b16 %v1458
        %v1495 = vunpack.c.l.b16 %v1459
        %v1496 = vunpack.c.l.b16 %v1460
        %v1497 = vunpack.c.l.b16 %v1461
        %v1498 = vunpack.c.l.b16 %v1462
        %v1499 = vunpack.c.l.b16 %v1463
        %v1500 = vunpack.c.l.b16 %v1464
        %v1501 = vunpack.c.l.b16 %v1465
        %v1502 = vunpack.c.l.b16 %v1466
        %v1503 = vunpack.c.l.b16 %v1467
        %v1504 = vpack.c.b16 %v1489, %v1488
        %v1505 = vpack.c.b16 %v1491, %v1490
        %v1506 = vpack.c.b16 %v1493, %v1492
        %v1507 = vpack.c.b16 %v1495, %v1494
        %v1508 = vpack.c.b16 %v1497, %v1496
        %v1509 = vpack.c.b16 %v1499, %v1498
        %v1510 = vpack.c.b16 %v1501, %v1500
        %v1511 = vpack.c.b16 %v1503, %v1502
        %1520 = vmatprep.subr.bf16.mxu0 0
        %1521 = vmatpush1.bf16.msra.mxu0 %v1504
        %1522 = vmatprep.subr.bf16.mxu0 0
        %1523 = vmatpush1.bf16.msra.mxu0 %v1505
        %1524 = vmatprep.subr.bf16.mxu0 0
        %1525 = vmatpush1.bf16.msra.mxu0 %v1506
        %1526 = vmatprep.subr.bf16.mxu0 0
        %1527 = vmatpush1.bf16.msra.mxu0 %v1507
        %1528 = vmatprep.subr.bf16.mxu0 0
        %1529 = vmatpush1.bf16.msra.mxu0 %v1508
        %1530 = vmatprep.subr.bf16.mxu0 0
        %1531 = vmatpush1.bf16.msra.mxu0 %v1509
        %1532 = vmatprep.subr.bf16.mxu0 0
        %1533 = vmatpush1.bf16.msra.mxu0 %v1510
        %1534 = vmatprep.subr.bf16.mxu0 0
        %1535 = vmatpush1.bf16.msra.mxu0 %v1511
        %1536 = vmatprep.subr.bf16.mxu0 0
        %1537 = vmatpush1.bf16.msra.mxu0 0
        %1538 = vmatprep.subr.bf16.mxu0 0
        %1539 = vmatpush1.bf16.msra.mxu0 0
        %1540 = vmatprep.subr.bf16.mxu0 0
        %1541 = vmatpush1.bf16.msra.mxu0 0
        %1542 = vmatprep.subr.bf16.mxu0 0
        %1543 = vmatpush1.bf16.msra.mxu0 0
        %1544 = vmatprep.subr.bf16.mxu0 0
        %1545 = vmatpush1.bf16.msra.mxu0 0
        %1546 = vmatprep.subr.bf16.mxu0 0
        %1547 = vmatpush1.bf16.msra.mxu0 0
        %1548 = vmatprep.subr.bf16.mxu0 0
        %1549 = vmatpush1.bf16.msra.mxu0 0
        %1550 = vmatprep.subr.bf16.mxu0 0
        %1551 = vmatpush1.bf16.msra.mxu0 0
        %1552 = vmatprep.mubr.bf16.mxu0 0
        %1553 = vmatmul.mubr.bf16.gmra.mrb[0].mxu0 %v1450
        %v1554 = vpop.f32.mrb[0].mxu0
        %v1555 = vadd.f32 0.0, %v1554
        %v1556 = vpop.f32.mrb[0].mxu0
        %v1557 = vpop.f32.mrb[0].mxu0
        %v1558 = vadd.f32 0.0, %v1557
        %v1559 = vpop.f32.mrb[0].mxu0
        %1560 = vdwg.mxu0
        %v1562 = vlaneseq
        %v1563 = vshrl.u32 %v1562, 7
        %v1564 = vsub.s32 0, %v1563
        %v1565 = vrot.slane %v1469, %v1564
        %v1567 = vmul.f32 %v1555, %v1565
        %v1568 = vmul.f32 %v1558, %v1565
        %v1570 = vlaneseq
        %v1571 = vshrl.u32 %v1570, 7
        %v1572 = vsub.s32 0, %v1571
        %v1573 = vrot.slane %v1471, %v1572
        %v1575 = vadd.f32 %v1567, %v1573
        %v1576 = vadd.f32 %v1568, %v1573
        %v1577 = vmax.f32 %v1575, 0.0
        %v1578 = vmax.f32 %v1576, 0.0
        %v1579 = vpack.c.bf16 %v1578, %v1577
        %s1580 = scalar_lea.vmem %s855, 576
        %v1581 = vld [vmem:[%s1580 + $0x40] sm:$0xf]
        %v1582 = vld [vmem:[%s1580 + $0x44] sm:$0xf]
        %v1583 = vld [vmem:[%s1580 + $0x48] sm:$0xf]
        %v1584 = vld [vmem:[%s1580 + $0x4c] sm:$0xf]
        %v1585 = vld [vmem:[%s1580 + $0x50] sm:$0xf]
        %v1586 = vld [vmem:[%s1580 + $0x54] sm:$0xf]
        %v1587 = vld [vmem:[%s1580 + $0x58] sm:$0xf]
        %v1588 = vld [vmem:[%s1580 + $0x5c] sm:$0xf]
        %v1589 = vld [vmem:[%s1580 + $0x60] sm:$0xf]
        %v1590 = vld [vmem:[%s1580 + $0x64] sm:$0xf]
        %v1591 = vld [vmem:[%s1580 + $0x68] sm:$0xf]
        %v1592 = vld [vmem:[%s1580 + $0x6c] sm:$0xf]
        %v1593 = vld [vmem:[%s1580 + $0x70] sm:$0xf]
        %v1594 = vld [vmem:[%s1580 + $0x74] sm:$0xf]
        %v1595 = vld [vmem:[%s1580 + $0x78] sm:$0xf]
        %v1596 = vld [vmem:[%s1580 + $0x7c] sm:$0xf]
        %s1597 = scalar_lea.vmem %s864, 3
        %v1598 = vld [vmem:[%s1597] sm:$0x1]
        %s1599 = scalar_lea.vmem %s690, 3 [#allocation2]
        %v1600 = vld [vmem:[%s1599] sm:$0x1]
        %v1617 = vunpack.c.l.b16 %v1581
        %v1618 = vunpack.c.l.b16 %v1582
        %v1619 = vunpack.c.l.b16 %v1583
        %v1620 = vunpack.c.l.b16 %v1584
        %v1621 = vunpack.c.l.b16 %v1585
        %v1622 = vunpack.c.l.b16 %v1586
        %v1623 = vunpack.c.l.b16 %v1587
        %v1624 = vunpack.c.l.b16 %v1588
        %v1625 = vunpack.c.l.b16 %v1589
        %v1626 = vunpack.c.l.b16 %v1590
        %v1627 = vunpack.c.l.b16 %v1591
        %v1628 = vunpack.c.l.b16 %v1592
        %v1629 = vunpack.c.l.b16 %v1593
        %v1630 = vunpack.c.l.b16 %v1594
        %v1631 = vunpack.c.l.b16 %v1595
        %v1632 = vunpack.c.l.b16 %v1596
        %v1633 = vpack.c.b16 %v1618, %v1617
        %v1634 = vpack.c.b16 %v1620, %v1619
        %v1635 = vpack.c.b16 %v1622, %v1621
        %v1636 = vpack.c.b16 %v1624, %v1623
        %v1637 = vpack.c.b16 %v1626, %v1625
        %v1638 = vpack.c.b16 %v1628, %v1627
        %v1639 = vpack.c.b16 %v1630, %v1629
        %v1640 = vpack.c.b16 %v1632, %v1631
        %1649 = vmatprep.subr.bf16.mxu0 0
        %1650 = vmatpush1.bf16.msra.mxu0 %v1633
        %1651 = vmatprep.subr.bf16.mxu0 0
        %1652 = vmatpush1.bf16.msra.mxu0 %v1634
        %1653 = vmatprep.subr.bf16.mxu0 0
        %1654 = vmatpush1.bf16.msra.mxu0 %v1635
        %1655 = vmatprep.subr.bf16.mxu0 0
        %1656 = vmatpush1.bf16.msra.mxu0 %v1636
        %1657 = vmatprep.subr.bf16.mxu0 0
        %1658 = vmatpush1.bf16.msra.mxu0 %v1637
        %1659 = vmatprep.subr.bf16.mxu0 0
        %1660 = vmatpush1.bf16.msra.mxu0 %v1638
        %1661 = vmatprep.subr.bf16.mxu0 0
        %1662 = vmatpush1.bf16.msra.mxu0 %v1639
        %1663 = vmatprep.subr.bf16.mxu0 0
        %1664 = vmatpush1.bf16.msra.mxu0 %v1640
        %1665 = vmatprep.subr.bf16.mxu0 0
        %1666 = vmatpush1.bf16.msra.mxu0 0
        %1667 = vmatprep.subr.bf16.mxu0 0
        %1668 = vmatpush1.bf16.msra.mxu0 0
        %1669 = vmatprep.subr.bf16.mxu0 0
        %1670 = vmatpush1.bf16.msra.mxu0 0
        %1671 = vmatprep.subr.bf16.mxu0 0
        %1672 = vmatpush1.bf16.msra.mxu0 0
        %1673 = vmatprep.subr.bf16.mxu0 0
        %1674 = vmatpush1.bf16.msra.mxu0 0
        %1675 = vmatprep.subr.bf16.mxu0 0
        %1676 = vmatpush1.bf16.msra.mxu0 0
        %1677 = vmatprep.subr.bf16.mxu0 0
        %1678 = vmatpush1.bf16.msra.mxu0 0
        %1679 = vmatprep.subr.bf16.mxu0 0
        %1680 = vmatpush1.bf16.msra.mxu0 0
        %1681 = vmatprep.mubr.bf16.mxu0 0
        %1682 = vmatmul.mubr.bf16.gmra.mrb[0].mxu0 %v1579
        %v1683 = vpop.f32.mrb[0].mxu0
        %v1684 = vadd.f32 0.0, %v1683
        %v1685 = vpop.f32.mrb[0].mxu0
        %v1686 = vpop.f32.mrb[0].mxu0
        %v1687 = vadd.f32 0.0, %v1686
        %v1688 = vpop.f32.mrb[0].mxu0
        %1689 = vdwg.mxu0
        %v1691 = vlaneseq
        %v1692 = vshrl.u32 %v1691, 7
        %v1693 = vsub.s32 0, %v1692
        %v1694 = vrot.slane %v1598, %v1693
        %v1696 = vmul.f32 %v1684, %v1694
        %v1697 = vmul.f32 %v1687, %v1694
        %v1699 = vlaneseq
        %v1700 = vshrl.u32 %v1699, 7
        %v1701 = vsub.s32 0, %v1700
        %v1702 = vrot.slane %v1600, %v1701
        %v1704 = vadd.f32 %v1696, %v1702
        %v1705 = vadd.f32 %v1697, %v1702
        %v1706 = vmax.f32 %v1704, 0.0
        %v1707 = vmax.f32 %v1705, 0.0
        %v1708 = vpack.c.bf16 %v1707, %v1706
        %v1709 = vld [vmem:[%s860] sm:$0xf]
        %v1710 = vld [vmem:[%s860 + $0x4] sm:$0xf]
        %v1711 = vld [vmem:[%s860 + $0x8] sm:$0xf]
        %v1712 = vld [vmem:[%s860 + $0xc] sm:$0xf]
        %v1713 = vld [vmem:[%s860 + $0x10] sm:$0xf]
        %v1714 = vld [vmem:[%s860 + $0x14] sm:$0xf]
        %v1715 = vld [vmem:[%s860 + $0x18] sm:$0xf]
        %v1716 = vld [vmem:[%s860 + $0x1c] sm:$0xf]
        %v1717 = vld [vmem:[%s860 + $0x20] sm:$0xf]
        %v1718 = vld [vmem:[%s860 + $0x24] sm:$0xf]
        %v1719 = vld [vmem:[%s860 + $0x28] sm:$0xf]
        %v1720 = vld [vmem:[%s860 + $0x2c] sm:$0xf]
        %v1721 = vld [vmem:[%s860 + $0x30] sm:$0xf]
        %v1722 = vld [vmem:[%s860 + $0x34] sm:$0xf]
        %v1723 = vld [vmem:[%s860 + $0x38] sm:$0xf]
        %v1724 = vld [vmem:[%s860 + $0x3c] sm:$0xf]
        %s1725 = scalar_lea.vmem %s864, 4
        %v1726 = vld [vmem:[%s1725] sm:$0x1]
        %s1727 = scalar_lea.vmem %s690, 4 [#allocation2]
        %v1728 = vld [vmem:[%s1727] sm:$0x1]
        %v1745 = vunpack.c.l.b16 %v1709
        %v1746 = vunpack.c.l.b16 %v1710
        %v1747 = vunpack.c.l.b16 %v1711
        %v1748 = vunpack.c.l.b16 %v1712
        %v1749 = vunpack.c.l.b16 %v1713
        %v1750 = vunpack.c.l.b16 %v1714
        %v1751 = vunpack.c.l.b16 %v1715
        %v1752 = vunpack.c.l.b16 %v1716
        %v1753 = vunpack.c.l.b16 %v1717
        %v1754 = vunpack.c.l.b16 %v1718
        %v1755 = vunpack.c.l.b16 %v1719
        %v1756 = vunpack.c.l.b16 %v1720
        %v1757 = vunpack.c.l.b16 %v1721
        %v1758 = vunpack.c.l.b16 %v1722
        %v1759 = vunpack.c.l.b16 %v1723
        %v1760 = vunpack.c.l.b16 %v1724
        %v1761 = vpack.c.b16 %v1746, %v1745
        %v1762 = vpack.c.b16 %v1748, %v1747
        %v1763 = vpack.c.b16 %v1750, %v1749
        %v1764 = vpack.c.b16 %v1752, %v1751
        %v1765 = vpack.c.b16 %v1754, %v1753
        %v1766 = vpack.c.b16 %v1756, %v1755
        %v1767 = vpack.c.b16 %v1758, %v1757
        %v1768 = vpack.c.b16 %v1760, %v1759
        %1777 = vmatprep.subr.bf16.mxu0 0
        %1778 = vmatpush1.bf16.msra.mxu0 %v1761
        %1779 = vmatprep.subr.bf16.mxu0 0
        %1780 = vmatpush1.bf16.msra.mxu0 %v1762
        %1781 = vmatprep.subr.bf16.mxu0 0
        %1782 = vmatpush1.bf16.msra.mxu0 %v1763
        %1783 = vmatprep.subr.bf16.mxu0 0
        %1784 = vmatpush1.bf16.msra.mxu0 %v1764
        %1785 = vmatprep.subr.bf16.mxu0 0
        %1786 = vmatpush1.bf16.msra.mxu0 %v1765
        %1787 = vmatprep.subr.bf16.mxu0 0
        %1788 = vmatpush1.bf16.msra.mxu0 %v1766
        %1789 = vmatprep.subr.bf16.mxu0 0
        %1790 = vmatpush1.bf16.msra.mxu0 %v1767
        %1791 = vmatprep.subr.bf16.mxu0 0
        %1792 = vmatpush1.bf16.msra.mxu0 %v1768
        %1793 = vmatprep.subr.bf16.mxu0 0
        %1794 = vmatpush1.bf16.msra.mxu0 0
        %1795 = vmatprep.subr.bf16.mxu0 0
        %1796 = vmatpush1.bf16.msra.mxu0 0
        %1797 = vmatprep.subr.bf16.mxu0 0
        %1798 = vmatpush1.bf16.msra.mxu0 0
        %1799 = vmatprep.subr.bf16.mxu0 0
        %1800 = vmatpush1.bf16.msra.mxu0 0
        %1801 = vmatprep.subr.bf16.mxu0 0
        %1802 = vmatpush1.bf16.msra.mxu0 0
        %1803 = vmatprep.subr.bf16.mxu0 0
        %1804 = vmatpush1.bf16.msra.mxu0 0
        %1805 = vmatprep.subr.bf16.mxu0 0
        %1806 = vmatpush1.bf16.msra.mxu0 0
        %1807 = vmatprep.subr.bf16.mxu0 0
        %1808 = vmatpush1.bf16.msra.mxu0 0
        %1809 = vmatprep.mubr.bf16.mxu0 0
        %1810 = vmatmul.mubr.bf16.gmra.mrb[0].mxu0 %v1708
        %v1811 = vpop.f32.mrb[0].mxu0
        %v1812 = vadd.f32 0.0, %v1811
        %v1813 = vpop.f32.mrb[0].mxu0
        %v1814 = vpop.f32.mrb[0].mxu0
        %v1815 = vadd.f32 0.0, %v1814
        %v1816 = vpop.f32.mrb[0].mxu0
        %1817 = vdwg.mxu0
        %v1819 = vlaneseq
        %v1820 = vshrl.u32 %v1819, 7
        %v1821 = vsub.s32 0, %v1820
        %v1822 = vrot.slane %v1726, %v1821
        %v1824 = vmul.f32 %v1812, %v1822
        %v1825 = vmul.f32 %v1815, %v1822
        %v1827 = vlaneseq
        %v1828 = vshrl.u32 %v1827, 7
        %v1829 = vsub.s32 0, %v1828
        %v1830 = vrot.slane %v1728, %v1829
        %v1832 = vadd.f32 %v1824, %v1830
        %v1833 = vadd.f32 %v1825, %v1830
        %v1834 = vmax.f32 %v1832, 0.0
        %v1835 = vmax.f32 %v1833, 0.0
        %v1836 = vpack.c.bf16 %v1835, %v1834
        %v1837 = vld [vmem:[%s869] sm:$0xf]
        %v1838 = vld [vmem:[%s869 + $0x4] sm:$0xf]
        %v1839 = vld [vmem:[%s869 + $0x8] sm:$0xf]
        %v1840 = vld [vmem:[%s869 + $0xc] sm:$0xf]
        %v1841 = vld [vmem:[%s869 + $0x10] sm:$0xf]
        %v1842 = vld [vmem:[%s869 + $0x14] sm:$0xf]
        %v1843 = vld [vmem:[%s869 + $0x18] sm:$0xf]
        %v1844 = vld [vmem:[%s869 + $0x1c] sm:$0xf]
        %v1845 = vld [vmem:[%s869 + $0x20] sm:$0xf]
        %v1846 = vld [vmem:[%s869 + $0x24] sm:$0xf]
        %v1847 = vld [vmem:[%s869 + $0x28] sm:$0xf]
        %v1848 = vld [vmem:[%s869 + $0x2c] sm:$0xf]
        %v1849 = vld [vmem:[%s869 + $0x30] sm:$0xf]
        %v1850 = vld [vmem:[%s869 + $0x34] sm:$0xf]
        %v1851 = vld [vmem:[%s869 + $0x38] sm:$0xf]
        %v1852 = vld [vmem:[%s869 + $0x3c] sm:$0xf]
        %v1869 = vunpack.c.l.b16 %v1837
        %v1870 = vunpack.c.l.b16 %v1838
        %v1871 = vunpack.c.l.b16 %v1839
        %v1872 = vunpack.c.l.b16 %v1840
        %v1873 = vunpack.c.l.b16 %v1841
        %v1874 = vunpack.c.l.b16 %v1842
        %v1875 = vunpack.c.l.b16 %v1843
        %v1876 = vunpack.c.l.b16 %v1844
        %v1877 = vunpack.c.l.b16 %v1845
        %v1878 = vunpack.c.l.b16 %v1846
        %v1879 = vunpack.c.l.b16 %v1847
        %v1880 = vunpack.c.l.b16 %v1848
        %v1881 = vunpack.c.l.b16 %v1849
        %v1882 = vunpack.c.l.b16 %v1850
        %v1883 = vunpack.c.l.b16 %v1851
        %v1884 = vunpack.c.l.b16 %v1852
        %v1885 = vpack.c.b16 %v1870, %v1869
        %v1886 = vpack.c.b16 %v1872, %v1871
        %v1887 = vpack.c.b16 %v1874, %v1873
        %v1888 = vpack.c.b16 %v1876, %v1875
        %v1889 = vpack.c.b16 %v1878, %v1877
        %v1890 = vpack.c.b16 %v1880, %v1879
        %v1891 = vpack.c.b16 %v1882, %v1881
        %v1892 = vpack.c.b16 %v1884, %v1883
        %1901 = vmatprep.subr.bf16.mxu0 0
        %1902 = vmatpush1.bf16.msra.mxu0 %v1885
        %1903 = vmatprep.subr.bf16.mxu0 0
        %1904 = vmatpush1.bf16.msra.mxu0 %v1886
        %1905 = vmatprep.subr.bf16.mxu0 0
        %1906 = vmatpush1.bf16.msra.mxu0 %v1887
        %1907 = vmatprep.subr.bf16.mxu0 0
        %1908 = vmatpush1.bf16.msra.mxu0 %v1888
        %1909 = vmatprep.subr.bf16.mxu0 0
        %1910 = vmatpush1.bf16.msra.mxu0 %v1889
        %1911 = vmatprep.subr.bf16.mxu0 0
        %1912 = vmatpush1.bf16.msra.mxu0 %v1890
        %1913 = vmatprep.subr.bf16.mxu0 0
        %1914 = vmatpush1.bf16.msra.mxu0 %v1891
        %1915 = vmatprep.subr.bf16.mxu0 0
        %1916 = vmatpush1.bf16.msra.mxu0 %v1892
        %1917 = vmatprep.subr.bf16.mxu0 0
        %1918 = vmatpush1.bf16.msra.mxu0 0
        %1919 = vmatprep.subr.bf16.mxu0 0
        %1920 = vmatpush1.bf16.msra.mxu0 0
        %1921 = vmatprep.subr.bf16.mxu0 0
        %1922 = vmatpush1.bf16.msra.mxu0 0
        %1923 = vmatprep.subr.bf16.mxu0 0
        %1924 = vmatpush1.bf16.msra.mxu0 0
        %1925 = vmatprep.subr.bf16.mxu0 0
        %1926 = vmatpush1.bf16.msra.mxu0 0
        %1927 = vmatprep.subr.bf16.mxu0 0
        %1928 = vmatpush1.bf16.msra.mxu0 0
        %1929 = vmatprep.subr.bf16.mxu0 0
        %1930 = vmatpush1.bf16.msra.mxu0 0
        %1931 = vmatprep.subr.bf16.mxu0 0
        %1932 = vmatpush1.bf16.msra.mxu0 0
        %1933 = vmatprep.mubr.bf16.mxu0 0
        %1934 = vmatmul.mubr.bf16.gmra.mrb[0].mxu0 %v1836
        %v1935 = vpop.f32.mrb[0].mxu0
        %v1936 = vadd.f32 0.0, %v1935
        %v1937 = vpop.f32.mrb[0].mxu0
        %v1938 = vpop.f32.mrb[0].mxu0
        %v1939 = vadd.f32 0.0, %v1938
        %v1940 = vpop.f32.mrb[0].mxu0
        %1941 = vdwg.mxu0
        %v1942 = vld [vmem:[%s872] sm:$0x1]
        %v1944 = vlaneseq
        %v1945 = vshrl.u32 %v1944, 7
        %v1946 = vsub.s32 0, %v1945
        %v1947 = vrot.slane %v1942, %v1946
        %v1949 = vmul.f32 %v1936, %v1947
        %v1950 = vmul.f32 %v1939, %v1947
        %v1951 = vld [vmem:[%s875] sm:$0x1]
        %v1953 = vlaneseq
        %v1954 = vshrl.u32 %v1953, 7
        %v1955 = vsub.s32 0, %v1954
        %v1956 = vrot.slane %v1951, %v1955
        %v1958 = vadd.f32 %v1949, %v1956
        %v1959 = vadd.f32 %v1950, %v1956
        %v1960 = vmax.f32 %v1958, 0.0
        %v1961 = vmax.f32 %v1959, 0.0
        %v1962 = vpack.c.bf16 %v1961, %v1960
        %v1963 = vld [vmem:[%s699] sm:$0xf]
        %v1964 = vld [vmem:[%s699 + $0x4] sm:$0xf]
        %v1965 = vld [vmem:[%s699 + $0x8] sm:$0xf]
        %v1966 = vld [vmem:[%s699 + $0xc] sm:$0xf]
        %v1967 = vld [vmem:[%s699 + $0x10] sm:$0xf]
        %v1968 = vld [vmem:[%s699 + $0x14] sm:$0xf]
        %v1969 = vld [vmem:[%s707] sm:$0x1]
        %v1971 = vlaneseq
        %v1972 = vshrl.u32 %v1971, 7
        %v1973 = vsub.s32 0, %v1972
        %v1974 = vrot.slane %v1969, %v1973
        %v1982 = vunpack.c.l.b16 %v1963
        %v1983 = vunpack.c.l.b16 %v1964
        %v1984 = vunpack.c.l.b16 %v1965
        %v1985 = vunpack.c.l.b16 %v1966
        %v1986 = vunpack.c.l.b16 %v1967
        %v1987 = vunpack.c.l.b16 %v1968
        %v1988 = vpack.c.b16 %v1983, %v1982
        %v1989 = vpack.c.b16 %v1985, %v1984
        %v1990 = vpack.c.b16 %v1987, %v1986
        %vm1994 = vcmask 392192
        %v1996 = vsel %vm1994, %v1962, 0
        %1998 = vmatprep.subr.bf16.mxu0 0
        %1999 = vmatpush1.bf16.msra.mxu0 %v1988
        %2000 = vmatprep.subr.bf16.mxu0 0
        %2001 = vmatpush1.bf16.msra.mxu0 %v1989
        %2002 = vmatprep.subr.bf16.mxu0 0
        %2003 = vmatpush1.bf16.msra.mxu0 %v1990
        %2004 = vmatprep.subr.bf16.mxu0 0
        %2005 = vmatpush1.bf16.msra.mxu0 0
        %2006 = vmatprep.subr.bf16.mxu0 0
        %2007 = vmatpush1.bf16.msra.mxu0 0
        %2008 = vmatprep.subr.bf16.mxu0 0
        %2009 = vmatpush1.bf16.msra.mxu0 0
        %2010 = vmatprep.subr.bf16.mxu0 0
        %2011 = vmatpush1.bf16.msra.mxu0 0
        %2012 = vmatprep.subr.bf16.mxu0 0
        %2013 = vmatpush1.bf16.msra.mxu0 0
        %2014 = vmatprep.subr.bf16.mxu0 0
        %2015 = vmatpush1.bf16.msra.mxu0 0
        %2016 = vmatprep.subr.bf16.mxu0 0
        %2017 = vmatpush1.bf16.msra.mxu0 0
        %2018 = vmatprep.subr.bf16.mxu0 0
        %2019 = vmatpush1.bf16.msra.mxu0 0
        %2020 = vmatprep.subr.bf16.mxu0 0
        %2021 = vmatpush1.bf16.msra.mxu0 0
        %2022 = vmatprep.subr.bf16.mxu0 0
        %2023 = vmatpush1.bf16.msra.mxu0 0
        %2024 = vmatprep.subr.bf16.mxu0 0
        %2025 = vmatpush1.bf16.msra.mxu0 0
        %2026 = vmatprep.subr.bf16.mxu0 0
        %2027 = vmatpush1.bf16.msra.mxu0 0
        %2028 = vmatprep.subr.bf16.mxu0 0
        %2029 = vmatpush1.bf16.msra.mxu0 0
        %2030 = vmatprep.mubr.bf16.mxu0 0
        %2031 = vmatmul.mubr.bf16.gmra.mrb[0].mxu0 %v1996
        %v2032 = vpop.f32.mrb[0].mxu0
        %v2033 = vadd.f32 %v1974, %v2032
        %v2034 = vpop.f32.mrb[0].mxu0
        %v2035 = vpop.f32.mrb[0].mxu0
        %v2036 = vadd.f32 %v1974, %v2035
        %v2037 = vpop.f32.mrb[0].mxu0
        %2038 = vdwg.mxu0
        %2039 = vst [vmem:[%s884] sm:$0xff] %v2033
        %2040 = vst [vmem:[%s884 + $0x8] sm:$0xff] %v2036
        %v2041 = vld [vmem:[%s716] sm:$0xf]
        %v2042 = vld [vmem:[%s716 + $0x4] sm:$0xf]
        %v2043 = vld [vmem:[%s716 + $0x8] sm:$0xf]
        %v2044 = vld [vmem:[%s716 + $0xc] sm:$0xf]
        %v2045 = vld [vmem:[%s716 + $0x10] sm:$0xf]
        %v2046 = vld [vmem:[%s716 + $0x14] sm:$0xf]
        %v2047 = vld [vmem:[%s716 + $0x18] sm:$0xf]
        %v2048 = vld [vmem:[%s716 + $0x1c] sm:$0xf]
        %v2049 = vld [vmem:[%s716 + $0x20] sm:$0xf]
        %v2050 = vld [vmem:[%s716 + $0x24] sm:$0xf]
        %v2051 = vld [vmem:[%s716 + $0x28] sm:$0xf]
        %v2052 = vld [vmem:[%s716 + $0x2c] sm:$0xf]
        %v2053 = vld [vmem:[%s716 + $0x30] sm:$0xf]
        %v2054 = vld [vmem:[%s716 + $0x34] sm:$0xf]
        %v2055 = vld [vmem:[%s716 + $0x38] sm:$0xf]
        %v2056 = vld [vmem:[%s716 + $0x3c] sm:$0xf]
        %v2073 = vunpack.c.l.b16 %v2041
        %v2074 = vunpack.c.l.b16 %v2042
        %v2075 = vunpack.c.l.b16 %v2043
        %v2076 = vunpack.c.l.b16 %v2044
        %v2077 = vunpack.c.l.b16 %v2045
        %v2078 = vunpack.c.l.b16 %v2046
        %v2079 = vunpack.c.l.b16 %v2047
        %v2080 = vunpack.c.l.b16 %v2048
        %v2081 = vunpack.c.l.b16 %v2049
        %v2082 = vunpack.c.l.b16 %v2050
        %v2083 = vunpack.c.l.b16 %v2051
        %v2084 = vunpack.c.l.b16 %v2052
        %v2085 = vunpack.c.l.b16 %v2053
        %v2086 = vunpack.c.l.b16 %v2054
        %v2087 = vunpack.c.l.b16 %v2055
        %v2088 = vunpack.c.l.b16 %v2056
        %v2089 = vpack.c.b16 %v2074, %v2073
        %v2090 = vpack.c.b16 %v2076, %v2075
        %v2091 = vpack.c.b16 %v2078, %v2077
        %v2092 = vpack.c.b16 %v2080, %v2079
        %v2093 = vpack.c.b16 %v2082, %v2081
        %v2094 = vpack.c.b16 %v2084, %v2083
        %v2095 = vpack.c.b16 %v2086, %v2085
        %v2096 = vpack.c.b16 %v2088, %v2087
        %2105 = vmatprep.subr.bf16.mxu0 0
        %2106 = vmatpush1.bf16.msra.mxu0 %v2089
        %2107 = vmatprep.subr.bf16.mxu0 0
        %2108 = vmatpush1.bf16.msra.mxu0 %v2090
        %2109 = vmatprep.subr.bf16.mxu0 0
        %2110 = vmatpush1.bf16.msra.mxu0 %v2091
        %2111 = vmatprep.subr.bf16.mxu0 0
        %2112 = vmatpush1.bf16.msra.mxu0 %v2092
        %2113 = vmatprep.subr.bf16.mxu0 0
        %2114 = vmatpush1.bf16.msra.mxu0 %v2093
        %2115 = vmatprep.subr.bf16.mxu0 0
        %2116 = vmatpush1.bf16.msra.mxu0 %v2094
        %2117 = vmatprep.subr.bf16.mxu0 0
        %2118 = vmatpush1.bf16.msra.mxu0 %v2095
        %2119 = vmatprep.subr.bf16.mxu0 0
        %2120 = vmatpush1.bf16.msra.mxu0 %v2096
        %2121 = vmatprep.subr.bf16.mxu0 0
        %2122 = vmatpush1.bf16.msra.mxu0 0
        %2123 = vmatprep.subr.bf16.mxu0 0
        %2124 = vmatpush1.bf16.msra.mxu0 0
        %2125 = vmatprep.subr.bf16.mxu0 0
        %2126 = vmatpush1.bf16.msra.mxu0 0
        %2127 = vmatprep.subr.bf16.mxu0 0
        %2128 = vmatpush1.bf16.msra.mxu0 0
        %2129 = vmatprep.subr.bf16.mxu0 0
        %2130 = vmatpush1.bf16.msra.mxu0 0
        %2131 = vmatprep.subr.bf16.mxu0 0
        %2132 = vmatpush1.bf16.msra.mxu0 0
        %2133 = vmatprep.subr.bf16.mxu0 0
        %2134 = vmatpush1.bf16.msra.mxu0 0
        %2135 = vmatprep.subr.bf16.mxu0 0
        %2136 = vmatpush1.bf16.msra.mxu0 0
        %2137 = vmatprep.mubr.bf16.mxu0 0
        %2138 = vmatmul.mubr.bf16.gmra.mrb[0].mxu0 %v1836
        %v2139 = vpop.f32.mrb[0].mxu0
        %v2140 = vadd.f32 0.0, %v2139
        %v2141 = vpop.f32.mrb[0].mxu0
        %v2142 = vpop.f32.mrb[0].mxu0
        %v2143 = vadd.f32 0.0, %v2142
        %v2144 = vpop.f32.mrb[0].mxu0
        %2145 = vdwg.mxu0
        %v2146 = vld [vmem:[%s724] sm:$0x1]
        %v2148 = vlaneseq
        %v2149 = vshrl.u32 %v2148, 7
        %v2150 = vsub.s32 0, %v2149
        %v2151 = vrot.slane %v2146, %v2150
        %v2153 = vmul.f32 %v2140, %v2151
        %v2154 = vmul.f32 %v2143, %v2151
        %v2155 = vld [vmem:[%s732] sm:$0x1]
        %v2157 = vlaneseq
        %v2158 = vshrl.u32 %v2157, 7
        %v2159 = vsub.s32 0, %v2158
        %v2160 = vrot.slane %v2155, %v2159
        %v2162 = vadd.f32 %v2153, %v2160
        %v2163 = vadd.f32 %v2154, %v2160
        %v2164 = vmax.f32 %v2162, 0.0
        %v2165 = vmax.f32 %v2163, 0.0
        %v2166 = vpack.c.bf16 %v2165, %v2164
        %v2167 = vld [vmem:[%s741] sm:$0xff]
        %v2168 = vld [vmem:[%s741 + $0x8] sm:$0xff]
        %v2169 = vld [vmem:[%s741 + $0x10] sm:$0xff]
        %v2170 = vld [vmem:[%s741 + $0x18] sm:$0xff]
        %v2171 = vld [vmem:[%s741 + $0x20] sm:$0xff]
        %v2172 = vld [vmem:[%s741 + $0x28] sm:$0xff]
        %v2173 = vld [vmem:[%s741 + $0x30] sm:$0xff]
        %v2174 = vld [vmem:[%s741 + $0x38] sm:$0xff]
        %v2175 = vld [vmem:[%s741 + $0x40] sm:$0xff]
        %v2176 = vld [vmem:[%s741 + $0x48] sm:$0xff]
        %v2177 = vld [vmem:[%s741 + $0x50] sm:$0xff]
        %v2178 = vld [vmem:[%s741 + $0x58] sm:$0xff]
        %v2179 = vld [vmem:[%s741 + $0x60] sm:$0xff]
        %v2180 = vld [vmem:[%s741 + $0x68] sm:$0xff]
        %v2181 = vld [vmem:[%s741 + $0x70] sm:$0xff]
        %v2182 = vld [vmem:[%s741 + $0x78] sm:$0xff]
        %v2183 = vld [vmem:[%s879] sm:$0x3]
        %v2185 = vlaneseq
        %v2186 = vshrl.u32 %v2185, 7
        %v2187 = vsub.s32 0, %v2186
        %v2188 = vrot.slane %v2183, %v2187
        %v2189 = vlaneseq
        %v2190 = vshrl.u32 %v2189, 7
        %v2191 = vsub.s32 1, %v2190
        %v2192 = vrot.slane %v2183, %v2191
        %v2211 = vunpack.c.l.b16 %v2167
        %v2212 = vunpack.c.h.b16 %v2167
        %v2213 = vunpack.c.l.b16 %v2168
        %v2214 = vunpack.c.h.b16 %v2168
        %v2215 = vunpack.c.l.b16 %v2169
        %v2216 = vunpack.c.h.b16 %v2169
        %v2217 = vunpack.c.l.b16 %v2170
        %v2218 = vunpack.c.h.b16 %v2170
        %v2219 = vunpack.c.l.b16 %v2171
        %v2220 = vunpack.c.h.b16 %v2171
        %v2221 = vunpack.c.l.b16 %v2172
        %v2222 = vunpack.c.h.b16 %v2172
        %v2223 = vunpack.c.l.b16 %v2173
        %v2224 = vunpack.c.h.b16 %v2173
        %v2225 = vunpack.c.l.b16 %v2174
        %v2226 = vunpack.c.h.b16 %v2174
        %v2227 = vunpack.c.l.b16 %v2175
        %v2228 = vunpack.c.h.b16 %v2175
        %v2229 = vunpack.c.l.b16 %v2176
        %v2230 = vunpack.c.h.b16 %v2176
        %v2231 = vunpack.c.l.b16 %v2177
        %v2232 = vunpack.c.h.b16 %v2177
        %v2233 = vunpack.c.l.b16 %v2178
        %v2234 = vunpack.c.h.b16 %v2178
        %v2235 = vunpack.c.l.b16 %v2179
        %v2236 = vunpack.c.h.b16 %v2179
        %v2237 = vunpack.c.l.b16 %v2180
        %v2238 = vunpack.c.h.b16 %v2180
        %v2239 = vunpack.c.l.b16 %v2181
        %v2240 = vunpack.c.h.b16 %v2181
        %v2241 = vunpack.c.l.b16 %v2182
        %v2242 = vunpack.c.h.b16 %v2182
        %v2243 = vpack.c.b16 %v2213, %v2211
        %v2244 = vpack.c.b16 %v2214, %v2212
        %v2245 = vpack.c.b16 %v2217, %v2215
        %v2246 = vpack.c.b16 %v2218, %v2216
        %v2247 = vpack.c.b16 %v2221, %v2219
        %v2248 = vpack.c.b16 %v2222, %v2220
        %v2249 = vpack.c.b16 %v2225, %v2223
        %v2250 = vpack.c.b16 %v2226, %v2224
        %v2251 = vpack.c.b16 %v2229, %v2227
        %v2252 = vpack.c.b16 %v2230, %v2228
        %v2253 = vpack.c.b16 %v2233, %v2231
        %v2254 = vpack.c.b16 %v2234, %v2232
        %v2255 = vpack.c.b16 %v2237, %v2235
        %v2256 = vpack.c.b16 %v2238, %v2236
        %v2257 = vpack.c.b16 %v2241, %v2239
        %v2258 = vpack.c.b16 %v2242, %v2240
        %2275 = vmatprep.subr.bf16.mxu0 %v2244
        %2276 = vmatpush1.bf16.msra.mxu0 %v2243
        %2277 = vmatprep.subr.bf16.mxu0 %v2246
        %2278 = vmatpush1.bf16.msra.mxu0 %v2245
        %2279 = vmatprep.subr.bf16.mxu0 %v2248
        %2280 = vmatpush1.bf16.msra.mxu0 %v2247
        %2281 = vmatprep.subr.bf16.mxu0 %v2250
        %2282 = vmatpush1.bf16.msra.mxu0 %v2249
        %2283 = vmatprep.subr.bf16.mxu0 %v2252
        %2284 = vmatpush1.bf16.msra.mxu0 %v2251
        %2285 = vmatprep.subr.bf16.mxu0 %v2254
        %2286 = vmatpush1.bf16.msra.mxu0 %v2253
        %2287 = vmatprep.subr.bf16.mxu0 %v2256
        %2288 = vmatpush1.bf16.msra.mxu0 %v2255
        %2289 = vmatprep.subr.bf16.mxu0 %v2258
        %2290 = vmatpush1.bf16.msra.mxu0 %v2257
        %2291 = vmatprep.subr.bf16.mxu0 0
        %2292 = vmatpush1.bf16.msra.mxu0 0
        %2293 = vmatprep.subr.bf16.mxu0 0
        %2294 = vmatpush1.bf16.msra.mxu0 0
        %2295 = vmatprep.subr.bf16.mxu0 0
        %2296 = vmatpush1.bf16.msra.mxu0 0
        %2297 = vmatprep.subr.bf16.mxu0 0
        %2298 = vmatpush1.bf16.msra.mxu0 0
        %2299 = vmatprep.subr.bf16.mxu0 0
        %2300 = vmatpush1.bf16.msra.mxu0 0
        %2301 = vmatprep.subr.bf16.mxu0 0
        %2302 = vmatpush1.bf16.msra.mxu0 0
        %2303 = vmatprep.subr.bf16.mxu0 0
        %2304 = vmatpush1.bf16.msra.mxu0 0
        %2305 = vmatprep.subr.bf16.mxu0 0
        %2306 = vmatpush1.bf16.msra.mxu0 0
        %2307 = vmatprep.mubr.bf16.mxu0 0
        %2308 = vmatmul.mubr.bf16.gmra.mrb[0].mxu0 %v2166
        %v2309 = vpop.f32.mrb[0].mxu0
        %v2310 = vadd.f32 %v2188, %v2309
        %v2311 = vpop.f32.mrb[0].mxu0
        %v2312 = vadd.f32 %v2192, %v2311
        %v2313 = vpop.f32.mrb[0].mxu0
        %v2314 = vadd.f32 %v2188, %v2313
        %v2315 = vpop.f32.mrb[0].mxu0
        %v2316 = vadd.f32 %v2192, %v2315
        %2317 = vdwg.mxu0
        %2318 = vst [vmem:[%s889] sm:$0xff] %v2310
        %2319 = vst [vmem:[%s889 + $0x8] sm:$0xff] %v2312
        %2320 = vst [vmem:[%s889 + $0x10] sm:$0xff] %v2314
        %2321 = vst [vmem:[%s889 + $0x18] sm:$0xff] %v2316
        %p2322 = scmp.lt.s32.totalorder %s40, 3
        %s2323 = scalar_select %p2322, %s40, 3
        %s2324 = smul.addr %s2323, 2
        %s2325 = smul.addr %s2324, 8
        %s2326 = scalar_lea.vmem %s15, %s2325
        %p2327 = scmp.lt.s32.totalorder %s40, 3
        %s2328 = scalar_select %p2327, %s40, 3
        %s2329 = smul.addr %s2328, 4
        %s2330 = smul.addr %s2329, 8
        %s2331 = scalar_lea.vmem %s16, %s2330
        // Predicated region
        $region109: #{e2enet_forward.5} parent=79 // pred_check
          %p2332 = pneg %p443
        $region110: #{e2enet_forward.5} parent=79 // pred_check_branch
          %2334 = sbr.rel (%p2332) target = $region112
        $region111: #{e2enet_forward.5} parent=79 // pred_region
          _
        $region112: #{e2enet_forward.5} parent=79 // pred_fallthru
          _
        // Predicated region
        $region113: #{e2enet_forward.5} parent=79 // pred_check
          %p2335 = pneg %p469
        $region114: #{e2enet_forward.5} parent=79 // pred_check_branch
          %2337 = sbr.rel (%p2335) target = $region116
        $region115: #{e2enet_forward.5} parent=79 // pred_region
          _
        $region116: #{e2enet_forward.5} parent=79 // pred_fallthru
          _
      $region80: #{e2enet_forward.5} parent=5 // pred_fallthru
        _
      %p2338 = scmp.le.s32.totalorder 2, %s35
      // Predicated region
      $region117: #{e2enet_forward.5} parent=5 // pred_check
        %p2339 = pneg %p2338
      $region118: #{e2enet_forward.5} parent=5 // pred_check_branch
        %2341 = sbr.rel (%p2339) target = $region120
      $region119: #{e2enet_forward.5} parent=5 // pred_region
        %s2342 = ssub.s32 %s35, 2
        // Predicated region
        $region121: #{e2enet_forward.5} parent=119 // pred_check
          %p2343 = pneg %p449
        $region122: #{e2enet_forward.5} parent=119 // pred_check_branch
          %2345 = sbr.rel (%p2343) target = $region124
        $region123: #{e2enet_forward.5} parent=119 // pred_region
          %p2346 = scmp.lt.s32.totalorder %s41, 3
          %s2347 = scalar_select %p2346, %s41, 3
          %s2348 = smul.addr %s2347, 2
          %s2349 = smul.addr %s2348, 8
          %s2350 = scalar_lea.vmem %s15, %s2349
        $region124: #{e2enet_forward.5} parent=119 // pred_fallthru
          _
        // Predicated region
        $region125: #{e2enet_forward.5} parent=119 // pred_check
          %p2351 = pneg %p475
        $region126: #{e2enet_forward.5} parent=119 // pred_check_branch
          %2353 = sbr.rel (%p2351) target = $region128
        $region127: #{e2enet_forward.5} parent=119 // pred_region
          %p2354 = scmp.lt.s32.totalorder %s41, 3
          %s2355 = scalar_select %p2354, %s41, 3
          %s2356 = smul.addr %s2355, 4
          %s2357 = smul.addr %s2356, 8
          %s2358 = scalar_lea.vmem %s16, %s2357
        $region128: #{e2enet_forward.5} parent=119 // pred_fallthru
          _
      $region120: #{e2enet_forward.5} parent=5 // pred_fallthru
        _
    $region6: #{e2enet_forward.5} parent=1 // loop_footer
      %s39 = sadd.s32 1, %s35
    $region7: #{e2enet_forward.5} parent=1 // loop_footer_branch
      %34 = sbr.rel target = $region3
    $region8: #{e2enet_forward.5} parent=1 // loop_exit
      _
    %2359 = vsyncpa [#allocation3], 1
    %s2360 = scalar_lea.sflag [#allocation3], 1
    %2361 = vsyncpa %s2360, 1
    %2362 = vsyncpa [#allocation5], 1
    %s2363 = scalar_lea.sflag [#allocation5], 1
    %2364 = vsyncpa %s2363, 1
    %2365 = vsyncpa [#allocation8], 1
    %s2366 = scalar_lea.sflag [#allocation8], 1
    %2367 = vsyncpa %s2366, 1
    %2368 = vsyncpa [#allocation11], 1
    %s2369 = scalar_lea.sflag [#allocation11], 1
    %2370 = vsyncpa %s2369, 1

</llo_original>
